<compile_context>
chip_gen: v7x
topology: tpu7x:2x2x1
jax: 0.10.0
libtpu: 0.0.40
codegen_flags: <defaults>
</compile_context>

<pallas_src>
import jax
import jax.numpy as jnp
from jax.experimental import pallas as pl
from jax.experimental.pallas import tpu as pltpu


HIDDEN = 512  # hardwired in the PyTorch module: Mlp(..., [512, 512, 512], ...)


def _critic_kernel(s_ref, a_ref, w1_ref, w2_ref, w3_ref, wl_ref, b_ref, out_ref):
    # One grid step == G ensemble members.
    g_nets = w2_ref.shape[0]
    sd = s_ref.shape[1]
    q = out_ref.shape[-1]

    s = s_ref[...]                                # (B, SD) f32
    a = a_ref[...]                                # (B, AD) f32

    for g in range(g_nets):                       # static unroll over nets in this step
        w1 = w1_ref[g].astype(jnp.float32)        # (SD+AD, H)
        b = b_ref[g]                              # (4, H) f32 packed biases

        # Layer 1: fused concat -> s @ W1[:SD] + a @ W1[SD:] + b1
        h = (jnp.dot(s, w1[:sd, :], preferred_element_type=jnp.float32)
             + jnp.dot(a, w1[sd:, :], preferred_element_type=jnp.float32)
             + b[0:1, :])
        h = jnp.maximum(h, 0.0)

        # Layer 2
        h = jnp.dot(h, w2_ref[g].astype(jnp.float32),
                    preferred_element_type=jnp.float32) + b[1:2, :]
        h = jnp.maximum(h, 0.0)

        # Layer 3
        h = jnp.dot(h, w3_ref[g].astype(jnp.float32),
                    preferred_element_type=jnp.float32) + b[2:3, :]
        h = jnp.maximum(h, 0.0)

        # Last layer (no ReLU); its bias sits in lanes [0:Q] of packed row 3.
        out = jnp.dot(h, wl_ref[g].astype(jnp.float32),
                      preferred_element_type=jnp.float32) + b[3:4, :q]

        out_ref[g] = out                          # contiguous (B, Q) slab


def critic_forward(state, action, params):
    """Pallas forward of Critic: returns quantiles of shape (B, n_nets, n_quantiles)."""
    w1, w2, w3, wl, b_packed = params
    state = state.astype(jnp.float32)
    action = action.astype(jnp.float32)

    B, SD = state.shape
    _, AD = action.shape
    n_nets, H, _ = w2.shape
    Q = wl.shape[2]
    D = SD + AD
    assert w1.shape == (n_nets, D, H)
    assert Q <= H, "packed last-layer bias assumes n_quantiles <= HIDDEN"

    # Grid coarsening: 2 steps (one per v7x TensorCore), ceil(n_nets/2) nets each.
    num_steps = 2 if n_nets >= 2 else 1
    G = -(-n_nets // num_steps)
    n_pad = num_steps * G

    def pad_nets(x):
        if n_pad == n_nets:
            return x
        pad = [(0, n_pad - n_nets)] + [(0, 0)] * (x.ndim - 1)
        return jnp.pad(x, pad)

    w1p, w2p, w3p, wlp, bp = (pad_nets(x) for x in (w1, w2, w3, wl, b_packed))

    flops = 2 * B * n_pad * (D * H + 2 * H * H + H * Q)
    bytes_weights = n_pad * (D * H + 2 * H * H + H * Q) * 2   # bf16
    bytes_bias = n_pad * 4 * H * 4                            # f32
    bytes_io = B * D * 4 + n_pad * B * Q * 4                  # state/action DMA'd once
    cost = pl.CostEstimate(flops=flops, transcendentals=0,
                           bytes_accessed=bytes_weights + bytes_bias + bytes_io)

    out = pl.pallas_call(
        _critic_kernel,
        out_shape=jax.ShapeDtypeStruct((n_pad, B, Q), jnp.float32),
        grid_spec=pltpu.PrefetchScalarGridSpec(
            num_scalar_prefetch=0,
            grid=(num_steps,),
            in_specs=[
                pl.BlockSpec((B, SD), lambda n: (0, 0)),        # state (fetched once)
                pl.BlockSpec((B, AD), lambda n: (0, 0)),        # action (fetched once)
                pl.BlockSpec((G, D, H), lambda n: (n, 0, 0)),   # W1 (merged, bf16)
                pl.BlockSpec((G, H, H), lambda n: (n, 0, 0)),   # W2
                pl.BlockSpec((G, H, H), lambda n: (n, 0, 0)),   # W3
                pl.BlockSpec((G, H, Q), lambda n: (n, 0, 0)),   # W_last
                pl.BlockSpec((G, 4, H), lambda n: (n, 0, 0)),   # packed biases (f32)
            ],
            out_specs=pl.BlockSpec((G, B, Q), lambda n: (n, 0, 0)),
        ),
        compiler_params=pltpu.CompilerParams(
            dimension_semantics=("parallel",),
            vmem_limit_bytes=32 * 1024 * 1024),
        cost_estimate=cost,
    )(state, action, w1p, w2p, w3p, wlp, bp)

    # Drop padded nets and arrange to (B, n_nets, Q) (tiny wrapper-side transpose).
    return jnp.transpose(out[:n_nets], (1, 0, 2))


def init_critic_params(key, state_dim, action_dim, n_nets, n_quantiles):
    """Synthetic init mirroring nn.Linear's U(-1/sqrt(fan_in), +1/sqrt(fan_in)).

    Weights are stored in bf16 (HBM-streamed), biases in f32 (tiny), and all
    four bias vectors are packed into one (n_nets, 4, H) array.
    """
    D = state_dim + action_dim
    H = HIDDEN
    Q = n_quantiles
    assert Q <= H, "packed last-layer bias assumes n_quantiles <= HIDDEN"
    keys = jax.random.split(key, 8)

    def u(k, shape, fan_in, dtype):
        bound = 1.0 / (fan_in ** 0.5)
        x = jax.random.uniform(k, shape, dtype=jnp.float32,
                               minval=-bound, maxval=bound)
        return x.astype(dtype)

    w1 = u(keys[0], (n_nets, D, H), D, jnp.bfloat16)      # fc0
    b1 = u(keys[1], (n_nets, H), D, jnp.float32)
    w2 = u(keys[2], (n_nets, H, H), H, jnp.bfloat16)      # fc1
    b2 = u(keys[3], (n_nets, H), H, jnp.float32)
    w3 = u(keys[4], (n_nets, H, H), H, jnp.bfloat16)      # fc2
    b3 = u(keys[5], (n_nets, H), H, jnp.float32)
    wl = u(keys[6], (n_nets, H, Q), H, jnp.bfloat16)      # last_fc
    bl = u(keys[7], (n_nets, Q), H, jnp.float32)

    bl_pad = jnp.zeros((n_nets, H), jnp.float32).at[:, :Q].set(bl)
    b_packed = jnp.stack([b1, b2, b3, bl_pad], axis=1)    # (n_nets, 4, H)

    return (w1, w2, w3, wl, b_packed)


def critic_reference(state, action, params):
    """Pure-JAX f32 reference of the PyTorch forward (same bf16 weight values)."""
    w1, w2, w3, wl, b = params
    n_nets = w2.shape[0]
    Q = wl.shape[2]
    sa = jnp.concatenate([state, action], axis=1).astype(jnp.float32)
    outs = []
    for n in range(n_nets):
        h = jnp.maximum(sa @ w1[n].astype(jnp.float32) + b[n, 0], 0.0)
        h = jnp.maximum(h @ w2[n].astype(jnp.float32) + b[n, 1], 0.0)
        h = jnp.maximum(h @ w3[n].astype(jnp.float32) + b[n, 2], 0.0)
        outs.append(h @ wl[n].astype(jnp.float32) + b[n, 3, :Q])
    return jnp.stack(outs, axis=1)                        # (B, n_nets, Q)


if __name__ == "__main__":
    # Small shapes consistent with the module (TQC defaults: 25 quantiles, 5 nets).
    batch = 2
    state_dim = 16
    action_dim = 4
    config = {"n_quantiles": 25, "n_nets": 5}

    key = jax.random.PRNGKey(0)
    k_state, k_action, k_params = jax.random.split(key, 3)
    state = jax.random.normal(k_state, (batch, state_dim), dtype=jnp.float32)
    action = jax.random.normal(k_action, (batch, action_dim), dtype=jnp.float32)
    params = init_critic_params(
        k_params, state_dim, action_dim, config["n_nets"], config["n_quantiles"])

    fwd = jax.jit(critic_forward)
    quantiles = fwd(state, action, params)
    quantiles = jax.block_until_ready(quantiles)

    assert quantiles.shape == (batch, config["n_nets"], config["n_quantiles"])

    ref = critic_reference(state, action, params)
    # f32 activations everywhere; only MXU multi-pass rounding remains.
    assert jnp.allclose(quantiles, ref, atol=1e-3, rtol=1e-3), "mismatch vs reference"

    print("KERNEL_OK")
</pallas_src>

<mosaic_0001>
module attributes {stable_mosaic.version = 11 : i64} {
  func.func @_critic_kernel(%arg0: i32, %arg1: memref<2x16xf32, #tpu.memory_space<vmem>>, %arg2: memref<2x4xf32, #tpu.memory_space<vmem>>, %arg3: memref<3x20x512xbf16, #tpu.memory_space<vmem>>, %arg4: memref<3x512x512xbf16, #tpu.memory_space<vmem>>, %arg5: memref<3x512x512xbf16, #tpu.memory_space<vmem>>, %arg6: memref<3x512x25xbf16, #tpu.memory_space<vmem>>, %arg7: memref<3x4x512xf32, #tpu.memory_space<vmem>>, %arg8: memref<3x2x25xf32, #tpu.memory_space<vmem>>) attributes {dimension_semantics = [#tpu.dimension_semantics<parallel>], iteration_bounds = array<i64: 2>, scalar_prefetch = 0 : i64, scratch_operands = 0 : i64, tpu.core_type = #tpu.core_type<tc>, window_params = [{pipeline_mode = #tpu.pipeline_mode<synchronous>, transform_indices = @transform_0, window_bounds = array<i64: 2, 16>}, {pipeline_mode = #tpu.pipeline_mode<synchronous>, transform_indices = @transform_1, window_bounds = array<i64: 2, 4>}, {transform_indices = @transform_2, window_bounds = array<i64: 3, 20, 512>}, {transform_indices = @transform_3, window_bounds = array<i64: 3, 512, 512>}, {transform_indices = @transform_4, window_bounds = array<i64: 3, 512, 512>}, {transform_indices = @transform_5, window_bounds = array<i64: 3, 512, 25>}, {transform_indices = @transform_6, window_bounds = array<i64: 3, 4, 512>}, {transform_indices = @transform_7, window_bounds = array<i64: 3, 2, 25>}]} {
    %c0 = arith.constant 0 : index
    %c0_0 = arith.constant 0 : index
    %0 = vector.load %arg1[%c0, %c0_0] : memref<2x16xf32, #tpu.memory_space<vmem>>, vector<2x16xf32>
    %c0_1 = arith.constant 0 : index
    %c0_2 = arith.constant 0 : index
    %1 = vector.load %arg2[%c0_1, %c0_2] : memref<2x4xf32, #tpu.memory_space<vmem>>, vector<2x4xf32>
    %c0_3 = arith.constant 0 : index
    %c0_4 = arith.constant 0 : index
    %c0_5 = arith.constant 0 : index
    %2 = vector.load %arg3[%c0_3, %c0_4, %c0_5] : memref<3x20x512xbf16, #tpu.memory_space<vmem>>, vector<1x20x512xbf16>
    %3 = vector.shape_cast %2 : vector<1x20x512xbf16> to vector<20x512xbf16>
    %4 = arith.extf %3 : vector<20x512xbf16> to vector<20x512xf32>
    %c0_6 = arith.constant 0 : index
    %c0_7 = arith.constant 0 : index
    %c0_8 = arith.constant 0 : index
    %5 = vector.load %arg7[%c0_6, %c0_7, %c0_8] : memref<3x4x512xf32, #tpu.memory_space<vmem>>, vector<1x4x512xf32>
    %6 = vector.shape_cast %5 : vector<1x4x512xf32> to vector<4x512xf32>
    %7 = vector.extract_strided_slice %4 {offsets = [0, 0], sizes = [16, 512], strides = [1, 1]} : vector<20x512xf32> to vector<16x512xf32>
    %cst = arith.constant dense<0.000000e+00> : vector<2x512xf32>
    %8 = tpu.matmul %0, %7, %cst {dimension_numbers = #tpu.dot_dimension_numbers<[1], [0], [0], [1], [0, 0, 1, 1], [], []>} : vector<2x16xf32>, vector<16x512xf32>, vector<2x512xf32> -> vector<2x512xf32>
    %9 = vector.extract_strided_slice %4 {offsets = [16, 0], sizes = [4, 512], strides = [1, 1]} : vector<20x512xf32> to vector<4x512xf32>
    %cst_9 = arith.constant dense<0.000000e+00> : vector<2x512xf32>
    %10 = tpu.matmul %1, %9, %cst_9 {dimension_numbers = #tpu.dot_dimension_numbers<[1], [0], [0], [1], [0, 0, 1, 1], [], []>} : vector<2x4xf32>, vector<4x512xf32>, vector<2x512xf32> -> vector<2x512xf32>
    %11 = arith.addf %8, %10 : vector<2x512xf32>
    %12 = vector.extract_strided_slice %6 {offsets = [0, 0], sizes = [1, 512], strides = [1, 1]} : vector<4x512xf32> to vector<1x512xf32>
    %13 = vector.broadcast %12 : vector<1x512xf32> to vector<2x512xf32>
    %14 = arith.addf %11, %13 : vector<2x512xf32>
    %cst_10 = arith.constant 0.000000e+00 : f32
    %15 = vector.broadcast %cst_10 : f32 to vector<2x512xf32>
    %16 = arith.maximumf %14, %15 : vector<2x512xf32>
    %c0_11 = arith.constant 0 : index
    %c0_12 = arith.constant 0 : index
    %c0_13 = arith.constant 0 : index
    %17 = vector.load %arg4[%c0_11, %c0_12, %c0_13] : memref<3x512x512xbf16, #tpu.memory_space<vmem>>, vector<1x512x512xbf16>
    %18 = vector.shape_cast %17 : vector<1x512x512xbf16> to vector<512x512xbf16>
    %19 = arith.extf %18 : vector<512x512xbf16> to vector<512x512xf32>
    %cst_14 = arith.constant dense<0.000000e+00> : vector<2x512xf32>
    %20 = tpu.matmul %16, %19, %cst_14 {dimension_numbers = #tpu.dot_dimension_numbers<[1], [0], [0], [1], [0, 0, 1, 1], [], []>} : vector<2x512xf32>, vector<512x512xf32>, vector<2x512xf32> -> vector<2x512xf32>
    %21 = vector.extract_strided_slice %6 {offsets = [1, 0], sizes = [1, 512], strides = [1, 1]} : vector<4x512xf32> to vector<1x512xf32>
    %22 = vector.broadcast %21 : vector<1x512xf32> to vector<2x512xf32>
    %23 = arith.addf %20, %22 : vector<2x512xf32>
    %cst_15 = arith.constant 0.000000e+00 : f32
    %24 = vector.broadcast %cst_15 : f32 to vector<2x512xf32>
    %25 = arith.maximumf %23, %24 : vector<2x512xf32>
    %c0_16 = arith.constant 0 : index
    %c0_17 = arith.constant 0 : index
    %c0_18 = arith.constant 0 : index
    %26 = vector.load %arg5[%c0_16, %c0_17, %c0_18] : memref<3x512x512xbf16, #tpu.memory_space<vmem>>, vector<1x512x512xbf16>
    %27 = vector.shape_cast %26 : vector<1x512x512xbf16> to vector<512x512xbf16>
    %28 = arith.extf %27 : vector<512x512xbf16> to vector<512x512xf32>
    %cst_19 = arith.constant dense<0.000000e+00> : vector<2x512xf32>
    %29 = tpu.matmul %25, %28, %cst_19 {dimension_numbers = #tpu.dot_dimension_numbers<[1], [0], [0], [1], [0, 0, 1, 1], [], []>} : vector<2x512xf32>, vector<512x512xf32>, vector<2x512xf32> -> vector<2x512xf32>
    %30 = vector.extract_strided_slice %6 {offsets = [2, 0], sizes = [1, 512], strides = [1, 1]} : vector<4x512xf32> to vector<1x512xf32>
    %31 = vector.broadcast %30 : vector<1x512xf32> to vector<2x512xf32>
    %32 = arith.addf %29, %31 : vector<2x512xf32>
    %cst_20 = arith.constant 0.000000e+00 : f32
    %33 = vector.broadcast %cst_20 : f32 to vector<2x512xf32>
    %34 = arith.maximumf %32, %33 : vector<2x512xf32>
    %c0_21 = arith.constant 0 : index
    %c0_22 = arith.constant 0 : index
    %c0_23 = arith.constant 0 : index
    %35 = vector.load %arg6[%c0_21, %c0_22, %c0_23] : memref<3x512x25xbf16, #tpu.memory_space<vmem>>, vector<1x512x25xbf16>
    %36 = vector.shape_cast %35 : vector<1x512x25xbf16> to vector<512x25xbf16>
    %37 = arith.extf %36 : vector<512x25xbf16> to vector<512x25xf32>
    %cst_24 = arith.constant dense<0.000000e+00> : vector<2x25xf32>
    %38 = tpu.matmul %34, %37, %cst_24 {dimension_numbers = #tpu.dot_dimension_numbers<[1], [0], [0], [1], [0, 0, 1, 1], [], []>} : vector<2x512xf32>, vector<512x25xf32>, vector<2x25xf32> -> vector<2x25xf32>
    %39 = vector.extract_strided_slice %6 {offsets = [3, 0], sizes = [1, 25], strides = [1, 1]} : vector<4x512xf32> to vector<1x25xf32>
    %40 = vector.broadcast %39 : vector<1x25xf32> to vector<2x25xf32>
    %41 = arith.addf %38, %40 : vector<2x25xf32>
    %c0_25 = arith.constant 0 : index
    %c0_26 = arith.constant 0 : index
    %c0_27 = arith.constant 0 : index
    %42 = vector.load %arg8[%c0_25, %c0_26, %c0_27] : memref<3x2x25xf32, #tpu.memory_space<vmem>>, vector<1x2x25xf32>
    %43 = vector.shape_cast %42 : vector<1x2x25xf32> to vector<2x25xf32>
    %44 = vector.shape_cast %41 : vector<2x25xf32> to vector<1x2x25xf32>
    tpu.vector_store %arg8[%c0_25, %c0_26, %c0_27], %44 {strides = array<i32>} : memref<3x2x25xf32, #tpu.memory_space<vmem>>, vector<1x2x25xf32>,
    %c1 = arith.constant 1 : index
    %c0_28 = arith.constant 0 : index
    %c0_29 = arith.constant 0 : index
    %45 = vector.load %arg3[%c1, %c0_28, %c0_29] : memref<3x20x512xbf16, #tpu.memory_space<vmem>>, vector<1x20x512xbf16>
    %46 = vector.shape_cast %45 : vector<1x20x512xbf16> to vector<20x512xbf16>
    %47 = arith.extf %46 : vector<20x512xbf16> to vector<20x512xf32>
    %c1_30 = arith.constant 1 : index
    %c0_31 = arith.constant 0 : index
    %c0_32 = arith.constant 0 : index
    %48 = vector.load %arg7[%c1_30, %c0_31, %c0_32] : memref<3x4x512xf32, #tpu.memory_space<vmem>>, vector<1x4x512xf32>
    %49 = vector.shape_cast %48 : vector<1x4x512xf32> to vector<4x512xf32>
    %50 = vector.extract_strided_slice %47 {offsets = [0, 0], sizes = [16, 512], strides = [1, 1]} : vector<20x512xf32> to vector<16x512xf32>
    %cst_33 = arith.constant dense<0.000000e+00> : vector<2x512xf32>
    %51 = tpu.matmul %0, %50, %cst_33 {dimension_numbers = #tpu.dot_dimension_numbers<[1], [0], [0], [1], [0, 0, 1, 1], [], []>} : vector<2x16xf32>, vector<16x512xf32>, vector<2x512xf32> -> vector<2x512xf32>
    %52 = vector.extract_strided_slice %47 {offsets = [16, 0], sizes = [4, 512], strides = [1, 1]} : vector<20x512xf32> to vector<4x512xf32>
    %cst_34 = arith.constant dense<0.000000e+00> : vector<2x512xf32>
    %53 = tpu.matmul %1, %52, %cst_34 {dimension_numbers = #tpu.dot_dimension_numbers<[1], [0], [0], [1], [0, 0, 1, 1], [], []>} : vector<2x4xf32>, vector<4x512xf32>, vector<2x512xf32> -> vector<2x512xf32>
    %54 = arith.addf %51, %53 : vector<2x512xf32>
    %55 = vector.extract_strided_slice %49 {offsets = [0, 0], sizes = [1, 512], strides = [1, 1]} : vector<4x512xf32> to vector<1x512xf32>
    %56 = vector.broadcast %55 : vector<1x512xf32> to vector<2x512xf32>
    %57 = arith.addf %54, %56 : vector<2x512xf32>
    %cst_35 = arith.constant 0.000000e+00 : f32
    %58 = vector.broadcast %cst_35 : f32 to vector<2x512xf32>
    %59 = arith.maximumf %57, %58 : vector<2x512xf32>
    %c1_36 = arith.constant 1 : index
    %c0_37 = arith.constant 0 : index
    %c0_38 = arith.constant 0 : index
    %60 = vector.load %arg4[%c1_36, %c0_37, %c0_38] : memref<3x512x512xbf16, #tpu.memory_space<vmem>>, vector<1x512x512xbf16>
    %61 = vector.shape_cast %60 : vector<1x512x512xbf16> to vector<512x512xbf16>
    %62 = arith.extf %61 : vector<512x512xbf16> to vector<512x512xf32>
    %cst_39 = arith.constant dense<0.000000e+00> : vector<2x512xf32>
    %63 = tpu.matmul %59, %62, %cst_39 {dimension_numbers = #tpu.dot_dimension_numbers<[1], [0], [0], [1], [0, 0, 1, 1], [], []>} : vector<2x512xf32>, vector<512x512xf32>, vector<2x512xf32> -> vector<2x512xf32>
    %64 = vector.extract_strided_slice %49 {offsets = [1, 0], sizes = [1, 512], strides = [1, 1]} : vector<4x512xf32> to vector<1x512xf32>
    %65 = vector.broadcast %64 : vector<1x512xf32> to vector<2x512xf32>
    %66 = arith.addf %63, %65 : vector<2x512xf32>
    %cst_40 = arith.constant 0.000000e+00 : f32
    %67 = vector.broadcast %cst_40 : f32 to vector<2x512xf32>
    %68 = arith.maximumf %66, %67 : vector<2x512xf32>
    %c1_41 = arith.constant 1 : index
    %c0_42 = arith.constant 0 : index
    %c0_43 = arith.constant 0 : index
    %69 = vector.load %arg5[%c1_41, %c0_42, %c0_43] : memref<3x512x512xbf16, #tpu.memory_space<vmem>>, vector<1x512x512xbf16>
    %70 = vector.shape_cast %69 : vector<1x512x512xbf16> to vector<512x512xbf16>
    %71 = arith.extf %70 : vector<512x512xbf16> to vector<512x512xf32>
    %cst_44 = arith.constant dense<0.000000e+00> : vector<2x512xf32>
    %72 = tpu.matmul %68, %71, %cst_44 {dimension_numbers = #tpu.dot_dimension_numbers<[1], [0], [0], [1], [0, 0, 1, 1], [], []>} : vector<2x512xf32>, vector<512x512xf32>, vector<2x512xf32> -> vector<2x512xf32>
    %73 = vector.extract_strided_slice %49 {offsets = [2, 0], sizes = [1, 512], strides = [1, 1]} : vector<4x512xf32> to vector<1x512xf32>
    %74 = vector.broadcast %73 : vector<1x512xf32> to vector<2x512xf32>
    %75 = arith.addf %72, %74 : vector<2x512xf32>
    %cst_45 = arith.constant 0.000000e+00 : f32
    %76 = vector.broadcast %cst_45 : f32 to vector<2x512xf32>
    %77 = arith.maximumf %75, %76 : vector<2x512xf32>
    %c1_46 = arith.constant 1 : index
    %c0_47 = arith.constant 0 : index
    %c0_48 = arith.constant 0 : index
    %78 = vector.load %arg6[%c1_46, %c0_47, %c0_48] : memref<3x512x25xbf16, #tpu.memory_space<vmem>>, vector<1x512x25xbf16>
    %79 = vector.shape_cast %78 : vector<1x512x25xbf16> to vector<512x25xbf16>
    %80 = arith.extf %79 : vector<512x25xbf16> to vector<512x25xf32>
    %cst_49 = arith.constant dense<0.000000e+00> : vector<2x25xf32>
    %81 = tpu.matmul %77, %80, %cst_49 {dimension_numbers = #tpu.dot_dimension_numbers<[1], [0], [0], [1], [0, 0, 1, 1], [], []>} : vector<2x512xf32>, vector<512x25xf32>, vector<2x25xf32> -> vector<2x25xf32>
    %82 = vector.extract_strided_slice %49 {offsets = [3, 0], sizes = [1, 25], strides = [1, 1]} : vector<4x512xf32> to vector<1x25xf32>
    %83 = vector.broadcast %82 : vector<1x25xf32> to vector<2x25xf32>
    %84 = arith.addf %81, %83 : vector<2x25xf32>
    %c1_50 = arith.constant 1 : index
    %c0_51 = arith.constant 0 : index
    %c0_52 = arith.constant 0 : index
    %85 = vector.load %arg8[%c1_50, %c0_51, %c0_52] : memref<3x2x25xf32, #tpu.memory_space<vmem>>, vector<1x2x25xf32>
    %86 = vector.shape_cast %85 : vector<1x2x25xf32> to vector<2x25xf32>
    %87 = vector.shape_cast %84 : vector<2x25xf32> to vector<1x2x25xf32>
    tpu.vector_store %arg8[%c1_50, %c0_51, %c0_52], %87 {strides = array<i32>} : memref<3x2x25xf32, #tpu.memory_space<vmem>>, vector<1x2x25xf32>,
    %c2 = arith.constant 2 : index
    %c0_53 = arith.constant 0 : index
    %c0_54 = arith.constant 0 : index
    %88 = vector.load %arg3[%c2, %c0_53, %c0_54] : memref<3x20x512xbf16, #tpu.memory_space<vmem>>, vector<1x20x512xbf16>
    %89 = vector.shape_cast %88 : vector<1x20x512xbf16> to vector<20x512xbf16>
    %90 = arith.extf %89 : vector<20x512xbf16> to vector<20x512xf32>
    %c2_55 = arith.constant 2 : index
    %c0_56 = arith.constant 0 : index
    %c0_57 = arith.constant 0 : index
    %91 = vector.load %arg7[%c2_55, %c0_56, %c0_57] : memref<3x4x512xf32, #tpu.memory_space<vmem>>, vector<1x4x512xf32>
    %92 = vector.shape_cast %91 : vector<1x4x512xf32> to vector<4x512xf32>
    %93 = vector.extract_strided_slice %90 {offsets = [0, 0], sizes = [16, 512], strides = [1, 1]} : vector<20x512xf32> to vector<16x512xf32>
    %cst_58 = arith.constant dense<0.000000e+00> : vector<2x512xf32>
    %94 = tpu.matmul %0, %93, %cst_58 {dimension_numbers = #tpu.dot_dimension_numbers<[1], [0], [0], [1], [0, 0, 1, 1], [], []>} : vector<2x16xf32>, vector<16x512xf32>, vector<2x512xf32> -> vector<2x512xf32>
    %95 = vector.extract_strided_slice %90 {offsets = [16, 0], sizes = [4, 512], strides = [1, 1]} : vector<20x512xf32> to vector<4x512xf32>
    %cst_59 = arith.constant dense<0.000000e+00> : vector<2x512xf32>
    %96 = tpu.matmul %1, %95, %cst_59 {dimension_numbers = #tpu.dot_dimension_numbers<[1], [0], [0], [1], [0, 0, 1, 1], [], []>} : vector<2x4xf32>, vector<4x512xf32>, vector<2x512xf32> -> vector<2x512xf32>
    %97 = arith.addf %94, %96 : vector<2x512xf32>
    %98 = vector.extract_strided_slice %92 {offsets = [0, 0], sizes = [1, 512], strides = [1, 1]} : vector<4x512xf32> to vector<1x512xf32>
    %99 = vector.broadcast %98 : vector<1x512xf32> to vector<2x512xf32>
    %100 = arith.addf %97, %99 : vector<2x512xf32>
    %cst_60 = arith.constant 0.000000e+00 : f32
    %101 = vector.broadcast %cst_60 : f32 to vector<2x512xf32>
    %102 = arith.maximumf %100, %101 : vector<2x512xf32>
    %c2_61 = arith.constant 2 : index
    %c0_62 = arith.constant 0 : index
    %c0_63 = arith.constant 0 : index
    %103 = vector.load %arg4[%c2_61, %c0_62, %c0_63] : memref<3x512x512xbf16, #tpu.memory_space<vmem>>, vector<1x512x512xbf16>
    %104 = vector.shape_cast %103 : vector<1x512x512xbf16> to vector<512x512xbf16>
    %105 = arith.extf %104 : vector<512x512xbf16> to vector<512x512xf32>
    %cst_64 = arith.constant dense<0.000000e+00> : vector<2x512xf32>
    %106 = tpu.matmul %102, %105, %cst_64 {dimension_numbers = #tpu.dot_dimension_numbers<[1], [0], [0], [1], [0, 0, 1, 1], [], []>} : vector<2x512xf32>, vector<512x512xf32>, vector<2x512xf32> -> vector<2x512xf32>
    %107 = vector.extract_strided_slice %92 {offsets = [1, 0], sizes = [1, 512], strides = [1, 1]} : vector<4x512xf32> to vector<1x512xf32>
    %108 = vector.broadcast %107 : vector<1x512xf32> to vector<2x512xf32>
    %109 = arith.addf %106, %108 : vector<2x512xf32>
    %cst_65 = arith.constant 0.000000e+00 : f32
    %110 = vector.broadcast %cst_65 : f32 to vector<2x512xf32>
    %111 = arith.maximumf %109, %110 : vector<2x512xf32>
    %c2_66 = arith.constant 2 : index
    %c0_67 = arith.constant 0 : index
    %c0_68 = arith.constant 0 : index
    %112 = vector.load %arg5[%c2_66, %c0_67, %c0_68] : memref<3x512x512xbf16, #tpu.memory_space<vmem>>, vector<1x512x512xbf16>
    %113 = vector.shape_cast %112 : vector<1x512x512xbf16> to vector<512x512xbf16>
    %114 = arith.extf %113 : vector<512x512xbf16> to vector<512x512xf32>
    %cst_69 = arith.constant dense<0.000000e+00> : vector<2x512xf32>
    %115 = tpu.matmul %111, %114, %cst_69 {dimension_numbers = #tpu.dot_dimension_numbers<[1], [0], [0], [1], [0, 0, 1, 1], [], []>} : vector<2x512xf32>, vector<512x512xf32>, vector<2x512xf32> -> vector<2x512xf32>
    %116 = vector.extract_strided_slice %92 {offsets = [2, 0], sizes = [1, 512], strides = [1, 1]} : vector<4x512xf32> to vector<1x512xf32>
    %117 = vector.broadcast %116 : vector<1x512xf32> to vector<2x512xf32>
    %118 = arith.addf %115, %117 : vector<2x512xf32>
    %cst_70 = arith.constant 0.000000e+00 : f32
    %119 = vector.broadcast %cst_70 : f32 to vector<2x512xf32>
    %120 = arith.maximumf %118, %119 : vector<2x512xf32>
    %c2_71 = arith.constant 2 : index
    %c0_72 = arith.constant 0 : index
    %c0_73 = arith.constant 0 : index
    %121 = vector.load %arg6[%c2_71, %c0_72, %c0_73] : memref<3x512x25xbf16, #tpu.memory_space<vmem>>, vector<1x512x25xbf16>
    %122 = vector.shape_cast %121 : vector<1x512x25xbf16> to vector<512x25xbf16>
    %123 = arith.extf %122 : vector<512x25xbf16> to vector<512x25xf32>
    %cst_74 = arith.constant dense<0.000000e+00> : vector<2x25xf32>
    %124 = tpu.matmul %120, %123, %cst_74 {dimension_numbers = #tpu.dot_dimension_numbers<[1], [0], [0], [1], [0, 0, 1, 1], [], []>} : vector<2x512xf32>, vector<512x25xf32>, vector<2x25xf32> -> vector<2x25xf32>
    %125 = vector.extract_strided_slice %92 {offsets = [3, 0], sizes = [1, 25], strides = [1, 1]} : vector<4x512xf32> to vector<1x25xf32>
    %126 = vector.broadcast %125 : vector<1x25xf32> to vector<2x25xf32>
    %127 = arith.addf %124, %126 : vector<2x25xf32>
    %c2_75 = arith.constant 2 : index
    %c0_76 = arith.constant 0 : index
    %c0_77 = arith.constant 0 : index
    %128 = vector.load %arg8[%c2_75, %c0_76, %c0_77] : memref<3x2x25xf32, #tpu.memory_space<vmem>>, vector<1x2x25xf32>
    %129 = vector.shape_cast %128 : vector<1x2x25xf32> to vector<2x25xf32>
    %130 = vector.shape_cast %127 : vector<2x25xf32> to vector<1x2x25xf32>
    tpu.vector_store %arg8[%c2_75, %c0_76, %c0_77], %130 {strides = array<i32>} : memref<3x2x25xf32, #tpu.memory_space<vmem>>, vector<1x2x25xf32>,
    return
  }
  func.func @transform_0(%arg0: i32) -> (i32, i32) {
    %c0_i32 = arith.constant 0 : i32
    %c0_i32_0 = arith.constant 0 : i32
    %c0_i32_1 = arith.constant 0 : i32
    return %c0_i32, %c0_i32_0 : i32, i32
  }
  func.func @transform_1(%arg0: i32) -> (i32, i32) {
    %c0_i32 = arith.constant 0 : i32
    %c0_i32_0 = arith.constant 0 : i32
    %c0_i32_1 = arith.constant 0 : i32
    return %c0_i32, %c0_i32_0 : i32, i32
  }
  func.func @transform_2(%arg0: i32) -> (i32, i32, i32) {
    %c0_i32 = arith.constant 0 : i32
    %c0_i32_0 = arith.constant 0 : i32
    %c0_i32_1 = arith.constant 0 : i32
    return %arg0, %c0_i32, %c0_i32_0 : i32, i32, i32
  }
  func.func @transform_3(%arg0: i32) -> (i32, i32, i32) {
    %c0_i32 = arith.constant 0 : i32
    %c0_i32_0 = arith.constant 0 : i32
    %c0_i32_1 = arith.constant 0 : i32
    return %arg0, %c0_i32, %c0_i32_0 : i32, i32, i32
  }
  func.func @transform_4(%arg0: i32) -> (i32, i32, i32) {
    %c0_i32 = arith.constant 0 : i32
    %c0_i32_0 = arith.constant 0 : i32
    %c0_i32_1 = arith.constant 0 : i32
    return %arg0, %c0_i32, %c0_i32_0 : i32, i32, i32
  }
  func.func @transform_5(%arg0: i32) -> (i32, i32, i32) {
    %c0_i32 = arith.constant 0 : i32
    %c0_i32_0 = arith.constant 0 : i32
    %c0_i32_1 = arith.constant 0 : i32
    return %arg0, %c0_i32, %c0_i32_0 : i32, i32, i32
  }
  func.func @transform_6(%arg0: i32) -> (i32, i32, i32) {
    %c0_i32 = arith.constant 0 : i32
    %c0_i32_0 = arith.constant 0 : i32
    %c0_i32_1 = arith.constant 0 : i32
    return %arg0, %c0_i32, %c0_i32_0 : i32, i32, i32
  }
  func.func @transform_7(%arg0: i32) -> (i32, i32, i32) {
    %c0_i32 = arith.constant 0 : i32
    %c0_i32_0 = arith.constant 0 : i32
    %c0_i32_1 = arith.constant 0 : i32
    return %arg0, %c0_i32, %c0_i32_0 : i32, i32, i32
  }
}

</mosaic_0001>

<llo_original>
// kernel: critic_forward.1
$region0: #{critic_forward.1}
  #allocation0 [shape = 'u32[]', space=smem, size = 0x4, offset = 0x4, fixed_abs, tag = 'smem constant byte address 0x4 - core index']
  #allocation1 [shape = 'u32[144,128]{1,0:T(1,128)}', space=vmem, size = 0x12000, scoped, tag = 'internal scratch']
  %s0 = inlined_call_operand.vmem [shape: f32[2,16], index: 0, kind: input, shape index: {}]
  %s1 = inlined_call_operand.vmem [shape: f32[2,4], index: 1, kind: input, shape index: {}]
  %s2 = inlined_call_operand.vmem [shape: bf16[6,20,512], index: 2, kind: input, shape index: {}]
  %s3 = inlined_call_operand.vmem [shape: bf16[6,512,512], index: 3, kind: input, shape index: {}]
  %s4 = inlined_call_operand.vmem [shape: bf16[6,512,512], index: 4, kind: input, shape index: {}]
  %s5 = inlined_call_operand.vmem [shape: bf16[6,512,25], index: 5, kind: input, shape index: {}]
  %s6 = inlined_call_operand.vmem [shape: f32[6,4,512], index: 6, kind: input, shape index: {}]
  %s7 = inlined_call_operand.vmem [shape: f32[6,2,25], index: 7, kind: output, shape index: {}]
  %s8 = sld [smem:[#allocation0]]
  $region61: #{critic_forward.1} parent=0
    _
  %s10 = ssub.s32 1, %s8
  %s11 = scalar_select 0, %s10, %s8
  loop: start=0, step=1, limit=4
  $region2: #{critic_forward.1} parent=0 // loop_pre_header
    _
  $region3: #{critic_forward.1} parent=0 // loop_header
    %s13 = sphi 0, %s17
    %p14 = scmp.ge.s32.totalorder %s13, 4
    %s21 = sphi 0, %s21
    %s23 = sphi 0, %s21
    %s24 = sphi 0, %s23
    %s38 = sphi 0, %s24
    %s42 = sphi 0, %s42
    %s44 = sphi 0, %s42
    %s45 = sphi 0, %s44
    %s59 = sphi 0, %s45
    %s65 = sphi 0, %s67
    %s68 = sphi 0, %s65
    %s69 = sphi 0, %s68
    %s85 = sphi 0, %s69
    %s91 = sphi 0, %s93
    %s94 = sphi 0, %s91
    %s95 = sphi 0, %s94
    %s111 = sphi 0, %s95
    %s117 = sphi 0, %s119
    %s120 = sphi 0, %s117
    %s121 = sphi 0, %s120
    %s137 = sphi 0, %s121
    %s143 = sphi 0, %s145
    %s146 = sphi 0, %s143
    %s147 = sphi 0, %s146
    %s163 = sphi 0, %s147
    %s169 = sphi 0, %s171
    %s172 = sphi 0, %s169
    %s173 = sphi 0, %s172
    %s189 = sphi 0, %s173
    %s195 = sphi 0, %s197
    %s198 = sphi 0, %s195
    %s199 = sphi 0, %s198
    %s215 = sphi 0, %s199
  $region4: #{critic_forward.1} parent=0 // loop_header_branch
    %16 = sbr.rel (%p14) target = $region8
  $region5: #{critic_forward.1} parent=0 // loop_body
    %s18 = ssub.s32 %s13, 1
    %s19 = ssub.s32 %s13, 2
    %s20 = sadd.s32 %s13, 1
    %s22 = sadd.s32 %s21, 1
    %p25 = scmp.eq.s32.totalorder %s13, 1
    %p26 = scmp.ne.s32.totalorder %s21, %s23
    %p27 = scmp.eq.s32.totalorder %s13, 0
    %p28 = por %p26, %p27
    %p29 = scmp.ne.s32.totalorder %s21, %s23
    %p30 = scmp.eq.s32.totalorder %s18, 1
    %p31 = por %p29, %p30
    %p32 = scmp.ne.s32.totalorder %s23, %s24
    %p33 = scmp.eq.s32.totalorder %s18, 0
    %p34 = por %p32, %p33
    %p35 = scmp.ne.s32.totalorder %s23, %s24
    %p36 = scmp.eq.s32.totalorder %s19, 1
    %p37 = por %p35, %p36
    %p39 = scmp.ne.s32.totalorder %s24, %s38
    %p40 = scmp.eq.s32.totalorder %s19, 0
    %p41 = por %p39, %p40
    %s43 = sadd.s32 %s42, 1
    %p46 = scmp.eq.s32.totalorder %s13, 1
    %p47 = scmp.ne.s32.totalorder %s42, %s44
    %p48 = scmp.eq.s32.totalorder %s13, 0
    %p49 = por %p47, %p48
    %p50 = scmp.ne.s32.totalorder %s42, %s44
    %p51 = scmp.eq.s32.totalorder %s18, 1
    %p52 = por %p50, %p51
    %p53 = scmp.ne.s32.totalorder %s44, %s45
    %p54 = scmp.eq.s32.totalorder %s18, 0
    %p55 = por %p53, %p54
    %p56 = scmp.ne.s32.totalorder %s44, %s45
    %p57 = scmp.eq.s32.totalorder %s19, 1
    %p58 = por %p56, %p57
    %p60 = scmp.ne.s32.totalorder %s45, %s59
    %p61 = scmp.eq.s32.totalorder %s19, 0
    %p62 = por %p60, %p61
    %s63 = ssub.s32 %s13, %s20
    %p64 = scmp.eq.s32.totalorder %s63, 0
    %s66 = sadd.s32 %s65, 1
    %s67 = scalar_select %p64, %s65, %s66
    %p70 = pneg %p64
    %p71 = scmp.eq.s32.totalorder %s13, 1
    %p72 = por %p70, %p71
    %p73 = scmp.ne.s32.totalorder %s65, %s68
    %p74 = scmp.eq.s32.totalorder %s13, 0
    %p75 = por %p73, %p74
    %p76 = scmp.ne.s32.totalorder %s65, %s68
    %p77 = scmp.eq.s32.totalorder %s18, 1
    %p78 = por %p76, %p77
    %p79 = scmp.ne.s32.totalorder %s68, %s69
    %p80 = scmp.eq.s32.totalorder %s18, 0
    %p81 = por %p79, %p80
    %p82 = scmp.ne.s32.totalorder %s68, %s69
    %p83 = scmp.eq.s32.totalorder %s19, 1
    %p84 = por %p82, %p83
    %p86 = scmp.ne.s32.totalorder %s69, %s85
    %p87 = scmp.eq.s32.totalorder %s19, 0
    %p88 = por %p86, %p87
    %s89 = ssub.s32 %s13, %s20
    %p90 = scmp.eq.s32.totalorder %s89, 0
    %s92 = sadd.s32 %s91, 1
    %s93 = scalar_select %p90, %s91, %s92
    %p96 = pneg %p90
    %p97 = scmp.eq.s32.totalorder %s13, 1
    %p98 = por %p96, %p97
    %p99 = scmp.ne.s32.totalorder %s91, %s94
    %p100 = scmp.eq.s32.totalorder %s13, 0
    %p101 = por %p99, %p100
    %p102 = scmp.ne.s32.totalorder %s91, %s94
    %p103 = scmp.eq.s32.totalorder %s18, 1
    %p104 = por %p102, %p103
    %p105 = scmp.ne.s32.totalorder %s94, %s95
    %p106 = scmp.eq.s32.totalorder %s18, 0
    %p107 = por %p105, %p106
    %p108 = scmp.ne.s32.totalorder %s94, %s95
    %p109 = scmp.eq.s32.totalorder %s19, 1
    %p110 = por %p108, %p109
    %p112 = scmp.ne.s32.totalorder %s95, %s111
    %p113 = scmp.eq.s32.totalorder %s19, 0
    %p114 = por %p112, %p113
    %s115 = ssub.s32 %s13, %s20
    %p116 = scmp.eq.s32.totalorder %s115, 0
    %s118 = sadd.s32 %s117, 1
    %s119 = scalar_select %p116, %s117, %s118
    %p122 = pneg %p116
    %p123 = scmp.eq.s32.totalorder %s13, 1
    %p124 = por %p122, %p123
    %p125 = scmp.ne.s32.totalorder %s117, %s120
    %p126 = scmp.eq.s32.totalorder %s13, 0
    %p127 = por %p125, %p126
    %p128 = scmp.ne.s32.totalorder %s117, %s120
    %p129 = scmp.eq.s32.totalorder %s18, 1
    %p130 = por %p128, %p129
    %p131 = scmp.ne.s32.totalorder %s120, %s121
    %p132 = scmp.eq.s32.totalorder %s18, 0
    %p133 = por %p131, %p132
    %p134 = scmp.ne.s32.totalorder %s120, %s121
    %p135 = scmp.eq.s32.totalorder %s19, 1
    %p136 = por %p134, %p135
    %p138 = scmp.ne.s32.totalorder %s121, %s137
    %p139 = scmp.eq.s32.totalorder %s19, 0
    %p140 = por %p138, %p139
    %s141 = ssub.s32 %s13, %s20
    %p142 = scmp.eq.s32.totalorder %s141, 0
    %s144 = sadd.s32 %s143, 1
    %s145 = scalar_select %p142, %s143, %s144
    %p148 = pneg %p142
    %p149 = scmp.eq.s32.totalorder %s13, 1
    %p150 = por %p148, %p149
    %p151 = scmp.ne.s32.totalorder %s143, %s146
    %p152 = scmp.eq.s32.totalorder %s13, 0
    %p153 = por %p151, %p152
    %p154 = scmp.ne.s32.totalorder %s143, %s146
    %p155 = scmp.eq.s32.totalorder %s18, 1
    %p156 = por %p154, %p155
    %p157 = scmp.ne.s32.totalorder %s146, %s147
    %p158 = scmp.eq.s32.totalorder %s18, 0
    %p159 = por %p157, %p158
    %p160 = scmp.ne.s32.totalorder %s146, %s147
    %p161 = scmp.eq.s32.totalorder %s19, 1
    %p162 = por %p160, %p161
    %p164 = scmp.ne.s32.totalorder %s147, %s163
    %p165 = scmp.eq.s32.totalorder %s19, 0
    %p166 = por %p164, %p165
    %s167 = ssub.s32 %s13, %s20
    %p168 = scmp.eq.s32.totalorder %s167, 0
    %s170 = sadd.s32 %s169, 1
    %s171 = scalar_select %p168, %s169, %s170
    %p174 = pneg %p168
    %p175 = scmp.eq.s32.totalorder %s13, 1
    %p176 = por %p174, %p175
    %p177 = scmp.ne.s32.totalorder %s169, %s172
    %p178 = scmp.eq.s32.totalorder %s13, 0
    %p179 = por %p177, %p178
    %p180 = scmp.ne.s32.totalorder %s169, %s172
    %p181 = scmp.eq.s32.totalorder %s18, 1
    %p182 = por %p180, %p181
    %p183 = scmp.ne.s32.totalorder %s172, %s173
    %p184 = scmp.eq.s32.totalorder %s18, 0
    %p185 = por %p183, %p184
    %p186 = scmp.ne.s32.totalorder %s172, %s173
    %p187 = scmp.eq.s32.totalorder %s19, 1
    %p188 = por %p186, %p187
    %p190 = scmp.ne.s32.totalorder %s173, %s189
    %p191 = scmp.eq.s32.totalorder %s19, 0
    %p192 = por %p190, %p191
    %s193 = ssub.s32 %s13, %s20
    %p194 = scmp.eq.s32.totalorder %s193, 0
    %s196 = sadd.s32 %s195, 1
    %s197 = scalar_select %p194, %s195, %s196
    %p200 = pneg %p194
    %p201 = scmp.eq.s32.totalorder %s13, 1
    %p202 = por %p200, %p201
    %p203 = scmp.ne.s32.totalorder %s195, %s198
    %p204 = scmp.eq.s32.totalorder %s13, 0
    %p205 = por %p203, %p204
    %p206 = scmp.ne.s32.totalorder %s195, %s198
    %p207 = scmp.eq.s32.totalorder %s18, 1
    %p208 = por %p206, %p207
    %p209 = scmp.ne.s32.totalorder %s198, %s199
    %p210 = scmp.eq.s32.totalorder %s18, 0
    %p211 = por %p209, %p210
    %p212 = scmp.ne.s32.totalorder %s198, %s199
    %p213 = scmp.eq.s32.totalorder %s19, 1
    %p214 = por %p212, %p213
    %p216 = scmp.ne.s32.totalorder %s199, %s215
    %p217 = scmp.eq.s32.totalorder %s19, 0
    %p218 = por %p216, %p217
    %p219 = scmp.le.s32.totalorder 1, %s13
    %p220 = scmp.lt.s32.totalorder %s13, 3
    %p221 = pnand %p219, %p220
    %p222 = pneg %p221
    // Predicated region
    $region9: #{critic_forward.1} parent=5 // pred_check
      _
    $region10: #{critic_forward.1} parent=5 // pred_check_branch
      %224 = sbr.rel (%p221) target = $region12
    $region11: #{critic_forward.1} parent=5 // pred_region
      %s225 = ssub.s32 %s13, 1
      // Predicated region
      $region13: #{critic_forward.1} parent=11 // pred_check
        %p226 = pneg %p34
      $region14: #{critic_forward.1} parent=11 // pred_check_branch
        %228 = sbr.rel (%p226) target = $region16
      $region15: #{critic_forward.1} parent=11 // pred_region
        _
      $region16: #{critic_forward.1} parent=11 // pred_fallthru
        _
      // Predicated region
      $region17: #{critic_forward.1} parent=11 // pred_check
        %p229 = pneg %p55
      $region18: #{critic_forward.1} parent=11 // pred_check_branch
        %231 = sbr.rel (%p229) target = $region20
      $region19: #{critic_forward.1} parent=11 // pred_region
        _
      $region20: #{critic_forward.1} parent=11 // pred_fallthru
        _
    $region12: #{critic_forward.1} parent=5 // pred_fallthru
      _
    %p232 = scmp.lt.s32.totalorder %s13, 2
    // Predicated region
    $region21: #{critic_forward.1} parent=5 // pred_check
      %p233 = pneg %p232
    $region22: #{critic_forward.1} parent=5 // pred_check_branch
      %235 = sbr.rel (%p233) target = $region24
    $region23: #{critic_forward.1} parent=5 // pred_region
      // Predicated region
      $region25: #{critic_forward.1} parent=23 // pred_check
        %p236 = pneg %p75
      $region26: #{critic_forward.1} parent=23 // pred_check_branch
        %238 = sbr.rel (%p236) target = $region28
      $region27: #{critic_forward.1} parent=23 // pred_region
        %s239 = smul.u32 3, %s13
        %p240 = scmp.lt.s32.totalorder %s239, 5
        %s241 = scalar_select %p240, %s239, 5
        %s242 = smul.addr %s241, 12
        %s243 = smul.addr %s242, 4
        %s244 = scalar_lea.vmem %s2, %s243
        %s245 = smul.u32 3, %s13
      $region28: #{critic_forward.1} parent=23 // pred_fallthru
        _
      // Predicated region
      $region29: #{critic_forward.1} parent=23 // pred_check
        %p246 = pneg %p101
      $region30: #{critic_forward.1} parent=23 // pred_check_branch
        %248 = sbr.rel (%p246) target = $region32
      $region31: #{critic_forward.1} parent=23 // pred_region
        %s249 = smul.u32 3, %s13
        %p250 = scmp.lt.s32.totalorder %s249, 5
        %s251 = scalar_select %p250, %s249, 5
        %s252 = smul.addr %s251, 256
        %s253 = smul.addr %s252, 4
        %s254 = scalar_lea.vmem %s3, %s253
        %s255 = smul.u32 3, %s13
      $region32: #{critic_forward.1} parent=23 // pred_fallthru
        _
      // Predicated region
      $region33: #{critic_forward.1} parent=23 // pred_check
        %p256 = pneg %p127
      $region34: #{critic_forward.1} parent=23 // pred_check_branch
        %258 = sbr.rel (%p256) target = $region36
      $region35: #{critic_forward.1} parent=23 // pred_region
        %s259 = smul.u32 3, %s13
        %p260 = scmp.lt.s32.totalorder %s259, 5
        %s261 = scalar_select %p260, %s259, 5
        %s262 = smul.addr %s261, 256
        %s263 = smul.addr %s262, 4
        %s264 = scalar_lea.vmem %s4, %s263
        %s265 = smul.u32 3, %s13
      $region36: #{critic_forward.1} parent=23 // pred_fallthru
        _
      // Predicated region
      $region37: #{critic_forward.1} parent=23 // pred_check
        %p266 = pneg %p153
      $region38: #{critic_forward.1} parent=23 // pred_check_branch
        %268 = sbr.rel (%p266) target = $region40
      $region39: #{critic_forward.1} parent=23 // pred_region
        %s269 = smul.u32 3, %s13
        %p270 = scmp.lt.s32.totalorder %s269, 5
        %s271 = scalar_select %p270, %s269, 5
        %s272 = smul.addr %s271, 64
        %s273 = smul.addr %s272, 4
        %s274 = scalar_lea.vmem %s5, %s273
        %s275 = smul.u32 3, %s13
      $region40: #{critic_forward.1} parent=23 // pred_fallthru
        _
      // Predicated region
      $region41: #{critic_forward.1} parent=23 // pred_check
        %p276 = pneg %p179
      $region42: #{critic_forward.1} parent=23 // pred_check_branch
        %278 = sbr.rel (%p276) target = $region44
      $region43: #{critic_forward.1} parent=23 // pred_region
        %s279 = smul.u32 3, %s13
        %p280 = scmp.lt.s32.totalorder %s279, 5
        %s281 = scalar_select %p280, %s279, 5
        %s282 = smul.addr %s281, 4
        %s283 = smul.addr %s282, 4
        %s284 = scalar_lea.vmem %s6, %s283
        %s285 = smul.u32 3, %s13
      $region44: #{critic_forward.1} parent=23 // pred_fallthru
        _
    $region24: #{critic_forward.1} parent=5 // pred_fallthru
      _
    %p286 = scmp.le.s32.totalorder 1, %s13
    %p287 = scmp.lt.s32.totalorder %s13, 3
    %p288 = pnand %p286, %p287
    %p289 = pneg %p288
    // Predicated region
    $region45: #{critic_forward.1} parent=5 // pred_check
      _
    $region46: #{critic_forward.1} parent=5 // pred_check_branch
      %291 = sbr.rel (%p288) target = $region48
    $region47: #{critic_forward.1} parent=5 // pred_region
      %s292 = ssub.s32 %s13, 1
      %p293 = pneg %p34
      %p294 = pneg %p31
      %p295 = pneg %p55
      %p296 = pneg %p52
      %s297 = smul.u32 3, %s18
      %p298 = scmp.lt.s32.totalorder %s297, 5
      %s299 = scalar_select %p298, %s297, 5
      %s300 = smul.addr %s299, 12
      %s301 = smul.addr %s300, 4
      %s302 = scalar_lea.vmem %s2, %s301
      %p303 = pneg %p81
      %p304 = pneg %p78
      %s305 = smul.u32 3, %s18
      %p306 = scmp.lt.s32.totalorder %s305, 5
      %s307 = scalar_select %p306, %s305, 5
      %s308 = smul.addr %s307, 256
      %s309 = smul.addr %s308, 4
      %s310 = scalar_lea.vmem %s3, %s309
      %p311 = pneg %p107
      %p312 = pneg %p104
      %s313 = smul.u32 3, %s18
      %p314 = scmp.lt.s32.totalorder %s313, 5
      %s315 = scalar_select %p314, %s313, 5
      %s316 = smul.addr %s315, 256
      %s317 = smul.addr %s316, 4
      %s318 = scalar_lea.vmem %s4, %s317
      %p319 = pneg %p133
      %p320 = pneg %p130
      %s321 = smul.u32 3, %s18
      %p322 = scmp.lt.s32.totalorder %s321, 5
      %s323 = scalar_select %p322, %s321, 5
      %s324 = smul.addr %s323, 64
      %s325 = smul.addr %s324, 4
      %s326 = scalar_lea.vmem %s5, %s325
      %p327 = pneg %p159
      %p328 = pneg %p156
      %s329 = smul.u32 3, %s18
      %p330 = scmp.lt.s32.totalorder %s329, 5
      %s331 = scalar_select %p330, %s329, 5
      %s332 = smul.addr %s331, 4
      %s333 = smul.addr %s332, 4
      %s334 = scalar_lea.vmem %s6, %s333
      %p335 = pneg %p185
      %p336 = pneg %p182
      %p337 = pneg %p211
      %p338 = pneg %p208
      %s339 = smul.u32 3, %s18
      %p340 = scmp.lt.s32.totalorder %s339, 5
      %s341 = scalar_select %p340, %s339, 5
      %s342 = smul.addr %s341, 2
      %s343 = scalar_lea.vmem %s7, %s342
      %s344 = smul.u32 3, %s18
      %p345 = scmp.lt.s32.totalorder %s344, 5
      %s346 = scalar_select %p345, %s344, 5
      %s347 = smul.addr %s346, 12
      %s348 = smul.addr %s347, 4
      %s349 = scalar_lea.vmem %s2, %s348
      %s350 = smul.u32 3, %s18
      %s351 = smul.u32 3, %s18
      %p352 = scmp.lt.s32.totalorder %s351, 5
      %s353 = scalar_select %p352, %s351, 5
      %s354 = smul.addr %s353, 256
      %s355 = smul.addr %s354, 4
      %s356 = scalar_lea.vmem %s3, %s355
      %s357 = smul.u32 3, %s18
      %s358 = smul.u32 3, %s18
      %p359 = scmp.lt.s32.totalorder %s358, 5
      %s360 = scalar_select %p359, %s358, 5
      %s361 = smul.addr %s360, 256
      %s362 = smul.addr %s361, 4
      %s363 = scalar_lea.vmem %s4, %s362
      %s364 = smul.u32 3, %s18
      %s365 = smul.u32 3, %s18
      %p366 = scmp.lt.s32.totalorder %s365, 5
      %s367 = scalar_select %p366, %s365, 5
      %s368 = smul.addr %s367, 64
      %s369 = smul.addr %s368, 4
      %s370 = scalar_lea.vmem %s5, %s369
      %s371 = smul.u32 3, %s18
      %s372 = smul.u32 3, %s18
      %p373 = scmp.lt.s32.totalorder %s372, 5
      %s374 = scalar_select %p373, %s372, 5
      %s375 = smul.addr %s374, 4
      %s376 = smul.addr %s375, 4
      %s377 = scalar_lea.vmem %s6, %s376
      %s378 = smul.u32 3, %s18
      %s379 = smul.u32 3, %s18
      %p380 = scmp.lt.s32.totalorder %s379, 5
      %s381 = scalar_select %p380, %s379, 5
      %s382 = smul.addr %s381, 2
      %s383 = scalar_lea.vmem %s7, %s382
      %s384 = smul.u32 3, %s18
      %v385 = vld [vmem:[%s0] sm:$0x3]
      %v386 = vld [vmem:[%s1] sm:$0x3]
      %v387 = vld [vmem:[%s349] sm:$0xff]
      %v388 = vld [vmem:[%s349 + $0x8] sm:$0xff]
      %v389 = vld [vmem:[%s349 + $0x10] sm:$0xff]
      %v390 = vld [vmem:[%s349 + $0x18] sm:$0xff]
      %v391 = vld [vmem:[%s349 + $0x20] sm:$0x33]
      %v392 = vld [vmem:[%s349 + $0x28] sm:$0x33]
      %v393 = vunpack.c.l.bf16 %v387
      %v394 = vunpack.c.h.bf16 %v387
      %v395 = vunpack.c.l.bf16 %v388
      %v396 = vunpack.c.h.bf16 %v388
      %v397 = vunpack.c.l.bf16 %v389
      %v398 = vunpack.c.h.bf16 %v389
      %v399 = vunpack.c.l.bf16 %v390
      %v400 = vunpack.c.h.bf16 %v390
      %v401 = vunpack.c.l.bf16 %v391
      %v402 = vunpack.c.h.bf16 %v391
      %v403 = vunpack.c.l.bf16 %v392
      %v404 = vunpack.c.h.bf16 %v392
      %v405 = vld [vmem:[%s377] sm:$0xff]
      %v406 = vld [vmem:[%s377 + $0x8] sm:$0xff]
      %vm407 = vcmask 31744
      %v409 = vsel %vm407, %v386, 0
      %vm411 = vcmask 1043456
      %v413 = vsel %vm411, %v401, 0
      %v416 = vsel %vm411, %v402, 0
      %v419 = vsel %vm411, %v403, 0
      %v422 = vsel %vm411, %v404, 0
      %424 = vmatprep.subr.mxu0 %v416
      %425 = vmatpush1.msra.mxu0 %v413
      %426 = vmatprep.subr.mxu0 0.0
      %427 = vmatpush1.msra.mxu0 0.0
      %428 = vmatprep.subr.mxu0 0.0
      %429 = vmatpush1.msra.mxu0 0.0
      %430 = vmatprep.subr.mxu0 0.0
      %431 = vmatpush1.msra.mxu0 0.0
      %432 = vmatprep.subr.mxu0 0.0
      %433 = vmatpush1.msra.mxu0 0.0
      %434 = vmatprep.subr.mxu0 0.0
      %435 = vmatpush1.msra.mxu0 0.0
      %436 = vmatprep.subr.mxu0 0.0
      %437 = vmatpush1.msra.mxu0 0.0
      %438 = vmatprep.subr.mxu0 0.0
      %439 = vmatpush1.msra.mxu0 0.0
      %440 = vmatprep.subr.mxu0 0.0
      %441 = vmatpush1.msra.mxu0 0.0
      %442 = vmatprep.subr.mxu0 0.0
      %443 = vmatpush1.msra.mxu0 0.0
      %444 = vmatprep.subr.mxu0 0.0
      %445 = vmatpush1.msra.mxu0 0.0
      %446 = vmatprep.subr.mxu0 0.0
      %447 = vmatpush1.msra.mxu0 0.0
      %448 = vmatprep.subr.mxu0 0.0
      %449 = vmatpush1.msra.mxu0 0.0
      %450 = vmatprep.subr.mxu0 0.0
      %451 = vmatpush1.msra.mxu0 0.0
      %452 = vmatprep.subr.mxu0 0.0
      %453 = vmatpush1.msra.mxu0 0.0
      %454 = vmatprep.subr.mxu0 0.0
      %455 = vmatpush1.msra.mxu0 0.0
      %456 = vmatprep.subr.mxu0 0.0
      %457 = vmatpush1.msra.mxu0 0.0
      %458 = vmatprep.subr.mxu0 0.0
      %459 = vmatpush1.msra.mxu0 0.0
      %460 = vmatprep.subr.mxu0 0.0
      %461 = vmatpush1.msra.mxu0 0.0
      %462 = vmatprep.subr.mxu0 0.0
      %463 = vmatpush1.msra.mxu0 0.0
      %464 = vmatprep.subr.mxu0 0.0
      %465 = vmatpush1.msra.mxu0 0.0
      %466 = vmatprep.subr.mxu0 0.0
      %467 = vmatpush1.msra.mxu0 0.0
      %468 = vmatprep.subr.mxu0 0.0
      %469 = vmatpush1.msra.mxu0 0.0
      %470 = vmatprep.subr.mxu0 0.0
      %471 = vmatpush1.msra.mxu0 0.0
      %472 = vmatprep.subr.mxu0 0.0
      %473 = vmatpush1.msra.mxu0 0.0
      %474 = vmatprep.subr.mxu0 0.0
      %475 = vmatpush1.msra.mxu0 0.0
      %476 = vmatprep.subr.mxu0 0.0
      %477 = vmatpush1.msra.mxu0 0.0
      %478 = vmatprep.subr.mxu0 0.0
      %479 = vmatpush1.msra.mxu0 0.0
      %480 = vmatprep.subr.mxu0 0.0
      %481 = vmatpush1.msra.mxu0 0.0
      %482 = vmatprep.subr.mxu0 0.0
      %483 = vmatpush1.msra.mxu0 0.0
      %484 = vmatprep.subr.mxu0 0.0
      %485 = vmatpush1.msra.mxu0 0.0
      %486 = vmatprep.subr.mxu0 0.0
      %487 = vmatpush1.msra.mxu0 0.0
      %488 = vmatprep.mubr.f32.mxu0 0.0
      %489 = vmatmul.mubr.f32.gmra.mrb[0].mxu0 %v409
      %v490 = vpop.f32.mrb[0].mxu0
      %v491 = vadd.f32 0.0, %v490
      %v492 = vpop.f32.mrb[0].mxu0
      %v493 = vadd.f32 0.0, %v492
      %494 = vdwg.mxu0
      %495 = vmatprep.subr.mxu0 %v422
      %496 = vmatpush1.msra.mxu0 %v419
      %497 = vmatprep.subr.mxu0 0.0
      %498 = vmatpush1.msra.mxu0 0.0
      %499 = vmatprep.subr.mxu0 0.0
      %500 = vmatpush1.msra.mxu0 0.0
      %501 = vmatprep.subr.mxu0 0.0
      %502 = vmatpush1.msra.mxu0 0.0
      %503 = vmatprep.subr.mxu0 0.0
      %504 = vmatpush1.msra.mxu0 0.0
      %505 = vmatprep.subr.mxu0 0.0
      %506 = vmatpush1.msra.mxu0 0.0
      %507 = vmatprep.subr.mxu0 0.0
      %508 = vmatpush1.msra.mxu0 0.0
      %509 = vmatprep.subr.mxu0 0.0
      %510 = vmatpush1.msra.mxu0 0.0
      %511 = vmatprep.subr.mxu0 0.0
      %512 = vmatpush1.msra.mxu0 0.0
      %513 = vmatprep.subr.mxu0 0.0
      %514 = vmatpush1.msra.mxu0 0.0
      %515 = vmatprep.subr.mxu0 0.0
      %516 = vmatpush1.msra.mxu0 0.0
      %517 = vmatprep.subr.mxu0 0.0
      %518 = vmatpush1.msra.mxu0 0.0
      %519 = vmatprep.subr.mxu0 0.0
      %520 = vmatpush1.msra.mxu0 0.0
      %521 = vmatprep.subr.mxu0 0.0
      %522 = vmatpush1.msra.mxu0 0.0
      %523 = vmatprep.subr.mxu0 0.0
      %524 = vmatpush1.msra.mxu0 0.0
      %525 = vmatprep.subr.mxu0 0.0
      %526 = vmatpush1.msra.mxu0 0.0
      %527 = vmatprep.subr.mxu0 0.0
      %528 = vmatpush1.msra.mxu0 0.0
      %529 = vmatprep.subr.mxu0 0.0
      %530 = vmatpush1.msra.mxu0 0.0
      %531 = vmatprep.subr.mxu0 0.0
      %532 = vmatpush1.msra.mxu0 0.0
      %533 = vmatprep.subr.mxu0 0.0
      %534 = vmatpush1.msra.mxu0 0.0
      %535 = vmatprep.subr.mxu0 0.0
      %536 = vmatpush1.msra.mxu0 0.0
      %537 = vmatprep.subr.mxu0 0.0
      %538 = vmatpush1.msra.mxu0 0.0
      %539 = vmatprep.subr.mxu0 0.0
      %540 = vmatpush1.msra.mxu0 0.0
      %541 = vmatprep.subr.mxu0 0.0
      %542 = vmatpush1.msra.mxu0 0.0
      %543 = vmatprep.subr.mxu0 0.0
      %544 = vmatpush1.msra.mxu0 0.0
      %545 = vmatprep.subr.mxu0 0.0
      %546 = vmatpush1.msra.mxu0 0.0
      %547 = vmatprep.subr.mxu0 0.0
      %548 = vmatpush1.msra.mxu0 0.0
      %549 = vmatprep.subr.mxu0 0.0
      %550 = vmatpush1.msra.mxu0 0.0
      %551 = vmatprep.subr.mxu0 0.0
      %552 = vmatpush1.msra.mxu0 0.0
      %553 = vmatprep.subr.mxu0 0.0
      %554 = vmatpush1.msra.mxu0 0.0
      %555 = vmatprep.subr.mxu0 0.0
      %556 = vmatpush1.msra.mxu0 0.0
      %557 = vmatprep.subr.mxu0 0.0
      %558 = vmatpush1.msra.mxu0 0.0
      %559 = vmatprep.mubr.f32.mxu0 0.0
      %560 = vmatmul.mubr.f32.gmra.mrb[0].mxu0 %v409
      %v561 = vpop.f32.mrb[0].mxu0
      %v562 = vadd.f32 0.0, %v561
      %v563 = vpop.f32.mrb[0].mxu0
      %v564 = vadd.f32 0.0, %v563
      %565 = vdwg.mxu0
      %vm566 = vcmask 130048
      %v568 = vsel %vm566, %v385, 0
      %570 = vmatprep.subr.mxu0 %v394
      %571 = vmatpush1.msra.mxu0 %v393
      %572 = vmatprep.subr.mxu0 %v398
      %573 = vmatpush1.msra.mxu0 %v397
      %574 = vmatprep.subr.mxu0 0.0
      %575 = vmatpush1.msra.mxu0 0.0
      %576 = vmatprep.subr.mxu0 0.0
      %577 = vmatpush1.msra.mxu0 0.0
      %578 = vmatprep.subr.mxu0 0.0
      %579 = vmatpush1.msra.mxu0 0.0
      %580 = vmatprep.subr.mxu0 0.0
      %581 = vmatpush1.msra.mxu0 0.0
      %582 = vmatprep.subr.mxu0 0.0
      %583 = vmatpush1.msra.mxu0 0.0
      %584 = vmatprep.subr.mxu0 0.0
      %585 = vmatpush1.msra.mxu0 0.0
      %586 = vmatprep.subr.mxu0 0.0
      %587 = vmatpush1.msra.mxu0 0.0
      %588 = vmatprep.subr.mxu0 0.0
      %589 = vmatpush1.msra.mxu0 0.0
      %590 = vmatprep.subr.mxu0 0.0
      %591 = vmatpush1.msra.mxu0 0.0
      %592 = vmatprep.subr.mxu0 0.0
      %593 = vmatpush1.msra.mxu0 0.0
      %594 = vmatprep.subr.mxu0 0.0
      %595 = vmatpush1.msra.mxu0 0.0
      %596 = vmatprep.subr.mxu0 0.0
      %597 = vmatpush1.msra.mxu0 0.0
      %598 = vmatprep.subr.mxu0 0.0
      %599 = vmatpush1.msra.mxu0 0.0
      %600 = vmatprep.subr.mxu0 0.0
      %601 = vmatpush1.msra.mxu0 0.0
      %602 = vmatprep.subr.mxu0 0.0
      %603 = vmatpush1.msra.mxu0 0.0
      %604 = vmatprep.subr.mxu0 0.0
      %605 = vmatpush1.msra.mxu0 0.0
      %606 = vmatprep.subr.mxu0 0.0
      %607 = vmatpush1.msra.mxu0 0.0
      %608 = vmatprep.subr.mxu0 0.0
      %609 = vmatpush1.msra.mxu0 0.0
      %610 = vmatprep.subr.mxu0 0.0
      %611 = vmatpush1.msra.mxu0 0.0
      %612 = vmatprep.subr.mxu0 0.0
      %613 = vmatpush1.msra.mxu0 0.0
      %614 = vmatprep.subr.mxu0 0.0
      %615 = vmatpush1.msra.mxu0 0.0
      %616 = vmatprep.subr.mxu0 0.0
      %617 = vmatpush1.msra.mxu0 0.0
      %618 = vmatprep.subr.mxu0 0.0
      %619 = vmatpush1.msra.mxu0 0.0
      %620 = vmatprep.subr.mxu0 0.0
      %621 = vmatpush1.msra.mxu0 0.0
      %622 = vmatprep.subr.mxu0 0.0
      %623 = vmatpush1.msra.mxu0 0.0
      %624 = vmatprep.subr.mxu0 0.0
      %625 = vmatpush1.msra.mxu0 0.0
      %626 = vmatprep.subr.mxu0 0.0
      %627 = vmatpush1.msra.mxu0 0.0
      %628 = vmatprep.subr.mxu0 0.0
      %629 = vmatpush1.msra.mxu0 0.0
      %630 = vmatprep.subr.mxu0 0.0
      %631 = vmatpush1.msra.mxu0 0.0
      %632 = vmatprep.subr.mxu0 0.0
      %633 = vmatpush1.msra.mxu0 0.0
      %634 = vmatprep.mubr.f32.mxu0 0.0
      %635 = vmatmul.mubr.f32.gmra.mrb[0].mxu0 %v568
      %v636 = vpop.f32.mrb[0].mxu0
      %v637 = vadd.f32 %v491, %v636
      %v638 = vpop.f32.mrb[0].mxu0
      %v639 = vadd.f32 %v493, %v638
      %640 = vdwg.mxu0
      %641 = vmatprep.subr.mxu0 %v396
      %642 = vmatpush1.msra.mxu0 %v395
      %643 = vmatprep.subr.mxu0 %v400
      %644 = vmatpush1.msra.mxu0 %v399
      %645 = vmatprep.subr.mxu0 0.0
      %646 = vmatpush1.msra.mxu0 0.0
      %647 = vmatprep.subr.mxu0 0.0
      %648 = vmatpush1.msra.mxu0 0.0
      %649 = vmatprep.subr.mxu0 0.0
      %650 = vmatpush1.msra.mxu0 0.0
      %651 = vmatprep.subr.mxu0 0.0
      %652 = vmatpush1.msra.mxu0 0.0
      %653 = vmatprep.subr.mxu0 0.0
      %654 = vmatpush1.msra.mxu0 0.0
      %655 = vmatprep.subr.mxu0 0.0
      %656 = vmatpush1.msra.mxu0 0.0
      %657 = vmatprep.subr.mxu0 0.0
      %658 = vmatpush1.msra.mxu0 0.0
      %659 = vmatprep.subr.mxu0 0.0
      %660 = vmatpush1.msra.mxu0 0.0
      %661 = vmatprep.subr.mxu0 0.0
      %662 = vmatpush1.msra.mxu0 0.0
      %663 = vmatprep.subr.mxu0 0.0
      %664 = vmatpush1.msra.mxu0 0.0
      %665 = vmatprep.subr.mxu0 0.0
      %666 = vmatpush1.msra.mxu0 0.0
      %667 = vmatprep.subr.mxu0 0.0
      %668 = vmatpush1.msra.mxu0 0.0
      %669 = vmatprep.subr.mxu0 0.0
      %670 = vmatpush1.msra.mxu0 0.0
      %671 = vmatprep.subr.mxu0 0.0
      %672 = vmatpush1.msra.mxu0 0.0
      %673 = vmatprep.subr.mxu0 0.0
      %674 = vmatpush1.msra.mxu0 0.0
      %675 = vmatprep.subr.mxu0 0.0
      %676 = vmatpush1.msra.mxu0 0.0
      %677 = vmatprep.subr.mxu0 0.0
      %678 = vmatpush1.msra.mxu0 0.0
      %679 = vmatprep.subr.mxu0 0.0
      %680 = vmatpush1.msra.mxu0 0.0
      %681 = vmatprep.subr.mxu0 0.0
      %682 = vmatpush1.msra.mxu0 0.0
      %683 = vmatprep.subr.mxu0 0.0
      %684 = vmatpush1.msra.mxu0 0.0
      %685 = vmatprep.subr.mxu0 0.0
      %686 = vmatpush1.msra.mxu0 0.0
      %687 = vmatprep.subr.mxu0 0.0
      %688 = vmatpush1.msra.mxu0 0.0
      %689 = vmatprep.subr.mxu0 0.0
      %690 = vmatpush1.msra.mxu0 0.0
      %691 = vmatprep.subr.mxu0 0.0
      %692 = vmatpush1.msra.mxu0 0.0
      %693 = vmatprep.subr.mxu0 0.0
      %694 = vmatpush1.msra.mxu0 0.0
      %695 = vmatprep.subr.mxu0 0.0
      %696 = vmatpush1.msra.mxu0 0.0
      %697 = vmatprep.subr.mxu0 0.0
      %698 = vmatpush1.msra.mxu0 0.0
      %699 = vmatprep.subr.mxu0 0.0
      %700 = vmatpush1.msra.mxu0 0.0
      %701 = vmatprep.subr.mxu0 0.0
      %702 = vmatpush1.msra.mxu0 0.0
      %703 = vmatprep.subr.mxu0 0.0
      %704 = vmatpush1.msra.mxu0 0.0
      %705 = vmatprep.mubr.f32.mxu0 0.0
      %706 = vmatmul.mubr.f32.gmra.mrb[0].mxu0 %v568
      %v707 = vpop.f32.mrb[0].mxu0
      %v708 = vadd.f32 %v562, %v707
      %v709 = vpop.f32.mrb[0].mxu0
      %v710 = vadd.f32 %v564, %v709
      %711 = vdwg.mxu0
      %v714 = vlaneseq
      %v715 = vshrl.u32 %v714, 7
      %v716 = vsub.s32 0, %v715
      %v717 = vrot.slane %v405, %v716
      %v718 = vlaneseq
      %v719 = vshrl.u32 %v718, 7
      %v720 = vsub.s32 4, %v719
      %v721 = vrot.slane %v405, %v720
      %v722 = vlaneseq
      %v723 = vshrl.u32 %v722, 7
      %v724 = vsub.s32 0, %v723
      %v725 = vrot.slane %v406, %v724
      %v726 = vlaneseq
      %v727 = vshrl.u32 %v726, 7
      %v728 = vsub.s32 4, %v727
      %v729 = vrot.slane %v406, %v728
      %v734 = vlaneseq
      %v735 = vshrl.u32 %v734, 7
      %v736 = vsub.s32 0, %v735
      %v737 = vrot.slane %v717, %v736
      %v738 = vlaneseq
      %v739 = vshrl.u32 %v738, 7
      %v740 = vsub.s32 0, %v739
      %v741 = vrot.slane %v721, %v740
      %v742 = vlaneseq
      %v743 = vshrl.u32 %v742, 7
      %v744 = vsub.s32 0, %v743
      %v745 = vrot.slane %v725, %v744
      %v746 = vlaneseq
      %v747 = vshrl.u32 %v746, 7
      %v748 = vsub.s32 0, %v747
      %v749 = vrot.slane %v729, %v748
      %v750 = vadd.f32 %v637, %v737
      %v751 = vadd.f32 %v639, %v741
      %v752 = vadd.f32 %v708, %v745
      %v753 = vadd.f32 %v710, %v749
      %v754 = vmax.f32 %v750, 0.0
      %v755 = vmax.f32 %v751, 0.0
      %v756 = vmax.f32 %v752, 0.0
      %v757 = vmax.f32 %v753, 0.0
      %v758 = vld [vmem:[%s356] sm:$0xff]
      %v759 = vld [vmem:[%s356 + $0x8] sm:$0xff]
      %v760 = vld [vmem:[%s356 + $0x10] sm:$0xff]
      %v761 = vld [vmem:[%s356 + $0x18] sm:$0xff]
      %v762 = vld [vmem:[%s356 + $0x20] sm:$0xff]
      %v763 = vld [vmem:[%s356 + $0x28] sm:$0xff]
      %v764 = vld [vmem:[%s356 + $0x30] sm:$0xff]
      %v765 = vld [vmem:[%s356 + $0x38] sm:$0xff]
      %v766 = vld [vmem:[%s356 + $0x40] sm:$0xff]
      %v767 = vld [vmem:[%s356 + $0x48] sm:$0xff]
      %v768 = vld [vmem:[%s356 + $0x50] sm:$0xff]
      %v769 = vld [vmem:[%s356 + $0x58] sm:$0xff]
      %v770 = vld [vmem:[%s356 + $0x60] sm:$0xff]
      %v771 = vld [vmem:[%s356 + $0x68] sm:$0xff]
      %v772 = vld [vmem:[%s356 + $0x70] sm:$0xff]
      %v773 = vld [vmem:[%s356 + $0x78] sm:$0xff]
      %v774 = vld [vmem:[%s356 + $0x80] sm:$0xff]
      %v775 = vld [vmem:[%s356 + $0x88] sm:$0xff]
      %v776 = vld [vmem:[%s356 + $0x90] sm:$0xff]
      %v777 = vld [vmem:[%s356 + $0x98] sm:$0xff]
      %v778 = vld [vmem:[%s356 + $0xa0] sm:$0xff]
      %v779 = vld [vmem:[%s356 + $0xa8] sm:$0xff]
      %v780 = vld [vmem:[%s356 + $0xb0] sm:$0xff]
      %v781 = vld [vmem:[%s356 + $0xb8] sm:$0xff]
      %v782 = vld [vmem:[%s356 + $0xc0] sm:$0xff]
      %v783 = vld [vmem:[%s356 + $0xc8] sm:$0xff]
      %v784 = vld [vmem:[%s356 + $0xd0] sm:$0xff]
      %v785 = vld [vmem:[%s356 + $0xd8] sm:$0xff]
      %v786 = vld [vmem:[%s356 + $0xe0] sm:$0xff]
      %v787 = vld [vmem:[%s356 + $0xe8] sm:$0xff]
      %v788 = vld [vmem:[%s356 + $0xf0] sm:$0xff]
      %v789 = vld [vmem:[%s356 + $0xf8] sm:$0xff]
      %v790 = vld [vmem:[%s356 + $0x100] sm:$0xff]
      %v791 = vld [vmem:[%s356 + $0x108] sm:$0xff]
      %v792 = vld [vmem:[%s356 + $0x110] sm:$0xff]
      %v793 = vld [vmem:[%s356 + $0x118] sm:$0xff]
      %v794 = vld [vmem:[%s356 + $0x120] sm:$0xff]
      %v795 = vld [vmem:[%s356 + $0x128] sm:$0xff]
      %v796 = vld [vmem:[%s356 + $0x130] sm:$0xff]
      %v797 = vld [vmem:[%s356 + $0x138] sm:$0xff]
      %v798 = vld [vmem:[%s356 + $0x140] sm:$0xff]
      %v799 = vld [vmem:[%s356 + $0x148] sm:$0xff]
      %v800 = vld [vmem:[%s356 + $0x150] sm:$0xff]
      %v801 = vld [vmem:[%s356 + $0x158] sm:$0xff]
      %v802 = vld [vmem:[%s356 + $0x160] sm:$0xff]
      %v803 = vld [vmem:[%s356 + $0x168] sm:$0xff]
      %v804 = vld [vmem:[%s356 + $0x170] sm:$0xff]
      %v805 = vld [vmem:[%s356 + $0x178] sm:$0xff]
      %v806 = vld [vmem:[%s356 + $0x180] sm:$0xff]
      %v807 = vld [vmem:[%s356 + $0x188] sm:$0xff]
      %v808 = vld [vmem:[%s356 + $0x190] sm:$0xff]
      %v809 = vld [vmem:[%s356 + $0x198] sm:$0xff]
      %v810 = vld [vmem:[%s356 + $0x1a0] sm:$0xff]
      %v811 = vld [vmem:[%s356 + $0x1a8] sm:$0xff]
      %v812 = vld [vmem:[%s356 + $0x1b0] sm:$0xff]
      %v813 = vld [vmem:[%s356 + $0x1b8] sm:$0xff]
      %v814 = vld [vmem:[%s356 + $0x1c0] sm:$0xff]
      %v815 = vld [vmem:[%s356 + $0x1c8] sm:$0xff]
      %v816 = vld [vmem:[%s356 + $0x1d0] sm:$0xff]
      %v817 = vld [vmem:[%s356 + $0x1d8] sm:$0xff]
      %v818 = vld [vmem:[%s356 + $0x1e0] sm:$0xff]
      %v819 = vld [vmem:[%s356 + $0x1e8] sm:$0xff]
      %v820 = vld [vmem:[%s356 + $0x1f0] sm:$0xff]
      %v821 = vld [vmem:[%s356 + $0x1f8] sm:$0xff]
      %v822 = vld [vmem:[%s356 + $0x200] sm:$0xff]
      %v823 = vld [vmem:[%s356 + $0x208] sm:$0xff]
      %v824 = vld [vmem:[%s356 + $0x210] sm:$0xff]
      %v825 = vld [vmem:[%s356 + $0x218] sm:$0xff]
      %v826 = vld [vmem:[%s356 + $0x220] sm:$0xff]
      %v827 = vld [vmem:[%s356 + $0x228] sm:$0xff]
      %v828 = vld [vmem:[%s356 + $0x230] sm:$0xff]
      %v829 = vld [vmem:[%s356 + $0x238] sm:$0xff]
      %v830 = vld [vmem:[%s356 + $0x240] sm:$0xff]
      %v831 = vld [vmem:[%s356 + $0x248] sm:$0xff]
      %v832 = vld [vmem:[%s356 + $0x250] sm:$0xff]
      %v833 = vld [vmem:[%s356 + $0x258] sm:$0xff]
      %v834 = vld [vmem:[%s356 + $0x260] sm:$0xff]
      %v835 = vld [vmem:[%s356 + $0x268] sm:$0xff]
      %v836 = vld [vmem:[%s356 + $0x270] sm:$0xff]
      %v837 = vld [vmem:[%s356 + $0x278] sm:$0xff]
      %v838 = vld [vmem:[%s356 + $0x280] sm:$0xff]
      %v839 = vld [vmem:[%s356 + $0x288] sm:$0xff]
      %v840 = vld [vmem:[%s356 + $0x290] sm:$0xff]
      %v841 = vld [vmem:[%s356 + $0x298] sm:$0xff]
      %v842 = vld [vmem:[%s356 + $0x2a0] sm:$0xff]
      %v843 = vld [vmem:[%s356 + $0x2a8] sm:$0xff]
      %v844 = vld [vmem:[%s356 + $0x2b0] sm:$0xff]
      %v845 = vld [vmem:[%s356 + $0x2b8] sm:$0xff]
      %v846 = vld [vmem:[%s356 + $0x2c0] sm:$0xff]
      %v847 = vld [vmem:[%s356 + $0x2c8] sm:$0xff]
      %v848 = vld [vmem:[%s356 + $0x2d0] sm:$0xff]
      %v849 = vld [vmem:[%s356 + $0x2d8] sm:$0xff]
      %v850 = vld [vmem:[%s356 + $0x2e0] sm:$0xff]
      %v851 = vld [vmem:[%s356 + $0x2e8] sm:$0xff]
      %v852 = vld [vmem:[%s356 + $0x2f0] sm:$0xff]
      %v853 = vld [vmem:[%s356 + $0x2f8] sm:$0xff]
      %v854 = vld [vmem:[%s356 + $0x300] sm:$0xff]
      %v855 = vld [vmem:[%s356 + $0x308] sm:$0xff]
      %v856 = vld [vmem:[%s356 + $0x310] sm:$0xff]
      %v857 = vld [vmem:[%s356 + $0x318] sm:$0xff]
      %v858 = vld [vmem:[%s356 + $0x320] sm:$0xff]
      %v859 = vld [vmem:[%s356 + $0x328] sm:$0xff]
      %v860 = vld [vmem:[%s356 + $0x330] sm:$0xff]
      %v861 = vld [vmem:[%s356 + $0x338] sm:$0xff]
      %v862 = vld [vmem:[%s356 + $0x340] sm:$0xff]
      %v863 = vld [vmem:[%s356 + $0x348] sm:$0xff]
      %v864 = vld [vmem:[%s356 + $0x350] sm:$0xff]
      %v865 = vld [vmem:[%s356 + $0x358] sm:$0xff]
      %v866 = vld [vmem:[%s356 + $0x360] sm:$0xff]
      %v867 = vld [vmem:[%s356 + $0x368] sm:$0xff]
      %v868 = vld [vmem:[%s356 + $0x370] sm:$0xff]
      %v869 = vld [vmem:[%s356 + $0x378] sm:$0xff]
      %v870 = vld [vmem:[%s356 + $0x380] sm:$0xff]
      %v871 = vld [vmem:[%s356 + $0x388] sm:$0xff]
      %v872 = vld [vmem:[%s356 + $0x390] sm:$0xff]
      %v873 = vld [vmem:[%s356 + $0x398] sm:$0xff]
      %v874 = vld [vmem:[%s356 + $0x3a0] sm:$0xff]
      %v875 = vld [vmem:[%s356 + $0x3a8] sm:$0xff]
      %v876 = vld [vmem:[%s356 + $0x3b0] sm:$0xff]
      %v877 = vld [vmem:[%s356 + $0x3b8] sm:$0xff]
      %v878 = vld [vmem:[%s356 + $0x3c0] sm:$0xff]
      %v879 = vld [vmem:[%s356 + $0x3c8] sm:$0xff]
      %v880 = vld [vmem:[%s356 + $0x3d0] sm:$0xff]
      %v881 = vld [vmem:[%s356 + $0x3d8] sm:$0xff]
      %v882 = vld [vmem:[%s356 + $0x3e0] sm:$0xff]
      %v883 = vld [vmem:[%s356 + $0x3e8] sm:$0xff]
      %v884 = vld [vmem:[%s356 + $0x3f0] sm:$0xff]
      %v885 = vld [vmem:[%s356 + $0x3f8] sm:$0xff]
      %v886 = vunpack.c.l.bf16 %v758
      %v887 = vunpack.c.h.bf16 %v758
      %v888 = vunpack.c.l.bf16 %v759
      %v889 = vunpack.c.h.bf16 %v759
      %v890 = vunpack.c.l.bf16 %v760
      %v891 = vunpack.c.h.bf16 %v760
      %v892 = vunpack.c.l.bf16 %v761
      %v893 = vunpack.c.h.bf16 %v761
      %v894 = vunpack.c.l.bf16 %v762
      %v895 = vunpack.c.h.bf16 %v762
      %v896 = vunpack.c.l.bf16 %v763
      %v897 = vunpack.c.h.bf16 %v763
      %v898 = vunpack.c.l.bf16 %v764
      %v899 = vunpack.c.h.bf16 %v764
      %v900 = vunpack.c.l.bf16 %v765
      %v901 = vunpack.c.h.bf16 %v765
      %v902 = vunpack.c.l.bf16 %v766
      %v903 = vunpack.c.h.bf16 %v766
      %v904 = vunpack.c.l.bf16 %v767
      %v905 = vunpack.c.h.bf16 %v767
      %v906 = vunpack.c.l.bf16 %v768
      %v907 = vunpack.c.h.bf16 %v768
      %v908 = vunpack.c.l.bf16 %v769
      %v909 = vunpack.c.h.bf16 %v769
      %v910 = vunpack.c.l.bf16 %v770
      %v911 = vunpack.c.h.bf16 %v770
      %v912 = vunpack.c.l.bf16 %v771
      %v913 = vunpack.c.h.bf16 %v771
      %v914 = vunpack.c.l.bf16 %v772
      %v915 = vunpack.c.h.bf16 %v772
      %v916 = vunpack.c.l.bf16 %v773
      %v917 = vunpack.c.h.bf16 %v773
      %v918 = vunpack.c.l.bf16 %v774
      %v919 = vunpack.c.h.bf16 %v774
      %v920 = vunpack.c.l.bf16 %v775
      %v921 = vunpack.c.h.bf16 %v775
      %v922 = vunpack.c.l.bf16 %v776
      %v923 = vunpack.c.h.bf16 %v776
      %v924 = vunpack.c.l.bf16 %v777
      %v925 = vunpack.c.h.bf16 %v777
      %v926 = vunpack.c.l.bf16 %v778
      %v927 = vunpack.c.h.bf16 %v778
      %v928 = vunpack.c.l.bf16 %v779
      %v929 = vunpack.c.h.bf16 %v779
      %v930 = vunpack.c.l.bf16 %v780
      %v931 = vunpack.c.h.bf16 %v780
      %v932 = vunpack.c.l.bf16 %v781
      %v933 = vunpack.c.h.bf16 %v781
      %v934 = vunpack.c.l.bf16 %v782
      %v935 = vunpack.c.h.bf16 %v782
      %v936 = vunpack.c.l.bf16 %v783
      %v937 = vunpack.c.h.bf16 %v783
      %v938 = vunpack.c.l.bf16 %v784
      %v939 = vunpack.c.h.bf16 %v784
      %v940 = vunpack.c.l.bf16 %v785
      %v941 = vunpack.c.h.bf16 %v785
      %v942 = vunpack.c.l.bf16 %v786
      %v943 = vunpack.c.h.bf16 %v786
      %v944 = vunpack.c.l.bf16 %v787
      %v945 = vunpack.c.h.bf16 %v787
      %v946 = vunpack.c.l.bf16 %v788
      %v947 = vunpack.c.h.bf16 %v788
      %v948 = vunpack.c.l.bf16 %v789
      %v949 = vunpack.c.h.bf16 %v789
      %v950 = vunpack.c.l.bf16 %v790
      %v951 = vunpack.c.h.bf16 %v790
      %v952 = vunpack.c.l.bf16 %v791
      %v953 = vunpack.c.h.bf16 %v791
      %v954 = vunpack.c.l.bf16 %v792
      %v955 = vunpack.c.h.bf16 %v792
      %v956 = vunpack.c.l.bf16 %v793
      %v957 = vunpack.c.h.bf16 %v793
      %v958 = vunpack.c.l.bf16 %v794
      %v959 = vunpack.c.h.bf16 %v794
      %v960 = vunpack.c.l.bf16 %v795
      %v961 = vunpack.c.h.bf16 %v795
      %v962 = vunpack.c.l.bf16 %v796
      %v963 = vunpack.c.h.bf16 %v796
      %v964 = vunpack.c.l.bf16 %v797
      %v965 = vunpack.c.h.bf16 %v797
      %v966 = vunpack.c.l.bf16 %v798
      %v967 = vunpack.c.h.bf16 %v798
      %v968 = vunpack.c.l.bf16 %v799
      %v969 = vunpack.c.h.bf16 %v799
      %v970 = vunpack.c.l.bf16 %v800
      %v971 = vunpack.c.h.bf16 %v800
      %v972 = vunpack.c.l.bf16 %v801
      %v973 = vunpack.c.h.bf16 %v801
      %v974 = vunpack.c.l.bf16 %v802
      %v975 = vunpack.c.h.bf16 %v802
      %v976 = vunpack.c.l.bf16 %v803
      %v977 = vunpack.c.h.bf16 %v803
      %v978 = vunpack.c.l.bf16 %v804
      %v979 = vunpack.c.h.bf16 %v804
      %v980 = vunpack.c.l.bf16 %v805
      %v981 = vunpack.c.h.bf16 %v805
      %v982 = vunpack.c.l.bf16 %v806
      %v983 = vunpack.c.h.bf16 %v806
      %v984 = vunpack.c.l.bf16 %v807
      %v985 = vunpack.c.h.bf16 %v807
      %v986 = vunpack.c.l.bf16 %v808
      %v987 = vunpack.c.h.bf16 %v808
      %v988 = vunpack.c.l.bf16 %v809
      %v989 = vunpack.c.h.bf16 %v809
      %v990 = vunpack.c.l.bf16 %v810
      %v991 = vunpack.c.h.bf16 %v810
      %v992 = vunpack.c.l.bf16 %v811
      %v993 = vunpack.c.h.bf16 %v811
      %v994 = vunpack.c.l.bf16 %v812
      %v995 = vunpack.c.h.bf16 %v812
      %v996 = vunpack.c.l.bf16 %v813
      %v997 = vunpack.c.h.bf16 %v813
      %v998 = vunpack.c.l.bf16 %v814
      %v999 = vunpack.c.h.bf16 %v814
      %v1000 = vunpack.c.l.bf16 %v815
      %v1001 = vunpack.c.h.bf16 %v815
      %v1002 = vunpack.c.l.bf16 %v816
      %v1003 = vunpack.c.h.bf16 %v816
      %v1004 = vunpack.c.l.bf16 %v817
      %v1005 = vunpack.c.h.bf16 %v817
      %v1006 = vunpack.c.l.bf16 %v818
      %v1007 = vunpack.c.h.bf16 %v818
      %v1008 = vunpack.c.l.bf16 %v819
      %v1009 = vunpack.c.h.bf16 %v819
      %v1010 = vunpack.c.l.bf16 %v820
      %v1011 = vunpack.c.h.bf16 %v820
      %v1012 = vunpack.c.l.bf16 %v821
      %v1013 = vunpack.c.h.bf16 %v821
      %v1014 = vunpack.c.l.bf16 %v822
      %v1015 = vunpack.c.h.bf16 %v822
      %v1016 = vunpack.c.l.bf16 %v823
      %v1017 = vunpack.c.h.bf16 %v823
      %v1018 = vunpack.c.l.bf16 %v824
      %v1019 = vunpack.c.h.bf16 %v824
      %v1020 = vunpack.c.l.bf16 %v825
      %v1021 = vunpack.c.h.bf16 %v825
      %v1022 = vunpack.c.l.bf16 %v826
      %v1023 = vunpack.c.h.bf16 %v826
      %v1024 = vunpack.c.l.bf16 %v827
      %v1025 = vunpack.c.h.bf16 %v827
      %v1026 = vunpack.c.l.bf16 %v828
      %v1027 = vunpack.c.h.bf16 %v828
      %v1028 = vunpack.c.l.bf16 %v829
      %v1029 = vunpack.c.h.bf16 %v829
      %v1030 = vunpack.c.l.bf16 %v830
      %v1031 = vunpack.c.h.bf16 %v830
      %v1032 = vunpack.c.l.bf16 %v831
      %v1033 = vunpack.c.h.bf16 %v831
      %v1034 = vunpack.c.l.bf16 %v832
      %v1035 = vunpack.c.h.bf16 %v832
      %v1036 = vunpack.c.l.bf16 %v833
      %v1037 = vunpack.c.h.bf16 %v833
      %v1038 = vunpack.c.l.bf16 %v834
      %v1039 = vunpack.c.h.bf16 %v834
      %v1040 = vunpack.c.l.bf16 %v835
      %v1041 = vunpack.c.h.bf16 %v835
      %v1042 = vunpack.c.l.bf16 %v836
      %v1043 = vunpack.c.h.bf16 %v836
      %v1044 = vunpack.c.l.bf16 %v837
      %v1045 = vunpack.c.h.bf16 %v837
      %v1046 = vunpack.c.l.bf16 %v838
      %v1047 = vunpack.c.h.bf16 %v838
      %v1048 = vunpack.c.l.bf16 %v839
      %v1049 = vunpack.c.h.bf16 %v839
      %v1050 = vunpack.c.l.bf16 %v840
      %v1051 = vunpack.c.h.bf16 %v840
      %v1052 = vunpack.c.l.bf16 %v841
      %v1053 = vunpack.c.h.bf16 %v841
      %v1054 = vunpack.c.l.bf16 %v842
      %v1055 = vunpack.c.h.bf16 %v842
      %v1056 = vunpack.c.l.bf16 %v843
      %v1057 = vunpack.c.h.bf16 %v843
      %v1058 = vunpack.c.l.bf16 %v844
      %v1059 = vunpack.c.h.bf16 %v844
      %v1060 = vunpack.c.l.bf16 %v845
      %v1061 = vunpack.c.h.bf16 %v845
      %v1062 = vunpack.c.l.bf16 %v846
      %v1063 = vunpack.c.h.bf16 %v846
      %v1064 = vunpack.c.l.bf16 %v847
      %v1065 = vunpack.c.h.bf16 %v847
      %v1066 = vunpack.c.l.bf16 %v848
      %v1067 = vunpack.c.h.bf16 %v848
      %v1068 = vunpack.c.l.bf16 %v849
      %v1069 = vunpack.c.h.bf16 %v849
      %v1070 = vunpack.c.l.bf16 %v850
      %v1071 = vunpack.c.h.bf16 %v850
      %v1072 = vunpack.c.l.bf16 %v851
      %v1073 = vunpack.c.h.bf16 %v851
      %v1074 = vunpack.c.l.bf16 %v852
      %v1075 = vunpack.c.h.bf16 %v852
      %v1076 = vunpack.c.l.bf16 %v853
      %v1077 = vunpack.c.h.bf16 %v853
      %v1078 = vunpack.c.l.bf16 %v854
      %v1079 = vunpack.c.h.bf16 %v854
      %v1080 = vunpack.c.l.bf16 %v855
      %v1081 = vunpack.c.h.bf16 %v855
      %v1082 = vunpack.c.l.bf16 %v856
      %v1083 = vunpack.c.h.bf16 %v856
      %v1084 = vunpack.c.l.bf16 %v857
      %v1085 = vunpack.c.h.bf16 %v857
      %v1086 = vunpack.c.l.bf16 %v858
      %v1087 = vunpack.c.h.bf16 %v858
      %v1088 = vunpack.c.l.bf16 %v859
      %v1089 = vunpack.c.h.bf16 %v859
      %v1090 = vunpack.c.l.bf16 %v860
      %v1091 = vunpack.c.h.bf16 %v860
      %v1092 = vunpack.c.l.bf16 %v861
      %v1093 = vunpack.c.h.bf16 %v861
      %v1094 = vunpack.c.l.bf16 %v862
      %v1095 = vunpack.c.h.bf16 %v862
      %v1096 = vunpack.c.l.bf16 %v863
      %v1097 = vunpack.c.h.bf16 %v863
      %v1098 = vunpack.c.l.bf16 %v864
      %v1099 = vunpack.c.h.bf16 %v864
      %v1100 = vunpack.c.l.bf16 %v865
      %v1101 = vunpack.c.h.bf16 %v865
      %v1102 = vunpack.c.l.bf16 %v866
      %v1103 = vunpack.c.h.bf16 %v866
      %v1104 = vunpack.c.l.bf16 %v867
      %v1105 = vunpack.c.h.bf16 %v867
      %v1106 = vunpack.c.l.bf16 %v868
      %v1107 = vunpack.c.h.bf16 %v868
      %v1108 = vunpack.c.l.bf16 %v869
      %v1109 = vunpack.c.h.bf16 %v869
      %v1110 = vunpack.c.l.bf16 %v870
      %v1111 = vunpack.c.h.bf16 %v870
      %v1112 = vunpack.c.l.bf16 %v871
      %v1113 = vunpack.c.h.bf16 %v871
      %v1114 = vunpack.c.l.bf16 %v872
      %v1115 = vunpack.c.h.bf16 %v872
      %v1116 = vunpack.c.l.bf16 %v873
      %v1117 = vunpack.c.h.bf16 %v873
      %v1118 = vunpack.c.l.bf16 %v874
      %v1119 = vunpack.c.h.bf16 %v874
      %v1120 = vunpack.c.l.bf16 %v875
      %v1121 = vunpack.c.h.bf16 %v875
      %v1122 = vunpack.c.l.bf16 %v876
      %v1123 = vunpack.c.h.bf16 %v876
      %v1124 = vunpack.c.l.bf16 %v877
      %v1125 = vunpack.c.h.bf16 %v877
      %v1126 = vunpack.c.l.bf16 %v878
      %v1127 = vunpack.c.h.bf16 %v878
      %v1128 = vunpack.c.l.bf16 %v879
      %v1129 = vunpack.c.h.bf16 %v879
      %v1130 = vunpack.c.l.bf16 %v880
      %v1131 = vunpack.c.h.bf16 %v880
      %v1132 = vunpack.c.l.bf16 %v881
      %v1133 = vunpack.c.h.bf16 %v881
      %v1134 = vunpack.c.l.bf16 %v882
      %v1135 = vunpack.c.h.bf16 %v882
      %v1136 = vunpack.c.l.bf16 %v883
      %v1137 = vunpack.c.h.bf16 %v883
      %v1138 = vunpack.c.l.bf16 %v884
      %v1139 = vunpack.c.h.bf16 %v884
      %v1140 = vunpack.c.l.bf16 %v885
      %v1141 = vunpack.c.h.bf16 %v885
      %v1142 = vlaneseq
      %v1143 = vshrl.u32 %v1142, 7
      %v1144 = vsub.s32 1, %v1143
      %v1145 = vrot.slane %v405, %v1144
      %v1146 = vlaneseq
      %v1147 = vshrl.u32 %v1146, 7
      %v1148 = vsub.s32 5, %v1147
      %v1149 = vrot.slane %v405, %v1148
      %v1150 = vlaneseq
      %v1151 = vshrl.u32 %v1150, 7
      %v1152 = vsub.s32 1, %v1151
      %v1153 = vrot.slane %v406, %v1152
      %v1154 = vlaneseq
      %v1155 = vshrl.u32 %v1154, 7
      %v1156 = vsub.s32 5, %v1155
      %v1157 = vrot.slane %v406, %v1156
      %v1162 = vlaneseq
      %v1163 = vshrl.u32 %v1162, 7
      %v1164 = vsub.s32 1, %v1163
      %v1165 = vrot.slane %v1145, %v1164
      %v1166 = vlaneseq
      %v1167 = vshrl.u32 %v1166, 7
      %v1168 = vsub.s32 1, %v1167
      %v1169 = vrot.slane %v1149, %v1168
      %v1170 = vlaneseq
      %v1171 = vshrl.u32 %v1170, 7
      %v1172 = vsub.s32 1, %v1171
      %v1173 = vrot.slane %v1153, %v1172
      %v1174 = vlaneseq
      %v1175 = vshrl.u32 %v1174, 7
      %v1176 = vsub.s32 1, %v1175
      %v1177 = vrot.slane %v1157, %v1176
      %1178 = vmatprep.subr.mxu0 %v887
      %1179 = vmatpush1.msra.mxu0 %v886
      %1180 = vmatprep.subr.mxu0 %v891
      %1181 = vmatpush1.msra.mxu0 %v890
      %1182 = vmatprep.subr.mxu0 %v895
      %1183 = vmatpush1.msra.mxu0 %v894
      %1184 = vmatprep.subr.mxu0 %v899
      %1185 = vmatpush1.msra.mxu0 %v898
      %1186 = vmatprep.subr.mxu0 %v903
      %1187 = vmatpush1.msra.mxu0 %v902
      %1188 = vmatprep.subr.mxu0 %v907
      %1189 = vmatpush1.msra.mxu0 %v906
      %1190 = vmatprep.subr.mxu0 %v911
      %1191 = vmatpush1.msra.mxu0 %v910
      %1192 = vmatprep.subr.mxu0 %v915
      %1193 = vmatpush1.msra.mxu0 %v914
      %1194 = vmatprep.subr.mxu0 %v919
      %1195 = vmatpush1.msra.mxu0 %v918
      %1196 = vmatprep.subr.mxu0 %v923
      %1197 = vmatpush1.msra.mxu0 %v922
      %1198 = vmatprep.subr.mxu0 %v927
      %1199 = vmatpush1.msra.mxu0 %v926
      %1200 = vmatprep.subr.mxu0 %v931
      %1201 = vmatpush1.msra.mxu0 %v930
      %1202 = vmatprep.subr.mxu0 %v935
      %1203 = vmatpush1.msra.mxu0 %v934
      %1204 = vmatprep.subr.mxu0 %v939
      %1205 = vmatpush1.msra.mxu0 %v938
      %1206 = vmatprep.subr.mxu0 %v943
      %1207 = vmatpush1.msra.mxu0 %v942
      %1208 = vmatprep.subr.mxu0 %v947
      %1209 = vmatpush1.msra.mxu0 %v946
      %1210 = vmatprep.subr.mxu0 %v951
      %1211 = vmatpush1.msra.mxu0 %v950
      %1212 = vmatprep.subr.mxu0 %v955
      %1213 = vmatpush1.msra.mxu0 %v954
      %1214 = vmatprep.subr.mxu0 %v959
      %1215 = vmatpush1.msra.mxu0 %v958
      %1216 = vmatprep.subr.mxu0 %v963
      %1217 = vmatpush1.msra.mxu0 %v962
      %1218 = vmatprep.subr.mxu0 %v967
      %1219 = vmatpush1.msra.mxu0 %v966
      %1220 = vmatprep.subr.mxu0 %v971
      %1221 = vmatpush1.msra.mxu0 %v970
      %1222 = vmatprep.subr.mxu0 %v975
      %1223 = vmatpush1.msra.mxu0 %v974
      %1224 = vmatprep.subr.mxu0 %v979
      %1225 = vmatpush1.msra.mxu0 %v978
      %1226 = vmatprep.subr.mxu0 %v983
      %1227 = vmatpush1.msra.mxu0 %v982
      %1228 = vmatprep.subr.mxu0 %v987
      %1229 = vmatpush1.msra.mxu0 %v986
      %1230 = vmatprep.subr.mxu0 %v991
      %1231 = vmatpush1.msra.mxu0 %v990
      %1232 = vmatprep.subr.mxu0 %v995
      %1233 = vmatpush1.msra.mxu0 %v994
      %1234 = vmatprep.subr.mxu0 %v999
      %1235 = vmatpush1.msra.mxu0 %v998
      %1236 = vmatprep.subr.mxu0 %v1003
      %1237 = vmatpush1.msra.mxu0 %v1002
      %1238 = vmatprep.subr.mxu0 %v1007
      %1239 = vmatpush1.msra.mxu0 %v1006
      %1240 = vmatprep.subr.mxu0 %v1011
      %1241 = vmatpush1.msra.mxu0 %v1010
      %1242 = vmatprep.mubr.f32.mxu0 %v755
      %1243 = vmatmul.mubr.f32.gmra.mrb[0].mxu0 %v754
      %v1244 = vpop.f32.mrb[0].mxu0
      %v1245 = vadd.f32 %v1165, %v1244
      %v1246 = vpop.f32.mrb[0].mxu0
      %v1247 = vadd.f32 %v1169, %v1246
      %1248 = vdwg.mxu0
      %1249 = vmatprep.subr.mxu0 %v1015
      %1250 = vmatpush1.msra.mxu0 %v1014
      %1251 = vmatprep.subr.mxu0 %v1019
      %1252 = vmatpush1.msra.mxu0 %v1018
      %1253 = vmatprep.subr.mxu0 %v1023
      %1254 = vmatpush1.msra.mxu0 %v1022
      %1255 = vmatprep.subr.mxu0 %v1027
      %1256 = vmatpush1.msra.mxu0 %v1026
      %1257 = vmatprep.subr.mxu0 %v1031
      %1258 = vmatpush1.msra.mxu0 %v1030
      %1259 = vmatprep.subr.mxu0 %v1035
      %1260 = vmatpush1.msra.mxu0 %v1034
      %1261 = vmatprep.subr.mxu0 %v1039
      %1262 = vmatpush1.msra.mxu0 %v1038
      %1263 = vmatprep.subr.mxu0 %v1043
      %1264 = vmatpush1.msra.mxu0 %v1042
      %1265 = vmatprep.subr.mxu0 %v1047
      %1266 = vmatpush1.msra.mxu0 %v1046
      %1267 = vmatprep.subr.mxu0 %v1051
      %1268 = vmatpush1.msra.mxu0 %v1050
      %1269 = vmatprep.subr.mxu0 %v1055
      %1270 = vmatpush1.msra.mxu0 %v1054
      %1271 = vmatprep.subr.mxu0 %v1059
      %1272 = vmatpush1.msra.mxu0 %v1058
      %1273 = vmatprep.subr.mxu0 %v1063
      %1274 = vmatpush1.msra.mxu0 %v1062
      %1275 = vmatprep.subr.mxu0 %v1067
      %1276 = vmatpush1.msra.mxu0 %v1066
      %1277 = vmatprep.subr.mxu0 %v1071
      %1278 = vmatpush1.msra.mxu0 %v1070
      %1279 = vmatprep.subr.mxu0 %v1075
      %1280 = vmatpush1.msra.mxu0 %v1074
      %1281 = vmatprep.subr.mxu0 %v1079
      %1282 = vmatpush1.msra.mxu0 %v1078
      %1283 = vmatprep.subr.mxu0 %v1083
      %1284 = vmatpush1.msra.mxu0 %v1082
      %1285 = vmatprep.subr.mxu0 %v1087
      %1286 = vmatpush1.msra.mxu0 %v1086
      %1287 = vmatprep.subr.mxu0 %v1091
      %1288 = vmatpush1.msra.mxu0 %v1090
      %1289 = vmatprep.subr.mxu0 %v1095
      %1290 = vmatpush1.msra.mxu0 %v1094
      %1291 = vmatprep.subr.mxu0 %v1099
      %1292 = vmatpush1.msra.mxu0 %v1098
      %1293 = vmatprep.subr.mxu0 %v1103
      %1294 = vmatpush1.msra.mxu0 %v1102
      %1295 = vmatprep.subr.mxu0 %v1107
      %1296 = vmatpush1.msra.mxu0 %v1106
      %1297 = vmatprep.subr.mxu0 %v1111
      %1298 = vmatpush1.msra.mxu0 %v1110
      %1299 = vmatprep.subr.mxu0 %v1115
      %1300 = vmatpush1.msra.mxu0 %v1114
      %1301 = vmatprep.subr.mxu0 %v1119
      %1302 = vmatpush1.msra.mxu0 %v1118
      %1303 = vmatprep.subr.mxu0 %v1123
      %1304 = vmatpush1.msra.mxu0 %v1122
      %1305 = vmatprep.subr.mxu0 %v1127
      %1306 = vmatpush1.msra.mxu0 %v1126
      %1307 = vmatprep.subr.mxu0 %v1131
      %1308 = vmatpush1.msra.mxu0 %v1130
      %1309 = vmatprep.subr.mxu0 %v1135
      %1310 = vmatpush1.msra.mxu0 %v1134
      %1311 = vmatprep.subr.mxu0 %v1139
      %1312 = vmatpush1.msra.mxu0 %v1138
      %1313 = vmatprep.mubr.f32.mxu0 %v757
      %1314 = vmatmul.mubr.f32.gmra.mrb[0].mxu0 %v756
      %v1315 = vpop.f32.mrb[0].mxu0
      %v1316 = vadd.f32 %v1245, %v1315
      %v1317 = vpop.f32.mrb[0].mxu0
      %v1318 = vadd.f32 %v1247, %v1317
      %1319 = vdwg.mxu0
      %1320 = vmatprep.subr.mxu0 %v889
      %1321 = vmatpush1.msra.mxu0 %v888
      %1322 = vmatprep.subr.mxu0 %v893
      %1323 = vmatpush1.msra.mxu0 %v892
      %1324 = vmatprep.subr.mxu0 %v897
      %1325 = vmatpush1.msra.mxu0 %v896
      %1326 = vmatprep.subr.mxu0 %v901
      %1327 = vmatpush1.msra.mxu0 %v900
      %1328 = vmatprep.subr.mxu0 %v905
      %1329 = vmatpush1.msra.mxu0 %v904
      %1330 = vmatprep.subr.mxu0 %v909
      %1331 = vmatpush1.msra.mxu0 %v908
      %1332 = vmatprep.subr.mxu0 %v913
      %1333 = vmatpush1.msra.mxu0 %v912
      %1334 = vmatprep.subr.mxu0 %v917
      %1335 = vmatpush1.msra.mxu0 %v916
      %1336 = vmatprep.subr.mxu0 %v921
      %1337 = vmatpush1.msra.mxu0 %v920
      %1338 = vmatprep.subr.mxu0 %v925
      %1339 = vmatpush1.msra.mxu0 %v924
      %1340 = vmatprep.subr.mxu0 %v929
      %1341 = vmatpush1.msra.mxu0 %v928
      %1342 = vmatprep.subr.mxu0 %v933
      %1343 = vmatpush1.msra.mxu0 %v932
      %1344 = vmatprep.subr.mxu0 %v937
      %1345 = vmatpush1.msra.mxu0 %v936
      %1346 = vmatprep.subr.mxu0 %v941
      %1347 = vmatpush1.msra.mxu0 %v940
      %1348 = vmatprep.subr.mxu0 %v945
      %1349 = vmatpush1.msra.mxu0 %v944
      %1350 = vmatprep.subr.mxu0 %v949
      %1351 = vmatpush1.msra.mxu0 %v948
      %1352 = vmatprep.subr.mxu0 %v953
      %1353 = vmatpush1.msra.mxu0 %v952
      %1354 = vmatprep.subr.mxu0 %v957
      %1355 = vmatpush1.msra.mxu0 %v956
      %1356 = vmatprep.subr.mxu0 %v961
      %1357 = vmatpush1.msra.mxu0 %v960
      %1358 = vmatprep.subr.mxu0 %v965
      %1359 = vmatpush1.msra.mxu0 %v964
      %1360 = vmatprep.subr.mxu0 %v969
      %1361 = vmatpush1.msra.mxu0 %v968
      %1362 = vmatprep.subr.mxu0 %v973
      %1363 = vmatpush1.msra.mxu0 %v972
      %1364 = vmatprep.subr.mxu0 %v977
      %1365 = vmatpush1.msra.mxu0 %v976
      %1366 = vmatprep.subr.mxu0 %v981
      %1367 = vmatpush1.msra.mxu0 %v980
      %1368 = vmatprep.subr.mxu0 %v985
      %1369 = vmatpush1.msra.mxu0 %v984
      %1370 = vmatprep.subr.mxu0 %v989
      %1371 = vmatpush1.msra.mxu0 %v988
      %1372 = vmatprep.subr.mxu0 %v993
      %1373 = vmatpush1.msra.mxu0 %v992
      %1374 = vmatprep.subr.mxu0 %v997
      %1375 = vmatpush1.msra.mxu0 %v996
      %1376 = vmatprep.subr.mxu0 %v1001
      %1377 = vmatpush1.msra.mxu0 %v1000
      %1378 = vmatprep.subr.mxu0 %v1005
      %1379 = vmatpush1.msra.mxu0 %v1004
      %1380 = vmatprep.subr.mxu0 %v1009
      %1381 = vmatpush1.msra.mxu0 %v1008
      %1382 = vmatprep.subr.mxu0 %v1013
      %1383 = vmatpush1.msra.mxu0 %v1012
      %1384 = vmatprep.mubr.f32.mxu0 %v755
      %1385 = vmatmul.mubr.f32.gmra.mrb[0].mxu0 %v754
      %v1386 = vpop.f32.mrb[0].mxu0
      %v1387 = vadd.f32 %v1173, %v1386
      %v1388 = vpop.f32.mrb[0].mxu0
      %v1389 = vadd.f32 %v1177, %v1388
      %1390 = vdwg.mxu0
      %1391 = vmatprep.subr.mxu0 %v1017
      %1392 = vmatpush1.msra.mxu0 %v1016
      %1393 = vmatprep.subr.mxu0 %v1021
      %1394 = vmatpush1.msra.mxu0 %v1020
      %1395 = vmatprep.subr.mxu0 %v1025
      %1396 = vmatpush1.msra.mxu0 %v1024
      %1397 = vmatprep.subr.mxu0 %v1029
      %1398 = vmatpush1.msra.mxu0 %v1028
      %1399 = vmatprep.subr.mxu0 %v1033
      %1400 = vmatpush1.msra.mxu0 %v1032
      %1401 = vmatprep.subr.mxu0 %v1037
      %1402 = vmatpush1.msra.mxu0 %v1036
      %1403 = vmatprep.subr.mxu0 %v1041
      %1404 = vmatpush1.msra.mxu0 %v1040
      %1405 = vmatprep.subr.mxu0 %v1045
      %1406 = vmatpush1.msra.mxu0 %v1044
      %1407 = vmatprep.subr.mxu0 %v1049
      %1408 = vmatpush1.msra.mxu0 %v1048
      %1409 = vmatprep.subr.mxu0 %v1053
      %1410 = vmatpush1.msra.mxu0 %v1052
      %1411 = vmatprep.subr.mxu0 %v1057
      %1412 = vmatpush1.msra.mxu0 %v1056
      %1413 = vmatprep.subr.mxu0 %v1061
      %1414 = vmatpush1.msra.mxu0 %v1060
      %1415 = vmatprep.subr.mxu0 %v1065
      %1416 = vmatpush1.msra.mxu0 %v1064
      %1417 = vmatprep.subr.mxu0 %v1069
      %1418 = vmatpush1.msra.mxu0 %v1068
      %1419 = vmatprep.subr.mxu0 %v1073
      %1420 = vmatpush1.msra.mxu0 %v1072
      %1421 = vmatprep.subr.mxu0 %v1077
      %1422 = vmatpush1.msra.mxu0 %v1076
      %1423 = vmatprep.subr.mxu0 %v1081
      %1424 = vmatpush1.msra.mxu0 %v1080
      %1425 = vmatprep.subr.mxu0 %v1085
      %1426 = vmatpush1.msra.mxu0 %v1084
      %1427 = vmatprep.subr.mxu0 %v1089
      %1428 = vmatpush1.msra.mxu0 %v1088
      %1429 = vmatprep.subr.mxu0 %v1093
      %1430 = vmatpush1.msra.mxu0 %v1092
      %1431 = vmatprep.subr.mxu0 %v1097
      %1432 = vmatpush1.msra.mxu0 %v1096
      %1433 = vmatprep.subr.mxu0 %v1101
      %1434 = vmatpush1.msra.mxu0 %v1100
      %1435 = vmatprep.subr.mxu0 %v1105
      %1436 = vmatpush1.msra.mxu0 %v1104
      %1437 = vmatprep.subr.mxu0 %v1109
      %1438 = vmatpush1.msra.mxu0 %v1108
      %1439 = vmatprep.subr.mxu0 %v1113
      %1440 = vmatpush1.msra.mxu0 %v1112
      %1441 = vmatprep.subr.mxu0 %v1117
      %1442 = vmatpush1.msra.mxu0 %v1116
      %1443 = vmatprep.subr.mxu0 %v1121
      %1444 = vmatpush1.msra.mxu0 %v1120
      %1445 = vmatprep.subr.mxu0 %v1125
      %1446 = vmatpush1.msra.mxu0 %v1124
      %1447 = vmatprep.subr.mxu0 %v1129
      %1448 = vmatpush1.msra.mxu0 %v1128
      %1449 = vmatprep.subr.mxu0 %v1133
      %1450 = vmatpush1.msra.mxu0 %v1132
      %1451 = vmatprep.subr.mxu0 %v1137
      %1452 = vmatpush1.msra.mxu0 %v1136
      %1453 = vmatprep.subr.mxu0 %v1141
      %1454 = vmatpush1.msra.mxu0 %v1140
      %1455 = vmatprep.mubr.f32.mxu0 %v757
      %1456 = vmatmul.mubr.f32.gmra.mrb[0].mxu0 %v756
      %v1457 = vpop.f32.mrb[0].mxu0
      %v1458 = vadd.f32 %v1387, %v1457
      %v1459 = vpop.f32.mrb[0].mxu0
      %v1460 = vadd.f32 %v1389, %v1459
      %1461 = vdwg.mxu0
      %v1462 = vmax.f32 %v1316, 0.0
      %v1463 = vmax.f32 %v1318, 0.0
      %v1464 = vmax.f32 %v1458, 0.0
      %v1465 = vmax.f32 %v1460, 0.0
      %v1466 = vld [vmem:[%s363] sm:$0xff]
      %v1467 = vld [vmem:[%s363 + $0x8] sm:$0xff]
      %v1468 = vld [vmem:[%s363 + $0x10] sm:$0xff]
      %v1469 = vld [vmem:[%s363 + $0x18] sm:$0xff]
      %v1470 = vld [vmem:[%s363 + $0x20] sm:$0xff]
      %v1471 = vld [vmem:[%s363 + $0x28] sm:$0xff]
      %v1472 = vld [vmem:[%s363 + $0x30] sm:$0xff]
      %v1473 = vld [vmem:[%s363 + $0x38] sm:$0xff]
      %v1474 = vld [vmem:[%s363 + $0x40] sm:$0xff]
      %v1475 = vld [vmem:[%s363 + $0x48] sm:$0xff]
      %v1476 = vld [vmem:[%s363 + $0x50] sm:$0xff]
      %v1477 = vld [vmem:[%s363 + $0x58] sm:$0xff]
      %v1478 = vld [vmem:[%s363 + $0x60] sm:$0xff]
      %v1479 = vld [vmem:[%s363 + $0x68] sm:$0xff]
      %v1480 = vld [vmem:[%s363 + $0x70] sm:$0xff]
      %v1481 = vld [vmem:[%s363 + $0x78] sm:$0xff]
      %v1482 = vld [vmem:[%s363 + $0x80] sm:$0xff]
      %v1483 = vld [vmem:[%s363 + $0x88] sm:$0xff]
      %v1484 = vld [vmem:[%s363 + $0x90] sm:$0xff]
      %v1485 = vld [vmem:[%s363 + $0x98] sm:$0xff]
      %v1486 = vld [vmem:[%s363 + $0xa0] sm:$0xff]
      %v1487 = vld [vmem:[%s363 + $0xa8] sm:$0xff]
      %v1488 = vld [vmem:[%s363 + $0xb0] sm:$0xff]
      %v1489 = vld [vmem:[%s363 + $0xb8] sm:$0xff]
      %v1490 = vld [vmem:[%s363 + $0xc0] sm:$0xff]
      %v1491 = vld [vmem:[%s363 + $0xc8] sm:$0xff]
      %v1492 = vld [vmem:[%s363 + $0xd0] sm:$0xff]
      %v1493 = vld [vmem:[%s363 + $0xd8] sm:$0xff]
      %v1494 = vld [vmem:[%s363 + $0xe0] sm:$0xff]
      %v1495 = vld [vmem:[%s363 + $0xe8] sm:$0xff]
      %v1496 = vld [vmem:[%s363 + $0xf0] sm:$0xff]
      %v1497 = vld [vmem:[%s363 + $0xf8] sm:$0xff]
      %v1498 = vld [vmem:[%s363 + $0x100] sm:$0xff]
      %v1499 = vld [vmem:[%s363 + $0x108] sm:$0xff]
      %v1500 = vld [vmem:[%s363 + $0x110] sm:$0xff]
      %v1501 = vld [vmem:[%s363 + $0x118] sm:$0xff]
      %v1502 = vld [vmem:[%s363 + $0x120] sm:$0xff]
      %v1503 = vld [vmem:[%s363 + $0x128] sm:$0xff]
      %v1504 = vld [vmem:[%s363 + $0x130] sm:$0xff]
      %v1505 = vld [vmem:[%s363 + $0x138] sm:$0xff]
      %v1506 = vld [vmem:[%s363 + $0x140] sm:$0xff]
      %v1507 = vld [vmem:[%s363 + $0x148] sm:$0xff]
      %v1508 = vld [vmem:[%s363 + $0x150] sm:$0xff]
      %v1509 = vld [vmem:[%s363 + $0x158] sm:$0xff]
      %v1510 = vld [vmem:[%s363 + $0x160] sm:$0xff]
      %v1511 = vld [vmem:[%s363 + $0x168] sm:$0xff]
      %v1512 = vld [vmem:[%s363 + $0x170] sm:$0xff]
      %v1513 = vld [vmem:[%s363 + $0x178] sm:$0xff]
      %v1514 = vld [vmem:[%s363 + $0x180] sm:$0xff]
      %v1515 = vld [vmem:[%s363 + $0x188] sm:$0xff]
      %v1516 = vld [vmem:[%s363 + $0x190] sm:$0xff]
      %v1517 = vld [vmem:[%s363 + $0x198] sm:$0xff]
      %v1518 = vld [vmem:[%s363 + $0x1a0] sm:$0xff]
      %v1519 = vld [vmem:[%s363 + $0x1a8] sm:$0xff]
      %v1520 = vld [vmem:[%s363 + $0x1b0] sm:$0xff]
      %v1521 = vld [vmem:[%s363 + $0x1b8] sm:$0xff]
      %v1522 = vld [vmem:[%s363 + $0x1c0] sm:$0xff]
      %v1523 = vld [vmem:[%s363 + $0x1c8] sm:$0xff]
      %v1524 = vld [vmem:[%s363 + $0x1d0] sm:$0xff]
      %v1525 = vld [vmem:[%s363 + $0x1d8] sm:$0xff]
      %v1526 = vld [vmem:[%s363 + $0x1e0] sm:$0xff]
      %v1527 = vld [vmem:[%s363 + $0x1e8] sm:$0xff]
      %v1528 = vld [vmem:[%s363 + $0x1f0] sm:$0xff]
      %v1529 = vld [vmem:[%s363 + $0x1f8] sm:$0xff]
      %v1530 = vld [vmem:[%s363 + $0x200] sm:$0xff]
      %v1531 = vld [vmem:[%s363 + $0x208] sm:$0xff]
      %v1532 = vld [vmem:[%s363 + $0x210] sm:$0xff]
      %v1533 = vld [vmem:[%s363 + $0x218] sm:$0xff]
      %v1534 = vld [vmem:[%s363 + $0x220] sm:$0xff]
      %v1535 = vld [vmem:[%s363 + $0x228] sm:$0xff]
      %v1536 = vld [vmem:[%s363 + $0x230] sm:$0xff]
      %v1537 = vld [vmem:[%s363 + $0x238] sm:$0xff]
      %v1538 = vld [vmem:[%s363 + $0x240] sm:$0xff]
      %v1539 = vld [vmem:[%s363 + $0x248] sm:$0xff]
      %v1540 = vld [vmem:[%s363 + $0x250] sm:$0xff]
      %v1541 = vld [vmem:[%s363 + $0x258] sm:$0xff]
      %v1542 = vld [vmem:[%s363 + $0x260] sm:$0xff]
      %v1543 = vld [vmem:[%s363 + $0x268] sm:$0xff]
      %v1544 = vld [vmem:[%s363 + $0x270] sm:$0xff]
      %v1545 = vld [vmem:[%s363 + $0x278] sm:$0xff]
      %v1546 = vld [vmem:[%s363 + $0x280] sm:$0xff]
      %v1547 = vld [vmem:[%s363 + $0x288] sm:$0xff]
      %v1548 = vld [vmem:[%s363 + $0x290] sm:$0xff]
      %v1549 = vld [vmem:[%s363 + $0x298] sm:$0xff]
      %v1550 = vld [vmem:[%s363 + $0x2a0] sm:$0xff]
      %v1551 = vld [vmem:[%s363 + $0x2a8] sm:$0xff]
      %v1552 = vld [vmem:[%s363 + $0x2b0] sm:$0xff]
      %v1553 = vld [vmem:[%s363 + $0x2b8] sm:$0xff]
      %v1554 = vld [vmem:[%s363 + $0x2c0] sm:$0xff]
      %v1555 = vld [vmem:[%s363 + $0x2c8] sm:$0xff]
      %v1556 = vld [vmem:[%s363 + $0x2d0] sm:$0xff]
      %v1557 = vld [vmem:[%s363 + $0x2d8] sm:$0xff]
      %v1558 = vld [vmem:[%s363 + $0x2e0] sm:$0xff]
      %v1559 = vld [vmem:[%s363 + $0x2e8] sm:$0xff]
      %v1560 = vld [vmem:[%s363 + $0x2f0] sm:$0xff]
      %v1561 = vld [vmem:[%s363 + $0x2f8] sm:$0xff]
      %v1562 = vld [vmem:[%s363 + $0x300] sm:$0xff]
      %v1563 = vld [vmem:[%s363 + $0x308] sm:$0xff]
      %v1564 = vld [vmem:[%s363 + $0x310] sm:$0xff]
      %v1565 = vld [vmem:[%s363 + $0x318] sm:$0xff]
      %v1566 = vld [vmem:[%s363 + $0x320] sm:$0xff]
      %v1567 = vld [vmem:[%s363 + $0x328] sm:$0xff]
      %v1568 = vld [vmem:[%s363 + $0x330] sm:$0xff]
      %v1569 = vld [vmem:[%s363 + $0x338] sm:$0xff]
      %v1570 = vld [vmem:[%s363 + $0x340] sm:$0xff]
      %v1571 = vld [vmem:[%s363 + $0x348] sm:$0xff]
      %v1572 = vld [vmem:[%s363 + $0x350] sm:$0xff]
      %v1573 = vld [vmem:[%s363 + $0x358] sm:$0xff]
      %v1574 = vld [vmem:[%s363 + $0x360] sm:$0xff]
      %v1575 = vld [vmem:[%s363 + $0x368] sm:$0xff]
      %v1576 = vld [vmem:[%s363 + $0x370] sm:$0xff]
      %v1577 = vld [vmem:[%s363 + $0x378] sm:$0xff]
      %v1578 = vld [vmem:[%s363 + $0x380] sm:$0xff]
      %v1579 = vld [vmem:[%s363 + $0x388] sm:$0xff]
      %v1580 = vld [vmem:[%s363 + $0x390] sm:$0xff]
      %v1581 = vld [vmem:[%s363 + $0x398] sm:$0xff]
      %v1582 = vld [vmem:[%s363 + $0x3a0] sm:$0xff]
      %v1583 = vld [vmem:[%s363 + $0x3a8] sm:$0xff]
      %v1584 = vld [vmem:[%s363 + $0x3b0] sm:$0xff]
      %v1585 = vld [vmem:[%s363 + $0x3b8] sm:$0xff]
      %v1586 = vld [vmem:[%s363 + $0x3c0] sm:$0xff]
      %v1587 = vld [vmem:[%s363 + $0x3c8] sm:$0xff]
      %v1588 = vld [vmem:[%s363 + $0x3d0] sm:$0xff]
      %v1589 = vld [vmem:[%s363 + $0x3d8] sm:$0xff]
      %v1590 = vld [vmem:[%s363 + $0x3e0] sm:$0xff]
      %v1591 = vld [vmem:[%s363 + $0x3e8] sm:$0xff]
      %v1592 = vld [vmem:[%s363 + $0x3f0] sm:$0xff]
      %v1593 = vld [vmem:[%s363 + $0x3f8] sm:$0xff]
      %v1594 = vunpack.c.l.bf16 %v1466
      %v1595 = vunpack.c.h.bf16 %v1466
      %v1596 = vunpack.c.l.bf16 %v1467
      %v1597 = vunpack.c.h.bf16 %v1467
      %v1598 = vunpack.c.l.bf16 %v1468
      %v1599 = vunpack.c.h.bf16 %v1468
      %v1600 = vunpack.c.l.bf16 %v1469
      %v1601 = vunpack.c.h.bf16 %v1469
      %v1602 = vunpack.c.l.bf16 %v1470
      %v1603 = vunpack.c.h.bf16 %v1470
      %v1604 = vunpack.c.l.bf16 %v1471
      %v1605 = vunpack.c.h.bf16 %v1471
      %v1606 = vunpack.c.l.bf16 %v1472
      %v1607 = vunpack.c.h.bf16 %v1472
      %v1608 = vunpack.c.l.bf16 %v1473
      %v1609 = vunpack.c.h.bf16 %v1473
      %v1610 = vunpack.c.l.bf16 %v1474
      %v1611 = vunpack.c.h.bf16 %v1474
      %v1612 = vunpack.c.l.bf16 %v1475
      %v1613 = vunpack.c.h.bf16 %v1475
      %v1614 = vunpack.c.l.bf16 %v1476
      %v1615 = vunpack.c.h.bf16 %v1476
      %v1616 = vunpack.c.l.bf16 %v1477
      %v1617 = vunpack.c.h.bf16 %v1477
      %v1618 = vunpack.c.l.bf16 %v1478
      %v1619 = vunpack.c.h.bf16 %v1478
      %v1620 = vunpack.c.l.bf16 %v1479
      %v1621 = vunpack.c.h.bf16 %v1479
      %v1622 = vunpack.c.l.bf16 %v1480
      %v1623 = vunpack.c.h.bf16 %v1480
      %v1624 = vunpack.c.l.bf16 %v1481
      %v1625 = vunpack.c.h.bf16 %v1481
      %v1626 = vunpack.c.l.bf16 %v1482
      %v1627 = vunpack.c.h.bf16 %v1482
      %v1628 = vunpack.c.l.bf16 %v1483
      %v1629 = vunpack.c.h.bf16 %v1483
      %v1630 = vunpack.c.l.bf16 %v1484
      %v1631 = vunpack.c.h.bf16 %v1484
      %v1632 = vunpack.c.l.bf16 %v1485
      %v1633 = vunpack.c.h.bf16 %v1485
      %v1634 = vunpack.c.l.bf16 %v1486
      %v1635 = vunpack.c.h.bf16 %v1486
      %v1636 = vunpack.c.l.bf16 %v1487
      %v1637 = vunpack.c.h.bf16 %v1487
      %v1638 = vunpack.c.l.bf16 %v1488
      %v1639 = vunpack.c.h.bf16 %v1488
      %v1640 = vunpack.c.l.bf16 %v1489
      %v1641 = vunpack.c.h.bf16 %v1489
      %v1642 = vunpack.c.l.bf16 %v1490
      %v1643 = vunpack.c.h.bf16 %v1490
      %v1644 = vunpack.c.l.bf16 %v1491
      %v1645 = vunpack.c.h.bf16 %v1491
      %v1646 = vunpack.c.l.bf16 %v1492
      %v1647 = vunpack.c.h.bf16 %v1492
      %v1648 = vunpack.c.l.bf16 %v1493
      %v1649 = vunpack.c.h.bf16 %v1493
      %v1650 = vunpack.c.l.bf16 %v1494
      %v1651 = vunpack.c.h.bf16 %v1494
      %v1652 = vunpack.c.l.bf16 %v1495
      %v1653 = vunpack.c.h.bf16 %v1495
      %v1654 = vunpack.c.l.bf16 %v1496
      %v1655 = vunpack.c.h.bf16 %v1496
      %v1656 = vunpack.c.l.bf16 %v1497
      %v1657 = vunpack.c.h.bf16 %v1497
      %v1658 = vunpack.c.l.bf16 %v1498
      %v1659 = vunpack.c.h.bf16 %v1498
      %v1660 = vunpack.c.l.bf16 %v1499
      %v1661 = vunpack.c.h.bf16 %v1499
      %v1662 = vunpack.c.l.bf16 %v1500
      %v1663 = vunpack.c.h.bf16 %v1500
      %v1664 = vunpack.c.l.bf16 %v1501
      %v1665 = vunpack.c.h.bf16 %v1501
      %v1666 = vunpack.c.l.bf16 %v1502
      %v1667 = vunpack.c.h.bf16 %v1502
      %v1668 = vunpack.c.l.bf16 %v1503
      %v1669 = vunpack.c.h.bf16 %v1503
      %v1670 = vunpack.c.l.bf16 %v1504
      %v1671 = vunpack.c.h.bf16 %v1504
      %v1672 = vunpack.c.l.bf16 %v1505
      %v1673 = vunpack.c.h.bf16 %v1505
      %v1674 = vunpack.c.l.bf16 %v1506
      %v1675 = vunpack.c.h.bf16 %v1506
      %v1676 = vunpack.c.l.bf16 %v1507
      %v1677 = vunpack.c.h.bf16 %v1507
      %v1678 = vunpack.c.l.bf16 %v1508
      %v1679 = vunpack.c.h.bf16 %v1508
      %v1680 = vunpack.c.l.bf16 %v1509
      %v1681 = vunpack.c.h.bf16 %v1509
      %v1682 = vunpack.c.l.bf16 %v1510
      %v1683 = vunpack.c.h.bf16 %v1510
      %v1684 = vunpack.c.l.bf16 %v1511
      %v1685 = vunpack.c.h.bf16 %v1511
      %v1686 = vunpack.c.l.bf16 %v1512
      %v1687 = vunpack.c.h.bf16 %v1512
      %v1688 = vunpack.c.l.bf16 %v1513
      %v1689 = vunpack.c.h.bf16 %v1513
      %v1690 = vunpack.c.l.bf16 %v1514
      %v1691 = vunpack.c.h.bf16 %v1514
      %v1692 = vunpack.c.l.bf16 %v1515
      %v1693 = vunpack.c.h.bf16 %v1515
      %v1694 = vunpack.c.l.bf16 %v1516
      %v1695 = vunpack.c.h.bf16 %v1516
      %v1696 = vunpack.c.l.bf16 %v1517
      %v1697 = vunpack.c.h.bf16 %v1517
      %v1698 = vunpack.c.l.bf16 %v1518
      %v1699 = vunpack.c.h.bf16 %v1518
      %v1700 = vunpack.c.l.bf16 %v1519
      %v1701 = vunpack.c.h.bf16 %v1519
      %v1702 = vunpack.c.l.bf16 %v1520
      %v1703 = vunpack.c.h.bf16 %v1520
      %v1704 = vunpack.c.l.bf16 %v1521
      %v1705 = vunpack.c.h.bf16 %v1521
      %v1706 = vunpack.c.l.bf16 %v1522
      %v1707 = vunpack.c.h.bf16 %v1522
      %v1708 = vunpack.c.l.bf16 %v1523
      %v1709 = vunpack.c.h.bf16 %v1523
      %v1710 = vunpack.c.l.bf16 %v1524
      %v1711 = vunpack.c.h.bf16 %v1524
      %v1712 = vunpack.c.l.bf16 %v1525
      %v1713 = vunpack.c.h.bf16 %v1525
      %v1714 = vunpack.c.l.bf16 %v1526
      %v1715 = vunpack.c.h.bf16 %v1526
      %v1716 = vunpack.c.l.bf16 %v1527
      %v1717 = vunpack.c.h.bf16 %v1527
      %v1718 = vunpack.c.l.bf16 %v1528
      %v1719 = vunpack.c.h.bf16 %v1528
      %v1720 = vunpack.c.l.bf16 %v1529
      %v1721 = vunpack.c.h.bf16 %v1529
      %v1722 = vunpack.c.l.bf16 %v1530
      %v1723 = vunpack.c.h.bf16 %v1530
      %v1724 = vunpack.c.l.bf16 %v1531
      %v1725 = vunpack.c.h.bf16 %v1531
      %v1726 = vunpack.c.l.bf16 %v1532
      %v1727 = vunpack.c.h.bf16 %v1532
      %v1728 = vunpack.c.l.bf16 %v1533
      %v1729 = vunpack.c.h.bf16 %v1533
      %v1730 = vunpack.c.l.bf16 %v1534
      %v1731 = vunpack.c.h.bf16 %v1534
      %v1732 = vunpack.c.l.bf16 %v1535
      %v1733 = vunpack.c.h.bf16 %v1535
      %v1734 = vunpack.c.l.bf16 %v1536
      %v1735 = vunpack.c.h.bf16 %v1536
      %v1736 = vunpack.c.l.bf16 %v1537
      %v1737 = vunpack.c.h.bf16 %v1537
      %v1738 = vunpack.c.l.bf16 %v1538
      %v1739 = vunpack.c.h.bf16 %v1538
      %v1740 = vunpack.c.l.bf16 %v1539
      %v1741 = vunpack.c.h.bf16 %v1539
      %v1742 = vunpack.c.l.bf16 %v1540
      %v1743 = vunpack.c.h.bf16 %v1540
      %v1744 = vunpack.c.l.bf16 %v1541
      %v1745 = vunpack.c.h.bf16 %v1541
      %v1746 = vunpack.c.l.bf16 %v1542
      %v1747 = vunpack.c.h.bf16 %v1542
      %v1748 = vunpack.c.l.bf16 %v1543
      %v1749 = vunpack.c.h.bf16 %v1543
      %v1750 = vunpack.c.l.bf16 %v1544
      %v1751 = vunpack.c.h.bf16 %v1544
      %v1752 = vunpack.c.l.bf16 %v1545
      %v1753 = vunpack.c.h.bf16 %v1545
      %v1754 = vunpack.c.l.bf16 %v1546
      %v1755 = vunpack.c.h.bf16 %v1546
      %v1756 = vunpack.c.l.bf16 %v1547
      %v1757 = vunpack.c.h.bf16 %v1547
      %v1758 = vunpack.c.l.bf16 %v1548
      %v1759 = vunpack.c.h.bf16 %v1548
      %v1760 = vunpack.c.l.bf16 %v1549
      %v1761 = vunpack.c.h.bf16 %v1549
      %v1762 = vunpack.c.l.bf16 %v1550
      %v1763 = vunpack.c.h.bf16 %v1550
      %v1764 = vunpack.c.l.bf16 %v1551
      %v1765 = vunpack.c.h.bf16 %v1551
      %v1766 = vunpack.c.l.bf16 %v1552
      %v1767 = vunpack.c.h.bf16 %v1552
      %v1768 = vunpack.c.l.bf16 %v1553
      %v1769 = vunpack.c.h.bf16 %v1553
      %v1770 = vunpack.c.l.bf16 %v1554
      %v1771 = vunpack.c.h.bf16 %v1554
      %v1772 = vunpack.c.l.bf16 %v1555
      %v1773 = vunpack.c.h.bf16 %v1555
      %v1774 = vunpack.c.l.bf16 %v1556
      %v1775 = vunpack.c.h.bf16 %v1556
      %v1776 = vunpack.c.l.bf16 %v1557
      %v1777 = vunpack.c.h.bf16 %v1557
      %v1778 = vunpack.c.l.bf16 %v1558
      %v1779 = vunpack.c.h.bf16 %v1558
      %v1780 = vunpack.c.l.bf16 %v1559
      %v1781 = vunpack.c.h.bf16 %v1559
      %v1782 = vunpack.c.l.bf16 %v1560
      %v1783 = vunpack.c.h.bf16 %v1560
      %v1784 = vunpack.c.l.bf16 %v1561
      %v1785 = vunpack.c.h.bf16 %v1561
      %v1786 = vunpack.c.l.bf16 %v1562
      %v1787 = vunpack.c.h.bf16 %v1562
      %v1788 = vunpack.c.l.bf16 %v1563
      %v1789 = vunpack.c.h.bf16 %v1563
      %v1790 = vunpack.c.l.bf16 %v1564
      %v1791 = vunpack.c.h.bf16 %v1564
      %v1792 = vunpack.c.l.bf16 %v1565
      %v1793 = vunpack.c.h.bf16 %v1565
      %v1794 = vunpack.c.l.bf16 %v1566
      %v1795 = vunpack.c.h.bf16 %v1566
      %v1796 = vunpack.c.l.bf16 %v1567
      %v1797 = vunpack.c.h.bf16 %v1567
      %v1798 = vunpack.c.l.bf16 %v1568
      %v1799 = vunpack.c.h.bf16 %v1568
      %v1800 = vunpack.c.l.bf16 %v1569
      %v1801 = vunpack.c.h.bf16 %v1569
      %v1802 = vunpack.c.l.bf16 %v1570
      %v1803 = vunpack.c.h.bf16 %v1570
      %v1804 = vunpack.c.l.bf16 %v1571
      %v1805 = vunpack.c.h.bf16 %v1571
      %v1806 = vunpack.c.l.bf16 %v1572
      %v1807 = vunpack.c.h.bf16 %v1572
      %v1808 = vunpack.c.l.bf16 %v1573
      %v1809 = vunpack.c.h.bf16 %v1573
      %v1810 = vunpack.c.l.bf16 %v1574
      %v1811 = vunpack.c.h.bf16 %v1574
      %v1812 = vunpack.c.l.bf16 %v1575
      %v1813 = vunpack.c.h.bf16 %v1575
      %v1814 = vunpack.c.l.bf16 %v1576
      %v1815 = vunpack.c.h.bf16 %v1576
      %v1816 = vunpack.c.l.bf16 %v1577
      %v1817 = vunpack.c.h.bf16 %v1577
      %v1818 = vunpack.c.l.bf16 %v1578
      %v1819 = vunpack.c.h.bf16 %v1578
      %v1820 = vunpack.c.l.bf16 %v1579
      %v1821 = vunpack.c.h.bf16 %v1579
      %v1822 = vunpack.c.l.bf16 %v1580
      %v1823 = vunpack.c.h.bf16 %v1580
      %v1824 = vunpack.c.l.bf16 %v1581
      %v1825 = vunpack.c.h.bf16 %v1581
      %v1826 = vunpack.c.l.bf16 %v1582
      %v1827 = vunpack.c.h.bf16 %v1582
      %v1828 = vunpack.c.l.bf16 %v1583
      %v1829 = vunpack.c.h.bf16 %v1583
      %v1830 = vunpack.c.l.bf16 %v1584
      %v1831 = vunpack.c.h.bf16 %v1584
      %v1832 = vunpack.c.l.bf16 %v1585
      %v1833 = vunpack.c.h.bf16 %v1585
      %v1834 = vunpack.c.l.bf16 %v1586
      %v1835 = vunpack.c.h.bf16 %v1586
      %v1836 = vunpack.c.l.bf16 %v1587
      %v1837 = vunpack.c.h.bf16 %v1587
      %v1838 = vunpack.c.l.bf16 %v1588
      %v1839 = vunpack.c.h.bf16 %v1588
      %v1840 = vunpack.c.l.bf16 %v1589
      %v1841 = vunpack.c.h.bf16 %v1589
      %v1842 = vunpack.c.l.bf16 %v1590
      %v1843 = vunpack.c.h.bf16 %v1590
      %v1844 = vunpack.c.l.bf16 %v1591
      %v1845 = vunpack.c.h.bf16 %v1591
      %v1846 = vunpack.c.l.bf16 %v1592
      %v1847 = vunpack.c.h.bf16 %v1592
      %v1848 = vunpack.c.l.bf16 %v1593
      %v1849 = vunpack.c.h.bf16 %v1593
      %v1850 = vlaneseq
      %v1851 = vshrl.u32 %v1850, 7
      %v1852 = vsub.s32 2, %v1851
      %v1853 = vrot.slane %v405, %v1852
      %v1854 = vlaneseq
      %v1855 = vshrl.u32 %v1854, 7
      %v1856 = vsub.s32 6, %v1855
      %v1857 = vrot.slane %v405, %v1856
      %v1858 = vlaneseq
      %v1859 = vshrl.u32 %v1858, 7
      %v1860 = vsub.s32 2, %v1859
      %v1861 = vrot.slane %v406, %v1860
      %v1862 = vlaneseq
      %v1863 = vshrl.u32 %v1862, 7
      %v1864 = vsub.s32 6, %v1863
      %v1865 = vrot.slane %v406, %v1864
      %v1870 = vlaneseq
      %v1871 = vshrl.u32 %v1870, 7
      %v1872 = vsub.s32 2, %v1871
      %v1873 = vrot.slane %v1853, %v1872
      %v1874 = vlaneseq
      %v1875 = vshrl.u32 %v1874, 7
      %v1876 = vsub.s32 2, %v1875
      %v1877 = vrot.slane %v1857, %v1876
      %v1878 = vlaneseq
      %v1879 = vshrl.u32 %v1878, 7
      %v1880 = vsub.s32 2, %v1879
      %v1881 = vrot.slane %v1861, %v1880
      %v1882 = vlaneseq
      %v1883 = vshrl.u32 %v1882, 7
      %v1884 = vsub.s32 2, %v1883
      %v1885 = vrot.slane %v1865, %v1884
      %1886 = vmatprep.subr.mxu0 %v1595
      %1887 = vmatpush1.msra.mxu0 %v1594
      %1888 = vmatprep.subr.mxu0 %v1599
      %1889 = vmatpush1.msra.mxu0 %v1598
      %1890 = vmatprep.subr.mxu0 %v1603
      %1891 = vmatpush1.msra.mxu0 %v1602
      %1892 = vmatprep.subr.mxu0 %v1607
      %1893 = vmatpush1.msra.mxu0 %v1606
      %1894 = vmatprep.subr.mxu0 %v1611
      %1895 = vmatpush1.msra.mxu0 %v1610
      %1896 = vmatprep.subr.mxu0 %v1615
      %1897 = vmatpush1.msra.mxu0 %v1614
      %1898 = vmatprep.subr.mxu0 %v1619
      %1899 = vmatpush1.msra.mxu0 %v1618
      %1900 = vmatprep.subr.mxu0 %v1623
      %1901 = vmatpush1.msra.mxu0 %v1622
      %1902 = vmatprep.subr.mxu0 %v1627
      %1903 = vmatpush1.msra.mxu0 %v1626
      %1904 = vmatprep.subr.mxu0 %v1631
      %1905 = vmatpush1.msra.mxu0 %v1630
      %1906 = vmatprep.subr.mxu0 %v1635
      %1907 = vmatpush1.msra.mxu0 %v1634
      %1908 = vmatprep.subr.mxu0 %v1639
      %1909 = vmatpush1.msra.mxu0 %v1638
      %1910 = vmatprep.subr.mxu0 %v1643
      %1911 = vmatpush1.msra.mxu0 %v1642
      %1912 = vmatprep.subr.mxu0 %v1647
      %1913 = vmatpush1.msra.mxu0 %v1646
      %1914 = vmatprep.subr.mxu0 %v1651
      %1915 = vmatpush1.msra.mxu0 %v1650
      %1916 = vmatprep.subr.mxu0 %v1655
      %1917 = vmatpush1.msra.mxu0 %v1654
      %1918 = vmatprep.subr.mxu0 %v1659
      %1919 = vmatpush1.msra.mxu0 %v1658
      %1920 = vmatprep.subr.mxu0 %v1663
      %1921 = vmatpush1.msra.mxu0 %v1662
      %1922 = vmatprep.subr.mxu0 %v1667
      %1923 = vmatpush1.msra.mxu0 %v1666
      %1924 = vmatprep.subr.mxu0 %v1671
      %1925 = vmatpush1.msra.mxu0 %v1670
      %1926 = vmatprep.subr.mxu0 %v1675
      %1927 = vmatpush1.msra.mxu0 %v1674
      %1928 = vmatprep.subr.mxu0 %v1679
      %1929 = vmatpush1.msra.mxu0 %v1678
      %1930 = vmatprep.subr.mxu0 %v1683
      %1931 = vmatpush1.msra.mxu0 %v1682
      %1932 = vmatprep.subr.mxu0 %v1687
      %1933 = vmatpush1.msra.mxu0 %v1686
      %1934 = vmatprep.subr.mxu0 %v1691
      %1935 = vmatpush1.msra.mxu0 %v1690
      %1936 = vmatprep.subr.mxu0 %v1695
      %1937 = vmatpush1.msra.mxu0 %v1694
      %1938 = vmatprep.subr.mxu0 %v1699
      %1939 = vmatpush1.msra.mxu0 %v1698
      %1940 = vmatprep.subr.mxu0 %v1703
      %1941 = vmatpush1.msra.mxu0 %v1702
      %1942 = vmatprep.subr.mxu0 %v1707
      %1943 = vmatpush1.msra.mxu0 %v1706
      %1944 = vmatprep.subr.mxu0 %v1711
      %1945 = vmatpush1.msra.mxu0 %v1710
      %1946 = vmatprep.subr.mxu0 %v1715
      %1947 = vmatpush1.msra.mxu0 %v1714
      %1948 = vmatprep.subr.mxu0 %v1719
      %1949 = vmatpush1.msra.mxu0 %v1718
      %1950 = vmatprep.mubr.f32.mxu0 %v1463
      %1951 = vmatmul.mubr.f32.gmra.mrb[0].mxu0 %v1462
      %v1952 = vpop.f32.mrb[0].mxu0
      %v1953 = vadd.f32 %v1873, %v1952
      %v1954 = vpop.f32.mrb[0].mxu0
      %v1955 = vadd.f32 %v1877, %v1954
      %1956 = vdwg.mxu0
      %1957 = vmatprep.subr.mxu0 %v1723
      %1958 = vmatpush1.msra.mxu0 %v1722
      %1959 = vmatprep.subr.mxu0 %v1727
      %1960 = vmatpush1.msra.mxu0 %v1726
      %1961 = vmatprep.subr.mxu0 %v1731
      %1962 = vmatpush1.msra.mxu0 %v1730
      %1963 = vmatprep.subr.mxu0 %v1735
      %1964 = vmatpush1.msra.mxu0 %v1734
      %1965 = vmatprep.subr.mxu0 %v1739
      %1966 = vmatpush1.msra.mxu0 %v1738
      %1967 = vmatprep.subr.mxu0 %v1743
      %1968 = vmatpush1.msra.mxu0 %v1742
      %1969 = vmatprep.subr.mxu0 %v1747
      %1970 = vmatpush1.msra.mxu0 %v1746
      %1971 = vmatprep.subr.mxu0 %v1751
      %1972 = vmatpush1.msra.mxu0 %v1750
      %1973 = vmatprep.subr.mxu0 %v1755
      %1974 = vmatpush1.msra.mxu0 %v1754
      %1975 = vmatprep.subr.mxu0 %v1759
      %1976 = vmatpush1.msra.mxu0 %v1758
      %1977 = vmatprep.subr.mxu0 %v1763
      %1978 = vmatpush1.msra.mxu0 %v1762
      %1979 = vmatprep.subr.mxu0 %v1767
      %1980 = vmatpush1.msra.mxu0 %v1766
      %1981 = vmatprep.subr.mxu0 %v1771
      %1982 = vmatpush1.msra.mxu0 %v1770
      %1983 = vmatprep.subr.mxu0 %v1775
      %1984 = vmatpush1.msra.mxu0 %v1774
      %1985 = vmatprep.subr.mxu0 %v1779
      %1986 = vmatpush1.msra.mxu0 %v1778
      %1987 = vmatprep.subr.mxu0 %v1783
      %1988 = vmatpush1.msra.mxu0 %v1782
      %1989 = vmatprep.subr.mxu0 %v1787
      %1990 = vmatpush1.msra.mxu0 %v1786
      %1991 = vmatprep.subr.mxu0 %v1791
      %1992 = vmatpush1.msra.mxu0 %v1790
      %1993 = vmatprep.subr.mxu0 %v1795
      %1994 = vmatpush1.msra.mxu0 %v1794
      %1995 = vmatprep.subr.mxu0 %v1799
      %1996 = vmatpush1.msra.mxu0 %v1798
      %1997 = vmatprep.subr.mxu0 %v1803
      %1998 = vmatpush1.msra.mxu0 %v1802
      %1999 = vmatprep.subr.mxu0 %v1807
      %2000 = vmatpush1.msra.mxu0 %v1806
      %2001 = vmatprep.subr.mxu0 %v1811
      %2002 = vmatpush1.msra.mxu0 %v1810
      %2003 = vmatprep.subr.mxu0 %v1815
      %2004 = vmatpush1.msra.mxu0 %v1814
      %2005 = vmatprep.subr.mxu0 %v1819
      %2006 = vmatpush1.msra.mxu0 %v1818
      %2007 = vmatprep.subr.mxu0 %v1823
      %2008 = vmatpush1.msra.mxu0 %v1822
      %2009 = vmatprep.subr.mxu0 %v1827
      %2010 = vmatpush1.msra.mxu0 %v1826
      %2011 = vmatprep.subr.mxu0 %v1831
      %2012 = vmatpush1.msra.mxu0 %v1830
      %2013 = vmatprep.subr.mxu0 %v1835
      %2014 = vmatpush1.msra.mxu0 %v1834
      %2015 = vmatprep.subr.mxu0 %v1839
      %2016 = vmatpush1.msra.mxu0 %v1838
      %2017 = vmatprep.subr.mxu0 %v1843
      %2018 = vmatpush1.msra.mxu0 %v1842
      %2019 = vmatprep.subr.mxu0 %v1847
      %2020 = vmatpush1.msra.mxu0 %v1846
      %2021 = vmatprep.mubr.f32.mxu0 %v1465
      %2022 = vmatmul.mubr.f32.gmra.mrb[0].mxu0 %v1464
      %v2023 = vpop.f32.mrb[0].mxu0
      %v2024 = vadd.f32 %v1953, %v2023
      %v2025 = vpop.f32.mrb[0].mxu0
      %v2026 = vadd.f32 %v1955, %v2025
      %2027 = vdwg.mxu0
      %2028 = vmatprep.subr.mxu0 %v1597
      %2029 = vmatpush1.msra.mxu0 %v1596
      %2030 = vmatprep.subr.mxu0 %v1601
      %2031 = vmatpush1.msra.mxu0 %v1600
      %2032 = vmatprep.subr.mxu0 %v1605
      %2033 = vmatpush1.msra.mxu0 %v1604
      %2034 = vmatprep.subr.mxu0 %v1609
      %2035 = vmatpush1.msra.mxu0 %v1608
      %2036 = vmatprep.subr.mxu0 %v1613
      %2037 = vmatpush1.msra.mxu0 %v1612
      %2038 = vmatprep.subr.mxu0 %v1617
      %2039 = vmatpush1.msra.mxu0 %v1616
      %2040 = vmatprep.subr.mxu0 %v1621
      %2041 = vmatpush1.msra.mxu0 %v1620
      %2042 = vmatprep.subr.mxu0 %v1625
      %2043 = vmatpush1.msra.mxu0 %v1624
      %2044 = vmatprep.subr.mxu0 %v1629
      %2045 = vmatpush1.msra.mxu0 %v1628
      %2046 = vmatprep.subr.mxu0 %v1633
      %2047 = vmatpush1.msra.mxu0 %v1632
      %2048 = vmatprep.subr.mxu0 %v1637
      %2049 = vmatpush1.msra.mxu0 %v1636
      %2050 = vmatprep.subr.mxu0 %v1641
      %2051 = vmatpush1.msra.mxu0 %v1640
      %2052 = vmatprep.subr.mxu0 %v1645
      %2053 = vmatpush1.msra.mxu0 %v1644
      %2054 = vmatprep.subr.mxu0 %v1649
      %2055 = vmatpush1.msra.mxu0 %v1648
      %2056 = vmatprep.subr.mxu0 %v1653
      %2057 = vmatpush1.msra.mxu0 %v1652
      %2058 = vmatprep.subr.mxu0 %v1657
      %2059 = vmatpush1.msra.mxu0 %v1656
      %2060 = vmatprep.subr.mxu0 %v1661
      %2061 = vmatpush1.msra.mxu0 %v1660
      %2062 = vmatprep.subr.mxu0 %v1665
      %2063 = vmatpush1.msra.mxu0 %v1664
      %2064 = vmatprep.subr.mxu0 %v1669
      %2065 = vmatpush1.msra.mxu0 %v1668
      %2066 = vmatprep.subr.mxu0 %v1673
      %2067 = vmatpush1.msra.mxu0 %v1672
      %2068 = vmatprep.subr.mxu0 %v1677
      %2069 = vmatpush1.msra.mxu0 %v1676
      %2070 = vmatprep.subr.mxu0 %v1681
      %2071 = vmatpush1.msra.mxu0 %v1680
      %2072 = vmatprep.subr.mxu0 %v1685
      %2073 = vmatpush1.msra.mxu0 %v1684
      %2074 = vmatprep.subr.mxu0 %v1689
      %2075 = vmatpush1.msra.mxu0 %v1688
      %2076 = vmatprep.subr.mxu0 %v1693
      %2077 = vmatpush1.msra.mxu0 %v1692
      %2078 = vmatprep.subr.mxu0 %v1697
      %2079 = vmatpush1.msra.mxu0 %v1696
      %2080 = vmatprep.subr.mxu0 %v1701
      %2081 = vmatpush1.msra.mxu0 %v1700
      %2082 = vmatprep.subr.mxu0 %v1705
      %2083 = vmatpush1.msra.mxu0 %v1704
      %2084 = vmatprep.subr.mxu0 %v1709
      %2085 = vmatpush1.msra.mxu0 %v1708
      %2086 = vmatprep.subr.mxu0 %v1713
      %2087 = vmatpush1.msra.mxu0 %v1712
      %2088 = vmatprep.subr.mxu0 %v1717
      %2089 = vmatpush1.msra.mxu0 %v1716
      %2090 = vmatprep.subr.mxu0 %v1721
      %2091 = vmatpush1.msra.mxu0 %v1720
      %2092 = vmatprep.mubr.f32.mxu0 %v1463
      %2093 = vmatmul.mubr.f32.gmra.mrb[0].mxu0 %v1462
      %v2094 = vpop.f32.mrb[0].mxu0
      %v2095 = vadd.f32 %v1881, %v2094
      %v2096 = vpop.f32.mrb[0].mxu0
      %v2097 = vadd.f32 %v1885, %v2096
      %2098 = vdwg.mxu0
      %2099 = vmatprep.subr.mxu0 %v1725
      %2100 = vmatpush1.msra.mxu0 %v1724
      %2101 = vmatprep.subr.mxu0 %v1729
      %2102 = vmatpush1.msra.mxu0 %v1728
      %2103 = vmatprep.subr.mxu0 %v1733
      %2104 = vmatpush1.msra.mxu0 %v1732
      %2105 = vmatprep.subr.mxu0 %v1737
      %2106 = vmatpush1.msra.mxu0 %v1736
      %2107 = vmatprep.subr.mxu0 %v1741
      %2108 = vmatpush1.msra.mxu0 %v1740
      %2109 = vmatprep.subr.mxu0 %v1745
      %2110 = vmatpush1.msra.mxu0 %v1744
      %2111 = vmatprep.subr.mxu0 %v1749
      %2112 = vmatpush1.msra.mxu0 %v1748
      %2113 = vmatprep.subr.mxu0 %v1753
      %2114 = vmatpush1.msra.mxu0 %v1752
      %2115 = vmatprep.subr.mxu0 %v1757
      %2116 = vmatpush1.msra.mxu0 %v1756
      %2117 = vmatprep.subr.mxu0 %v1761
      %2118 = vmatpush1.msra.mxu0 %v1760
      %2119 = vmatprep.subr.mxu0 %v1765
      %2120 = vmatpush1.msra.mxu0 %v1764
      %2121 = vmatprep.subr.mxu0 %v1769
      %2122 = vmatpush1.msra.mxu0 %v1768
      %2123 = vmatprep.subr.mxu0 %v1773
      %2124 = vmatpush1.msra.mxu0 %v1772
      %2125 = vmatprep.subr.mxu0 %v1777
      %2126 = vmatpush1.msra.mxu0 %v1776
      %2127 = vmatprep.subr.mxu0 %v1781
      %2128 = vmatpush1.msra.mxu0 %v1780
      %2129 = vmatprep.subr.mxu0 %v1785
      %2130 = vmatpush1.msra.mxu0 %v1784
      %2131 = vmatprep.subr.mxu0 %v1789
      %2132 = vmatpush1.msra.mxu0 %v1788
      %2133 = vmatprep.subr.mxu0 %v1793
      %2134 = vmatpush1.msra.mxu0 %v1792
      %2135 = vmatprep.subr.mxu0 %v1797
      %2136 = vmatpush1.msra.mxu0 %v1796
      %2137 = vmatprep.subr.mxu0 %v1801
      %2138 = vmatpush1.msra.mxu0 %v1800
      %2139 = vmatprep.subr.mxu0 %v1805
      %2140 = vmatpush1.msra.mxu0 %v1804
      %2141 = vmatprep.subr.mxu0 %v1809
      %2142 = vmatpush1.msra.mxu0 %v1808
      %2143 = vmatprep.subr.mxu0 %v1813
      %2144 = vmatpush1.msra.mxu0 %v1812
      %2145 = vmatprep.subr.mxu0 %v1817
      %2146 = vmatpush1.msra.mxu0 %v1816
      %2147 = vmatprep.subr.mxu0 %v1821
      %2148 = vmatpush1.msra.mxu0 %v1820
      %2149 = vmatprep.subr.mxu0 %v1825
      %2150 = vmatpush1.msra.mxu0 %v1824
      %2151 = vmatprep.subr.mxu0 %v1829
      %2152 = vmatpush1.msra.mxu0 %v1828
      %2153 = vmatprep.subr.mxu0 %v1833
      %2154 = vmatpush1.msra.mxu0 %v1832
      %2155 = vmatprep.subr.mxu0 %v1837
      %2156 = vmatpush1.msra.mxu0 %v1836
      %2157 = vmatprep.subr.mxu0 %v1841
      %2158 = vmatpush1.msra.mxu0 %v1840
      %2159 = vmatprep.subr.mxu0 %v1845
      %2160 = vmatpush1.msra.mxu0 %v1844
      %2161 = vmatprep.subr.mxu0 %v1849
      %2162 = vmatpush1.msra.mxu0 %v1848
      %2163 = vmatprep.mubr.f32.mxu0 %v1465
      %2164 = vmatmul.mubr.f32.gmra.mrb[0].mxu0 %v1464
      %v2165 = vpop.f32.mrb[0].mxu0
      %v2166 = vadd.f32 %v2095, %v2165
      %v2167 = vpop.f32.mrb[0].mxu0
      %v2168 = vadd.f32 %v2097, %v2167
      %2169 = vdwg.mxu0
      %v2170 = vmax.f32 %v2024, 0.0
      %v2171 = vmax.f32 %v2026, 0.0
      %v2172 = vmax.f32 %v2166, 0.0
      %v2173 = vmax.f32 %v2168, 0.0
      %v2174 = vld [vmem:[%s370] sm:$0xf]
      %v2175 = vld [vmem:[%s370 + $0x4] sm:$0xf]
      %v2176 = vld [vmem:[%s370 + $0x8] sm:$0xf]
      %v2177 = vld [vmem:[%s370 + $0xc] sm:$0xf]
      %v2178 = vld [vmem:[%s370 + $0x10] sm:$0xf]
      %v2179 = vld [vmem:[%s370 + $0x14] sm:$0xf]
      %v2180 = vld [vmem:[%s370 + $0x18] sm:$0xf]
      %v2181 = vld [vmem:[%s370 + $0x1c] sm:$0xf]
      %v2182 = vld [vmem:[%s370 + $0x20] sm:$0xf]
      %v2183 = vld [vmem:[%s370 + $0x24] sm:$0xf]
      %v2184 = vld [vmem:[%s370 + $0x28] sm:$0xf]
      %v2185 = vld [vmem:[%s370 + $0x2c] sm:$0xf]
      %v2186 = vld [vmem:[%s370 + $0x30] sm:$0xf]
      %v2187 = vld [vmem:[%s370 + $0x34] sm:$0xf]
      %v2188 = vld [vmem:[%s370 + $0x38] sm:$0xf]
      %v2189 = vld [vmem:[%s370 + $0x3c] sm:$0xf]
      %v2190 = vld [vmem:[%s370 + $0x40] sm:$0xf]
      %v2191 = vld [vmem:[%s370 + $0x44] sm:$0xf]
      %v2192 = vld [vmem:[%s370 + $0x48] sm:$0xf]
      %v2193 = vld [vmem:[%s370 + $0x4c] sm:$0xf]
      %v2194 = vld [vmem:[%s370 + $0x50] sm:$0xf]
      %v2195 = vld [vmem:[%s370 + $0x54] sm:$0xf]
      %v2196 = vld [vmem:[%s370 + $0x58] sm:$0xf]
      %v2197 = vld [vmem:[%s370 + $0x5c] sm:$0xf]
      %v2198 = vld [vmem:[%s370 + $0x60] sm:$0xf]
      %v2199 = vld [vmem:[%s370 + $0x64] sm:$0xf]
      %v2200 = vld [vmem:[%s370 + $0x68] sm:$0xf]
      %v2201 = vld [vmem:[%s370 + $0x6c] sm:$0xf]
      %v2202 = vld [vmem:[%s370 + $0x70] sm:$0xf]
      %v2203 = vld [vmem:[%s370 + $0x74] sm:$0xf]
      %v2204 = vld [vmem:[%s370 + $0x78] sm:$0xf]
      %v2205 = vld [vmem:[%s370 + $0x7c] sm:$0xf]
      %v2206 = vld [vmem:[%s370 + $0x80] sm:$0xf]
      %v2207 = vld [vmem:[%s370 + $0x84] sm:$0xf]
      %v2208 = vld [vmem:[%s370 + $0x88] sm:$0xf]
      %v2209 = vld [vmem:[%s370 + $0x8c] sm:$0xf]
      %v2210 = vld [vmem:[%s370 + $0x90] sm:$0xf]
      %v2211 = vld [vmem:[%s370 + $0x94] sm:$0xf]
      %v2212 = vld [vmem:[%s370 + $0x98] sm:$0xf]
      %v2213 = vld [vmem:[%s370 + $0x9c] sm:$0xf]
      %v2214 = vld [vmem:[%s370 + $0xa0] sm:$0xf]
      %v2215 = vld [vmem:[%s370 + $0xa4] sm:$0xf]
      %v2216 = vld [vmem:[%s370 + $0xa8] sm:$0xf]
      %v2217 = vld [vmem:[%s370 + $0xac] sm:$0xf]
      %v2218 = vld [vmem:[%s370 + $0xb0] sm:$0xf]
      %v2219 = vld [vmem:[%s370 + $0xb4] sm:$0xf]
      %v2220 = vld [vmem:[%s370 + $0xb8] sm:$0xf]
      %v2221 = vld [vmem:[%s370 + $0xbc] sm:$0xf]
      %v2222 = vld [vmem:[%s370 + $0xc0] sm:$0xf]
      %v2223 = vld [vmem:[%s370 + $0xc4] sm:$0xf]
      %v2224 = vld [vmem:[%s370 + $0xc8] sm:$0xf]
      %v2225 = vld [vmem:[%s370 + $0xcc] sm:$0xf]
      %v2226 = vld [vmem:[%s370 + $0xd0] sm:$0xf]
      %v2227 = vld [vmem:[%s370 + $0xd4] sm:$0xf]
      %v2228 = vld [vmem:[%s370 + $0xd8] sm:$0xf]
      %v2229 = vld [vmem:[%s370 + $0xdc] sm:$0xf]
      %v2230 = vld [vmem:[%s370 + $0xe0] sm:$0xf]
      %v2231 = vld [vmem:[%s370 + $0xe4] sm:$0xf]
      %v2232 = vld [vmem:[%s370 + $0xe8] sm:$0xf]
      %v2233 = vld [vmem:[%s370 + $0xec] sm:$0xf]
      %v2234 = vld [vmem:[%s370 + $0xf0] sm:$0xf]
      %v2235 = vld [vmem:[%s370 + $0xf4] sm:$0xf]
      %v2236 = vld [vmem:[%s370 + $0xf8] sm:$0xf]
      %v2237 = vld [vmem:[%s370 + $0xfc] sm:$0xf]
      %v2238 = vunpack.c.l.bf16 %v2174
      %v2239 = vunpack.c.l.bf16 %v2175
      %v2240 = vunpack.c.l.bf16 %v2176
      %v2241 = vunpack.c.l.bf16 %v2177
      %v2242 = vunpack.c.l.bf16 %v2178
      %v2243 = vunpack.c.l.bf16 %v2179
      %v2244 = vunpack.c.l.bf16 %v2180
      %v2245 = vunpack.c.l.bf16 %v2181
      %v2246 = vunpack.c.l.bf16 %v2182
      %v2247 = vunpack.c.l.bf16 %v2183
      %v2248 = vunpack.c.l.bf16 %v2184
      %v2249 = vunpack.c.l.bf16 %v2185
      %v2250 = vunpack.c.l.bf16 %v2186
      %v2251 = vunpack.c.l.bf16 %v2187
      %v2252 = vunpack.c.l.bf16 %v2188
      %v2253 = vunpack.c.l.bf16 %v2189
      %v2254 = vunpack.c.l.bf16 %v2190
      %v2255 = vunpack.c.l.bf16 %v2191
      %v2256 = vunpack.c.l.bf16 %v2192
      %v2257 = vunpack.c.l.bf16 %v2193
      %v2258 = vunpack.c.l.bf16 %v2194
      %v2259 = vunpack.c.l.bf16 %v2195
      %v2260 = vunpack.c.l.bf16 %v2196
      %v2261 = vunpack.c.l.bf16 %v2197
      %v2262 = vunpack.c.l.bf16 %v2198
      %v2263 = vunpack.c.l.bf16 %v2199
      %v2264 = vunpack.c.l.bf16 %v2200
      %v2265 = vunpack.c.l.bf16 %v2201
      %v2266 = vunpack.c.l.bf16 %v2202
      %v2267 = vunpack.c.l.bf16 %v2203
      %v2268 = vunpack.c.l.bf16 %v2204
      %v2269 = vunpack.c.l.bf16 %v2205
      %v2270 = vunpack.c.l.bf16 %v2206
      %v2271 = vunpack.c.l.bf16 %v2207
      %v2272 = vunpack.c.l.bf16 %v2208
      %v2273 = vunpack.c.l.bf16 %v2209
      %v2274 = vunpack.c.l.bf16 %v2210
      %v2275 = vunpack.c.l.bf16 %v2211
      %v2276 = vunpack.c.l.bf16 %v2212
      %v2277 = vunpack.c.l.bf16 %v2213
      %v2278 = vunpack.c.l.bf16 %v2214
      %v2279 = vunpack.c.l.bf16 %v2215
      %v2280 = vunpack.c.l.bf16 %v2216
      %v2281 = vunpack.c.l.bf16 %v2217
      %v2282 = vunpack.c.l.bf16 %v2218
      %v2283 = vunpack.c.l.bf16 %v2219
      %v2284 = vunpack.c.l.bf16 %v2220
      %v2285 = vunpack.c.l.bf16 %v2221
      %v2286 = vunpack.c.l.bf16 %v2222
      %v2287 = vunpack.c.l.bf16 %v2223
      %v2288 = vunpack.c.l.bf16 %v2224
      %v2289 = vunpack.c.l.bf16 %v2225
      %v2290 = vunpack.c.l.bf16 %v2226
      %v2291 = vunpack.c.l.bf16 %v2227
      %v2292 = vunpack.c.l.bf16 %v2228
      %v2293 = vunpack.c.l.bf16 %v2229
      %v2294 = vunpack.c.l.bf16 %v2230
      %v2295 = vunpack.c.l.bf16 %v2231
      %v2296 = vunpack.c.l.bf16 %v2232
      %v2297 = vunpack.c.l.bf16 %v2233
      %v2298 = vunpack.c.l.bf16 %v2234
      %v2299 = vunpack.c.l.bf16 %v2235
      %v2300 = vunpack.c.l.bf16 %v2236
      %v2301 = vunpack.c.l.bf16 %v2237
      %v2302 = vlaneseq
      %v2303 = vshrl.u32 %v2302, 7
      %v2304 = vsub.s32 3, %v2303
      %v2305 = vrot.slane %v405, %v2304
      %2306 = vmatprep.subr.mxu0 0.0
      %2307 = vmatpush1.msra.mxu0 %v2238
      %2308 = vmatprep.subr.mxu0 0.0
      %2309 = vmatpush1.msra.mxu0 %v2239
      %2310 = vmatprep.subr.mxu0 0.0
      %2311 = vmatpush1.msra.mxu0 %v2240
      %2312 = vmatprep.subr.mxu0 0.0
      %2313 = vmatpush1.msra.mxu0 %v2241
      %2314 = vmatprep.subr.mxu0 0.0
      %2315 = vmatpush1.msra.mxu0 %v2242
      %2316 = vmatprep.subr.mxu0 0.0
      %2317 = vmatpush1.msra.mxu0 %v2243
      %2318 = vmatprep.subr.mxu0 0.0
      %2319 = vmatpush1.msra.mxu0 %v2244
      %2320 = vmatprep.subr.mxu0 0.0
      %2321 = vmatpush1.msra.mxu0 %v2245
      %2322 = vmatprep.subr.mxu0 0.0
      %2323 = vmatpush1.msra.mxu0 %v2246
      %2324 = vmatprep.subr.mxu0 0.0
      %2325 = vmatpush1.msra.mxu0 %v2247
      %2326 = vmatprep.subr.mxu0 0.0
      %2327 = vmatpush1.msra.mxu0 %v2248
      %2328 = vmatprep.subr.mxu0 0.0
      %2329 = vmatpush1.msra.mxu0 %v2249
      %2330 = vmatprep.subr.mxu0 0.0
      %2331 = vmatpush1.msra.mxu0 %v2250
      %2332 = vmatprep.subr.mxu0 0.0
      %2333 = vmatpush1.msra.mxu0 %v2251
      %2334 = vmatprep.subr.mxu0 0.0
      %2335 = vmatpush1.msra.mxu0 %v2252
      %2336 = vmatprep.subr.mxu0 0.0
      %2337 = vmatpush1.msra.mxu0 %v2253
      %2338 = vmatprep.subr.mxu0 0.0
      %2339 = vmatpush1.msra.mxu0 %v2254
      %2340 = vmatprep.subr.mxu0 0.0
      %2341 = vmatpush1.msra.mxu0 %v2255
      %2342 = vmatprep.subr.mxu0 0.0
      %2343 = vmatpush1.msra.mxu0 %v2256
      %2344 = vmatprep.subr.mxu0 0.0
      %2345 = vmatpush1.msra.mxu0 %v2257
      %2346 = vmatprep.subr.mxu0 0.0
      %2347 = vmatpush1.msra.mxu0 %v2258
      %2348 = vmatprep.subr.mxu0 0.0
      %2349 = vmatpush1.msra.mxu0 %v2259
      %2350 = vmatprep.subr.mxu0 0.0
      %2351 = vmatpush1.msra.mxu0 %v2260
      %2352 = vmatprep.subr.mxu0 0.0
      %2353 = vmatpush1.msra.mxu0 %v2261
      %2354 = vmatprep.subr.mxu0 0.0
      %2355 = vmatpush1.msra.mxu0 %v2262
      %2356 = vmatprep.subr.mxu0 0.0
      %2357 = vmatpush1.msra.mxu0 %v2263
      %2358 = vmatprep.subr.mxu0 0.0
      %2359 = vmatpush1.msra.mxu0 %v2264
      %2360 = vmatprep.subr.mxu0 0.0
      %2361 = vmatpush1.msra.mxu0 %v2265
      %2362 = vmatprep.subr.mxu0 0.0
      %2363 = vmatpush1.msra.mxu0 %v2266
      %2364 = vmatprep.subr.mxu0 0.0
      %2365 = vmatpush1.msra.mxu0 %v2267
      %2366 = vmatprep.subr.mxu0 0.0
      %2367 = vmatpush1.msra.mxu0 %v2268
      %2368 = vmatprep.subr.mxu0 0.0
      %2369 = vmatpush1.msra.mxu0 %v2269
      %2370 = vmatprep.mubr.f32.mxu0 %v2171
      %2371 = vmatmul.mubr.f32.gmra.mrb[0].mxu0 %v2170
      %v2372 = vpop.f32.mrb[0].mxu0
      %v2373 = vadd.f32 %v2305, %v2372
      %v2374 = vpop.f32.mrb[0].mxu0
      %2375 = vdwg.mxu0
      %2376 = vmatprep.subr.mxu0 0.0
      %2377 = vmatpush1.msra.mxu0 %v2270
      %2378 = vmatprep.subr.mxu0 0.0
      %2379 = vmatpush1.msra.mxu0 %v2271
      %2380 = vmatprep.subr.mxu0 0.0
      %2381 = vmatpush1.msra.mxu0 %v2272
      %2382 = vmatprep.subr.mxu0 0.0
      %2383 = vmatpush1.msra.mxu0 %v2273
      %2384 = vmatprep.subr.mxu0 0.0
      %2385 = vmatpush1.msra.mxu0 %v2274
      %2386 = vmatprep.subr.mxu0 0.0
      %2387 = vmatpush1.msra.mxu0 %v2275
      %2388 = vmatprep.subr.mxu0 0.0
      %2389 = vmatpush1.msra.mxu0 %v2276
      %2390 = vmatprep.subr.mxu0 0.0
      %2391 = vmatpush1.msra.mxu0 %v2277
      %2392 = vmatprep.subr.mxu0 0.0
      %2393 = vmatpush1.msra.mxu0 %v2278
      %2394 = vmatprep.subr.mxu0 0.0
      %2395 = vmatpush1.msra.mxu0 %v2279
      %2396 = vmatprep.subr.mxu0 0.0
      %2397 = vmatpush1.msra.mxu0 %v2280
      %2398 = vmatprep.subr.mxu0 0.0
      %2399 = vmatpush1.msra.mxu0 %v2281
      %2400 = vmatprep.subr.mxu0 0.0
      %2401 = vmatpush1.msra.mxu0 %v2282
      %2402 = vmatprep.subr.mxu0 0.0
      %2403 = vmatpush1.msra.mxu0 %v2283
      %2404 = vmatprep.subr.mxu0 0.0
      %2405 = vmatpush1.msra.mxu0 %v2284
      %2406 = vmatprep.subr.mxu0 0.0
      %2407 = vmatpush1.msra.mxu0 %v2285
      %2408 = vmatprep.subr.mxu0 0.0
      %2409 = vmatpush1.msra.mxu0 %v2286
      %2410 = vmatprep.subr.mxu0 0.0
      %2411 = vmatpush1.msra.mxu0 %v2287
      %2412 = vmatprep.subr.mxu0 0.0
      %2413 = vmatpush1.msra.mxu0 %v2288
      %2414 = vmatprep.subr.mxu0 0.0
      %2415 = vmatpush1.msra.mxu0 %v2289
      %2416 = vmatprep.subr.mxu0 0.0
      %2417 = vmatpush1.msra.mxu0 %v2290
      %2418 = vmatprep.subr.mxu0 0.0
      %2419 = vmatpush1.msra.mxu0 %v2291
      %2420 = vmatprep.subr.mxu0 0.0
      %2421 = vmatpush1.msra.mxu0 %v2292
      %2422 = vmatprep.subr.mxu0 0.0
      %2423 = vmatpush1.msra.mxu0 %v2293
      %2424 = vmatprep.subr.mxu0 0.0
      %2425 = vmatpush1.msra.mxu0 %v2294
      %2426 = vmatprep.subr.mxu0 0.0
      %2427 = vmatpush1.msra.mxu0 %v2295
      %2428 = vmatprep.subr.mxu0 0.0
      %2429 = vmatpush1.msra.mxu0 %v2296
      %2430 = vmatprep.subr.mxu0 0.0
      %2431 = vmatpush1.msra.mxu0 %v2297
      %2432 = vmatprep.subr.mxu0 0.0
      %2433 = vmatpush1.msra.mxu0 %v2298
      %2434 = vmatprep.subr.mxu0 0.0
      %2435 = vmatpush1.msra.mxu0 %v2299
      %2436 = vmatprep.subr.mxu0 0.0
      %2437 = vmatpush1.msra.mxu0 %v2300
      %2438 = vmatprep.subr.mxu0 0.0
      %2439 = vmatpush1.msra.mxu0 %v2301
      %2440 = vmatprep.mubr.f32.mxu0 %v2173
      %2441 = vmatmul.mubr.f32.gmra.mrb[0].mxu0 %v2172
      %v2442 = vpop.f32.mrb[0].mxu0
      %v2443 = vadd.f32 %v2373, %v2442
      %v2444 = vpop.f32.mrb[0].mxu0
      %2445 = vdwg.mxu0
      %vm2446 = vcmask 197632
      %2447 = vst.msk [vmem:[%s383] sm:$0x3] %vm2446, %v2443
      %s2448 = scalar_lea.vmem %s349, 48
      %v2449 = vld [vmem:[%s2448] sm:$0xff]
      %v2450 = vld [vmem:[%s2448 + $0x8] sm:$0xff]
      %v2451 = vld [vmem:[%s2448 + $0x10] sm:$0xff]
      %v2452 = vld [vmem:[%s2448 + $0x18] sm:$0xff]
      %v2453 = vld [vmem:[%s2448 + $0x20] sm:$0x33]
      %v2454 = vld [vmem:[%s2448 + $0x28] sm:$0x33]
      %v2455 = vunpack.c.l.bf16 %v2449
      %v2456 = vunpack.c.h.bf16 %v2449
      %v2457 = vunpack.c.l.bf16 %v2450
      %v2458 = vunpack.c.h.bf16 %v2450
      %v2459 = vunpack.c.l.bf16 %v2451
      %v2460 = vunpack.c.h.bf16 %v2451
      %v2461 = vunpack.c.l.bf16 %v2452
      %v2462 = vunpack.c.h.bf16 %v2452
      %v2463 = vunpack.c.l.bf16 %v2453
      %v2464 = vunpack.c.h.bf16 %v2453
      %v2465 = vunpack.c.l.bf16 %v2454
      %v2466 = vunpack.c.h.bf16 %v2454
      %s2467 = scalar_lea.vmem %s377, 16
      %v2468 = vld [vmem:[%s2467] sm:$0xff]
      %v2469 = vld [vmem:[%s2467 + $0x8] sm:$0xff]
      %v2471 = vsel %vm411, %v2463, 0
      %v2474 = vsel %vm411, %v2464, 0
      %v2477 = vsel %vm411, %v2465, 0
      %v2480 = vsel %vm411, %v2466, 0
      %2482 = vmatprep.subr.mxu0 %v2474
      %2483 = vmatpush1.msra.mxu0 %v2471
      %2484 = vmatprep.subr.mxu0 0.0
      %2485 = vmatpush1.msra.mxu0 0.0
      %2486 = vmatprep.subr.mxu0 0.0
      %2487 = vmatpush1.msra.mxu0 0.0
      %2488 = vmatprep.subr.mxu0 0.0
      %2489 = vmatpush1.msra.mxu0 0.0
      %2490 = vmatprep.subr.mxu0 0.0
      %2491 = vmatpush1.msra.mxu0 0.0
      %2492 = vmatprep.subr.mxu0 0.0
      %2493 = vmatpush1.msra.mxu0 0.0
      %2494 = vmatprep.subr.mxu0 0.0
      %2495 = vmatpush1.msra.mxu0 0.0
      %2496 = vmatprep.subr.mxu0 0.0
      %2497 = vmatpush1.msra.mxu0 0.0
      %2498 = vmatprep.subr.mxu0 0.0
      %2499 = vmatpush1.msra.mxu0 0.0
      %2500 = vmatprep.subr.mxu0 0.0
      %2501 = vmatpush1.msra.mxu0 0.0
      %2502 = vmatprep.subr.mxu0 0.0
      %2503 = vmatpush1.msra.mxu0 0.0
      %2504 = vmatprep.subr.mxu0 0.0
      %2505 = vmatpush1.msra.mxu0 0.0
      %2506 = vmatprep.subr.mxu0 0.0
      %2507 = vmatpush1.msra.mxu0 0.0
      %2508 = vmatprep.subr.mxu0 0.0
      %2509 = vmatpush1.msra.mxu0 0.0
      %2510 = vmatprep.subr.mxu0 0.0
      %2511 = vmatpush1.msra.mxu0 0.0
      %2512 = vmatprep.subr.mxu0 0.0
      %2513 = vmatpush1.msra.mxu0 0.0
      %2514 = vmatprep.subr.mxu0 0.0
      %2515 = vmatpush1.msra.mxu0 0.0
      %2516 = vmatprep.subr.mxu0 0.0
      %2517 = vmatpush1.msra.mxu0 0.0
      %2518 = vmatprep.subr.mxu0 0.0
      %2519 = vmatpush1.msra.mxu0 0.0
      %2520 = vmatprep.subr.mxu0 0.0
      %2521 = vmatpush1.msra.mxu0 0.0
      %2522 = vmatprep.subr.mxu0 0.0
      %2523 = vmatpush1.msra.mxu0 0.0
      %2524 = vmatprep.subr.mxu0 0.0
      %2525 = vmatpush1.msra.mxu0 0.0
      %2526 = vmatprep.subr.mxu0 0.0
      %2527 = vmatpush1.msra.mxu0 0.0
      %2528 = vmatprep.subr.mxu0 0.0
      %2529 = vmatpush1.msra.mxu0 0.0
      %2530 = vmatprep.subr.mxu0 0.0
      %2531 = vmatpush1.msra.mxu0 0.0
      %2532 = vmatprep.subr.mxu0 0.0
      %2533 = vmatpush1.msra.mxu0 0.0
      %2534 = vmatprep.subr.mxu0 0.0
      %2535 = vmatpush1.msra.mxu0 0.0
      %2536 = vmatprep.subr.mxu0 0.0
      %2537 = vmatpush1.msra.mxu0 0.0
      %2538 = vmatprep.subr.mxu0 0.0
      %2539 = vmatpush1.msra.mxu0 0.0
      %2540 = vmatprep.subr.mxu0 0.0
      %2541 = vmatpush1.msra.mxu0 0.0
      %2542 = vmatprep.subr.mxu0 0.0
      %2543 = vmatpush1.msra.mxu0 0.0
      %2544 = vmatprep.subr.mxu0 0.0
      %2545 = vmatpush1.msra.mxu0 0.0
      %2546 = vmatprep.mubr.f32.mxu0 0.0
      %2547 = vmatmul.mubr.f32.gmra.mrb[0].mxu0 %v409
      %v2548 = vpop.f32.mrb[0].mxu0
      %v2549 = vadd.f32 0.0, %v2548
      %v2550 = vpop.f32.mrb[0].mxu0
      %v2551 = vadd.f32 0.0, %v2550
      %2552 = vdwg.mxu0
      %2553 = vmatprep.subr.mxu0 %v2480
      %2554 = vmatpush1.msra.mxu0 %v2477
      %2555 = vmatprep.subr.mxu0 0.0
      %2556 = vmatpush1.msra.mxu0 0.0
      %2557 = vmatprep.subr.mxu0 0.0
      %2558 = vmatpush1.msra.mxu0 0.0
      %2559 = vmatprep.subr.mxu0 0.0
      %2560 = vmatpush1.msra.mxu0 0.0
      %2561 = vmatprep.subr.mxu0 0.0
      %2562 = vmatpush1.msra.mxu0 0.0
      %2563 = vmatprep.subr.mxu0 0.0
      %2564 = vmatpush1.msra.mxu0 0.0
      %2565 = vmatprep.subr.mxu0 0.0
      %2566 = vmatpush1.msra.mxu0 0.0
      %2567 = vmatprep.subr.mxu0 0.0
      %2568 = vmatpush1.msra.mxu0 0.0
      %2569 = vmatprep.subr.mxu0 0.0
      %2570 = vmatpush1.msra.mxu0 0.0
      %2571 = vmatprep.subr.mxu0 0.0
      %2572 = vmatpush1.msra.mxu0 0.0
      %2573 = vmatprep.subr.mxu0 0.0
      %2574 = vmatpush1.msra.mxu0 0.0
      %2575 = vmatprep.subr.mxu0 0.0
      %2576 = vmatpush1.msra.mxu0 0.0
      %2577 = vmatprep.subr.mxu0 0.0
      %2578 = vmatpush1.msra.mxu0 0.0
      %2579 = vmatprep.subr.mxu0 0.0
      %2580 = vmatpush1.msra.mxu0 0.0
      %2581 = vmatprep.subr.mxu0 0.0
      %2582 = vmatpush1.msra.mxu0 0.0
      %2583 = vmatprep.subr.mxu0 0.0
      %2584 = vmatpush1.msra.mxu0 0.0
      %2585 = vmatprep.subr.mxu0 0.0
      %2586 = vmatpush1.msra.mxu0 0.0
      %2587 = vmatprep.subr.mxu0 0.0
      %2588 = vmatpush1.msra.mxu0 0.0
      %2589 = vmatprep.subr.mxu0 0.0
      %2590 = vmatpush1.msra.mxu0 0.0
      %2591 = vmatprep.subr.mxu0 0.0
      %2592 = vmatpush1.msra.mxu0 0.0
      %2593 = vmatprep.subr.mxu0 0.0
      %2594 = vmatpush1.msra.mxu0 0.0
      %2595 = vmatprep.subr.mxu0 0.0
      %2596 = vmatpush1.msra.mxu0 0.0
      %2597 = vmatprep.subr.mxu0 0.0
      %2598 = vmatpush1.msra.mxu0 0.0
      %2599 = vmatprep.subr.mxu0 0.0
      %2600 = vmatpush1.msra.mxu0 0.0
      %2601 = vmatprep.subr.mxu0 0.0
      %2602 = vmatpush1.msra.mxu0 0.0
      %2603 = vmatprep.subr.mxu0 0.0
      %2604 = vmatpush1.msra.mxu0 0.0
      %2605 = vmatprep.subr.mxu0 0.0
      %2606 = vmatpush1.msra.mxu0 0.0
      %2607 = vmatprep.subr.mxu0 0.0
      %2608 = vmatpush1.msra.mxu0 0.0
      %2609 = vmatprep.subr.mxu0 0.0
      %2610 = vmatpush1.msra.mxu0 0.0
      %2611 = vmatprep.subr.mxu0 0.0
      %2612 = vmatpush1.msra.mxu0 0.0
      %2613 = vmatprep.subr.mxu0 0.0
      %2614 = vmatpush1.msra.mxu0 0.0
      %2615 = vmatprep.subr.mxu0 0.0
      %2616 = vmatpush1.msra.mxu0 0.0
      %2617 = vmatprep.mubr.f32.mxu0 0.0
      %2618 = vmatmul.mubr.f32.gmra.mrb[0].mxu0 %v409
      %v2619 = vpop.f32.mrb[0].mxu0
      %v2620 = vadd.f32 0.0, %v2619
      %v2621 = vpop.f32.mrb[0].mxu0
      %v2622 = vadd.f32 0.0, %v2621
      %2623 = vdwg.mxu0
      %2624 = vmatprep.subr.mxu0 %v2456
      %2625 = vmatpush1.msra.mxu0 %v2455
      %2626 = vmatprep.subr.mxu0 %v2460
      %2627 = vmatpush1.msra.mxu0 %v2459
      %2628 = vmatprep.subr.mxu0 0.0
      %2629 = vmatpush1.msra.mxu0 0.0
      %2630 = vmatprep.subr.mxu0 0.0
      %2631 = vmatpush1.msra.mxu0 0.0
      %2632 = vmatprep.subr.mxu0 0.0
      %2633 = vmatpush1.msra.mxu0 0.0
      %2634 = vmatprep.subr.mxu0 0.0
      %2635 = vmatpush1.msra.mxu0 0.0
      %2636 = vmatprep.subr.mxu0 0.0
      %2637 = vmatpush1.msra.mxu0 0.0
      %2638 = vmatprep.subr.mxu0 0.0
      %2639 = vmatpush1.msra.mxu0 0.0
      %2640 = vmatprep.subr.mxu0 0.0
      %2641 = vmatpush1.msra.mxu0 0.0
      %2642 = vmatprep.subr.mxu0 0.0
      %2643 = vmatpush1.msra.mxu0 0.0
      %2644 = vmatprep.subr.mxu0 0.0
      %2645 = vmatpush1.msra.mxu0 0.0
      %2646 = vmatprep.subr.mxu0 0.0
      %2647 = vmatpush1.msra.mxu0 0.0
      %2648 = vmatprep.subr.mxu0 0.0
      %2649 = vmatpush1.msra.mxu0 0.0
      %2650 = vmatprep.subr.mxu0 0.0
      %2651 = vmatpush1.msra.mxu0 0.0
      %2652 = vmatprep.subr.mxu0 0.0
      %2653 = vmatpush1.msra.mxu0 0.0
      %2654 = vmatprep.subr.mxu0 0.0
      %2655 = vmatpush1.msra.mxu0 0.0
      %2656 = vmatprep.subr.mxu0 0.0
      %2657 = vmatpush1.msra.mxu0 0.0
      %2658 = vmatprep.subr.mxu0 0.0
      %2659 = vmatpush1.msra.mxu0 0.0
      %2660 = vmatprep.subr.mxu0 0.0
      %2661 = vmatpush1.msra.mxu0 0.0
      %2662 = vmatprep.subr.mxu0 0.0
      %2663 = vmatpush1.msra.mxu0 0.0
      %2664 = vmatprep.subr.mxu0 0.0
      %2665 = vmatpush1.msra.mxu0 0.0
      %2666 = vmatprep.subr.mxu0 0.0
      %2667 = vmatpush1.msra.mxu0 0.0
      %2668 = vmatprep.subr.mxu0 0.0
      %2669 = vmatpush1.msra.mxu0 0.0
      %2670 = vmatprep.subr.mxu0 0.0
      %2671 = vmatpush1.msra.mxu0 0.0
      %2672 = vmatprep.subr.mxu0 0.0
      %2673 = vmatpush1.msra.mxu0 0.0
      %2674 = vmatprep.subr.mxu0 0.0
      %2675 = vmatpush1.msra.mxu0 0.0
      %2676 = vmatprep.subr.mxu0 0.0
      %2677 = vmatpush1.msra.mxu0 0.0
      %2678 = vmatprep.subr.mxu0 0.0
      %2679 = vmatpush1.msra.mxu0 0.0
      %2680 = vmatprep.subr.mxu0 0.0
      %2681 = vmatpush1.msra.mxu0 0.0
      %2682 = vmatprep.subr.mxu0 0.0
      %2683 = vmatpush1.msra.mxu0 0.0
      %2684 = vmatprep.subr.mxu0 0.0
      %2685 = vmatpush1.msra.mxu0 0.0
      %2686 = vmatprep.subr.mxu0 0.0
      %2687 = vmatpush1.msra.mxu0 0.0
      %2688 = vmatprep.mubr.f32.mxu0 0.0
      %2689 = vmatmul.mubr.f32.gmra.mrb[0].mxu0 %v568
      %v2690 = vpop.f32.mrb[0].mxu0
      %v2691 = vadd.f32 %v2549, %v2690
      %v2692 = vpop.f32.mrb[0].mxu0
      %v2693 = vadd.f32 %v2551, %v2692
      %2694 = vdwg.mxu0
      %2695 = vmatprep.subr.mxu0 %v2458
      %2696 = vmatpush1.msra.mxu0 %v2457
      %2697 = vmatprep.subr.mxu0 %v2462
      %2698 = vmatpush1.msra.mxu0 %v2461
      %2699 = vmatprep.subr.mxu0 0.0
      %2700 = vmatpush1.msra.mxu0 0.0
      %2701 = vmatprep.subr.mxu0 0.0
      %2702 = vmatpush1.msra.mxu0 0.0
      %2703 = vmatprep.subr.mxu0 0.0
      %2704 = vmatpush1.msra.mxu0 0.0
      %2705 = vmatprep.subr.mxu0 0.0
      %2706 = vmatpush1.msra.mxu0 0.0
      %2707 = vmatprep.subr.mxu0 0.0
      %2708 = vmatpush1.msra.mxu0 0.0
      %2709 = vmatprep.subr.mxu0 0.0
      %2710 = vmatpush1.msra.mxu0 0.0
      %2711 = vmatprep.subr.mxu0 0.0
      %2712 = vmatpush1.msra.mxu0 0.0
      %2713 = vmatprep.subr.mxu0 0.0
      %2714 = vmatpush1.msra.mxu0 0.0
      %2715 = vmatprep.subr.mxu0 0.0
      %2716 = vmatpush1.msra.mxu0 0.0
      %2717 = vmatprep.subr.mxu0 0.0
      %2718 = vmatpush1.msra.mxu0 0.0
      %2719 = vmatprep.subr.mxu0 0.0
      %2720 = vmatpush1.msra.mxu0 0.0
      %2721 = vmatprep.subr.mxu0 0.0
      %2722 = vmatpush1.msra.mxu0 0.0
      %2723 = vmatprep.subr.mxu0 0.0
      %2724 = vmatpush1.msra.mxu0 0.0
      %2725 = vmatprep.subr.mxu0 0.0
      %2726 = vmatpush1.msra.mxu0 0.0
      %2727 = vmatprep.subr.mxu0 0.0
      %2728 = vmatpush1.msra.mxu0 0.0
      %2729 = vmatprep.subr.mxu0 0.0
      %2730 = vmatpush1.msra.mxu0 0.0
      %2731 = vmatprep.subr.mxu0 0.0
      %2732 = vmatpush1.msra.mxu0 0.0
      %2733 = vmatprep.subr.mxu0 0.0
      %2734 = vmatpush1.msra.mxu0 0.0
      %2735 = vmatprep.subr.mxu0 0.0
      %2736 = vmatpush1.msra.mxu0 0.0
      %2737 = vmatprep.subr.mxu0 0.0
      %2738 = vmatpush1.msra.mxu0 0.0
      %2739 = vmatprep.subr.mxu0 0.0
      %2740 = vmatpush1.msra.mxu0 0.0
      %2741 = vmatprep.subr.mxu0 0.0
      %2742 = vmatpush1.msra.mxu0 0.0
      %2743 = vmatprep.subr.mxu0 0.0
      %2744 = vmatpush1.msra.mxu0 0.0
      %2745 = vmatprep.subr.mxu0 0.0
      %2746 = vmatpush1.msra.mxu0 0.0
      %2747 = vmatprep.subr.mxu0 0.0
      %2748 = vmatpush1.msra.mxu0 0.0
      %2749 = vmatprep.subr.mxu0 0.0
      %2750 = vmatpush1.msra.mxu0 0.0
      %2751 = vmatprep.subr.mxu0 0.0
      %2752 = vmatpush1.msra.mxu0 0.0
      %2753 = vmatprep.subr.mxu0 0.0
      %2754 = vmatpush1.msra.mxu0 0.0
      %2755 = vmatprep.subr.mxu0 0.0
      %2756 = vmatpush1.msra.mxu0 0.0
      %2757 = vmatprep.subr.mxu0 0.0
      %2758 = vmatpush1.msra.mxu0 0.0
      %2759 = vmatprep.mubr.f32.mxu0 0.0
      %2760 = vmatmul.mubr.f32.gmra.mrb[0].mxu0 %v568
      %v2761 = vpop.f32.mrb[0].mxu0
      %v2762 = vadd.f32 %v2620, %v2761
      %v2763 = vpop.f32.mrb[0].mxu0
      %v2764 = vadd.f32 %v2622, %v2763
      %2765 = vdwg.mxu0
      %v2768 = vlaneseq
      %v2769 = vshrl.u32 %v2768, 7
      %v2770 = vsub.s32 0, %v2769
      %v2771 = vrot.slane %v2468, %v2770
      %v2772 = vlaneseq
      %v2773 = vshrl.u32 %v2772, 7
      %v2774 = vsub.s32 4, %v2773
      %v2775 = vrot.slane %v2468, %v2774
      %v2776 = vlaneseq
      %v2777 = vshrl.u32 %v2776, 7
      %v2778 = vsub.s32 0, %v2777
      %v2779 = vrot.slane %v2469, %v2778
      %v2780 = vlaneseq
      %v2781 = vshrl.u32 %v2780, 7
      %v2782 = vsub.s32 4, %v2781
      %v2783 = vrot.slane %v2469, %v2782
      %v2788 = vlaneseq
      %v2789 = vshrl.u32 %v2788, 7
      %v2790 = vsub.s32 0, %v2789
      %v2791 = vrot.slane %v2771, %v2790
      %v2792 = vlaneseq
      %v2793 = vshrl.u32 %v2792, 7
      %v2794 = vsub.s32 0, %v2793
      %v2795 = vrot.slane %v2775, %v2794
      %v2796 = vlaneseq
      %v2797 = vshrl.u32 %v2796, 7
      %v2798 = vsub.s32 0, %v2797
      %v2799 = vrot.slane %v2779, %v2798
      %v2800 = vlaneseq
      %v2801 = vshrl.u32 %v2800, 7
      %v2802 = vsub.s32 0, %v2801
      %v2803 = vrot.slane %v2783, %v2802
      %v2804 = vadd.f32 %v2691, %v2791
      %v2805 = vadd.f32 %v2693, %v2795
      %v2806 = vadd.f32 %v2762, %v2799
      %v2807 = vadd.f32 %v2764, %v2803
      %v2808 = vmax.f32 %v2804, 0.0
      %v2809 = vmax.f32 %v2805, 0.0
      %v2810 = vmax.f32 %v2806, 0.0
      %v2811 = vmax.f32 %v2807, 0.0
      %s2812 = scalar_lea.vmem %s356, 1024
      %v2813 = vld [vmem:[%s2812] sm:$0xff]
      %v2814 = vld [vmem:[%s2812 + $0x8] sm:$0xff]
      %v2815 = vld [vmem:[%s2812 + $0x10] sm:$0xff]
      %v2816 = vld [vmem:[%s2812 + $0x18] sm:$0xff]
      %v2817 = vld [vmem:[%s2812 + $0x20] sm:$0xff]
      %v2818 = vld [vmem:[%s2812 + $0x28] sm:$0xff]
      %v2819 = vld [vmem:[%s2812 + $0x30] sm:$0xff]
      %v2820 = vld [vmem:[%s2812 + $0x38] sm:$0xff]
      %v2821 = vld [vmem:[%s2812 + $0x40] sm:$0xff]
      %v2822 = vld [vmem:[%s2812 + $0x48] sm:$0xff]
      %v2823 = vld [vmem:[%s2812 + $0x50] sm:$0xff]
      %v2824 = vld [vmem:[%s2812 + $0x58] sm:$0xff]
      %v2825 = vld [vmem:[%s2812 + $0x60] sm:$0xff]
      %v2826 = vld [vmem:[%s2812 + $0x68] sm:$0xff]
      %v2827 = vld [vmem:[%s2812 + $0x70] sm:$0xff]
      %v2828 = vld [vmem:[%s2812 + $0x78] sm:$0xff]
      %v2829 = vld [vmem:[%s2812 + $0x80] sm:$0xff]
      %v2830 = vld [vmem:[%s2812 + $0x88] sm:$0xff]
      %v2831 = vld [vmem:[%s2812 + $0x90] sm:$0xff]
      %v2832 = vld [vmem:[%s2812 + $0x98] sm:$0xff]
      %v2833 = vld [vmem:[%s2812 + $0xa0] sm:$0xff]
      %v2834 = vld [vmem:[%s2812 + $0xa8] sm:$0xff]
      %v2835 = vld [vmem:[%s2812 + $0xb0] sm:$0xff]
      %v2836 = vld [vmem:[%s2812 + $0xb8] sm:$0xff]
      %v2837 = vld [vmem:[%s2812 + $0xc0] sm:$0xff]
      %v2838 = vld [vmem:[%s2812 + $0xc8] sm:$0xff]
      %v2839 = vld [vmem:[%s2812 + $0xd0] sm:$0xff]
      %v2840 = vld [vmem:[%s2812 + $0xd8] sm:$0xff]
      %v2841 = vld [vmem:[%s2812 + $0xe0] sm:$0xff]
      %v2842 = vld [vmem:[%s2812 + $0xe8] sm:$0xff]
      %v2843 = vld [vmem:[%s2812 + $0xf0] sm:$0xff]
      %v2844 = vld [vmem:[%s2812 + $0xf8] sm:$0xff]
      %v2845 = vld [vmem:[%s2812 + $0x100] sm:$0xff]
      %v2846 = vld [vmem:[%s2812 + $0x108] sm:$0xff]
      %v2847 = vld [vmem:[%s2812 + $0x110] sm:$0xff]
      %v2848 = vld [vmem:[%s2812 + $0x118] sm:$0xff]
      %v2849 = vld [vmem:[%s2812 + $0x120] sm:$0xff]
      %v2850 = vld [vmem:[%s2812 + $0x128] sm:$0xff]
      %v2851 = vld [vmem:[%s2812 + $0x130] sm:$0xff]
      %v2852 = vld [vmem:[%s2812 + $0x138] sm:$0xff]
      %v2853 = vld [vmem:[%s2812 + $0x140] sm:$0xff]
      %v2854 = vld [vmem:[%s2812 + $0x148] sm:$0xff]
      %v2855 = vld [vmem:[%s2812 + $0x150] sm:$0xff]
      %v2856 = vld [vmem:[%s2812 + $0x158] sm:$0xff]
      %v2857 = vld [vmem:[%s2812 + $0x160] sm:$0xff]
      %v2858 = vld [vmem:[%s2812 + $0x168] sm:$0xff]
      %v2859 = vld [vmem:[%s2812 + $0x170] sm:$0xff]
      %v2860 = vld [vmem:[%s2812 + $0x178] sm:$0xff]
      %v2861 = vld [vmem:[%s2812 + $0x180] sm:$0xff]
      %v2862 = vld [vmem:[%s2812 + $0x188] sm:$0xff]
      %v2863 = vld [vmem:[%s2812 + $0x190] sm:$0xff]
      %v2864 = vld [vmem:[%s2812 + $0x198] sm:$0xff]
      %v2865 = vld [vmem:[%s2812 + $0x1a0] sm:$0xff]
      %v2866 = vld [vmem:[%s2812 + $0x1a8] sm:$0xff]
      %v2867 = vld [vmem:[%s2812 + $0x1b0] sm:$0xff]
      %v2868 = vld [vmem:[%s2812 + $0x1b8] sm:$0xff]
      %v2869 = vld [vmem:[%s2812 + $0x1c0] sm:$0xff]
      %v2870 = vld [vmem:[%s2812 + $0x1c8] sm:$0xff]
      %v2871 = vld [vmem:[%s2812 + $0x1d0] sm:$0xff]
      %v2872 = vld [vmem:[%s2812 + $0x1d8] sm:$0xff]
      %v2873 = vld [vmem:[%s2812 + $0x1e0] sm:$0xff]
      %v2874 = vld [vmem:[%s2812 + $0x1e8] sm:$0xff]
      %v2875 = vld [vmem:[%s2812 + $0x1f0] sm:$0xff]
      %v2876 = vld [vmem:[%s2812 + $0x1f8] sm:$0xff]
      %v2877 = vld [vmem:[%s2812 + $0x200] sm:$0xff]
      %v2878 = vld [vmem:[%s2812 + $0x208] sm:$0xff]
      %v2879 = vld [vmem:[%s2812 + $0x210] sm:$0xff]
      %v2880 = vld [vmem:[%s2812 + $0x218] sm:$0xff]
      %v2881 = vld [vmem:[%s2812 + $0x220] sm:$0xff]
      %v2882 = vld [vmem:[%s2812 + $0x228] sm:$0xff]
      %v2883 = vld [vmem:[%s2812 + $0x230] sm:$0xff]
      %v2884 = vld [vmem:[%s2812 + $0x238] sm:$0xff]
      %v2885 = vld [vmem:[%s2812 + $0x240] sm:$0xff]
      %v2886 = vld [vmem:[%s2812 + $0x248] sm:$0xff]
      %v2887 = vld [vmem:[%s2812 + $0x250] sm:$0xff]
      %v2888 = vld [vmem:[%s2812 + $0x258] sm:$0xff]
      %v2889 = vld [vmem:[%s2812 + $0x260] sm:$0xff]
      %v2890 = vld [vmem:[%s2812 + $0x268] sm:$0xff]
      %v2891 = vld [vmem:[%s2812 + $0x270] sm:$0xff]
      %v2892 = vld [vmem:[%s2812 + $0x278] sm:$0xff]
      %v2893 = vld [vmem:[%s2812 + $0x280] sm:$0xff]
      %v2894 = vld [vmem:[%s2812 + $0x288] sm:$0xff]
      %v2895 = vld [vmem:[%s2812 + $0x290] sm:$0xff]
      %v2896 = vld [vmem:[%s2812 + $0x298] sm:$0xff]
      %v2897 = vld [vmem:[%s2812 + $0x2a0] sm:$0xff]
      %v2898 = vld [vmem:[%s2812 + $0x2a8] sm:$0xff]
      %v2899 = vld [vmem:[%s2812 + $0x2b0] sm:$0xff]
      %v2900 = vld [vmem:[%s2812 + $0x2b8] sm:$0xff]
      %v2901 = vld [vmem:[%s2812 + $0x2c0] sm:$0xff]
      %v2902 = vld [vmem:[%s2812 + $0x2c8] sm:$0xff]
      %v2903 = vld [vmem:[%s2812 + $0x2d0] sm:$0xff]
      %v2904 = vld [vmem:[%s2812 + $0x2d8] sm:$0xff]
      %v2905 = vld [vmem:[%s2812 + $0x2e0] sm:$0xff]
      %v2906 = vld [vmem:[%s2812 + $0x2e8] sm:$0xff]
      %v2907 = vld [vmem:[%s2812 + $0x2f0] sm:$0xff]
      %v2908 = vld [vmem:[%s2812 + $0x2f8] sm:$0xff]
      %v2909 = vld [vmem:[%s2812 + $0x300] sm:$0xff]
      %v2910 = vld [vmem:[%s2812 + $0x308] sm:$0xff]
      %v2911 = vld [vmem:[%s2812 + $0x310] sm:$0xff]
      %v2912 = vld [vmem:[%s2812 + $0x318] sm:$0xff]
      %v2913 = vld [vmem:[%s2812 + $0x320] sm:$0xff]
      %v2914 = vld [vmem:[%s2812 + $0x328] sm:$0xff]
      %v2915 = vld [vmem:[%s2812 + $0x330] sm:$0xff]
      %v2916 = vld [vmem:[%s2812 + $0x338] sm:$0xff]
      %v2917 = vld [vmem:[%s2812 + $0x340] sm:$0xff]
      %v2918 = vld [vmem:[%s2812 + $0x348] sm:$0xff]
      %v2919 = vld [vmem:[%s2812 + $0x350] sm:$0xff]
      %v2920 = vld [vmem:[%s2812 + $0x358] sm:$0xff]
      %v2921 = vld [vmem:[%s2812 + $0x360] sm:$0xff]
      %v2922 = vld [vmem:[%s2812 + $0x368] sm:$0xff]
      %v2923 = vld [vmem:[%s2812 + $0x370] sm:$0xff]
      %v2924 = vld [vmem:[%s2812 + $0x378] sm:$0xff]
      %v2925 = vld [vmem:[%s2812 + $0x380] sm:$0xff]
      %v2926 = vld [vmem:[%s2812 + $0x388] sm:$0xff]
      %v2927 = vld [vmem:[%s2812 + $0x390] sm:$0xff]
      %v2928 = vld [vmem:[%s2812 + $0x398] sm:$0xff]
      %v2929 = vld [vmem:[%s2812 + $0x3a0] sm:$0xff]
      %v2930 = vld [vmem:[%s2812 + $0x3a8] sm:$0xff]
      %v2931 = vld [vmem:[%s2812 + $0x3b0] sm:$0xff]
      %v2932 = vld [vmem:[%s2812 + $0x3b8] sm:$0xff]
      %v2933 = vld [vmem:[%s2812 + $0x3c0] sm:$0xff]
      %v2934 = vld [vmem:[%s2812 + $0x3c8] sm:$0xff]
      %v2935 = vld [vmem:[%s2812 + $0x3d0] sm:$0xff]
      %v2936 = vld [vmem:[%s2812 + $0x3d8] sm:$0xff]
      %v2937 = vld [vmem:[%s2812 + $0x3e0] sm:$0xff]
      %v2938 = vld [vmem:[%s2812 + $0x3e8] sm:$0xff]
      %v2939 = vld [vmem:[%s2812 + $0x3f0] sm:$0xff]
      %v2940 = vld [vmem:[%s2812 + $0x3f8] sm:$0xff]
      %v2941 = vunpack.c.l.bf16 %v2813
      %v2942 = vunpack.c.h.bf16 %v2813
      %v2943 = vunpack.c.l.bf16 %v2814
      %v2944 = vunpack.c.h.bf16 %v2814
      %v2945 = vunpack.c.l.bf16 %v2815
      %v2946 = vunpack.c.h.bf16 %v2815
      %v2947 = vunpack.c.l.bf16 %v2816
      %v2948 = vunpack.c.h.bf16 %v2816
      %v2949 = vunpack.c.l.bf16 %v2817
      %v2950 = vunpack.c.h.bf16 %v2817
      %v2951 = vunpack.c.l.bf16 %v2818
      %v2952 = vunpack.c.h.bf16 %v2818
      %v2953 = vunpack.c.l.bf16 %v2819
      %v2954 = vunpack.c.h.bf16 %v2819
      %v2955 = vunpack.c.l.bf16 %v2820
      %v2956 = vunpack.c.h.bf16 %v2820
      %v2957 = vunpack.c.l.bf16 %v2821
      %v2958 = vunpack.c.h.bf16 %v2821
      %v2959 = vunpack.c.l.bf16 %v2822
      %v2960 = vunpack.c.h.bf16 %v2822
      %v2961 = vunpack.c.l.bf16 %v2823
      %v2962 = vunpack.c.h.bf16 %v2823
      %v2963 = vunpack.c.l.bf16 %v2824
      %v2964 = vunpack.c.h.bf16 %v2824
      %v2965 = vunpack.c.l.bf16 %v2825
      %v2966 = vunpack.c.h.bf16 %v2825
      %v2967 = vunpack.c.l.bf16 %v2826
      %v2968 = vunpack.c.h.bf16 %v2826
      %v2969 = vunpack.c.l.bf16 %v2827
      %v2970 = vunpack.c.h.bf16 %v2827
      %v2971 = vunpack.c.l.bf16 %v2828
      %v2972 = vunpack.c.h.bf16 %v2828
      %v2973 = vunpack.c.l.bf16 %v2829
      %v2974 = vunpack.c.h.bf16 %v2829
      %v2975 = vunpack.c.l.bf16 %v2830
      %v2976 = vunpack.c.h.bf16 %v2830
      %v2977 = vunpack.c.l.bf16 %v2831
      %v2978 = vunpack.c.h.bf16 %v2831
      %v2979 = vunpack.c.l.bf16 %v2832
      %v2980 = vunpack.c.h.bf16 %v2832
      %v2981 = vunpack.c.l.bf16 %v2833
      %v2982 = vunpack.c.h.bf16 %v2833
      %v2983 = vunpack.c.l.bf16 %v2834
      %v2984 = vunpack.c.h.bf16 %v2834
      %v2985 = vunpack.c.l.bf16 %v2835
      %v2986 = vunpack.c.h.bf16 %v2835
      %v2987 = vunpack.c.l.bf16 %v2836
      %v2988 = vunpack.c.h.bf16 %v2836
      %v2989 = vunpack.c.l.bf16 %v2837
      %v2990 = vunpack.c.h.bf16 %v2837
      %v2991 = vunpack.c.l.bf16 %v2838
      %v2992 = vunpack.c.h.bf16 %v2838
      %v2993 = vunpack.c.l.bf16 %v2839
      %v2994 = vunpack.c.h.bf16 %v2839
      %v2995 = vunpack.c.l.bf16 %v2840
      %v2996 = vunpack.c.h.bf16 %v2840
      %v2997 = vunpack.c.l.bf16 %v2841
      %v2998 = vunpack.c.h.bf16 %v2841
      %v2999 = vunpack.c.l.bf16 %v2842
      %v3000 = vunpack.c.h.bf16 %v2842
      %v3001 = vunpack.c.l.bf16 %v2843
      %v3002 = vunpack.c.h.bf16 %v2843
      %v3003 = vunpack.c.l.bf16 %v2844
      %v3004 = vunpack.c.h.bf16 %v2844
      %v3005 = vunpack.c.l.bf16 %v2845
      %v3006 = vunpack.c.h.bf16 %v2845
      %v3007 = vunpack.c.l.bf16 %v2846
      %v3008 = vunpack.c.h.bf16 %v2846
      %v3009 = vunpack.c.l.bf16 %v2847
      %v3010 = vunpack.c.h.bf16 %v2847
      %v3011 = vunpack.c.l.bf16 %v2848
      %v3012 = vunpack.c.h.bf16 %v2848
      %v3013 = vunpack.c.l.bf16 %v2849
      %v3014 = vunpack.c.h.bf16 %v2849
      %v3015 = vunpack.c.l.bf16 %v2850
      %v3016 = vunpack.c.h.bf16 %v2850
      %v3017 = vunpack.c.l.bf16 %v2851
      %v3018 = vunpack.c.h.bf16 %v2851
      %v3019 = vunpack.c.l.bf16 %v2852
      %v3020 = vunpack.c.h.bf16 %v2852
      %v3021 = vunpack.c.l.bf16 %v2853
      %v3022 = vunpack.c.h.bf16 %v2853
      %v3023 = vunpack.c.l.bf16 %v2854
      %v3024 = vunpack.c.h.bf16 %v2854
      %v3025 = vunpack.c.l.bf16 %v2855
      %v3026 = vunpack.c.h.bf16 %v2855
      %v3027 = vunpack.c.l.bf16 %v2856
      %v3028 = vunpack.c.h.bf16 %v2856
      %v3029 = vunpack.c.l.bf16 %v2857
      %v3030 = vunpack.c.h.bf16 %v2857
      %v3031 = vunpack.c.l.bf16 %v2858
      %v3032 = vunpack.c.h.bf16 %v2858
      %v3033 = vunpack.c.l.bf16 %v2859
      %v3034 = vunpack.c.h.bf16 %v2859
      %v3035 = vunpack.c.l.bf16 %v2860
      %v3036 = vunpack.c.h.bf16 %v2860
      %v3037 = vunpack.c.l.bf16 %v2861
      %v3038 = vunpack.c.h.bf16 %v2861
      %v3039 = vunpack.c.l.bf16 %v2862
      %v3040 = vunpack.c.h.bf16 %v2862
      %v3041 = vunpack.c.l.bf16 %v2863
      %v3042 = vunpack.c.h.bf16 %v2863
      %v3043 = vunpack.c.l.bf16 %v2864
      %v3044 = vunpack.c.h.bf16 %v2864
      %v3045 = vunpack.c.l.bf16 %v2865
      %v3046 = vunpack.c.h.bf16 %v2865
      %v3047 = vunpack.c.l.bf16 %v2866
      %v3048 = vunpack.c.h.bf16 %v2866
      %v3049 = vunpack.c.l.bf16 %v2867
      %v3050 = vunpack.c.h.bf16 %v2867
      %v3051 = vunpack.c.l.bf16 %v2868
      %v3052 = vunpack.c.h.bf16 %v2868
      %v3053 = vunpack.c.l.bf16 %v2869
      %v3054 = vunpack.c.h.bf16 %v2869
      %v3055 = vunpack.c.l.bf16 %v2870
      %v3056 = vunpack.c.h.bf16 %v2870
      %v3057 = vunpack.c.l.bf16 %v2871
      %v3058 = vunpack.c.h.bf16 %v2871
      %v3059 = vunpack.c.l.bf16 %v2872
      %v3060 = vunpack.c.h.bf16 %v2872
      %v3061 = vunpack.c.l.bf16 %v2873
      %v3062 = vunpack.c.h.bf16 %v2873
      %v3063 = vunpack.c.l.bf16 %v2874
      %v3064 = vunpack.c.h.bf16 %v2874
      %v3065 = vunpack.c.l.bf16 %v2875
      %v3066 = vunpack.c.h.bf16 %v2875
      %v3067 = vunpack.c.l.bf16 %v2876
      %v3068 = vunpack.c.h.bf16 %v2876
      %v3069 = vunpack.c.l.bf16 %v2877
      %v3070 = vunpack.c.h.bf16 %v2877
      %v3071 = vunpack.c.l.bf16 %v2878
      %v3072 = vunpack.c.h.bf16 %v2878
      %v3073 = vunpack.c.l.bf16 %v2879
      %v3074 = vunpack.c.h.bf16 %v2879
      %v3075 = vunpack.c.l.bf16 %v2880
      %v3076 = vunpack.c.h.bf16 %v2880
      %v3077 = vunpack.c.l.bf16 %v2881
      %v3078 = vunpack.c.h.bf16 %v2881
      %v3079 = vunpack.c.l.bf16 %v2882
      %v3080 = vunpack.c.h.bf16 %v2882
      %v3081 = vunpack.c.l.bf16 %v2883
      %v3082 = vunpack.c.h.bf16 %v2883
      %v3083 = vunpack.c.l.bf16 %v2884
      %v3084 = vunpack.c.h.bf16 %v2884
      %v3085 = vunpack.c.l.bf16 %v2885
      %v3086 = vunpack.c.h.bf16 %v2885
      %v3087 = vunpack.c.l.bf16 %v2886
      %v3088 = vunpack.c.h.bf16 %v2886
      %v3089 = vunpack.c.l.bf16 %v2887
      %v3090 = vunpack.c.h.bf16 %v2887
      %v3091 = vunpack.c.l.bf16 %v2888
      %v3092 = vunpack.c.h.bf16 %v2888
      %v3093 = vunpack.c.l.bf16 %v2889
      %v3094 = vunpack.c.h.bf16 %v2889
      %v3095 = vunpack.c.l.bf16 %v2890
      %v3096 = vunpack.c.h.bf16 %v2890
      %v3097 = vunpack.c.l.bf16 %v2891
      %v3098 = vunpack.c.h.bf16 %v2891
      %v3099 = vunpack.c.l.bf16 %v2892
      %v3100 = vunpack.c.h.bf16 %v2892
      %v3101 = vunpack.c.l.bf16 %v2893
      %v3102 = vunpack.c.h.bf16 %v2893
      %v3103 = vunpack.c.l.bf16 %v2894
      %v3104 = vunpack.c.h.bf16 %v2894
      %v3105 = vunpack.c.l.bf16 %v2895
      %v3106 = vunpack.c.h.bf16 %v2895
      %v3107 = vunpack.c.l.bf16 %v2896
      %v3108 = vunpack.c.h.bf16 %v2896
      %v3109 = vunpack.c.l.bf16 %v2897
      %v3110 = vunpack.c.h.bf16 %v2897
      %v3111 = vunpack.c.l.bf16 %v2898
      %v3112 = vunpack.c.h.bf16 %v2898
      %v3113 = vunpack.c.l.bf16 %v2899
      %v3114 = vunpack.c.h.bf16 %v2899
      %v3115 = vunpack.c.l.bf16 %v2900
      %v3116 = vunpack.c.h.bf16 %v2900
      %v3117 = vunpack.c.l.bf16 %v2901
      %v3118 = vunpack.c.h.bf16 %v2901
      %v3119 = vunpack.c.l.bf16 %v2902
      %v3120 = vunpack.c.h.bf16 %v2902
      %v3121 = vunpack.c.l.bf16 %v2903
      %v3122 = vunpack.c.h.bf16 %v2903
      %v3123 = vunpack.c.l.bf16 %v2904
      %v3124 = vunpack.c.h.bf16 %v2904
      %v3125 = vunpack.c.l.bf16 %v2905
      %v3126 = vunpack.c.h.bf16 %v2905
      %v3127 = vunpack.c.l.bf16 %v2906
      %v3128 = vunpack.c.h.bf16 %v2906
      %v3129 = vunpack.c.l.bf16 %v2907
      %v3130 = vunpack.c.h.bf16 %v2907
      %v3131 = vunpack.c.l.bf16 %v2908
      %v3132 = vunpack.c.h.bf16 %v2908
      %v3133 = vunpack.c.l.bf16 %v2909
      %v3134 = vunpack.c.h.bf16 %v2909
      %v3135 = vunpack.c.l.bf16 %v2910
      %v3136 = vunpack.c.h.bf16 %v2910
      %v3137 = vunpack.c.l.bf16 %v2911
      %v3138 = vunpack.c.h.bf16 %v2911
      %v3139 = vunpack.c.l.bf16 %v2912
      %v3140 = vunpack.c.h.bf16 %v2912
      %v3141 = vunpack.c.l.bf16 %v2913
      %v3142 = vunpack.c.h.bf16 %v2913
      %v3143 = vunpack.c.l.bf16 %v2914
      %v3144 = vunpack.c.h.bf16 %v2914
      %v3145 = vunpack.c.l.bf16 %v2915
      %v3146 = vunpack.c.h.bf16 %v2915
      %v3147 = vunpack.c.l.bf16 %v2916
      %v3148 = vunpack.c.h.bf16 %v2916
      %v3149 = vunpack.c.l.bf16 %v2917
      %v3150 = vunpack.c.h.bf16 %v2917
      %v3151 = vunpack.c.l.bf16 %v2918
      %v3152 = vunpack.c.h.bf16 %v2918
      %v3153 = vunpack.c.l.bf16 %v2919
      %v3154 = vunpack.c.h.bf16 %v2919
      %v3155 = vunpack.c.l.bf16 %v2920
      %v3156 = vunpack.c.h.bf16 %v2920
      %v3157 = vunpack.c.l.bf16 %v2921
      %v3158 = vunpack.c.h.bf16 %v2921
      %v3159 = vunpack.c.l.bf16 %v2922
      %v3160 = vunpack.c.h.bf16 %v2922
      %v3161 = vunpack.c.l.bf16 %v2923
      %v3162 = vunpack.c.h.bf16 %v2923
      %v3163 = vunpack.c.l.bf16 %v2924
      %v3164 = vunpack.c.h.bf16 %v2924
      %v3165 = vunpack.c.l.bf16 %v2925
      %v3166 = vunpack.c.h.bf16 %v2925
      %v3167 = vunpack.c.l.bf16 %v2926
      %v3168 = vunpack.c.h.bf16 %v2926
      %v3169 = vunpack.c.l.bf16 %v2927
      %v3170 = vunpack.c.h.bf16 %v2927
      %v3171 = vunpack.c.l.bf16 %v2928
      %v3172 = vunpack.c.h.bf16 %v2928
      %v3173 = vunpack.c.l.bf16 %v2929
      %v3174 = vunpack.c.h.bf16 %v2929
      %v3175 = vunpack.c.l.bf16 %v2930
      %v3176 = vunpack.c.h.bf16 %v2930
      %v3177 = vunpack.c.l.bf16 %v2931
      %v3178 = vunpack.c.h.bf16 %v2931
      %v3179 = vunpack.c.l.bf16 %v2932
      %v3180 = vunpack.c.h.bf16 %v2932
      %v3181 = vunpack.c.l.bf16 %v2933
      %v3182 = vunpack.c.h.bf16 %v2933
      %v3183 = vunpack.c.l.bf16 %v2934
      %v3184 = vunpack.c.h.bf16 %v2934
      %v3185 = vunpack.c.l.bf16 %v2935
      %v3186 = vunpack.c.h.bf16 %v2935
      %v3187 = vunpack.c.l.bf16 %v2936
      %v3188 = vunpack.c.h.bf16 %v2936
      %v3189 = vunpack.c.l.bf16 %v2937
      %v3190 = vunpack.c.h.bf16 %v2937
      %v3191 = vunpack.c.l.bf16 %v2938
      %v3192 = vunpack.c.h.bf16 %v2938
      %v3193 = vunpack.c.l.bf16 %v2939
      %v3194 = vunpack.c.h.bf16 %v2939
      %v3195 = vunpack.c.l.bf16 %v2940
      %v3196 = vunpack.c.h.bf16 %v2940
      %v3197 = vlaneseq
      %v3198 = vshrl.u32 %v3197, 7
      %v3199 = vsub.s32 1, %v3198
      %v3200 = vrot.slane %v2468, %v3199
      %v3201 = vlaneseq
      %v3202 = vshrl.u32 %v3201, 7
      %v3203 = vsub.s32 5, %v3202
      %v3204 = vrot.slane %v2468, %v3203
      %v3205 = vlaneseq
      %v3206 = vshrl.u32 %v3205, 7
      %v3207 = vsub.s32 1, %v3206
      %v3208 = vrot.slane %v2469, %v3207
      %v3209 = vlaneseq
      %v3210 = vshrl.u32 %v3209, 7
      %v3211 = vsub.s32 5, %v3210
      %v3212 = vrot.slane %v2469, %v3211
      %v3217 = vlaneseq
      %v3218 = vshrl.u32 %v3217, 7
      %v3219 = vsub.s32 1, %v3218
      %v3220 = vrot.slane %v3200, %v3219
      %v3221 = vlaneseq
      %v3222 = vshrl.u32 %v3221, 7
      %v3223 = vsub.s32 1, %v3222
      %v3224 = vrot.slane %v3204, %v3223
      %v3225 = vlaneseq
      %v3226 = vshrl.u32 %v3225, 7
      %v3227 = vsub.s32 1, %v3226
      %v3228 = vrot.slane %v3208, %v3227
      %v3229 = vlaneseq
      %v3230 = vshrl.u32 %v3229, 7
      %v3231 = vsub.s32 1, %v3230
      %v3232 = vrot.slane %v3212, %v3231
      %3233 = vmatprep.subr.mxu0 %v2942
      %3234 = vmatpush1.msra.mxu0 %v2941
      %3235 = vmatprep.subr.mxu0 %v2946
      %3236 = vmatpush1.msra.mxu0 %v2945
      %3237 = vmatprep.subr.mxu0 %v2950
      %3238 = vmatpush1.msra.mxu0 %v2949
      %3239 = vmatprep.subr.mxu0 %v2954
      %3240 = vmatpush1.msra.mxu0 %v2953
      %3241 = vmatprep.subr.mxu0 %v2958
      %3242 = vmatpush1.msra.mxu0 %v2957
      %3243 = vmatprep.subr.mxu0 %v2962
      %3244 = vmatpush1.msra.mxu0 %v2961
      %3245 = vmatprep.subr.mxu0 %v2966
      %3246 = vmatpush1.msra.mxu0 %v2965
      %3247 = vmatprep.subr.mxu0 %v2970
      %3248 = vmatpush1.msra.mxu0 %v2969
      %3249 = vmatprep.subr.mxu0 %v2974
      %3250 = vmatpush1.msra.mxu0 %v2973
      %3251 = vmatprep.subr.mxu0 %v2978
      %3252 = vmatpush1.msra.mxu0 %v2977
      %3253 = vmatprep.subr.mxu0 %v2982
      %3254 = vmatpush1.msra.mxu0 %v2981
      %3255 = vmatprep.subr.mxu0 %v2986
      %3256 = vmatpush1.msra.mxu0 %v2985
      %3257 = vmatprep.subr.mxu0 %v2990
      %3258 = vmatpush1.msra.mxu0 %v2989
      %3259 = vmatprep.subr.mxu0 %v2994
      %3260 = vmatpush1.msra.mxu0 %v2993
      %3261 = vmatprep.subr.mxu0 %v2998
      %3262 = vmatpush1.msra.mxu0 %v2997
      %3263 = vmatprep.subr.mxu0 %v3002
      %3264 = vmatpush1.msra.mxu0 %v3001
      %3265 = vmatprep.subr.mxu0 %v3006
      %3266 = vmatpush1.msra.mxu0 %v3005
      %3267 = vmatprep.subr.mxu0 %v3010
      %3268 = vmatpush1.msra.mxu0 %v3009
      %3269 = vmatprep.subr.mxu0 %v3014
      %3270 = vmatpush1.msra.mxu0 %v3013
      %3271 = vmatprep.subr.mxu0 %v3018
      %3272 = vmatpush1.msra.mxu0 %v3017
      %3273 = vmatprep.subr.mxu0 %v3022
      %3274 = vmatpush1.msra.mxu0 %v3021
      %3275 = vmatprep.subr.mxu0 %v3026
      %3276 = vmatpush1.msra.mxu0 %v3025
      %3277 = vmatprep.subr.mxu0 %v3030
      %3278 = vmatpush1.msra.mxu0 %v3029
      %3279 = vmatprep.subr.mxu0 %v3034
      %3280 = vmatpush1.msra.mxu0 %v3033
      %3281 = vmatprep.subr.mxu0 %v3038
      %3282 = vmatpush1.msra.mxu0 %v3037
      %3283 = vmatprep.subr.mxu0 %v3042
      %3284 = vmatpush1.msra.mxu0 %v3041
      %3285 = vmatprep.subr.mxu0 %v3046
      %3286 = vmatpush1.msra.mxu0 %v3045
      %3287 = vmatprep.subr.mxu0 %v3050
      %3288 = vmatpush1.msra.mxu0 %v3049
      %3289 = vmatprep.subr.mxu0 %v3054
      %3290 = vmatpush1.msra.mxu0 %v3053
      %3291 = vmatprep.subr.mxu0 %v3058
      %3292 = vmatpush1.msra.mxu0 %v3057
      %3293 = vmatprep.subr.mxu0 %v3062
      %3294 = vmatpush1.msra.mxu0 %v3061
      %3295 = vmatprep.subr.mxu0 %v3066
      %3296 = vmatpush1.msra.mxu0 %v3065
      %3297 = vmatprep.mubr.f32.mxu0 %v2809
      %3298 = vmatmul.mubr.f32.gmra.mrb[0].mxu0 %v2808
      %v3299 = vpop.f32.mrb[0].mxu0
      %v3300 = vadd.f32 %v3220, %v3299
      %v3301 = vpop.f32.mrb[0].mxu0
      %v3302 = vadd.f32 %v3224, %v3301
      %3303 = vdwg.mxu0
      %3304 = vmatprep.subr.mxu0 %v3070
      %3305 = vmatpush1.msra.mxu0 %v3069
      %3306 = vmatprep.subr.mxu0 %v3074
      %3307 = vmatpush1.msra.mxu0 %v3073
      %3308 = vmatprep.subr.mxu0 %v3078
      %3309 = vmatpush1.msra.mxu0 %v3077
      %3310 = vmatprep.subr.mxu0 %v3082
      %3311 = vmatpush1.msra.mxu0 %v3081
      %3312 = vmatprep.subr.mxu0 %v3086
      %3313 = vmatpush1.msra.mxu0 %v3085
      %3314 = vmatprep.subr.mxu0 %v3090
      %3315 = vmatpush1.msra.mxu0 %v3089
      %3316 = vmatprep.subr.mxu0 %v3094
      %3317 = vmatpush1.msra.mxu0 %v3093
      %3318 = vmatprep.subr.mxu0 %v3098
      %3319 = vmatpush1.msra.mxu0 %v3097
      %3320 = vmatprep.subr.mxu0 %v3102
      %3321 = vmatpush1.msra.mxu0 %v3101
      %3322 = vmatprep.subr.mxu0 %v3106
      %3323 = vmatpush1.msra.mxu0 %v3105
      %3324 = vmatprep.subr.mxu0 %v3110
      %3325 = vmatpush1.msra.mxu0 %v3109
      %3326 = vmatprep.subr.mxu0 %v3114
      %3327 = vmatpush1.msra.mxu0 %v3113
      %3328 = vmatprep.subr.mxu0 %v3118
      %3329 = vmatpush1.msra.mxu0 %v3117
      %3330 = vmatprep.subr.mxu0 %v3122
      %3331 = vmatpush1.msra.mxu0 %v3121
      %3332 = vmatprep.subr.mxu0 %v3126
      %3333 = vmatpush1.msra.mxu0 %v3125
      %3334 = vmatprep.subr.mxu0 %v3130
      %3335 = vmatpush1.msra.mxu0 %v3129
      %3336 = vmatprep.subr.mxu0 %v3134
      %3337 = vmatpush1.msra.mxu0 %v3133
      %3338 = vmatprep.subr.mxu0 %v3138
      %3339 = vmatpush1.msra.mxu0 %v3137
      %3340 = vmatprep.subr.mxu0 %v3142
      %3341 = vmatpush1.msra.mxu0 %v3141
      %3342 = vmatprep.subr.mxu0 %v3146
      %3343 = vmatpush1.msra.mxu0 %v3145
      %3344 = vmatprep.subr.mxu0 %v3150
      %3345 = vmatpush1.msra.mxu0 %v3149
      %3346 = vmatprep.subr.mxu0 %v3154
      %3347 = vmatpush1.msra.mxu0 %v3153
      %3348 = vmatprep.subr.mxu0 %v3158
      %3349 = vmatpush1.msra.mxu0 %v3157
      %3350 = vmatprep.subr.mxu0 %v3162
      %3351 = vmatpush1.msra.mxu0 %v3161
      %3352 = vmatprep.subr.mxu0 %v3166
      %3353 = vmatpush1.msra.mxu0 %v3165
      %3354 = vmatprep.subr.mxu0 %v3170
      %3355 = vmatpush1.msra.mxu0 %v3169
      %3356 = vmatprep.subr.mxu0 %v3174
      %3357 = vmatpush1.msra.mxu0 %v3173
      %3358 = vmatprep.subr.mxu0 %v3178
      %3359 = vmatpush1.msra.mxu0 %v3177
      %3360 = vmatprep.subr.mxu0 %v3182
      %3361 = vmatpush1.msra.mxu0 %v3181
      %3362 = vmatprep.subr.mxu0 %v3186
      %3363 = vmatpush1.msra.mxu0 %v3185
      %3364 = vmatprep.subr.mxu0 %v3190
      %3365 = vmatpush1.msra.mxu0 %v3189
      %3366 = vmatprep.subr.mxu0 %v3194
      %3367 = vmatpush1.msra.mxu0 %v3193
      %3368 = vmatprep.mubr.f32.mxu0 %v2811
      %3369 = vmatmul.mubr.f32.gmra.mrb[0].mxu0 %v2810
      %v3370 = vpop.f32.mrb[0].mxu0
      %v3371 = vadd.f32 %v3300, %v3370
      %v3372 = vpop.f32.mrb[0].mxu0
      %v3373 = vadd.f32 %v3302, %v3372
      %3374 = vdwg.mxu0
      %3375 = vmatprep.subr.mxu0 %v2944
      %3376 = vmatpush1.msra.mxu0 %v2943
      %3377 = vmatprep.subr.mxu0 %v2948
      %3378 = vmatpush1.msra.mxu0 %v2947
      %3379 = vmatprep.subr.mxu0 %v2952
      %3380 = vmatpush1.msra.mxu0 %v2951
      %3381 = vmatprep.subr.mxu0 %v2956
      %3382 = vmatpush1.msra.mxu0 %v2955
      %3383 = vmatprep.subr.mxu0 %v2960
      %3384 = vmatpush1.msra.mxu0 %v2959
      %3385 = vmatprep.subr.mxu0 %v2964
      %3386 = vmatpush1.msra.mxu0 %v2963
      %3387 = vmatprep.subr.mxu0 %v2968
      %3388 = vmatpush1.msra.mxu0 %v2967
      %3389 = vmatprep.subr.mxu0 %v2972
      %3390 = vmatpush1.msra.mxu0 %v2971
      %3391 = vmatprep.subr.mxu0 %v2976
      %3392 = vmatpush1.msra.mxu0 %v2975
      %3393 = vmatprep.subr.mxu0 %v2980
      %3394 = vmatpush1.msra.mxu0 %v2979
      %3395 = vmatprep.subr.mxu0 %v2984
      %3396 = vmatpush1.msra.mxu0 %v2983
      %3397 = vmatprep.subr.mxu0 %v2988
      %3398 = vmatpush1.msra.mxu0 %v2987
      %3399 = vmatprep.subr.mxu0 %v2992
      %3400 = vmatpush1.msra.mxu0 %v2991
      %3401 = vmatprep.subr.mxu0 %v2996
      %3402 = vmatpush1.msra.mxu0 %v2995
      %3403 = vmatprep.subr.mxu0 %v3000
      %3404 = vmatpush1.msra.mxu0 %v2999
      %3405 = vmatprep.subr.mxu0 %v3004
      %3406 = vmatpush1.msra.mxu0 %v3003
      %3407 = vmatprep.subr.mxu0 %v3008
      %3408 = vmatpush1.msra.mxu0 %v3007
      %3409 = vmatprep.subr.mxu0 %v3012
      %3410 = vmatpush1.msra.mxu0 %v3011
      %3411 = vmatprep.subr.mxu0 %v3016
      %3412 = vmatpush1.msra.mxu0 %v3015
      %3413 = vmatprep.subr.mxu0 %v3020
      %3414 = vmatpush1.msra.mxu0 %v3019
      %3415 = vmatprep.subr.mxu0 %v3024
      %3416 = vmatpush1.msra.mxu0 %v3023
      %3417 = vmatprep.subr.mxu0 %v3028
      %3418 = vmatpush1.msra.mxu0 %v3027
      %3419 = vmatprep.subr.mxu0 %v3032
      %3420 = vmatpush1.msra.mxu0 %v3031
      %3421 = vmatprep.subr.mxu0 %v3036
      %3422 = vmatpush1.msra.mxu0 %v3035
      %3423 = vmatprep.subr.mxu0 %v3040
      %3424 = vmatpush1.msra.mxu0 %v3039
      %3425 = vmatprep.subr.mxu0 %v3044
      %3426 = vmatpush1.msra.mxu0 %v3043
      %3427 = vmatprep.subr.mxu0 %v3048
      %3428 = vmatpush1.msra.mxu0 %v3047
      %3429 = vmatprep.subr.mxu0 %v3052
      %3430 = vmatpush1.msra.mxu0 %v3051
      %3431 = vmatprep.subr.mxu0 %v3056
      %3432 = vmatpush1.msra.mxu0 %v3055
      %3433 = vmatprep.subr.mxu0 %v3060
      %3434 = vmatpush1.msra.mxu0 %v3059
      %3435 = vmatprep.subr.mxu0 %v3064
      %3436 = vmatpush1.msra.mxu0 %v3063
      %3437 = vmatprep.subr.mxu0 %v3068
      %3438 = vmatpush1.msra.mxu0 %v3067
      %3439 = vmatprep.mubr.f32.mxu0 %v2809
      %3440 = vmatmul.mubr.f32.gmra.mrb[0].mxu0 %v2808
      %v3441 = vpop.f32.mrb[0].mxu0
      %v3442 = vadd.f32 %v3228, %v3441
      %v3443 = vpop.f32.mrb[0].mxu0
      %v3444 = vadd.f32 %v3232, %v3443
      %3445 = vdwg.mxu0
      %3446 = vmatprep.subr.mxu0 %v3072
      %3447 = vmatpush1.msra.mxu0 %v3071
      %3448 = vmatprep.subr.mxu0 %v3076
      %3449 = vmatpush1.msra.mxu0 %v3075
      %3450 = vmatprep.subr.mxu0 %v3080
      %3451 = vmatpush1.msra.mxu0 %v3079
      %3452 = vmatprep.subr.mxu0 %v3084
      %3453 = vmatpush1.msra.mxu0 %v3083
      %3454 = vmatprep.subr.mxu0 %v3088
      %3455 = vmatpush1.msra.mxu0 %v3087
      %3456 = vmatprep.subr.mxu0 %v3092
      %3457 = vmatpush1.msra.mxu0 %v3091
      %3458 = vmatprep.subr.mxu0 %v3096
      %3459 = vmatpush1.msra.mxu0 %v3095
      %3460 = vmatprep.subr.mxu0 %v3100
      %3461 = vmatpush1.msra.mxu0 %v3099
      %3462 = vmatprep.subr.mxu0 %v3104
      %3463 = vmatpush1.msra.mxu0 %v3103
      %3464 = vmatprep.subr.mxu0 %v3108
      %3465 = vmatpush1.msra.mxu0 %v3107
      %3466 = vmatprep.subr.mxu0 %v3112
      %3467 = vmatpush1.msra.mxu0 %v3111
      %3468 = vmatprep.subr.mxu0 %v3116
      %3469 = vmatpush1.msra.mxu0 %v3115
      %3470 = vmatprep.subr.mxu0 %v3120
      %3471 = vmatpush1.msra.mxu0 %v3119
      %3472 = vmatprep.subr.mxu0 %v3124
      %3473 = vmatpush1.msra.mxu0 %v3123
      %3474 = vmatprep.subr.mxu0 %v3128
      %3475 = vmatpush1.msra.mxu0 %v3127
      %3476 = vmatprep.subr.mxu0 %v3132
      %3477 = vmatpush1.msra.mxu0 %v3131
      %3478 = vmatprep.subr.mxu0 %v3136
      %3479 = vmatpush1.msra.mxu0 %v3135
      %3480 = vmatprep.subr.mxu0 %v3140
      %3481 = vmatpush1.msra.mxu0 %v3139
      %3482 = vmatprep.subr.mxu0 %v3144
      %3483 = vmatpush1.msra.mxu0 %v3143
      %3484 = vmatprep.subr.mxu0 %v3148
      %3485 = vmatpush1.msra.mxu0 %v3147
      %3486 = vmatprep.subr.mxu0 %v3152
      %3487 = vmatpush1.msra.mxu0 %v3151
      %3488 = vmatprep.subr.mxu0 %v3156
      %3489 = vmatpush1.msra.mxu0 %v3155
      %3490 = vmatprep.subr.mxu0 %v3160
      %3491 = vmatpush1.msra.mxu0 %v3159
      %3492 = vmatprep.subr.mxu0 %v3164
      %3493 = vmatpush1.msra.mxu0 %v3163
      %3494 = vmatprep.subr.mxu0 %v3168
      %3495 = vmatpush1.msra.mxu0 %v3167
      %3496 = vmatprep.subr.mxu0 %v3172
      %3497 = vmatpush1.msra.mxu0 %v3171
      %3498 = vmatprep.subr.mxu0 %v3176
      %3499 = vmatpush1.msra.mxu0 %v3175
      %3500 = vmatprep.subr.mxu0 %v3180
      %3501 = vmatpush1.msra.mxu0 %v3179
      %3502 = vmatprep.subr.mxu0 %v3184
      %3503 = vmatpush1.msra.mxu0 %v3183
      %3504 = vmatprep.subr.mxu0 %v3188
      %3505 = vmatpush1.msra.mxu0 %v3187
      %3506 = vmatprep.subr.mxu0 %v3192
      %3507 = vmatpush1.msra.mxu0 %v3191
      %3508 = vmatprep.subr.mxu0 %v3196
      %3509 = vmatpush1.msra.mxu0 %v3195
      %3510 = vmatprep.mubr.f32.mxu0 %v2811
      %3511 = vmatmul.mubr.f32.gmra.mrb[0].mxu0 %v2810
      %v3512 = vpop.f32.mrb[0].mxu0
      %v3513 = vadd.f32 %v3442, %v3512
      %v3514 = vpop.f32.mrb[0].mxu0
      %v3515 = vadd.f32 %v3444, %v3514
      %3516 = vdwg.mxu0
      %v3517 = vmax.f32 %v3371, 0.0
      %v3518 = vmax.f32 %v3373, 0.0
      %v3519 = vmax.f32 %v3513, 0.0
      %v3520 = vmax.f32 %v3515, 0.0
      %s3521 = scalar_lea.vmem %s363, 1024
      %v3522 = vld [vmem:[%s3521] sm:$0xff]
      %v3523 = vld [vmem:[%s3521 + $0x8] sm:$0xff]
      %v3524 = vld [vmem:[%s3521 + $0x10] sm:$0xff]
      %v3525 = vld [vmem:[%s3521 + $0x18] sm:$0xff]
      %v3526 = vld [vmem:[%s3521 + $0x20] sm:$0xff]
      %v3527 = vld [vmem:[%s3521 + $0x28] sm:$0xff]
      %v3528 = vld [vmem:[%s3521 + $0x30] sm:$0xff]
      %v3529 = vld [vmem:[%s3521 + $0x38] sm:$0xff]
      %v3530 = vld [vmem:[%s3521 + $0x40] sm:$0xff]
      %v3531 = vld [vmem:[%s3521 + $0x48] sm:$0xff]
      %v3532 = vld [vmem:[%s3521 + $0x50] sm:$0xff]
      %v3533 = vld [vmem:[%s3521 + $0x58] sm:$0xff]
      %v3534 = vld [vmem:[%s3521 + $0x60] sm:$0xff]
      %v3535 = vld [vmem:[%s3521 + $0x68] sm:$0xff]
      %v3536 = vld [vmem:[%s3521 + $0x70] sm:$0xff]
      %v3537 = vld [vmem:[%s3521 + $0x78] sm:$0xff]
      %v3538 = vld [vmem:[%s3521 + $0x80] sm:$0xff]
      %v3539 = vld [vmem:[%s3521 + $0x88] sm:$0xff]
      %v3540 = vld [vmem:[%s3521 + $0x90] sm:$0xff]
      %v3541 = vld [vmem:[%s3521 + $0x98] sm:$0xff]
      %v3542 = vld [vmem:[%s3521 + $0xa0] sm:$0xff]
      %v3543 = vld [vmem:[%s3521 + $0xa8] sm:$0xff]
      %v3544 = vld [vmem:[%s3521 + $0xb0] sm:$0xff]
      %v3545 = vld [vmem:[%s3521 + $0xb8] sm:$0xff]
      %v3546 = vld [vmem:[%s3521 + $0xc0] sm:$0xff]
      %v3547 = vld [vmem:[%s3521 + $0xc8] sm:$0xff]
      %v3548 = vld [vmem:[%s3521 + $0xd0] sm:$0xff]
      %v3549 = vld [vmem:[%s3521 + $0xd8] sm:$0xff]
      %v3550 = vld [vmem:[%s3521 + $0xe0] sm:$0xff]
      %v3551 = vld [vmem:[%s3521 + $0xe8] sm:$0xff]
      %v3552 = vld [vmem:[%s3521 + $0xf0] sm:$0xff]
      %v3553 = vld [vmem:[%s3521 + $0xf8] sm:$0xff]
      %v3554 = vld [vmem:[%s3521 + $0x100] sm:$0xff]
      %v3555 = vld [vmem:[%s3521 + $0x108] sm:$0xff]
      %v3556 = vld [vmem:[%s3521 + $0x110] sm:$0xff]
      %v3557 = vld [vmem:[%s3521 + $0x118] sm:$0xff]
      %v3558 = vld [vmem:[%s3521 + $0x120] sm:$0xff]
      %v3559 = vld [vmem:[%s3521 + $0x128] sm:$0xff]
      %v3560 = vld [vmem:[%s3521 + $0x130] sm:$0xff]
      %v3561 = vld [vmem:[%s3521 + $0x138] sm:$0xff]
      %v3562 = vld [vmem:[%s3521 + $0x140] sm:$0xff]
      %v3563 = vld [vmem:[%s3521 + $0x148] sm:$0xff]
      %v3564 = vld [vmem:[%s3521 + $0x150] sm:$0xff]
      %v3565 = vld [vmem:[%s3521 + $0x158] sm:$0xff]
      %v3566 = vld [vmem:[%s3521 + $0x160] sm:$0xff]
      %v3567 = vld [vmem:[%s3521 + $0x168] sm:$0xff]
      %v3568 = vld [vmem:[%s3521 + $0x170] sm:$0xff]
      %v3569 = vld [vmem:[%s3521 + $0x178] sm:$0xff]
      %v3570 = vld [vmem:[%s3521 + $0x180] sm:$0xff]
      %v3571 = vld [vmem:[%s3521 + $0x188] sm:$0xff]
      %v3572 = vld [vmem:[%s3521 + $0x190] sm:$0xff]
      %v3573 = vld [vmem:[%s3521 + $0x198] sm:$0xff]
      %v3574 = vld [vmem:[%s3521 + $0x1a0] sm:$0xff]
      %v3575 = vld [vmem:[%s3521 + $0x1a8] sm:$0xff]
      %v3576 = vld [vmem:[%s3521 + $0x1b0] sm:$0xff]
      %v3577 = vld [vmem:[%s3521 + $0x1b8] sm:$0xff]
      %v3578 = vld [vmem:[%s3521 + $0x1c0] sm:$0xff]
      %v3579 = vld [vmem:[%s3521 + $0x1c8] sm:$0xff]
      %v3580 = vld [vmem:[%s3521 + $0x1d0] sm:$0xff]
      %v3581 = vld [vmem:[%s3521 + $0x1d8] sm:$0xff]
      %v3582 = vld [vmem:[%s3521 + $0x1e0] sm:$0xff]
      %v3583 = vld [vmem:[%s3521 + $0x1e8] sm:$0xff]
      %v3584 = vld [vmem:[%s3521 + $0x1f0] sm:$0xff]
      %v3585 = vld [vmem:[%s3521 + $0x1f8] sm:$0xff]
      %v3586 = vld [vmem:[%s3521 + $0x200] sm:$0xff]
      %v3587 = vld [vmem:[%s3521 + $0x208] sm:$0xff]
      %v3588 = vld [vmem:[%s3521 + $0x210] sm:$0xff]
      %v3589 = vld [vmem:[%s3521 + $0x218] sm:$0xff]
      %v3590 = vld [vmem:[%s3521 + $0x220] sm:$0xff]
      %v3591 = vld [vmem:[%s3521 + $0x228] sm:$0xff]
      %v3592 = vld [vmem:[%s3521 + $0x230] sm:$0xff]
      %v3593 = vld [vmem:[%s3521 + $0x238] sm:$0xff]
      %v3594 = vld [vmem:[%s3521 + $0x240] sm:$0xff]
      %v3595 = vld [vmem:[%s3521 + $0x248] sm:$0xff]
      %v3596 = vld [vmem:[%s3521 + $0x250] sm:$0xff]
      %v3597 = vld [vmem:[%s3521 + $0x258] sm:$0xff]
      %v3598 = vld [vmem:[%s3521 + $0x260] sm:$0xff]
      %v3599 = vld [vmem:[%s3521 + $0x268] sm:$0xff]
      %v3600 = vld [vmem:[%s3521 + $0x270] sm:$0xff]
      %v3601 = vld [vmem:[%s3521 + $0x278] sm:$0xff]
      %v3602 = vld [vmem:[%s3521 + $0x280] sm:$0xff]
      %v3603 = vld [vmem:[%s3521 + $0x288] sm:$0xff]
      %v3604 = vld [vmem:[%s3521 + $0x290] sm:$0xff]
      %v3605 = vld [vmem:[%s3521 + $0x298] sm:$0xff]
      %v3606 = vld [vmem:[%s3521 + $0x2a0] sm:$0xff]
      %v3607 = vld [vmem:[%s3521 + $0x2a8] sm:$0xff]
      %v3608 = vld [vmem:[%s3521 + $0x2b0] sm:$0xff]
      %v3609 = vld [vmem:[%s3521 + $0x2b8] sm:$0xff]
      %v3610 = vld [vmem:[%s3521 + $0x2c0] sm:$0xff]
      %v3611 = vld [vmem:[%s3521 + $0x2c8] sm:$0xff]
      %v3612 = vld [vmem:[%s3521 + $0x2d0] sm:$0xff]
      %v3613 = vld [vmem:[%s3521 + $0x2d8] sm:$0xff]
      %v3614 = vld [vmem:[%s3521 + $0x2e0] sm:$0xff]
      %v3615 = vld [vmem:[%s3521 + $0x2e8] sm:$0xff]
      %v3616 = vld [vmem:[%s3521 + $0x2f0] sm:$0xff]
      %v3617 = vld [vmem:[%s3521 + $0x2f8] sm:$0xff]
      %v3618 = vld [vmem:[%s3521 + $0x300] sm:$0xff]
      %v3619 = vld [vmem:[%s3521 + $0x308] sm:$0xff]
      %v3620 = vld [vmem:[%s3521 + $0x310] sm:$0xff]
      %v3621 = vld [vmem:[%s3521 + $0x318] sm:$0xff]
      %v3622 = vld [vmem:[%s3521 + $0x320] sm:$0xff]
      %v3623 = vld [vmem:[%s3521 + $0x328] sm:$0xff]
      %v3624 = vld [vmem:[%s3521 + $0x330] sm:$0xff]
      %v3625 = vld [vmem:[%s3521 + $0x338] sm:$0xff]
      %v3626 = vld [vmem:[%s3521 + $0x340] sm:$0xff]
      %v3627 = vld [vmem:[%s3521 + $0x348] sm:$0xff]
      %v3628 = vld [vmem:[%s3521 + $0x350] sm:$0xff]
      %v3629 = vld [vmem:[%s3521 + $0x358] sm:$0xff]
      %v3630 = vld [vmem:[%s3521 + $0x360] sm:$0xff]
      %v3631 = vld [vmem:[%s3521 + $0x368] sm:$0xff]
      %v3632 = vld [vmem:[%s3521 + $0x370] sm:$0xff]
      %v3633 = vld [vmem:[%s3521 + $0x378] sm:$0xff]
      %v3634 = vld [vmem:[%s3521 + $0x380] sm:$0xff]
      %v3635 = vld [vmem:[%s3521 + $0x388] sm:$0xff]
      %v3636 = vld [vmem:[%s3521 + $0x390] sm:$0xff]
      %v3637 = vld [vmem:[%s3521 + $0x398] sm:$0xff]
      %v3638 = vld [vmem:[%s3521 + $0x3a0] sm:$0xff]
      %v3639 = vld [vmem:[%s3521 + $0x3a8] sm:$0xff]
      %v3640 = vld [vmem:[%s3521 + $0x3b0] sm:$0xff]
      %v3641 = vld [vmem:[%s3521 + $0x3b8] sm:$0xff]
      %v3642 = vld [vmem:[%s3521 + $0x3c0] sm:$0xff]
      %v3643 = vld [vmem:[%s3521 + $0x3c8] sm:$0xff]
      %v3644 = vld [vmem:[%s3521 + $0x3d0] sm:$0xff]
      %v3645 = vld [vmem:[%s3521 + $0x3d8] sm:$0xff]
      %v3646 = vld [vmem:[%s3521 + $0x3e0] sm:$0xff]
      %v3647 = vld [vmem:[%s3521 + $0x3e8] sm:$0xff]
      %v3648 = vld [vmem:[%s3521 + $0x3f0] sm:$0xff]
      %v3649 = vld [vmem:[%s3521 + $0x3f8] sm:$0xff]
      %v3650 = vunpack.c.l.bf16 %v3522
      %v3651 = vunpack.c.h.bf16 %v3522
      %v3652 = vunpack.c.l.bf16 %v3523
      %v3653 = vunpack.c.h.bf16 %v3523
      %v3654 = vunpack.c.l.bf16 %v3524
      %v3655 = vunpack.c.h.bf16 %v3524
      %v3656 = vunpack.c.l.bf16 %v3525
      %v3657 = vunpack.c.h.bf16 %v3525
      %v3658 = vunpack.c.l.bf16 %v3526
      %v3659 = vunpack.c.h.bf16 %v3526
      %v3660 = vunpack.c.l.bf16 %v3527
      %v3661 = vunpack.c.h.bf16 %v3527
      %v3662 = vunpack.c.l.bf16 %v3528
      %v3663 = vunpack.c.h.bf16 %v3528
      %v3664 = vunpack.c.l.bf16 %v3529
      %v3665 = vunpack.c.h.bf16 %v3529
      %v3666 = vunpack.c.l.bf16 %v3530
      %v3667 = vunpack.c.h.bf16 %v3530
      %v3668 = vunpack.c.l.bf16 %v3531
      %v3669 = vunpack.c.h.bf16 %v3531
      %v3670 = vunpack.c.l.bf16 %v3532
      %v3671 = vunpack.c.h.bf16 %v3532
      %v3672 = vunpack.c.l.bf16 %v3533
      %v3673 = vunpack.c.h.bf16 %v3533
      %v3674 = vunpack.c.l.bf16 %v3534
      %v3675 = vunpack.c.h.bf16 %v3534
      %v3676 = vunpack.c.l.bf16 %v3535
      %v3677 = vunpack.c.h.bf16 %v3535
      %v3678 = vunpack.c.l.bf16 %v3536
      %v3679 = vunpack.c.h.bf16 %v3536
      %v3680 = vunpack.c.l.bf16 %v3537
      %v3681 = vunpack.c.h.bf16 %v3537
      %v3682 = vunpack.c.l.bf16 %v3538
      %v3683 = vunpack.c.h.bf16 %v3538
      %v3684 = vunpack.c.l.bf16 %v3539
      %v3685 = vunpack.c.h.bf16 %v3539
      %v3686 = vunpack.c.l.bf16 %v3540
      %v3687 = vunpack.c.h.bf16 %v3540
      %v3688 = vunpack.c.l.bf16 %v3541
      %v3689 = vunpack.c.h.bf16 %v3541
      %v3690 = vunpack.c.l.bf16 %v3542
      %v3691 = vunpack.c.h.bf16 %v3542
      %v3692 = vunpack.c.l.bf16 %v3543
      %v3693 = vunpack.c.h.bf16 %v3543
      %v3694 = vunpack.c.l.bf16 %v3544
      %v3695 = vunpack.c.h.bf16 %v3544
      %v3696 = vunpack.c.l.bf16 %v3545
      %v3697 = vunpack.c.h.bf16 %v3545
      %v3698 = vunpack.c.l.bf16 %v3546
      %v3699 = vunpack.c.h.bf16 %v3546
      %v3700 = vunpack.c.l.bf16 %v3547
      %v3701 = vunpack.c.h.bf16 %v3547
      %v3702 = vunpack.c.l.bf16 %v3548
      %v3703 = vunpack.c.h.bf16 %v3548
      %v3704 = vunpack.c.l.bf16 %v3549
      %v3705 = vunpack.c.h.bf16 %v3549
      %v3706 = vunpack.c.l.bf16 %v3550
      %v3707 = vunpack.c.h.bf16 %v3550
      %v3708 = vunpack.c.l.bf16 %v3551
      %v3709 = vunpack.c.h.bf16 %v3551
      %v3710 = vunpack.c.l.bf16 %v3552
      %v3711 = vunpack.c.h.bf16 %v3552
      %v3712 = vunpack.c.l.bf16 %v3553
      %v3713 = vunpack.c.h.bf16 %v3553
      %v3714 = vunpack.c.l.bf16 %v3554
      %v3715 = vunpack.c.h.bf16 %v3554
      %v3716 = vunpack.c.l.bf16 %v3555
      %v3717 = vunpack.c.h.bf16 %v3555
      %v3718 = vunpack.c.l.bf16 %v3556
      %v3719 = vunpack.c.h.bf16 %v3556
      %v3720 = vunpack.c.l.bf16 %v3557
      %v3721 = vunpack.c.h.bf16 %v3557
      %v3722 = vunpack.c.l.bf16 %v3558
      %v3723 = vunpack.c.h.bf16 %v3558
      %v3724 = vunpack.c.l.bf16 %v3559
      %v3725 = vunpack.c.h.bf16 %v3559
      %v3726 = vunpack.c.l.bf16 %v3560
      %v3727 = vunpack.c.h.bf16 %v3560
      %v3728 = vunpack.c.l.bf16 %v3561
      %v3729 = vunpack.c.h.bf16 %v3561
      %v3730 = vunpack.c.l.bf16 %v3562
      %v3731 = vunpack.c.h.bf16 %v3562
      %v3732 = vunpack.c.l.bf16 %v3563
      %v3733 = vunpack.c.h.bf16 %v3563
      %v3734 = vunpack.c.l.bf16 %v3564
      %v3735 = vunpack.c.h.bf16 %v3564
      %v3736 = vunpack.c.l.bf16 %v3565
      %v3737 = vunpack.c.h.bf16 %v3565
      %v3738 = vunpack.c.l.bf16 %v3566
      %v3739 = vunpack.c.h.bf16 %v3566
      %v3740 = vunpack.c.l.bf16 %v3567
      %v3741 = vunpack.c.h.bf16 %v3567
      %v3742 = vunpack.c.l.bf16 %v3568
      %v3743 = vunpack.c.h.bf16 %v3568
      %v3744 = vunpack.c.l.bf16 %v3569
      %v3745 = vunpack.c.h.bf16 %v3569
      %v3746 = vunpack.c.l.bf16 %v3570
      %v3747 = vunpack.c.h.bf16 %v3570
      %v3748 = vunpack.c.l.bf16 %v3571
      %v3749 = vunpack.c.h.bf16 %v3571
      %v3750 = vunpack.c.l.bf16 %v3572
      %v3751 = vunpack.c.h.bf16 %v3572
      %v3752 = vunpack.c.l.bf16 %v3573
      %v3753 = vunpack.c.h.bf16 %v3573
      %v3754 = vunpack.c.l.bf16 %v3574
      %v3755 = vunpack.c.h.bf16 %v3574
      %v3756 = vunpack.c.l.bf16 %v3575
      %v3757 = vunpack.c.h.bf16 %v3575
      %v3758 = vunpack.c.l.bf16 %v3576
      %v3759 = vunpack.c.h.bf16 %v3576
      %v3760 = vunpack.c.l.bf16 %v3577
      %v3761 = vunpack.c.h.bf16 %v3577
      %v3762 = vunpack.c.l.bf16 %v3578
      %v3763 = vunpack.c.h.bf16 %v3578
      %v3764 = vunpack.c.l.bf16 %v3579
      %v3765 = vunpack.c.h.bf16 %v3579
      %v3766 = vunpack.c.l.bf16 %v3580
      %v3767 = vunpack.c.h.bf16 %v3580
      %v3768 = vunpack.c.l.bf16 %v3581
      %v3769 = vunpack.c.h.bf16 %v3581
      %v3770 = vunpack.c.l.bf16 %v3582
      %v3771 = vunpack.c.h.bf16 %v3582
      %v3772 = vunpack.c.l.bf16 %v3583
      %v3773 = vunpack.c.h.bf16 %v3583
      %v3774 = vunpack.c.l.bf16 %v3584
      %v3775 = vunpack.c.h.bf16 %v3584
      %v3776 = vunpack.c.l.bf16 %v3585
      %v3777 = vunpack.c.h.bf16 %v3585
      %v3778 = vunpack.c.l.bf16 %v3586
      %v3779 = vunpack.c.h.bf16 %v3586
      %v3780 = vunpack.c.l.bf16 %v3587
      %v3781 = vunpack.c.h.bf16 %v3587
      %v3782 = vunpack.c.l.bf16 %v3588
      %v3783 = vunpack.c.h.bf16 %v3588
      %v3784 = vunpack.c.l.bf16 %v3589
      %v3785 = vunpack.c.h.bf16 %v3589
      %v3786 = vunpack.c.l.bf16 %v3590
      %v3787 = vunpack.c.h.bf16 %v3590
      %v3788 = vunpack.c.l.bf16 %v3591
      %v3789 = vunpack.c.h.bf16 %v3591
      %v3790 = vunpack.c.l.bf16 %v3592
      %v3791 = vunpack.c.h.bf16 %v3592
      %v3792 = vunpack.c.l.bf16 %v3593
      %v3793 = vunpack.c.h.bf16 %v3593
      %v3794 = vunpack.c.l.bf16 %v3594
      %v3795 = vunpack.c.h.bf16 %v3594
      %v3796 = vunpack.c.l.bf16 %v3595
      %v3797 = vunpack.c.h.bf16 %v3595
      %v3798 = vunpack.c.l.bf16 %v3596
      %v3799 = vunpack.c.h.bf16 %v3596
      %v3800 = vunpack.c.l.bf16 %v3597
      %v3801 = vunpack.c.h.bf16 %v3597
      %v3802 = vunpack.c.l.bf16 %v3598
      %v3803 = vunpack.c.h.bf16 %v3598
      %v3804 = vunpack.c.l.bf16 %v3599
      %v3805 = vunpack.c.h.bf16 %v3599
      %v3806 = vunpack.c.l.bf16 %v3600
      %v3807 = vunpack.c.h.bf16 %v3600
      %v3808 = vunpack.c.l.bf16 %v3601
      %v3809 = vunpack.c.h.bf16 %v3601
      %v3810 = vunpack.c.l.bf16 %v3602
      %v3811 = vunpack.c.h.bf16 %v3602
      %v3812 = vunpack.c.l.bf16 %v3603
      %v3813 = vunpack.c.h.bf16 %v3603
      %v3814 = vunpack.c.l.bf16 %v3604
      %v3815 = vunpack.c.h.bf16 %v3604
      %v3816 = vunpack.c.l.bf16 %v3605
      %v3817 = vunpack.c.h.bf16 %v3605
      %v3818 = vunpack.c.l.bf16 %v3606
      %v3819 = vunpack.c.h.bf16 %v3606
      %v3820 = vunpack.c.l.bf16 %v3607
      %v3821 = vunpack.c.h.bf16 %v3607
      %v3822 = vunpack.c.l.bf16 %v3608
      %v3823 = vunpack.c.h.bf16 %v3608
      %v3824 = vunpack.c.l.bf16 %v3609
      %v3825 = vunpack.c.h.bf16 %v3609
      %v3826 = vunpack.c.l.bf16 %v3610
      %v3827 = vunpack.c.h.bf16 %v3610
      %v3828 = vunpack.c.l.bf16 %v3611
      %v3829 = vunpack.c.h.bf16 %v3611
      %v3830 = vunpack.c.l.bf16 %v3612
      %v3831 = vunpack.c.h.bf16 %v3612
      %v3832 = vunpack.c.l.bf16 %v3613
      %v3833 = vunpack.c.h.bf16 %v3613
      %v3834 = vunpack.c.l.bf16 %v3614
      %v3835 = vunpack.c.h.bf16 %v3614
      %v3836 = vunpack.c.l.bf16 %v3615
      %v3837 = vunpack.c.h.bf16 %v3615
      %v3838 = vunpack.c.l.bf16 %v3616
      %v3839 = vunpack.c.h.bf16 %v3616
      %v3840 = vunpack.c.l.bf16 %v3617
      %v3841 = vunpack.c.h.bf16 %v3617
      %v3842 = vunpack.c.l.bf16 %v3618
      %v3843 = vunpack.c.h.bf16 %v3618
      %v3844 = vunpack.c.l.bf16 %v3619
      %v3845 = vunpack.c.h.bf16 %v3619
      %v3846 = vunpack.c.l.bf16 %v3620
      %v3847 = vunpack.c.h.bf16 %v3620
      %v3848 = vunpack.c.l.bf16 %v3621
      %v3849 = vunpack.c.h.bf16 %v3621
      %v3850 = vunpack.c.l.bf16 %v3622
      %v3851 = vunpack.c.h.bf16 %v3622
      %v3852 = vunpack.c.l.bf16 %v3623
      %v3853 = vunpack.c.h.bf16 %v3623
      %v3854 = vunpack.c.l.bf16 %v3624
      %v3855 = vunpack.c.h.bf16 %v3624
      %v3856 = vunpack.c.l.bf16 %v3625
      %v3857 = vunpack.c.h.bf16 %v3625
      %v3858 = vunpack.c.l.bf16 %v3626
      %v3859 = vunpack.c.h.bf16 %v3626
      %v3860 = vunpack.c.l.bf16 %v3627
      %v3861 = vunpack.c.h.bf16 %v3627
      %v3862 = vunpack.c.l.bf16 %v3628
      %v3863 = vunpack.c.h.bf16 %v3628
      %v3864 = vunpack.c.l.bf16 %v3629
      %v3865 = vunpack.c.h.bf16 %v3629
      %v3866 = vunpack.c.l.bf16 %v3630
      %v3867 = vunpack.c.h.bf16 %v3630
      %v3868 = vunpack.c.l.bf16 %v3631
      %v3869 = vunpack.c.h.bf16 %v3631
      %v3870 = vunpack.c.l.bf16 %v3632
      %v3871 = vunpack.c.h.bf16 %v3632
      %v3872 = vunpack.c.l.bf16 %v3633
      %v3873 = vunpack.c.h.bf16 %v3633
      %v3874 = vunpack.c.l.bf16 %v3634
      %v3875 = vunpack.c.h.bf16 %v3634
      %v3876 = vunpack.c.l.bf16 %v3635
      %v3877 = vunpack.c.h.bf16 %v3635
      %v3878 = vunpack.c.l.bf16 %v3636
      %v3879 = vunpack.c.h.bf16 %v3636
      %v3880 = vunpack.c.l.bf16 %v3637
      %v3881 = vunpack.c.h.bf16 %v3637
      %v3882 = vunpack.c.l.bf16 %v3638
      %v3883 = vunpack.c.h.bf16 %v3638
      %v3884 = vunpack.c.l.bf16 %v3639
      %v3885 = vunpack.c.h.bf16 %v3639
      %v3886 = vunpack.c.l.bf16 %v3640
      %v3887 = vunpack.c.h.bf16 %v3640
      %v3888 = vunpack.c.l.bf16 %v3641
      %v3889 = vunpack.c.h.bf16 %v3641
      %v3890 = vunpack.c.l.bf16 %v3642
      %v3891 = vunpack.c.h.bf16 %v3642
      %v3892 = vunpack.c.l.bf16 %v3643
      %v3893 = vunpack.c.h.bf16 %v3643
      %v3894 = vunpack.c.l.bf16 %v3644
      %v3895 = vunpack.c.h.bf16 %v3644
      %v3896 = vunpack.c.l.bf16 %v3645
      %v3897 = vunpack.c.h.bf16 %v3645
      %v3898 = vunpack.c.l.bf16 %v3646
      %v3899 = vunpack.c.h.bf16 %v3646
      %v3900 = vunpack.c.l.bf16 %v3647
      %v3901 = vunpack.c.h.bf16 %v3647
      %v3902 = vunpack.c.l.bf16 %v3648
      %v3903 = vunpack.c.h.bf16 %v3648
      %v3904 = vunpack.c.l.bf16 %v3649
      %v3905 = vunpack.c.h.bf16 %v3649
      %v3906 = vlaneseq
      %v3907 = vshrl.u32 %v3906, 7
      %v3908 = vsub.s32 2, %v3907
      %v3909 = vrot.slane %v2468, %v3908
      %v3910 = vlaneseq
      %v3911 = vshrl.u32 %v3910, 7
      %v3912 = vsub.s32 6, %v3911
      %v3913 = vrot.slane %v2468, %v3912
      %v3914 = vlaneseq
      %v3915 = vshrl.u32 %v3914, 7
      %v3916 = vsub.s32 2, %v3915
      %v3917 = vrot.slane %v2469, %v3916
      %v3918 = vlaneseq
      %v3919 = vshrl.u32 %v3918, 7
      %v3920 = vsub.s32 6, %v3919
      %v3921 = vrot.slane %v2469, %v3920
      %v3926 = vlaneseq
      %v3927 = vshrl.u32 %v3926, 7
      %v3928 = vsub.s32 2, %v3927
      %v3929 = vrot.slane %v3909, %v3928
      %v3930 = vlaneseq
      %v3931 = vshrl.u32 %v3930, 7
      %v3932 = vsub.s32 2, %v3931
      %v3933 = vrot.slane %v3913, %v3932
      %v3934 = vlaneseq
      %v3935 = vshrl.u32 %v3934, 7
      %v3936 = vsub.s32 2, %v3935
      %v3937 = vrot.slane %v3917, %v3936
      %v3938 = vlaneseq
      %v3939 = vshrl.u32 %v3938, 7
      %v3940 = vsub.s32 2, %v3939
      %v3941 = vrot.slane %v3921, %v3940
      %3942 = vmatprep.subr.mxu0 %v3651
      %3943 = vmatpush1.msra.mxu0 %v3650
      %3944 = vmatprep.subr.mxu0 %v3655
      %3945 = vmatpush1.msra.mxu0 %v3654
      %3946 = vmatprep.subr.mxu0 %v3659
      %3947 = vmatpush1.msra.mxu0 %v3658
      %3948 = vmatprep.subr.mxu0 %v3663
      %3949 = vmatpush1.msra.mxu0 %v3662
      %3950 = vmatprep.subr.mxu0 %v3667
      %3951 = vmatpush1.msra.mxu0 %v3666
      %3952 = vmatprep.subr.mxu0 %v3671
      %3953 = vmatpush1.msra.mxu0 %v3670
      %3954 = vmatprep.subr.mxu0 %v3675
      %3955 = vmatpush1.msra.mxu0 %v3674
      %3956 = vmatprep.subr.mxu0 %v3679
      %3957 = vmatpush1.msra.mxu0 %v3678
      %3958 = vmatprep.subr.mxu0 %v3683
      %3959 = vmatpush1.msra.mxu0 %v3682
      %3960 = vmatprep.subr.mxu0 %v3687
      %3961 = vmatpush1.msra.mxu0 %v3686
      %3962 = vmatprep.subr.mxu0 %v3691
      %3963 = vmatpush1.msra.mxu0 %v3690
      %3964 = vmatprep.subr.mxu0 %v3695
      %3965 = vmatpush1.msra.mxu0 %v3694
      %3966 = vmatprep.subr.mxu0 %v3699
      %3967 = vmatpush1.msra.mxu0 %v3698
      %3968 = vmatprep.subr.mxu0 %v3703
      %3969 = vmatpush1.msra.mxu0 %v3702
      %3970 = vmatprep.subr.mxu0 %v3707
      %3971 = vmatpush1.msra.mxu0 %v3706
      %3972 = vmatprep.subr.mxu0 %v3711
      %3973 = vmatpush1.msra.mxu0 %v3710
      %3974 = vmatprep.subr.mxu0 %v3715
      %3975 = vmatpush1.msra.mxu0 %v3714
      %3976 = vmatprep.subr.mxu0 %v3719
      %3977 = vmatpush1.msra.mxu0 %v3718
      %3978 = vmatprep.subr.mxu0 %v3723
      %3979 = vmatpush1.msra.mxu0 %v3722
      %3980 = vmatprep.subr.mxu0 %v3727
      %3981 = vmatpush1.msra.mxu0 %v3726
      %3982 = vmatprep.subr.mxu0 %v3731
      %3983 = vmatpush1.msra.mxu0 %v3730
      %3984 = vmatprep.subr.mxu0 %v3735
      %3985 = vmatpush1.msra.mxu0 %v3734
      %3986 = vmatprep.subr.mxu0 %v3739
      %3987 = vmatpush1.msra.mxu0 %v3738
      %3988 = vmatprep.subr.mxu0 %v3743
      %3989 = vmatpush1.msra.mxu0 %v3742
      %3990 = vmatprep.subr.mxu0 %v3747
      %3991 = vmatpush1.msra.mxu0 %v3746
      %3992 = vmatprep.subr.mxu0 %v3751
      %3993 = vmatpush1.msra.mxu0 %v3750
      %3994 = vmatprep.subr.mxu0 %v3755
      %3995 = vmatpush1.msra.mxu0 %v3754
      %3996 = vmatprep.subr.mxu0 %v3759
      %3997 = vmatpush1.msra.mxu0 %v3758
      %3998 = vmatprep.subr.mxu0 %v3763
      %3999 = vmatpush1.msra.mxu0 %v3762
      %4000 = vmatprep.subr.mxu0 %v3767
      %4001 = vmatpush1.msra.mxu0 %v3766
      %4002 = vmatprep.subr.mxu0 %v3771
      %4003 = vmatpush1.msra.mxu0 %v3770
      %4004 = vmatprep.subr.mxu0 %v3775
      %4005 = vmatpush1.msra.mxu0 %v3774
      %4006 = vmatprep.mubr.f32.mxu0 %v3518
      %4007 = vmatmul.mubr.f32.gmra.mrb[0].mxu0 %v3517
      %v4008 = vpop.f32.mrb[0].mxu0
      %v4009 = vadd.f32 %v3929, %v4008
      %v4010 = vpop.f32.mrb[0].mxu0
      %v4011 = vadd.f32 %v3933, %v4010
      %4012 = vdwg.mxu0
      %4013 = vmatprep.subr.mxu0 %v3779
      %4014 = vmatpush1.msra.mxu0 %v3778
      %4015 = vmatprep.subr.mxu0 %v3783
      %4016 = vmatpush1.msra.mxu0 %v3782
      %4017 = vmatprep.subr.mxu0 %v3787
      %4018 = vmatpush1.msra.mxu0 %v3786
      %4019 = vmatprep.subr.mxu0 %v3791
      %4020 = vmatpush1.msra.mxu0 %v3790
      %4021 = vmatprep.subr.mxu0 %v3795
      %4022 = vmatpush1.msra.mxu0 %v3794
      %4023 = vmatprep.subr.mxu0 %v3799
      %4024 = vmatpush1.msra.mxu0 %v3798
      %4025 = vmatprep.subr.mxu0 %v3803
      %4026 = vmatpush1.msra.mxu0 %v3802
      %4027 = vmatprep.subr.mxu0 %v3807
      %4028 = vmatpush1.msra.mxu0 %v3806
      %4029 = vmatprep.subr.mxu0 %v3811
      %4030 = vmatpush1.msra.mxu0 %v3810
      %4031 = vmatprep.subr.mxu0 %v3815
      %4032 = vmatpush1.msra.mxu0 %v3814
      %4033 = vmatprep.subr.mxu0 %v3819
      %4034 = vmatpush1.msra.mxu0 %v3818
      %4035 = vmatprep.subr.mxu0 %v3823
      %4036 = vmatpush1.msra.mxu0 %v3822
      %4037 = vmatprep.subr.mxu0 %v3827
      %4038 = vmatpush1.msra.mxu0 %v3826
      %4039 = vmatprep.subr.mxu0 %v3831
      %4040 = vmatpush1.msra.mxu0 %v3830
      %4041 = vmatprep.subr.mxu0 %v3835
      %4042 = vmatpush1.msra.mxu0 %v3834
      %4043 = vmatprep.subr.mxu0 %v3839
      %4044 = vmatpush1.msra.mxu0 %v3838
      %4045 = vmatprep.subr.mxu0 %v3843
      %4046 = vmatpush1.msra.mxu0 %v3842
      %4047 = vmatprep.subr.mxu0 %v3847
      %4048 = vmatpush1.msra.mxu0 %v3846
      %4049 = vmatprep.subr.mxu0 %v3851
      %4050 = vmatpush1.msra.mxu0 %v3850
      %4051 = vmatprep.subr.mxu0 %v3855
      %4052 = vmatpush1.msra.mxu0 %v3854
      %4053 = vmatprep.subr.mxu0 %v3859
      %4054 = vmatpush1.msra.mxu0 %v3858
      %4055 = vmatprep.subr.mxu0 %v3863
      %4056 = vmatpush1.msra.mxu0 %v3862
      %4057 = vmatprep.subr.mxu0 %v3867
      %4058 = vmatpush1.msra.mxu0 %v3866
      %4059 = vmatprep.subr.mxu0 %v3871
      %4060 = vmatpush1.msra.mxu0 %v3870
      %4061 = vmatprep.subr.mxu0 %v3875
      %4062 = vmatpush1.msra.mxu0 %v3874
      %4063 = vmatprep.subr.mxu0 %v3879
      %4064 = vmatpush1.msra.mxu0 %v3878
      %4065 = vmatprep.subr.mxu0 %v3883
      %4066 = vmatpush1.msra.mxu0 %v3882
      %4067 = vmatprep.subr.mxu0 %v3887
      %4068 = vmatpush1.msra.mxu0 %v3886
      %4069 = vmatprep.subr.mxu0 %v3891
      %4070 = vmatpush1.msra.mxu0 %v3890
      %4071 = vmatprep.subr.mxu0 %v3895
      %4072 = vmatpush1.msra.mxu0 %v3894
      %4073 = vmatprep.subr.mxu0 %v3899
      %4074 = vmatpush1.msra.mxu0 %v3898
      %4075 = vmatprep.subr.mxu0 %v3903
      %4076 = vmatpush1.msra.mxu0 %v3902
      %4077 = vmatprep.mubr.f32.mxu0 %v3520
      %4078 = vmatmul.mubr.f32.gmra.mrb[0].mxu0 %v3519
      %v4079 = vpop.f32.mrb[0].mxu0
      %v4080 = vadd.f32 %v4009, %v4079
      %v4081 = vpop.f32.mrb[0].mxu0
      %v4082 = vadd.f32 %v4011, %v4081
      %4083 = vdwg.mxu0
      %4084 = vmatprep.subr.mxu0 %v3653
      %4085 = vmatpush1.msra.mxu0 %v3652
      %4086 = vmatprep.subr.mxu0 %v3657
      %4087 = vmatpush1.msra.mxu0 %v3656
      %4088 = vmatprep.subr.mxu0 %v3661
      %4089 = vmatpush1.msra.mxu0 %v3660
      %4090 = vmatprep.subr.mxu0 %v3665
      %4091 = vmatpush1.msra.mxu0 %v3664
      %4092 = vmatprep.subr.mxu0 %v3669
      %4093 = vmatpush1.msra.mxu0 %v3668
      %4094 = vmatprep.subr.mxu0 %v3673
      %4095 = vmatpush1.msra.mxu0 %v3672
      %4096 = vmatprep.subr.mxu0 %v3677
      %4097 = vmatpush1.msra.mxu0 %v3676
      %4098 = vmatprep.subr.mxu0 %v3681
      %4099 = vmatpush1.msra.mxu0 %v3680
      %4100 = vmatprep.subr.mxu0 %v3685
      %4101 = vmatpush1.msra.mxu0 %v3684
      %4102 = vmatprep.subr.mxu0 %v3689
      %4103 = vmatpush1.msra.mxu0 %v3688
      %4104 = vmatprep.subr.mxu0 %v3693
      %4105 = vmatpush1.msra.mxu0 %v3692
      %4106 = vmatprep.subr.mxu0 %v3697
      %4107 = vmatpush1.msra.mxu0 %v3696
      %4108 = vmatprep.subr.mxu0 %v3701
      %4109 = vmatpush1.msra.mxu0 %v3700
      %4110 = vmatprep.subr.mxu0 %v3705
      %4111 = vmatpush1.msra.mxu0 %v3704
      %4112 = vmatprep.subr.mxu0 %v3709
      %4113 = vmatpush1.msra.mxu0 %v3708
      %4114 = vmatprep.subr.mxu0 %v3713
      %4115 = vmatpush1.msra.mxu0 %v3712
      %4116 = vmatprep.subr.mxu0 %v3717
      %4117 = vmatpush1.msra.mxu0 %v3716
      %4118 = vmatprep.subr.mxu0 %v3721
      %4119 = vmatpush1.msra.mxu0 %v3720
      %4120 = vmatprep.subr.mxu0 %v3725
      %4121 = vmatpush1.msra.mxu0 %v3724
      %4122 = vmatprep.subr.mxu0 %v3729
      %4123 = vmatpush1.msra.mxu0 %v3728
      %4124 = vmatprep.subr.mxu0 %v3733
      %4125 = vmatpush1.msra.mxu0 %v3732
      %4126 = vmatprep.subr.mxu0 %v3737
      %4127 = vmatpush1.msra.mxu0 %v3736
      %4128 = vmatprep.subr.mxu0 %v3741
      %4129 = vmatpush1.msra.mxu0 %v3740
      %4130 = vmatprep.subr.mxu0 %v3745
      %4131 = vmatpush1.msra.mxu0 %v3744
      %4132 = vmatprep.subr.mxu0 %v3749
      %4133 = vmatpush1.msra.mxu0 %v3748
      %4134 = vmatprep.subr.mxu0 %v3753
      %4135 = vmatpush1.msra.mxu0 %v3752
      %4136 = vmatprep.subr.mxu0 %v3757
      %4137 = vmatpush1.msra.mxu0 %v3756
      %4138 = vmatprep.subr.mxu0 %v3761
      %4139 = vmatpush1.msra.mxu0 %v3760
      %4140 = vmatprep.subr.mxu0 %v3765
      %4141 = vmatpush1.msra.mxu0 %v3764
      %4142 = vmatprep.subr.mxu0 %v3769
      %4143 = vmatpush1.msra.mxu0 %v3768
      %4144 = vmatprep.subr.mxu0 %v3773
      %4145 = vmatpush1.msra.mxu0 %v3772
      %4146 = vmatprep.subr.mxu0 %v3777
      %4147 = vmatpush1.msra.mxu0 %v3776
      %4148 = vmatprep.mubr.f32.mxu0 %v3518
      %4149 = vmatmul.mubr.f32.gmra.mrb[0].mxu0 %v3517
      %v4150 = vpop.f32.mrb[0].mxu0
      %v4151 = vadd.f32 %v3937, %v4150
      %v4152 = vpop.f32.mrb[0].mxu0
      %v4153 = vadd.f32 %v3941, %v4152
      %4154 = vdwg.mxu0
      %4155 = vmatprep.subr.mxu0 %v3781
      %4156 = vmatpush1.msra.mxu0 %v3780
      %4157 = vmatprep.subr.mxu0 %v3785
      %4158 = vmatpush1.msra.mxu0 %v3784
      %4159 = vmatprep.subr.mxu0 %v3789
      %4160 = vmatpush1.msra.mxu0 %v3788
      %4161 = vmatprep.subr.mxu0 %v3793
      %4162 = vmatpush1.msra.mxu0 %v3792
      %4163 = vmatprep.subr.mxu0 %v3797
      %4164 = vmatpush1.msra.mxu0 %v3796
      %4165 = vmatprep.subr.mxu0 %v3801
      %4166 = vmatpush1.msra.mxu0 %v3800
      %4167 = vmatprep.subr.mxu0 %v3805
      %4168 = vmatpush1.msra.mxu0 %v3804
      %4169 = vmatprep.subr.mxu0 %v3809
      %4170 = vmatpush1.msra.mxu0 %v3808
      %4171 = vmatprep.subr.mxu0 %v3813
      %4172 = vmatpush1.msra.mxu0 %v3812
      %4173 = vmatprep.subr.mxu0 %v3817
      %4174 = vmatpush1.msra.mxu0 %v3816
      %4175 = vmatprep.subr.mxu0 %v3821
      %4176 = vmatpush1.msra.mxu0 %v3820
      %4177 = vmatprep.subr.mxu0 %v3825
      %4178 = vmatpush1.msra.mxu0 %v3824
      %4179 = vmatprep.subr.mxu0 %v3829
      %4180 = vmatpush1.msra.mxu0 %v3828
      %4181 = vmatprep.subr.mxu0 %v3833
      %4182 = vmatpush1.msra.mxu0 %v3832
      %4183 = vmatprep.subr.mxu0 %v3837
      %4184 = vmatpush1.msra.mxu0 %v3836
      %4185 = vmatprep.subr.mxu0 %v3841
      %4186 = vmatpush1.msra.mxu0 %v3840
      %4187 = vmatprep.subr.mxu0 %v3845
      %4188 = vmatpush1.msra.mxu0 %v3844
      %4189 = vmatprep.subr.mxu0 %v3849
      %4190 = vmatpush1.msra.mxu0 %v3848
      %4191 = vmatprep.subr.mxu0 %v3853
      %4192 = vmatpush1.msra.mxu0 %v3852
      %4193 = vmatprep.subr.mxu0 %v3857
      %4194 = vmatpush1.msra.mxu0 %v3856
      %4195 = vmatprep.subr.mxu0 %v3861
      %4196 = vmatpush1.msra.mxu0 %v3860
      %4197 = vmatprep.subr.mxu0 %v3865
      %4198 = vmatpush1.msra.mxu0 %v3864
      %4199 = vmatprep.subr.mxu0 %v3869
      %4200 = vmatpush1.msra.mxu0 %v3868
      %4201 = vmatprep.subr.mxu0 %v3873
      %4202 = vmatpush1.msra.mxu0 %v3872
      %4203 = vmatprep.subr.mxu0 %v3877
      %4204 = vmatpush1.msra.mxu0 %v3876
      %4205 = vmatprep.subr.mxu0 %v3881
      %4206 = vmatpush1.msra.mxu0 %v3880
      %4207 = vmatprep.subr.mxu0 %v3885
      %4208 = vmatpush1.msra.mxu0 %v3884
      %4209 = vmatprep.subr.mxu0 %v3889
      %4210 = vmatpush1.msra.mxu0 %v3888
      %4211 = vmatprep.subr.mxu0 %v3893
      %4212 = vmatpush1.msra.mxu0 %v3892
      %4213 = vmatprep.subr.mxu0 %v3897
      %4214 = vmatpush1.msra.mxu0 %v3896
      %4215 = vmatprep.subr.mxu0 %v3901
      %4216 = vmatpush1.msra.mxu0 %v3900
      %4217 = vmatprep.subr.mxu0 %v3905
      %4218 = vmatpush1.msra.mxu0 %v3904
      %4219 = vmatprep.mubr.f32.mxu0 %v3520
      %4220 = vmatmul.mubr.f32.gmra.mrb[0].mxu0 %v3519
      %v4221 = vpop.f32.mrb[0].mxu0
      %v4222 = vadd.f32 %v4151, %v4221
      %v4223 = vpop.f32.mrb[0].mxu0
      %v4224 = vadd.f32 %v4153, %v4223
      %4225 = vdwg.mxu0
      %v4226 = vmax.f32 %v4080, 0.0
      %v4227 = vmax.f32 %v4082, 0.0
      %v4228 = vmax.f32 %v4222, 0.0
      %v4229 = vmax.f32 %v4224, 0.0
      %s4230 = scalar_lea.vmem %s370, 256
      %v4231 = vld [vmem:[%s4230] sm:$0xf]
      %v4232 = vld [vmem:[%s4230 + $0x4] sm:$0xf]
      %v4233 = vld [vmem:[%s4230 + $0x8] sm:$0xf]
      %v4234 = vld [vmem:[%s4230 + $0xc] sm:$0xf]
      %v4235 = vld [vmem:[%s4230 + $0x10] sm:$0xf]
      %v4236 = vld [vmem:[%s4230 + $0x14] sm:$0xf]
      %v4237 = vld [vmem:[%s4230 + $0x18] sm:$0xf]
      %v4238 = vld [vmem:[%s4230 + $0x1c] sm:$0xf]
      %v4239 = vld [vmem:[%s4230 + $0x20] sm:$0xf]
      %v4240 = vld [vmem:[%s4230 + $0x24] sm:$0xf]
      %v4241 = vld [vmem:[%s4230 + $0x28] sm:$0xf]
      %v4242 = vld [vmem:[%s4230 + $0x2c] sm:$0xf]
      %v4243 = vld [vmem:[%s4230 + $0x30] sm:$0xf]
      %v4244 = vld [vmem:[%s4230 + $0x34] sm:$0xf]
      %v4245 = vld [vmem:[%s4230 + $0x38] sm:$0xf]
      %v4246 = vld [vmem:[%s4230 + $0x3c] sm:$0xf]
      %v4247 = vld [vmem:[%s4230 + $0x40] sm:$0xf]
      %v4248 = vld [vmem:[%s4230 + $0x44] sm:$0xf]
      %v4249 = vld [vmem:[%s4230 + $0x48] sm:$0xf]
      %v4250 = vld [vmem:[%s4230 + $0x4c] sm:$0xf]
      %v4251 = vld [vmem:[%s4230 + $0x50] sm:$0xf]
      %v4252 = vld [vmem:[%s4230 + $0x54] sm:$0xf]
      %v4253 = vld [vmem:[%s4230 + $0x58] sm:$0xf]
      %v4254 = vld [vmem:[%s4230 + $0x5c] sm:$0xf]
      %v4255 = vld [vmem:[%s4230 + $0x60] sm:$0xf]
      %v4256 = vld [vmem:[%s4230 + $0x64] sm:$0xf]
      %v4257 = vld [vmem:[%s4230 + $0x68] sm:$0xf]
      %v4258 = vld [vmem:[%s4230 + $0x6c] sm:$0xf]
      %v4259 = vld [vmem:[%s4230 + $0x70] sm:$0xf]
      %v4260 = vld [vmem:[%s4230 + $0x74] sm:$0xf]
      %v4261 = vld [vmem:[%s4230 + $0x78] sm:$0xf]
      %v4262 = vld [vmem:[%s4230 + $0x7c] sm:$0xf]
      %v4263 = vld [vmem:[%s4230 + $0x80] sm:$0xf]
      %v4264 = vld [vmem:[%s4230 + $0x84] sm:$0xf]
      %v4265 = vld [vmem:[%s4230 + $0x88] sm:$0xf]
      %v4266 = vld [vmem:[%s4230 + $0x8c] sm:$0xf]
      %v4267 = vld [vmem:[%s4230 + $0x90] sm:$0xf]
      %v4268 = vld [vmem:[%s4230 + $0x94] sm:$0xf]
      %v4269 = vld [vmem:[%s4230 + $0x98] sm:$0xf]
      %v4270 = vld [vmem:[%s4230 + $0x9c] sm:$0xf]
      %v4271 = vld [vmem:[%s4230 + $0xa0] sm:$0xf]
      %v4272 = vld [vmem:[%s4230 + $0xa4] sm:$0xf]
      %v4273 = vld [vmem:[%s4230 + $0xa8] sm:$0xf]
      %v4274 = vld [vmem:[%s4230 + $0xac] sm:$0xf]
      %v4275 = vld [vmem:[%s4230 + $0xb0] sm:$0xf]
      %v4276 = vld [vmem:[%s4230 + $0xb4] sm:$0xf]
      %v4277 = vld [vmem:[%s4230 + $0xb8] sm:$0xf]
      %v4278 = vld [vmem:[%s4230 + $0xbc] sm:$0xf]
      %v4279 = vld [vmem:[%s4230 + $0xc0] sm:$0xf]
      %v4280 = vld [vmem:[%s4230 + $0xc4] sm:$0xf]
      %v4281 = vld [vmem:[%s4230 + $0xc8] sm:$0xf]
      %v4282 = vld [vmem:[%s4230 + $0xcc] sm:$0xf]
      %v4283 = vld [vmem:[%s4230 + $0xd0] sm:$0xf]
      %v4284 = vld [vmem:[%s4230 + $0xd4] sm:$0xf]
      %v4285 = vld [vmem:[%s4230 + $0xd8] sm:$0xf]
      %v4286 = vld [vmem:[%s4230 + $0xdc] sm:$0xf]
      %v4287 = vld [vmem:[%s4230 + $0xe0] sm:$0xf]
      %v4288 = vld [vmem:[%s4230 + $0xe4] sm:$0xf]
      %v4289 = vld [vmem:[%s4230 + $0xe8] sm:$0xf]
      %v4290 = vld [vmem:[%s4230 + $0xec] sm:$0xf]
      %v4291 = vld [vmem:[%s4230 + $0xf0] sm:$0xf]
      %v4292 = vld [vmem:[%s4230 + $0xf4] sm:$0xf]
      %v4293 = vld [vmem:[%s4230 + $0xf8] sm:$0xf]
      %v4294 = vld [vmem:[%s4230 + $0xfc] sm:$0xf]
      %v4295 = vunpack.c.l.bf16 %v4231
      %v4296 = vunpack.c.l.bf16 %v4232
      %v4297 = vunpack.c.l.bf16 %v4233
      %v4298 = vunpack.c.l.bf16 %v4234
      %v4299 = vunpack.c.l.bf16 %v4235
      %v4300 = vunpack.c.l.bf16 %v4236
      %v4301 = vunpack.c.l.bf16 %v4237
      %v4302 = vunpack.c.l.bf16 %v4238
      %v4303 = vunpack.c.l.bf16 %v4239
      %v4304 = vunpack.c.l.bf16 %v4240
      %v4305 = vunpack.c.l.bf16 %v4241
      %v4306 = vunpack.c.l.bf16 %v4242
      %v4307 = vunpack.c.l.bf16 %v4243
      %v4308 = vunpack.c.l.bf16 %v4244
      %v4309 = vunpack.c.l.bf16 %v4245
      %v4310 = vunpack.c.l.bf16 %v4246
      %v4311 = vunpack.c.l.bf16 %v4247
      %v4312 = vunpack.c.l.bf16 %v4248
      %v4313 = vunpack.c.l.bf16 %v4249
      %v4314 = vunpack.c.l.bf16 %v4250
      %v4315 = vunpack.c.l.bf16 %v4251
      %v4316 = vunpack.c.l.bf16 %v4252
      %v4317 = vunpack.c.l.bf16 %v4253
      %v4318 = vunpack.c.l.bf16 %v4254
      %v4319 = vunpack.c.l.bf16 %v4255
      %v4320 = vunpack.c.l.bf16 %v4256
      %v4321 = vunpack.c.l.bf16 %v4257
      %v4322 = vunpack.c.l.bf16 %v4258
      %v4323 = vunpack.c.l.bf16 %v4259
      %v4324 = vunpack.c.l.bf16 %v4260
      %v4325 = vunpack.c.l.bf16 %v4261
      %v4326 = vunpack.c.l.bf16 %v4262
      %v4327 = vunpack.c.l.bf16 %v4263
      %v4328 = vunpack.c.l.bf16 %v4264
      %v4329 = vunpack.c.l.bf16 %v4265
      %v4330 = vunpack.c.l.bf16 %v4266
      %v4331 = vunpack.c.l.bf16 %v4267
      %v4332 = vunpack.c.l.bf16 %v4268
      %v4333 = vunpack.c.l.bf16 %v4269
      %v4334 = vunpack.c.l.bf16 %v4270
      %v4335 = vunpack.c.l.bf16 %v4271
      %v4336 = vunpack.c.l.bf16 %v4272
      %v4337 = vunpack.c.l.bf16 %v4273
      %v4338 = vunpack.c.l.bf16 %v4274
      %v4339 = vunpack.c.l.bf16 %v4275
      %v4340 = vunpack.c.l.bf16 %v4276
      %v4341 = vunpack.c.l.bf16 %v4277
      %v4342 = vunpack.c.l.bf16 %v4278
      %v4343 = vunpack.c.l.bf16 %v4279
      %v4344 = vunpack.c.l.bf16 %v4280
      %v4345 = vunpack.c.l.bf16 %v4281
      %v4346 = vunpack.c.l.bf16 %v4282
      %v4347 = vunpack.c.l.bf16 %v4283
      %v4348 = vunpack.c.l.bf16 %v4284
      %v4349 = vunpack.c.l.bf16 %v4285
      %v4350 = vunpack.c.l.bf16 %v4286
      %v4351 = vunpack.c.l.bf16 %v4287
      %v4352 = vunpack.c.l.bf16 %v4288
      %v4353 = vunpack.c.l.bf16 %v4289
      %v4354 = vunpack.c.l.bf16 %v4290
      %v4355 = vunpack.c.l.bf16 %v4291
      %v4356 = vunpack.c.l.bf16 %v4292
      %v4357 = vunpack.c.l.bf16 %v4293
      %v4358 = vunpack.c.l.bf16 %v4294
      %v4359 = vlaneseq
      %v4360 = vshrl.u32 %v4359, 7
      %v4361 = vsub.s32 3, %v4360
      %v4362 = vrot.slane %v2468, %v4361
      %4363 = vmatprep.subr.mxu0 0.0
      %4364 = vmatpush1.msra.mxu0 %v4295
      %4365 = vmatprep.subr.mxu0 0.0
      %4366 = vmatpush1.msra.mxu0 %v4296
      %4367 = vmatprep.subr.mxu0 0.0
      %4368 = vmatpush1.msra.mxu0 %v4297
      %4369 = vmatprep.subr.mxu0 0.0
      %4370 = vmatpush1.msra.mxu0 %v4298
      %4371 = vmatprep.subr.mxu0 0.0
      %4372 = vmatpush1.msra.mxu0 %v4299
      %4373 = vmatprep.subr.mxu0 0.0
      %4374 = vmatpush1.msra.mxu0 %v4300
      %4375 = vmatprep.subr.mxu0 0.0
      %4376 = vmatpush1.msra.mxu0 %v4301
      %4377 = vmatprep.subr.mxu0 0.0
      %4378 = vmatpush1.msra.mxu0 %v4302
      %4379 = vmatprep.subr.mxu0 0.0
      %4380 = vmatpush1.msra.mxu0 %v4303
      %4381 = vmatprep.subr.mxu0 0.0
      %4382 = vmatpush1.msra.mxu0 %v4304
      %4383 = vmatprep.subr.mxu0 0.0
      %4384 = vmatpush1.msra.mxu0 %v4305
      %4385 = vmatprep.subr.mxu0 0.0
      %4386 = vmatpush1.msra.mxu0 %v4306
      %4387 = vmatprep.subr.mxu0 0.0
      %4388 = vmatpush1.msra.mxu0 %v4307
      %4389 = vmatprep.subr.mxu0 0.0
      %4390 = vmatpush1.msra.mxu0 %v4308
      %4391 = vmatprep.subr.mxu0 0.0
      %4392 = vmatpush1.msra.mxu0 %v4309
      %4393 = vmatprep.subr.mxu0 0.0
      %4394 = vmatpush1.msra.mxu0 %v4310
      %4395 = vmatprep.subr.mxu0 0.0
      %4396 = vmatpush1.msra.mxu0 %v4311
      %4397 = vmatprep.subr.mxu0 0.0
      %4398 = vmatpush1.msra.mxu0 %v4312
      %4399 = vmatprep.subr.mxu0 0.0
      %4400 = vmatpush1.msra.mxu0 %v4313
      %4401 = vmatprep.subr.mxu0 0.0
      %4402 = vmatpush1.msra.mxu0 %v4314
      %4403 = vmatprep.subr.mxu0 0.0
      %4404 = vmatpush1.msra.mxu0 %v4315
      %4405 = vmatprep.subr.mxu0 0.0
      %4406 = vmatpush1.msra.mxu0 %v4316
      %4407 = vmatprep.subr.mxu0 0.0
      %4408 = vmatpush1.msra.mxu0 %v4317
      %4409 = vmatprep.subr.mxu0 0.0
      %4410 = vmatpush1.msra.mxu0 %v4318
      %4411 = vmatprep.subr.mxu0 0.0
      %4412 = vmatpush1.msra.mxu0 %v4319
      %4413 = vmatprep.subr.mxu0 0.0
      %4414 = vmatpush1.msra.mxu0 %v4320
      %4415 = vmatprep.subr.mxu0 0.0
      %4416 = vmatpush1.msra.mxu0 %v4321
      %4417 = vmatprep.subr.mxu0 0.0
      %4418 = vmatpush1.msra.mxu0 %v4322
      %4419 = vmatprep.subr.mxu0 0.0
      %4420 = vmatpush1.msra.mxu0 %v4323
      %4421 = vmatprep.subr.mxu0 0.0
      %4422 = vmatpush1.msra.mxu0 %v4324
      %4423 = vmatprep.subr.mxu0 0.0
      %4424 = vmatpush1.msra.mxu0 %v4325
      %4425 = vmatprep.subr.mxu0 0.0
      %4426 = vmatpush1.msra.mxu0 %v4326
      %4427 = vmatprep.mubr.f32.mxu0 %v4227
      %4428 = vmatmul.mubr.f32.gmra.mrb[0].mxu0 %v4226
      %v4429 = vpop.f32.mrb[0].mxu0
      %v4430 = vadd.f32 %v4362, %v4429
      %v4431 = vpop.f32.mrb[0].mxu0
      %4432 = vdwg.mxu0
      %4433 = vmatprep.subr.mxu0 0.0
      %4434 = vmatpush1.msra.mxu0 %v4327
      %4435 = vmatprep.subr.mxu0 0.0
      %4436 = vmatpush1.msra.mxu0 %v4328
      %4437 = vmatprep.subr.mxu0 0.0
      %4438 = vmatpush1.msra.mxu0 %v4329
      %4439 = vmatprep.subr.mxu0 0.0
      %4440 = vmatpush1.msra.mxu0 %v4330
      %4441 = vmatprep.subr.mxu0 0.0
      %4442 = vmatpush1.msra.mxu0 %v4331
      %4443 = vmatprep.subr.mxu0 0.0
      %4444 = vmatpush1.msra.mxu0 %v4332
      %4445 = vmatprep.subr.mxu0 0.0
      %4446 = vmatpush1.msra.mxu0 %v4333
      %4447 = vmatprep.subr.mxu0 0.0
      %4448 = vmatpush1.msra.mxu0 %v4334
      %4449 = vmatprep.subr.mxu0 0.0
      %4450 = vmatpush1.msra.mxu0 %v4335
      %4451 = vmatprep.subr.mxu0 0.0
      %4452 = vmatpush1.msra.mxu0 %v4336
      %4453 = vmatprep.subr.mxu0 0.0
      %4454 = vmatpush1.msra.mxu0 %v4337
      %4455 = vmatprep.subr.mxu0 0.0
      %4456 = vmatpush1.msra.mxu0 %v4338
      %4457 = vmatprep.subr.mxu0 0.0
      %4458 = vmatpush1.msra.mxu0 %v4339
      %4459 = vmatprep.subr.mxu0 0.0
      %4460 = vmatpush1.msra.mxu0 %v4340
      %4461 = vmatprep.subr.mxu0 0.0
      %4462 = vmatpush1.msra.mxu0 %v4341
      %4463 = vmatprep.subr.mxu0 0.0
      %4464 = vmatpush1.msra.mxu0 %v4342
      %4465 = vmatprep.subr.mxu0 0.0
      %4466 = vmatpush1.msra.mxu0 %v4343
      %4467 = vmatprep.subr.mxu0 0.0
      %4468 = vmatpush1.msra.mxu0 %v4344
      %4469 = vmatprep.subr.mxu0 0.0
      %4470 = vmatpush1.msra.mxu0 %v4345
      %4471 = vmatprep.subr.mxu0 0.0
      %4472 = vmatpush1.msra.mxu0 %v4346
      %4473 = vmatprep.subr.mxu0 0.0
      %4474 = vmatpush1.msra.mxu0 %v4347
      %4475 = vmatprep.subr.mxu0 0.0
      %4476 = vmatpush1.msra.mxu0 %v4348
      %4477 = vmatprep.subr.mxu0 0.0
      %4478 = vmatpush1.msra.mxu0 %v4349
      %4479 = vmatprep.subr.mxu0 0.0
      %4480 = vmatpush1.msra.mxu0 %v4350
      %4481 = vmatprep.subr.mxu0 0.0
      %4482 = vmatpush1.msra.mxu0 %v4351
      %4483 = vmatprep.subr.mxu0 0.0
      %4484 = vmatpush1.msra.mxu0 %v4352
      %4485 = vmatprep.subr.mxu0 0.0
      %4486 = vmatpush1.msra.mxu0 %v4353
      %4487 = vmatprep.subr.mxu0 0.0
      %4488 = vmatpush1.msra.mxu0 %v4354
      %4489 = vmatprep.subr.mxu0 0.0
      %4490 = vmatpush1.msra.mxu0 %v4355
      %4491 = vmatprep.subr.mxu0 0.0
      %4492 = vmatpush1.msra.mxu0 %v4356
      %4493 = vmatprep.subr.mxu0 0.0
      %4494 = vmatpush1.msra.mxu0 %v4357
      %4495 = vmatprep.subr.mxu0 0.0
      %4496 = vmatpush1.msra.mxu0 %v4358
      %4497 = vmatprep.mubr.f32.mxu0 %v4229
      %4498 = vmatmul.mubr.f32.gmra.mrb[0].mxu0 %v4228
      %v4499 = vpop.f32.mrb[0].mxu0
      %v4500 = vadd.f32 %v4430, %v4499
      %v4501 = vpop.f32.mrb[0].mxu0
      %4502 = vdwg.mxu0
      %s4503 = scalar_lea.vmem %s383, 2
      %4504 = vst.msk [vmem:[%s4503] sm:$0x3] %vm2446, %v4500
      %s4505 = scalar_lea.vmem %s349, 96
      %v4506 = vld [vmem:[%s4505] sm:$0xff]
      %v4507 = vld [vmem:[%s4505 + $0x8] sm:$0xff]
      %v4508 = vld [vmem:[%s4505 + $0x10] sm:$0xff]
      %v4509 = vld [vmem:[%s4505 + $0x18] sm:$0xff]
      %v4510 = vld [vmem:[%s4505 + $0x20] sm:$0x33]
      %v4511 = vld [vmem:[%s4505 + $0x28] sm:$0x33]
      %v4512 = vunpack.c.l.bf16 %v4506
      %v4513 = vunpack.c.h.bf16 %v4506
      %v4514 = vunpack.c.l.bf16 %v4507
      %v4515 = vunpack.c.h.bf16 %v4507
      %v4516 = vunpack.c.l.bf16 %v4508
      %v4517 = vunpack.c.h.bf16 %v4508
      %v4518 = vunpack.c.l.bf16 %v4509
      %v4519 = vunpack.c.h.bf16 %v4509
      %v4520 = vunpack.c.l.bf16 %v4510
      %v4521 = vunpack.c.h.bf16 %v4510
      %v4522 = vunpack.c.l.bf16 %v4511
      %v4523 = vunpack.c.h.bf16 %v4511
      %s4524 = scalar_lea.vmem %s377, 32
      %v4525 = vld [vmem:[%s4524] sm:$0xff]
      %v4526 = vld [vmem:[%s4524 + $0x8] sm:$0xff]
      %v4528 = vsel %vm411, %v4520, 0
      %v4531 = vsel %vm411, %v4521, 0
      %v4534 = vsel %vm411, %v4522, 0
      %v4537 = vsel %vm411, %v4523, 0
      %4539 = vmatprep.subr.mxu0 %v4531
      %4540 = vmatpush1.msra.mxu0 %v4528
      %4541 = vmatprep.subr.mxu0 0.0
      %4542 = vmatpush1.msra.mxu0 0.0
      %4543 = vmatprep.subr.mxu0 0.0
      %4544 = vmatpush1.msra.mxu0 0.0
      %4545 = vmatprep.subr.mxu0 0.0
      %4546 = vmatpush1.msra.mxu0 0.0
      %4547 = vmatprep.subr.mxu0 0.0
      %4548 = vmatpush1.msra.mxu0 0.0
      %4549 = vmatprep.subr.mxu0 0.0
      %4550 = vmatpush1.msra.mxu0 0.0
      %4551 = vmatprep.subr.mxu0 0.0
      %4552 = vmatpush1.msra.mxu0 0.0
      %4553 = vmatprep.subr.mxu0 0.0
      %4554 = vmatpush1.msra.mxu0 0.0
      %4555 = vmatprep.subr.mxu0 0.0
      %4556 = vmatpush1.msra.mxu0 0.0
      %4557 = vmatprep.subr.mxu0 0.0
      %4558 = vmatpush1.msra.mxu0 0.0
      %4559 = vmatprep.subr.mxu0 0.0
      %4560 = vmatpush1.msra.mxu0 0.0
      %4561 = vmatprep.subr.mxu0 0.0
      %4562 = vmatpush1.msra.mxu0 0.0
      %4563 = vmatprep.subr.mxu0 0.0
      %4564 = vmatpush1.msra.mxu0 0.0
      %4565 = vmatprep.subr.mxu0 0.0
      %4566 = vmatpush1.msra.mxu0 0.0
      %4567 = vmatprep.subr.mxu0 0.0
      %4568 = vmatpush1.msra.mxu0 0.0
      %4569 = vmatprep.subr.mxu0 0.0
      %4570 = vmatpush1.msra.mxu0 0.0
      %4571 = vmatprep.subr.mxu0 0.0
      %4572 = vmatpush1.msra.mxu0 0.0
      %4573 = vmatprep.subr.mxu0 0.0
      %4574 = vmatpush1.msra.mxu0 0.0
      %4575 = vmatprep.subr.mxu0 0.0
      %4576 = vmatpush1.msra.mxu0 0.0
      %4577 = vmatprep.subr.mxu0 0.0
      %4578 = vmatpush1.msra.mxu0 0.0
      %4579 = vmatprep.subr.mxu0 0.0
      %4580 = vmatpush1.msra.mxu0 0.0
      %4581 = vmatprep.subr.mxu0 0.0
      %4582 = vmatpush1.msra.mxu0 0.0
      %4583 = vmatprep.subr.mxu0 0.0
      %4584 = vmatpush1.msra.mxu0 0.0
      %4585 = vmatprep.subr.mxu0 0.0
      %4586 = vmatpush1.msra.mxu0 0.0
      %4587 = vmatprep.subr.mxu0 0.0
      %4588 = vmatpush1.msra.mxu0 0.0
      %4589 = vmatprep.subr.mxu0 0.0
      %4590 = vmatpush1.msra.mxu0 0.0
      %4591 = vmatprep.subr.mxu0 0.0
      %4592 = vmatpush1.msra.mxu0 0.0
      %4593 = vmatprep.subr.mxu0 0.0
      %4594 = vmatpush1.msra.mxu0 0.0
      %4595 = vmatprep.subr.mxu0 0.0
      %4596 = vmatpush1.msra.mxu0 0.0
      %4597 = vmatprep.subr.mxu0 0.0
      %4598 = vmatpush1.msra.mxu0 0.0
      %4599 = vmatprep.subr.mxu0 0.0
      %4600 = vmatpush1.msra.mxu0 0.0
      %4601 = vmatprep.subr.mxu0 0.0
      %4602 = vmatpush1.msra.mxu0 0.0
      %4603 = vmatprep.mubr.f32.mxu0 0.0
      %4604 = vmatmul.mubr.f32.gmra.mrb[0].mxu0 %v409
      %v4605 = vpop.f32.mrb[0].mxu0
      %v4606 = vadd.f32 0.0, %v4605
      %v4607 = vpop.f32.mrb[0].mxu0
      %v4608 = vadd.f32 0.0, %v4607
      %4609 = vdwg.mxu0
      %4610 = vmatprep.subr.mxu0 %v4537
      %4611 = vmatpush1.msra.mxu0 %v4534
      %4612 = vmatprep.subr.mxu0 0.0
      %4613 = vmatpush1.msra.mxu0 0.0
      %4614 = vmatprep.subr.mxu0 0.0
      %4615 = vmatpush1.msra.mxu0 0.0
      %4616 = vmatprep.subr.mxu0 0.0
      %4617 = vmatpush1.msra.mxu0 0.0
      %4618 = vmatprep.subr.mxu0 0.0
      %4619 = vmatpush1.msra.mxu0 0.0
      %4620 = vmatprep.subr.mxu0 0.0
      %4621 = vmatpush1.msra.mxu0 0.0
      %4622 = vmatprep.subr.mxu0 0.0
      %4623 = vmatpush1.msra.mxu0 0.0
      %4624 = vmatprep.subr.mxu0 0.0
      %4625 = vmatpush1.msra.mxu0 0.0
      %4626 = vmatprep.subr.mxu0 0.0
      %4627 = vmatpush1.msra.mxu0 0.0
      %4628 = vmatprep.subr.mxu0 0.0
      %4629 = vmatpush1.msra.mxu0 0.0
      %4630 = vmatprep.subr.mxu0 0.0
      %4631 = vmatpush1.msra.mxu0 0.0
      %4632 = vmatprep.subr.mxu0 0.0
      %4633 = vmatpush1.msra.mxu0 0.0
      %4634 = vmatprep.subr.mxu0 0.0
      %4635 = vmatpush1.msra.mxu0 0.0
      %4636 = vmatprep.subr.mxu0 0.0
      %4637 = vmatpush1.msra.mxu0 0.0
      %4638 = vmatprep.subr.mxu0 0.0
      %4639 = vmatpush1.msra.mxu0 0.0
      %4640 = vmatprep.subr.mxu0 0.0
      %4641 = vmatpush1.msra.mxu0 0.0
      %4642 = vmatprep.subr.mxu0 0.0
      %4643 = vmatpush1.msra.mxu0 0.0
      %4644 = vmatprep.subr.mxu0 0.0
      %4645 = vmatpush1.msra.mxu0 0.0
      %4646 = vmatprep.subr.mxu0 0.0
      %4647 = vmatpush1.msra.mxu0 0.0
      %4648 = vmatprep.subr.mxu0 0.0
      %4649 = vmatpush1.msra.mxu0 0.0
      %4650 = vmatprep.subr.mxu0 0.0
      %4651 = vmatpush1.msra.mxu0 0.0
      %4652 = vmatprep.subr.mxu0 0.0
      %4653 = vmatpush1.msra.mxu0 0.0
      %4654 = vmatprep.subr.mxu0 0.0
      %4655 = vmatpush1.msra.mxu0 0.0
      %4656 = vmatprep.subr.mxu0 0.0
      %4657 = vmatpush1.msra.mxu0 0.0
      %4658 = vmatprep.subr.mxu0 0.0
      %4659 = vmatpush1.msra.mxu0 0.0
      %4660 = vmatprep.subr.mxu0 0.0
      %4661 = vmatpush1.msra.mxu0 0.0
      %4662 = vmatprep.subr.mxu0 0.0
      %4663 = vmatpush1.msra.mxu0 0.0
      %4664 = vmatprep.subr.mxu0 0.0
      %4665 = vmatpush1.msra.mxu0 0.0
      %4666 = vmatprep.subr.mxu0 0.0
      %4667 = vmatpush1.msra.mxu0 0.0
      %4668 = vmatprep.subr.mxu0 0.0
      %4669 = vmatpush1.msra.mxu0 0.0
      %4670 = vmatprep.subr.mxu0 0.0
      %4671 = vmatpush1.msra.mxu0 0.0
      %4672 = vmatprep.subr.mxu0 0.0
      %4673 = vmatpush1.msra.mxu0 0.0
      %4674 = vmatprep.mubr.f32.mxu0 0.0
      %4675 = vmatmul.mubr.f32.gmra.mrb[0].mxu0 %v409
      %v4676 = vpop.f32.mrb[0].mxu0
      %v4677 = vadd.f32 0.0, %v4676
      %v4678 = vpop.f32.mrb[0].mxu0
      %v4679 = vadd.f32 0.0, %v4678
      %4680 = vdwg.mxu0
      %4681 = vmatprep.subr.mxu0 %v4513
      %4682 = vmatpush1.msra.mxu0 %v4512
      %4683 = vmatprep.subr.mxu0 %v4517
      %4684 = vmatpush1.msra.mxu0 %v4516
      %4685 = vmatprep.subr.mxu0 0.0
      %4686 = vmatpush1.msra.mxu0 0.0
      %4687 = vmatprep.subr.mxu0 0.0
      %4688 = vmatpush1.msra.mxu0 0.0
      %4689 = vmatprep.subr.mxu0 0.0
      %4690 = vmatpush1.msra.mxu0 0.0
      %4691 = vmatprep.subr.mxu0 0.0
      %4692 = vmatpush1.msra.mxu0 0.0
      %4693 = vmatprep.subr.mxu0 0.0
      %4694 = vmatpush1.msra.mxu0 0.0
      %4695 = vmatprep.subr.mxu0 0.0
      %4696 = vmatpush1.msra.mxu0 0.0
      %4697 = vmatprep.subr.mxu0 0.0
      %4698 = vmatpush1.msra.mxu0 0.0
      %4699 = vmatprep.subr.mxu0 0.0
      %4700 = vmatpush1.msra.mxu0 0.0
      %4701 = vmatprep.subr.mxu0 0.0
      %4702 = vmatpush1.msra.mxu0 0.0
      %4703 = vmatprep.subr.mxu0 0.0
      %4704 = vmatpush1.msra.mxu0 0.0
      %4705 = vmatprep.subr.mxu0 0.0
      %4706 = vmatpush1.msra.mxu0 0.0
      %4707 = vmatprep.subr.mxu0 0.0
      %4708 = vmatpush1.msra.mxu0 0.0
      %4709 = vmatprep.subr.mxu0 0.0
      %4710 = vmatpush1.msra.mxu0 0.0
      %4711 = vmatprep.subr.mxu0 0.0
      %4712 = vmatpush1.msra.mxu0 0.0
      %4713 = vmatprep.subr.mxu0 0.0
      %4714 = vmatpush1.msra.mxu0 0.0
      %4715 = vmatprep.subr.mxu0 0.0
      %4716 = vmatpush1.msra.mxu0 0.0
      %4717 = vmatprep.subr.mxu0 0.0
      %4718 = vmatpush1.msra.mxu0 0.0
      %4719 = vmatprep.subr.mxu0 0.0
      %4720 = vmatpush1.msra.mxu0 0.0
      %4721 = vmatprep.subr.mxu0 0.0
      %4722 = vmatpush1.msra.mxu0 0.0
      %4723 = vmatprep.subr.mxu0 0.0
      %4724 = vmatpush1.msra.mxu0 0.0
      %4725 = vmatprep.subr.mxu0 0.0
      %4726 = vmatpush1.msra.mxu0 0.0
      %4727 = vmatprep.subr.mxu0 0.0
      %4728 = vmatpush1.msra.mxu0 0.0
      %4729 = vmatprep.subr.mxu0 0.0
      %4730 = vmatpush1.msra.mxu0 0.0
      %4731 = vmatprep.subr.mxu0 0.0
      %4732 = vmatpush1.msra.mxu0 0.0
      %4733 = vmatprep.subr.mxu0 0.0
      %4734 = vmatpush1.msra.mxu0 0.0
      %4735 = vmatprep.subr.mxu0 0.0
      %4736 = vmatpush1.msra.mxu0 0.0
      %4737 = vmatprep.subr.mxu0 0.0
      %4738 = vmatpush1.msra.mxu0 0.0
      %4739 = vmatprep.subr.mxu0 0.0
      %4740 = vmatpush1.msra.mxu0 0.0
      %4741 = vmatprep.subr.mxu0 0.0
      %4742 = vmatpush1.msra.mxu0 0.0
      %4743 = vmatprep.subr.mxu0 0.0
      %4744 = vmatpush1.msra.mxu0 0.0
      %4745 = vmatprep.mubr.f32.mxu0 0.0
      %4746 = vmatmul.mubr.f32.gmra.mrb[0].mxu0 %v568
      %v4747 = vpop.f32.mrb[0].mxu0
      %v4748 = vadd.f32 %v4606, %v4747
      %v4749 = vpop.f32.mrb[0].mxu0
      %v4750 = vadd.f32 %v4608, %v4749
      %4751 = vdwg.mxu0
      %4752 = vmatprep.subr.mxu0 %v4515
      %4753 = vmatpush1.msra.mxu0 %v4514
      %4754 = vmatprep.subr.mxu0 %v4519
      %4755 = vmatpush1.msra.mxu0 %v4518
      %4756 = vmatprep.subr.mxu0 0.0
      %4757 = vmatpush1.msra.mxu0 0.0
      %4758 = vmatprep.subr.mxu0 0.0
      %4759 = vmatpush1.msra.mxu0 0.0
      %4760 = vmatprep.subr.mxu0 0.0
      %4761 = vmatpush1.msra.mxu0 0.0
      %4762 = vmatprep.subr.mxu0 0.0
      %4763 = vmatpush1.msra.mxu0 0.0
      %4764 = vmatprep.subr.mxu0 0.0
      %4765 = vmatpush1.msra.mxu0 0.0
      %4766 = vmatprep.subr.mxu0 0.0
      %4767 = vmatpush1.msra.mxu0 0.0
      %4768 = vmatprep.subr.mxu0 0.0
      %4769 = vmatpush1.msra.mxu0 0.0
      %4770 = vmatprep.subr.mxu0 0.0
      %4771 = vmatpush1.msra.mxu0 0.0
      %4772 = vmatprep.subr.mxu0 0.0
      %4773 = vmatpush1.msra.mxu0 0.0
      %4774 = vmatprep.subr.mxu0 0.0
      %4775 = vmatpush1.msra.mxu0 0.0
      %4776 = vmatprep.subr.mxu0 0.0
      %4777 = vmatpush1.msra.mxu0 0.0
      %4778 = vmatprep.subr.mxu0 0.0
      %4779 = vmatpush1.msra.mxu0 0.0
      %4780 = vmatprep.subr.mxu0 0.0
      %4781 = vmatpush1.msra.mxu0 0.0
      %4782 = vmatprep.subr.mxu0 0.0
      %4783 = vmatpush1.msra.mxu0 0.0
      %4784 = vmatprep.subr.mxu0 0.0
      %4785 = vmatpush1.msra.mxu0 0.0
      %4786 = vmatprep.subr.mxu0 0.0
      %4787 = vmatpush1.msra.mxu0 0.0
      %4788 = vmatprep.subr.mxu0 0.0
      %4789 = vmatpush1.msra.mxu0 0.0
      %4790 = vmatprep.subr.mxu0 0.0
      %4791 = vmatpush1.msra.mxu0 0.0
      %4792 = vmatprep.subr.mxu0 0.0
      %4793 = vmatpush1.msra.mxu0 0.0
      %4794 = vmatprep.subr.mxu0 0.0
      %4795 = vmatpush1.msra.mxu0 0.0
      %4796 = vmatprep.subr.mxu0 0.0
      %4797 = vmatpush1.msra.mxu0 0.0
      %4798 = vmatprep.subr.mxu0 0.0
      %4799 = vmatpush1.msra.mxu0 0.0
      %4800 = vmatprep.subr.mxu0 0.0
      %4801 = vmatpush1.msra.mxu0 0.0
      %4802 = vmatprep.subr.mxu0 0.0
      %4803 = vmatpush1.msra.mxu0 0.0
      %4804 = vmatprep.subr.mxu0 0.0
      %4805 = vmatpush1.msra.mxu0 0.0
      %4806 = vmatprep.subr.mxu0 0.0
      %4807 = vmatpush1.msra.mxu0 0.0
      %4808 = vmatprep.subr.mxu0 0.0
      %4809 = vmatpush1.msra.mxu0 0.0
      %4810 = vmatprep.subr.mxu0 0.0
      %4811 = vmatpush1.msra.mxu0 0.0
      %4812 = vmatprep.subr.mxu0 0.0
      %4813 = vmatpush1.msra.mxu0 0.0
      %4814 = vmatprep.subr.mxu0 0.0
      %4815 = vmatpush1.msra.mxu0 0.0
      %4816 = vmatprep.mubr.f32.mxu0 0.0
      %4817 = vmatmul.mubr.f32.gmra.mrb[0].mxu0 %v568
      %v4818 = vpop.f32.mrb[0].mxu0
      %v4819 = vadd.f32 %v4677, %v4818
      %v4820 = vpop.f32.mrb[0].mxu0
      %v4821 = vadd.f32 %v4679, %v4820
      %4822 = vdwg.mxu0
      %v4825 = vlaneseq
      %v4826 = vshrl.u32 %v4825, 7
      %v4827 = vsub.s32 0, %v4826
      %v4828 = vrot.slane %v4525, %v4827
      %v4829 = vlaneseq
      %v4830 = vshrl.u32 %v4829, 7
      %v4831 = vsub.s32 4, %v4830
      %v4832 = vrot.slane %v4525, %v4831
      %v4833 = vlaneseq
      %v4834 = vshrl.u32 %v4833, 7
      %v4835 = vsub.s32 0, %v4834
      %v4836 = vrot.slane %v4526, %v4835
      %v4837 = vlaneseq
      %v4838 = vshrl.u32 %v4837, 7
      %v4839 = vsub.s32 4, %v4838
      %v4840 = vrot.slane %v4526, %v4839
      %v4845 = vlaneseq
      %v4846 = vshrl.u32 %v4845, 7
      %v4847 = vsub.s32 0, %v4846
      %v4848 = vrot.slane %v4828, %v4847
      %v4849 = vlaneseq
      %v4850 = vshrl.u32 %v4849, 7
      %v4851 = vsub.s32 0, %v4850
      %v4852 = vrot.slane %v4832, %v4851
      %v4853 = vlaneseq
      %v4854 = vshrl.u32 %v4853, 7
      %v4855 = vsub.s32 0, %v4854
      %v4856 = vrot.slane %v4836, %v4855
      %v4857 = vlaneseq
      %v4858 = vshrl.u32 %v4857, 7
      %v4859 = vsub.s32 0, %v4858
      %v4860 = vrot.slane %v4840, %v4859
      %v4861 = vadd.f32 %v4748, %v4848
      %v4862 = vadd.f32 %v4750, %v4852
      %v4863 = vadd.f32 %v4819, %v4856
      %v4864 = vadd.f32 %v4821, %v4860
      %v4865 = vmax.f32 %v4861, 0.0
      %v4866 = vmax.f32 %v4862, 0.0
      %v4867 = vmax.f32 %v4863, 0.0
      %v4868 = vmax.f32 %v4864, 0.0
      %s4869 = scalar_lea.vmem %s356, 2048
      %v4870 = vld [vmem:[%s4869] sm:$0xff]
      %v4871 = vld [vmem:[%s4869 + $0x8] sm:$0xff]
      %v4872 = vld [vmem:[%s4869 + $0x10] sm:$0xff]
      %v4873 = vld [vmem:[%s4869 + $0x18] sm:$0xff]
      %v4874 = vld [vmem:[%s4869 + $0x20] sm:$0xff]
      %v4875 = vld [vmem:[%s4869 + $0x28] sm:$0xff]
      %v4876 = vld [vmem:[%s4869 + $0x30] sm:$0xff]
      %v4877 = vld [vmem:[%s4869 + $0x38] sm:$0xff]
      %v4878 = vld [vmem:[%s4869 + $0x40] sm:$0xff]
      %v4879 = vld [vmem:[%s4869 + $0x48] sm:$0xff]
      %v4880 = vld [vmem:[%s4869 + $0x50] sm:$0xff]
      %v4881 = vld [vmem:[%s4869 + $0x58] sm:$0xff]
      %v4882 = vld [vmem:[%s4869 + $0x60] sm:$0xff]
      %v4883 = vld [vmem:[%s4869 + $0x68] sm:$0xff]
      %v4884 = vld [vmem:[%s4869 + $0x70] sm:$0xff]
      %v4885 = vld [vmem:[%s4869 + $0x78] sm:$0xff]
      %v4886 = vld [vmem:[%s4869 + $0x80] sm:$0xff]
      %v4887 = vld [vmem:[%s4869 + $0x88] sm:$0xff]
      %v4888 = vld [vmem:[%s4869 + $0x90] sm:$0xff]
      %v4889 = vld [vmem:[%s4869 + $0x98] sm:$0xff]
      %v4890 = vld [vmem:[%s4869 + $0xa0] sm:$0xff]
      %v4891 = vld [vmem:[%s4869 + $0xa8] sm:$0xff]
      %v4892 = vld [vmem:[%s4869 + $0xb0] sm:$0xff]
      %v4893 = vld [vmem:[%s4869 + $0xb8] sm:$0xff]
      %v4894 = vld [vmem:[%s4869 + $0xc0] sm:$0xff]
      %v4895 = vld [vmem:[%s4869 + $0xc8] sm:$0xff]
      %v4896 = vld [vmem:[%s4869 + $0xd0] sm:$0xff]
      %v4897 = vld [vmem:[%s4869 + $0xd8] sm:$0xff]
      %v4898 = vld [vmem:[%s4869 + $0xe0] sm:$0xff]
      %v4899 = vld [vmem:[%s4869 + $0xe8] sm:$0xff]
      %v4900 = vld [vmem:[%s4869 + $0xf0] sm:$0xff]
      %v4901 = vld [vmem:[%s4869 + $0xf8] sm:$0xff]
      %v4902 = vld [vmem:[%s4869 + $0x100] sm:$0xff]
      %v4903 = vld [vmem:[%s4869 + $0x108] sm:$0xff]
      %v4904 = vld [vmem:[%s4869 + $0x110] sm:$0xff]
      %v4905 = vld [vmem:[%s4869 + $0x118] sm:$0xff]
      %v4906 = vld [vmem:[%s4869 + $0x120] sm:$0xff]
      %v4907 = vld [vmem:[%s4869 + $0x128] sm:$0xff]
      %v4908 = vld [vmem:[%s4869 + $0x130] sm:$0xff]
      %v4909 = vld [vmem:[%s4869 + $0x138] sm:$0xff]
      %v4910 = vld [vmem:[%s4869 + $0x140] sm:$0xff]
      %v4911 = vld [vmem:[%s4869 + $0x148] sm:$0xff]
      %v4912 = vld [vmem:[%s4869 + $0x150] sm:$0xff]
      %v4913 = vld [vmem:[%s4869 + $0x158] sm:$0xff]
      %v4914 = vld [vmem:[%s4869 + $0x160] sm:$0xff]
      %v4915 = vld [vmem:[%s4869 + $0x168] sm:$0xff]
      %v4916 = vld [vmem:[%s4869 + $0x170] sm:$0xff]
      %v4917 = vld [vmem:[%s4869 + $0x178] sm:$0xff]
      %v4918 = vld [vmem:[%s4869 + $0x180] sm:$0xff]
      %v4919 = vld [vmem:[%s4869 + $0x188] sm:$0xff]
      %v4920 = vld [vmem:[%s4869 + $0x190] sm:$0xff]
      %v4921 = vld [vmem:[%s4869 + $0x198] sm:$0xff]
      %v4922 = vld [vmem:[%s4869 + $0x1a0] sm:$0xff]
      %v4923 = vld [vmem:[%s4869 + $0x1a8] sm:$0xff]
      %v4924 = vld [vmem:[%s4869 + $0x1b0] sm:$0xff]
      %v4925 = vld [vmem:[%s4869 + $0x1b8] sm:$0xff]
      %v4926 = vld [vmem:[%s4869 + $0x1c0] sm:$0xff]
      %v4927 = vld [vmem:[%s4869 + $0x1c8] sm:$0xff]
      %v4928 = vld [vmem:[%s4869 + $0x1d0] sm:$0xff]
      %v4929 = vld [vmem:[%s4869 + $0x1d8] sm:$0xff]
      %v4930 = vld [vmem:[%s4869 + $0x1e0] sm:$0xff]
      %v4931 = vld [vmem:[%s4869 + $0x1e8] sm:$0xff]
      %v4932 = vld [vmem:[%s4869 + $0x1f0] sm:$0xff]
      %v4933 = vld [vmem:[%s4869 + $0x1f8] sm:$0xff]
      %v4934 = vld [vmem:[%s4869 + $0x200] sm:$0xff]
      %v4935 = vld [vmem:[%s4869 + $0x208] sm:$0xff]
      %v4936 = vld [vmem:[%s4869 + $0x210] sm:$0xff]
      %v4937 = vld [vmem:[%s4869 + $0x218] sm:$0xff]
      %v4938 = vld [vmem:[%s4869 + $0x220] sm:$0xff]
      %v4939 = vld [vmem:[%s4869 + $0x228] sm:$0xff]
      %v4940 = vld [vmem:[%s4869 + $0x230] sm:$0xff]
      %v4941 = vld [vmem:[%s4869 + $0x238] sm:$0xff]
      %v4942 = vld [vmem:[%s4869 + $0x240] sm:$0xff]
      %v4943 = vld [vmem:[%s4869 + $0x248] sm:$0xff]
      %v4944 = vld [vmem:[%s4869 + $0x250] sm:$0xff]
      %v4945 = vld [vmem:[%s4869 + $0x258] sm:$0xff]
      %v4946 = vld [vmem:[%s4869 + $0x260] sm:$0xff]
      %v4947 = vld [vmem:[%s4869 + $0x268] sm:$0xff]
      %v4948 = vld [vmem:[%s4869 + $0x270] sm:$0xff]
      %v4949 = vld [vmem:[%s4869 + $0x278] sm:$0xff]
      %v4950 = vld [vmem:[%s4869 + $0x280] sm:$0xff]
      %v4951 = vld [vmem:[%s4869 + $0x288] sm:$0xff]
      %v4952 = vld [vmem:[%s4869 + $0x290] sm:$0xff]
      %v4953 = vld [vmem:[%s4869 + $0x298] sm:$0xff]
      %v4954 = vld [vmem:[%s4869 + $0x2a0] sm:$0xff]
      %v4955 = vld [vmem:[%s4869 + $0x2a8] sm:$0xff]
      %v4956 = vld [vmem:[%s4869 + $0x2b0] sm:$0xff]
      %v4957 = vld [vmem:[%s4869 + $0x2b8] sm:$0xff]
      %v4958 = vld [vmem:[%s4869 + $0x2c0] sm:$0xff]
      %v4959 = vld [vmem:[%s4869 + $0x2c8] sm:$0xff]
      %v4960 = vld [vmem:[%s4869 + $0x2d0] sm:$0xff]
      %v4961 = vld [vmem:[%s4869 + $0x2d8] sm:$0xff]
      %v4962 = vld [vmem:[%s4869 + $0x2e0] sm:$0xff]
      %v4963 = vld [vmem:[%s4869 + $0x2e8] sm:$0xff]
      %v4964 = vld [vmem:[%s4869 + $0x2f0] sm:$0xff]
      %v4965 = vld [vmem:[%s4869 + $0x2f8] sm:$0xff]
      %v4966 = vld [vmem:[%s4869 + $0x300] sm:$0xff]
      %v4967 = vld [vmem:[%s4869 + $0x308] sm:$0xff]
      %v4968 = vld [vmem:[%s4869 + $0x310] sm:$0xff]
      %v4969 = vld [vmem:[%s4869 + $0x318] sm:$0xff]
      %v4970 = vld [vmem:[%s4869 + $0x320] sm:$0xff]
      %v4971 = vld [vmem:[%s4869 + $0x328] sm:$0xff]
      %v4972 = vld [vmem:[%s4869 + $0x330] sm:$0xff]
      %v4973 = vld [vmem:[%s4869 + $0x338] sm:$0xff]
      %v4974 = vld [vmem:[%s4869 + $0x340] sm:$0xff]
      %v4975 = vld [vmem:[%s4869 + $0x348] sm:$0xff]
      %v4976 = vld [vmem:[%s4869 + $0x350] sm:$0xff]
      %v4977 = vld [vmem:[%s4869 + $0x358] sm:$0xff]
      %v4978 = vld [vmem:[%s4869 + $0x360] sm:$0xff]
      %v4979 = vld [vmem:[%s4869 + $0x368] sm:$0xff]
      %v4980 = vld [vmem:[%s4869 + $0x370] sm:$0xff]
      %v4981 = vld [vmem:[%s4869 + $0x378] sm:$0xff]
      %v4982 = vld [vmem:[%s4869 + $0x380] sm:$0xff]
      %v4983 = vld [vmem:[%s4869 + $0x388] sm:$0xff]
      %v4984 = vld [vmem:[%s4869 + $0x390] sm:$0xff]
      %v4985 = vld [vmem:[%s4869 + $0x398] sm:$0xff]
      %v4986 = vld [vmem:[%s4869 + $0x3a0] sm:$0xff]
      %v4987 = vld [vmem:[%s4869 + $0x3a8] sm:$0xff]
      %v4988 = vld [vmem:[%s4869 + $0x3b0] sm:$0xff]
      %v4989 = vld [vmem:[%s4869 + $0x3b8] sm:$0xff]
      %v4990 = vld [vmem:[%s4869 + $0x3c0] sm:$0xff]
      %v4991 = vld [vmem:[%s4869 + $0x3c8] sm:$0xff]
      %v4992 = vld [vmem:[%s4869 + $0x3d0] sm:$0xff]
      %v4993 = vld [vmem:[%s4869 + $0x3d8] sm:$0xff]
      %v4994 = vld [vmem:[%s4869 + $0x3e0] sm:$0xff]
      %v4995 = vld [vmem:[%s4869 + $0x3e8] sm:$0xff]
      %v4996 = vld [vmem:[%s4869 + $0x3f0] sm:$0xff]
      %v4997 = vld [vmem:[%s4869 + $0x3f8] sm:$0xff]
      %v4998 = vunpack.c.l.bf16 %v4870
      %v4999 = vunpack.c.h.bf16 %v4870
      %v5000 = vunpack.c.l.bf16 %v4871
      %v5001 = vunpack.c.h.bf16 %v4871
      %v5002 = vunpack.c.l.bf16 %v4872
      %v5003 = vunpack.c.h.bf16 %v4872
      %v5004 = vunpack.c.l.bf16 %v4873
      %v5005 = vunpack.c.h.bf16 %v4873
      %v5006 = vunpack.c.l.bf16 %v4874
      %v5007 = vunpack.c.h.bf16 %v4874
      %v5008 = vunpack.c.l.bf16 %v4875
      %v5009 = vunpack.c.h.bf16 %v4875
      %v5010 = vunpack.c.l.bf16 %v4876
      %v5011 = vunpack.c.h.bf16 %v4876
      %v5012 = vunpack.c.l.bf16 %v4877
      %v5013 = vunpack.c.h.bf16 %v4877
      %v5014 = vunpack.c.l.bf16 %v4878
      %v5015 = vunpack.c.h.bf16 %v4878
      %v5016 = vunpack.c.l.bf16 %v4879
      %v5017 = vunpack.c.h.bf16 %v4879
      %v5018 = vunpack.c.l.bf16 %v4880
      %v5019 = vunpack.c.h.bf16 %v4880
      %v5020 = vunpack.c.l.bf16 %v4881
      %v5021 = vunpack.c.h.bf16 %v4881
      %v5022 = vunpack.c.l.bf16 %v4882
      %v5023 = vunpack.c.h.bf16 %v4882
      %v5024 = vunpack.c.l.bf16 %v4883
      %v5025 = vunpack.c.h.bf16 %v4883
      %v5026 = vunpack.c.l.bf16 %v4884
      %v5027 = vunpack.c.h.bf16 %v4884
      %v5028 = vunpack.c.l.bf16 %v4885
      %v5029 = vunpack.c.h.bf16 %v4885
      %v5030 = vunpack.c.l.bf16 %v4886
      %v5031 = vunpack.c.h.bf16 %v4886
      %v5032 = vunpack.c.l.bf16 %v4887
      %v5033 = vunpack.c.h.bf16 %v4887
      %v5034 = vunpack.c.l.bf16 %v4888
      %v5035 = vunpack.c.h.bf16 %v4888
      %v5036 = vunpack.c.l.bf16 %v4889
      %v5037 = vunpack.c.h.bf16 %v4889
      %v5038 = vunpack.c.l.bf16 %v4890
      %v5039 = vunpack.c.h.bf16 %v4890
      %v5040 = vunpack.c.l.bf16 %v4891
      %v5041 = vunpack.c.h.bf16 %v4891
      %v5042 = vunpack.c.l.bf16 %v4892
      %v5043 = vunpack.c.h.bf16 %v4892
      %v5044 = vunpack.c.l.bf16 %v4893
      %v5045 = vunpack.c.h.bf16 %v4893
      %v5046 = vunpack.c.l.bf16 %v4894
      %v5047 = vunpack.c.h.bf16 %v4894
      %v5048 = vunpack.c.l.bf16 %v4895
      %v5049 = vunpack.c.h.bf16 %v4895
      %v5050 = vunpack.c.l.bf16 %v4896
      %v5051 = vunpack.c.h.bf16 %v4896
      %v5052 = vunpack.c.l.bf16 %v4897
      %v5053 = vunpack.c.h.bf16 %v4897
      %v5054 = vunpack.c.l.bf16 %v4898
      %v5055 = vunpack.c.h.bf16 %v4898
      %v5056 = vunpack.c.l.bf16 %v4899
      %v5057 = vunpack.c.h.bf16 %v4899
      %v5058 = vunpack.c.l.bf16 %v4900
      %v5059 = vunpack.c.h.bf16 %v4900
      %v5060 = vunpack.c.l.bf16 %v4901
      %v5061 = vunpack.c.h.bf16 %v4901
      %v5062 = vunpack.c.l.bf16 %v4902
      %v5063 = vunpack.c.h.bf16 %v4902
      %v5064 = vunpack.c.l.bf16 %v4903
      %v5065 = vunpack.c.h.bf16 %v4903
      %v5066 = vunpack.c.l.bf16 %v4904
      %v5067 = vunpack.c.h.bf16 %v4904
      %v5068 = vunpack.c.l.bf16 %v4905
      %v5069 = vunpack.c.h.bf16 %v4905
      %v5070 = vunpack.c.l.bf16 %v4906
      %v5071 = vunpack.c.h.bf16 %v4906
      %v5072 = vunpack.c.l.bf16 %v4907
      %v5073 = vunpack.c.h.bf16 %v4907
      %v5074 = vunpack.c.l.bf16 %v4908
      %v5075 = vunpack.c.h.bf16 %v4908
      %v5076 = vunpack.c.l.bf16 %v4909
      %v5077 = vunpack.c.h.bf16 %v4909
      %v5078 = vunpack.c.l.bf16 %v4910
      %v5079 = vunpack.c.h.bf16 %v4910
      %v5080 = vunpack.c.l.bf16 %v4911
      %v5081 = vunpack.c.h.bf16 %v4911
      %v5082 = vunpack.c.l.bf16 %v4912
      %v5083 = vunpack.c.h.bf16 %v4912
      %v5084 = vunpack.c.l.bf16 %v4913
      %v5085 = vunpack.c.h.bf16 %v4913
      %v5086 = vunpack.c.l.bf16 %v4914
      %v5087 = vunpack.c.h.bf16 %v4914
      %v5088 = vunpack.c.l.bf16 %v4915
      %v5089 = vunpack.c.h.bf16 %v4915
      %v5090 = vunpack.c.l.bf16 %v4916
      %v5091 = vunpack.c.h.bf16 %v4916
      %v5092 = vunpack.c.l.bf16 %v4917
      %v5093 = vunpack.c.h.bf16 %v4917
      %v5094 = vunpack.c.l.bf16 %v4918
      %v5095 = vunpack.c.h.bf16 %v4918
      %v5096 = vunpack.c.l.bf16 %v4919
      %v5097 = vunpack.c.h.bf16 %v4919
      %v5098 = vunpack.c.l.bf16 %v4920
      %v5099 = vunpack.c.h.bf16 %v4920
      %v5100 = vunpack.c.l.bf16 %v4921
      %v5101 = vunpack.c.h.bf16 %v4921
      %v5102 = vunpack.c.l.bf16 %v4922
      %v5103 = vunpack.c.h.bf16 %v4922
      %v5104 = vunpack.c.l.bf16 %v4923
      %v5105 = vunpack.c.h.bf16 %v4923
      %v5106 = vunpack.c.l.bf16 %v4924
      %v5107 = vunpack.c.h.bf16 %v4924
      %v5108 = vunpack.c.l.bf16 %v4925
      %v5109 = vunpack.c.h.bf16 %v4925
      %v5110 = vunpack.c.l.bf16 %v4926
      %v5111 = vunpack.c.h.bf16 %v4926
      %v5112 = vunpack.c.l.bf16 %v4927
      %v5113 = vunpack.c.h.bf16 %v4927
      %v5114 = vunpack.c.l.bf16 %v4928
      %v5115 = vunpack.c.h.bf16 %v4928
      %v5116 = vunpack.c.l.bf16 %v4929
      %v5117 = vunpack.c.h.bf16 %v4929
      %v5118 = vunpack.c.l.bf16 %v4930
      %v5119 = vunpack.c.h.bf16 %v4930
      %v5120 = vunpack.c.l.bf16 %v4931
      %v5121 = vunpack.c.h.bf16 %v4931
      %v5122 = vunpack.c.l.bf16 %v4932
      %v5123 = vunpack.c.h.bf16 %v4932
      %v5124 = vunpack.c.l.bf16 %v4933
      %v5125 = vunpack.c.h.bf16 %v4933
      %v5126 = vunpack.c.l.bf16 %v4934
      %v5127 = vunpack.c.h.bf16 %v4934
      %v5128 = vunpack.c.l.bf16 %v4935
      %v5129 = vunpack.c.h.bf16 %v4935
      %v5130 = vunpack.c.l.bf16 %v4936
      %v5131 = vunpack.c.h.bf16 %v4936
      %v5132 = vunpack.c.l.bf16 %v4937
      %v5133 = vunpack.c.h.bf16 %v4937
      %v5134 = vunpack.c.l.bf16 %v4938
      %v5135 = vunpack.c.h.bf16 %v4938
      %v5136 = vunpack.c.l.bf16 %v4939
      %v5137 = vunpack.c.h.bf16 %v4939
      %v5138 = vunpack.c.l.bf16 %v4940
      %v5139 = vunpack.c.h.bf16 %v4940
      %v5140 = vunpack.c.l.bf16 %v4941
      %v5141 = vunpack.c.h.bf16 %v4941
      %v5142 = vunpack.c.l.bf16 %v4942
      %v5143 = vunpack.c.h.bf16 %v4942
      %v5144 = vunpack.c.l.bf16 %v4943
      %v5145 = vunpack.c.h.bf16 %v4943
      %v5146 = vunpack.c.l.bf16 %v4944
      %v5147 = vunpack.c.h.bf16 %v4944
      %v5148 = vunpack.c.l.bf16 %v4945
      %v5149 = vunpack.c.h.bf16 %v4945
      %v5150 = vunpack.c.l.bf16 %v4946
      %v5151 = vunpack.c.h.bf16 %v4946
      %v5152 = vunpack.c.l.bf16 %v4947
      %v5153 = vunpack.c.h.bf16 %v4947
      %v5154 = vunpack.c.l.bf16 %v4948
      %v5155 = vunpack.c.h.bf16 %v4948
      %v5156 = vunpack.c.l.bf16 %v4949
      %v5157 = vunpack.c.h.bf16 %v4949
      %v5158 = vunpack.c.l.bf16 %v4950
      %v5159 = vunpack.c.h.bf16 %v4950
      %v5160 = vunpack.c.l.bf16 %v4951
      %v5161 = vunpack.c.h.bf16 %v4951
      %v5162 = vunpack.c.l.bf16 %v4952
      %v5163 = vunpack.c.h.bf16 %v4952
      %v5164 = vunpack.c.l.bf16 %v4953
      %v5165 = vunpack.c.h.bf16 %v4953
      %v5166 = vunpack.c.l.bf16 %v4954
      %v5167 = vunpack.c.h.bf16 %v4954
      %v5168 = vunpack.c.l.bf16 %v4955
      %v5169 = vunpack.c.h.bf16 %v4955
      %v5170 = vunpack.c.l.bf16 %v4956
      %v5171 = vunpack.c.h.bf16 %v4956
      %v5172 = vunpack.c.l.bf16 %v4957
      %v5173 = vunpack.c.h.bf16 %v4957
      %v5174 = vunpack.c.l.bf16 %v4958
      %v5175 = vunpack.c.h.bf16 %v4958
      %v5176 = vunpack.c.l.bf16 %v4959
      %v5177 = vunpack.c.h.bf16 %v4959
      %v5178 = vunpack.c.l.bf16 %v4960
      %v5179 = vunpack.c.h.bf16 %v4960
      %v5180 = vunpack.c.l.bf16 %v4961
      %v5181 = vunpack.c.h.bf16 %v4961
      %v5182 = vunpack.c.l.bf16 %v4962
      %v5183 = vunpack.c.h.bf16 %v4962
      %v5184 = vunpack.c.l.bf16 %v4963
      %v5185 = vunpack.c.h.bf16 %v4963
      %v5186 = vunpack.c.l.bf16 %v4964
      %v5187 = vunpack.c.h.bf16 %v4964
      %v5188 = vunpack.c.l.bf16 %v4965
      %v5189 = vunpack.c.h.bf16 %v4965
      %v5190 = vunpack.c.l.bf16 %v4966
      %v5191 = vunpack.c.h.bf16 %v4966
      %v5192 = vunpack.c.l.bf16 %v4967
      %v5193 = vunpack.c.h.bf16 %v4967
      %v5194 = vunpack.c.l.bf16 %v4968
      %v5195 = vunpack.c.h.bf16 %v4968
      %v5196 = vunpack.c.l.bf16 %v4969
      %v5197 = vunpack.c.h.bf16 %v4969
      %v5198 = vunpack.c.l.bf16 %v4970
      %v5199 = vunpack.c.h.bf16 %v4970
      %v5200 = vunpack.c.l.bf16 %v4971
      %v5201 = vunpack.c.h.bf16 %v4971
      %v5202 = vunpack.c.l.bf16 %v4972
      %v5203 = vunpack.c.h.bf16 %v4972
      %v5204 = vunpack.c.l.bf16 %v4973
      %v5205 = vunpack.c.h.bf16 %v4973
      %v5206 = vunpack.c.l.bf16 %v4974
      %v5207 = vunpack.c.h.bf16 %v4974
      %v5208 = vunpack.c.l.bf16 %v4975
      %v5209 = vunpack.c.h.bf16 %v4975
      %v5210 = vunpack.c.l.bf16 %v4976
      %v5211 = vunpack.c.h.bf16 %v4976
      %v5212 = vunpack.c.l.bf16 %v4977
      %v5213 = vunpack.c.h.bf16 %v4977
      %v5214 = vunpack.c.l.bf16 %v4978
      %v5215 = vunpack.c.h.bf16 %v4978
      %v5216 = vunpack.c.l.bf16 %v4979
      %v5217 = vunpack.c.h.bf16 %v4979
      %v5218 = vunpack.c.l.bf16 %v4980
      %v5219 = vunpack.c.h.bf16 %v4980
      %v5220 = vunpack.c.l.bf16 %v4981
      %v5221 = vunpack.c.h.bf16 %v4981
      %v5222 = vunpack.c.l.bf16 %v4982
      %v5223 = vunpack.c.h.bf16 %v4982
      %v5224 = vunpack.c.l.bf16 %v4983
      %v5225 = vunpack.c.h.bf16 %v4983
      %v5226 = vunpack.c.l.bf16 %v4984
      %v5227 = vunpack.c.h.bf16 %v4984
      %v5228 = vunpack.c.l.bf16 %v4985
      %v5229 = vunpack.c.h.bf16 %v4985
      %v5230 = vunpack.c.l.bf16 %v4986
      %v5231 = vunpack.c.h.bf16 %v4986
      %v5232 = vunpack.c.l.bf16 %v4987
      %v5233 = vunpack.c.h.bf16 %v4987
      %v5234 = vunpack.c.l.bf16 %v4988
      %v5235 = vunpack.c.h.bf16 %v4988
      %v5236 = vunpack.c.l.bf16 %v4989
      %v5237 = vunpack.c.h.bf16 %v4989
      %v5238 = vunpack.c.l.bf16 %v4990
      %v5239 = vunpack.c.h.bf16 %v4990
      %v5240 = vunpack.c.l.bf16 %v4991
      %v5241 = vunpack.c.h.bf16 %v4991
      %v5242 = vunpack.c.l.bf16 %v4992
      %v5243 = vunpack.c.h.bf16 %v4992
      %v5244 = vunpack.c.l.bf16 %v4993
      %v5245 = vunpack.c.h.bf16 %v4993
      %v5246 = vunpack.c.l.bf16 %v4994
      %v5247 = vunpack.c.h.bf16 %v4994
      %v5248 = vunpack.c.l.bf16 %v4995
      %v5249 = vunpack.c.h.bf16 %v4995
      %v5250 = vunpack.c.l.bf16 %v4996
      %v5251 = vunpack.c.h.bf16 %v4996
      %v5252 = vunpack.c.l.bf16 %v4997
      %v5253 = vunpack.c.h.bf16 %v4997
      %v5254 = vlaneseq
      %v5255 = vshrl.u32 %v5254, 7
      %v5256 = vsub.s32 1, %v5255
      %v5257 = vrot.slane %v4525, %v5256
      %v5258 = vlaneseq
      %v5259 = vshrl.u32 %v5258, 7
      %v5260 = vsub.s32 5, %v5259
      %v5261 = vrot.slane %v4525, %v5260
      %v5262 = vlaneseq
      %v5263 = vshrl.u32 %v5262, 7
      %v5264 = vsub.s32 1, %v5263
      %v5265 = vrot.slane %v4526, %v5264
      %v5266 = vlaneseq
      %v5267 = vshrl.u32 %v5266, 7
      %v5268 = vsub.s32 5, %v5267
      %v5269 = vrot.slane %v4526, %v5268
      %v5274 = vlaneseq
      %v5275 = vshrl.u32 %v5274, 7
      %v5276 = vsub.s32 1, %v5275
      %v5277 = vrot.slane %v5257, %v5276
      %v5278 = vlaneseq
      %v5279 = vshrl.u32 %v5278, 7
      %v5280 = vsub.s32 1, %v5279
      %v5281 = vrot.slane %v5261, %v5280
      %v5282 = vlaneseq
      %v5283 = vshrl.u32 %v5282, 7
      %v5284 = vsub.s32 1, %v5283
      %v5285 = vrot.slane %v5265, %v5284
      %v5286 = vlaneseq
      %v5287 = vshrl.u32 %v5286, 7
      %v5288 = vsub.s32 1, %v5287
      %v5289 = vrot.slane %v5269, %v5288
      %5290 = vmatprep.subr.mxu0 %v4999
      %5291 = vmatpush1.msra.mxu0 %v4998
      %5292 = vmatprep.subr.mxu0 %v5003
      %5293 = vmatpush1.msra.mxu0 %v5002
      %5294 = vmatprep.subr.mxu0 %v5007
      %5295 = vmatpush1.msra.mxu0 %v5006
      %5296 = vmatprep.subr.mxu0 %v5011
      %5297 = vmatpush1.msra.mxu0 %v5010
      %5298 = vmatprep.subr.mxu0 %v5015
      %5299 = vmatpush1.msra.mxu0 %v5014
      %5300 = vmatprep.subr.mxu0 %v5019
      %5301 = vmatpush1.msra.mxu0 %v5018
      %5302 = vmatprep.subr.mxu0 %v5023
      %5303 = vmatpush1.msra.mxu0 %v5022
      %5304 = vmatprep.subr.mxu0 %v5027
      %5305 = vmatpush1.msra.mxu0 %v5026
      %5306 = vmatprep.subr.mxu0 %v5031
      %5307 = vmatpush1.msra.mxu0 %v5030
      %5308 = vmatprep.subr.mxu0 %v5035
      %5309 = vmatpush1.msra.mxu0 %v5034
      %5310 = vmatprep.subr.mxu0 %v5039
      %5311 = vmatpush1.msra.mxu0 %v5038
      %5312 = vmatprep.subr.mxu0 %v5043
      %5313 = vmatpush1.msra.mxu0 %v5042
      %5314 = vmatprep.subr.mxu0 %v5047
      %5315 = vmatpush1.msra.mxu0 %v5046
      %5316 = vmatprep.subr.mxu0 %v5051
      %5317 = vmatpush1.msra.mxu0 %v5050
      %5318 = vmatprep.subr.mxu0 %v5055
      %5319 = vmatpush1.msra.mxu0 %v5054
      %5320 = vmatprep.subr.mxu0 %v5059
      %5321 = vmatpush1.msra.mxu0 %v5058
      %5322 = vmatprep.subr.mxu0 %v5063
      %5323 = vmatpush1.msra.mxu0 %v5062
      %5324 = vmatprep.subr.mxu0 %v5067
      %5325 = vmatpush1.msra.mxu0 %v5066
      %5326 = vmatprep.subr.mxu0 %v5071
      %5327 = vmatpush1.msra.mxu0 %v5070
      %5328 = vmatprep.subr.mxu0 %v5075
      %5329 = vmatpush1.msra.mxu0 %v5074
      %5330 = vmatprep.subr.mxu0 %v5079
      %5331 = vmatpush1.msra.mxu0 %v5078
      %5332 = vmatprep.subr.mxu0 %v5083
      %5333 = vmatpush1.msra.mxu0 %v5082
      %5334 = vmatprep.subr.mxu0 %v5087
      %5335 = vmatpush1.msra.mxu0 %v5086
      %5336 = vmatprep.subr.mxu0 %v5091
      %5337 = vmatpush1.msra.mxu0 %v5090
      %5338 = vmatprep.subr.mxu0 %v5095
      %5339 = vmatpush1.msra.mxu0 %v5094
      %5340 = vmatprep.subr.mxu0 %v5099
      %5341 = vmatpush1.msra.mxu0 %v5098
      %5342 = vmatprep.subr.mxu0 %v5103
      %5343 = vmatpush1.msra.mxu0 %v5102
      %5344 = vmatprep.subr.mxu0 %v5107
      %5345 = vmatpush1.msra.mxu0 %v5106
      %5346 = vmatprep.subr.mxu0 %v5111
      %5347 = vmatpush1.msra.mxu0 %v5110
      %5348 = vmatprep.subr.mxu0 %v5115
      %5349 = vmatpush1.msra.mxu0 %v5114
      %5350 = vmatprep.subr.mxu0 %v5119
      %5351 = vmatpush1.msra.mxu0 %v5118
      %5352 = vmatprep.subr.mxu0 %v5123
      %5353 = vmatpush1.msra.mxu0 %v5122
      %5354 = vmatprep.mubr.f32.mxu0 %v4866
      %5355 = vmatmul.mubr.f32.gmra.mrb[0].mxu0 %v4865
      %v5356 = vpop.f32.mrb[0].mxu0
      %v5357 = vadd.f32 %v5277, %v5356
      %v5358 = vpop.f32.mrb[0].mxu0
      %v5359 = vadd.f32 %v5281, %v5358
      %5360 = vdwg.mxu0
      %5361 = vmatprep.subr.mxu0 %v5127
      %5362 = vmatpush1.msra.mxu0 %v5126
      %5363 = vmatprep.subr.mxu0 %v5131
      %5364 = vmatpush1.msra.mxu0 %v5130
      %5365 = vmatprep.subr.mxu0 %v5135
      %5366 = vmatpush1.msra.mxu0 %v5134
      %5367 = vmatprep.subr.mxu0 %v5139
      %5368 = vmatpush1.msra.mxu0 %v5138
      %5369 = vmatprep.subr.mxu0 %v5143
      %5370 = vmatpush1.msra.mxu0 %v5142
      %5371 = vmatprep.subr.mxu0 %v5147
      %5372 = vmatpush1.msra.mxu0 %v5146
      %5373 = vmatprep.subr.mxu0 %v5151
      %5374 = vmatpush1.msra.mxu0 %v5150
      %5375 = vmatprep.subr.mxu0 %v5155
      %5376 = vmatpush1.msra.mxu0 %v5154
      %5377 = vmatprep.subr.mxu0 %v5159
      %5378 = vmatpush1.msra.mxu0 %v5158
      %5379 = vmatprep.subr.mxu0 %v5163
      %5380 = vmatpush1.msra.mxu0 %v5162
      %5381 = vmatprep.subr.mxu0 %v5167
      %5382 = vmatpush1.msra.mxu0 %v5166
      %5383 = vmatprep.subr.mxu0 %v5171
      %5384 = vmatpush1.msra.mxu0 %v5170
      %5385 = vmatprep.subr.mxu0 %v5175
      %5386 = vmatpush1.msra.mxu0 %v5174
      %5387 = vmatprep.subr.mxu0 %v5179
      %5388 = vmatpush1.msra.mxu0 %v5178
      %5389 = vmatprep.subr.mxu0 %v5183
      %5390 = vmatpush1.msra.mxu0 %v5182
      %5391 = vmatprep.subr.mxu0 %v5187
      %5392 = vmatpush1.msra.mxu0 %v5186
      %5393 = vmatprep.subr.mxu0 %v5191
      %5394 = vmatpush1.msra.mxu0 %v5190
      %5395 = vmatprep.subr.mxu0 %v5195
      %5396 = vmatpush1.msra.mxu0 %v5194
      %5397 = vmatprep.subr.mxu0 %v5199
      %5398 = vmatpush1.msra.mxu0 %v5198
      %5399 = vmatprep.subr.mxu0 %v5203
      %5400 = vmatpush1.msra.mxu0 %v5202
      %5401 = vmatprep.subr.mxu0 %v5207
      %5402 = vmatpush1.msra.mxu0 %v5206
      %5403 = vmatprep.subr.mxu0 %v5211
      %5404 = vmatpush1.msra.mxu0 %v5210
      %5405 = vmatprep.subr.mxu0 %v5215
      %5406 = vmatpush1.msra.mxu0 %v5214
      %5407 = vmatprep.subr.mxu0 %v5219
      %5408 = vmatpush1.msra.mxu0 %v5218
      %5409 = vmatprep.subr.mxu0 %v5223
      %5410 = vmatpush1.msra.mxu0 %v5222
      %5411 = vmatprep.subr.mxu0 %v5227
      %5412 = vmatpush1.msra.mxu0 %v5226
      %5413 = vmatprep.subr.mxu0 %v5231
      %5414 = vmatpush1.msra.mxu0 %v5230
      %5415 = vmatprep.subr.mxu0 %v5235
      %5416 = vmatpush1.msra.mxu0 %v5234
      %5417 = vmatprep.subr.mxu0 %v5239
      %5418 = vmatpush1.msra.mxu0 %v5238
      %5419 = vmatprep.subr.mxu0 %v5243
      %5420 = vmatpush1.msra.mxu0 %v5242
      %5421 = vmatprep.subr.mxu0 %v5247
      %5422 = vmatpush1.msra.mxu0 %v5246
      %5423 = vmatprep.subr.mxu0 %v5251
      %5424 = vmatpush1.msra.mxu0 %v5250
      %5425 = vmatprep.mubr.f32.mxu0 %v4868
      %5426 = vmatmul.mubr.f32.gmra.mrb[0].mxu0 %v4867
      %v5427 = vpop.f32.mrb[0].mxu0
      %v5428 = vadd.f32 %v5357, %v5427
      %v5429 = vpop.f32.mrb[0].mxu0
      %v5430 = vadd.f32 %v5359, %v5429
      %5431 = vdwg.mxu0
      %5432 = vmatprep.subr.mxu0 %v5001
      %5433 = vmatpush1.msra.mxu0 %v5000
      %5434 = vmatprep.subr.mxu0 %v5005
      %5435 = vmatpush1.msra.mxu0 %v5004
      %5436 = vmatprep.subr.mxu0 %v5009
      %5437 = vmatpush1.msra.mxu0 %v5008
      %5438 = vmatprep.subr.mxu0 %v5013
      %5439 = vmatpush1.msra.mxu0 %v5012
      %5440 = vmatprep.subr.mxu0 %v5017
      %5441 = vmatpush1.msra.mxu0 %v5016
      %5442 = vmatprep.subr.mxu0 %v5021
      %5443 = vmatpush1.msra.mxu0 %v5020
      %5444 = vmatprep.subr.mxu0 %v5025
      %5445 = vmatpush1.msra.mxu0 %v5024
      %5446 = vmatprep.subr.mxu0 %v5029
      %5447 = vmatpush1.msra.mxu0 %v5028
      %5448 = vmatprep.subr.mxu0 %v5033
      %5449 = vmatpush1.msra.mxu0 %v5032
      %5450 = vmatprep.subr.mxu0 %v5037
      %5451 = vmatpush1.msra.mxu0 %v5036
      %5452 = vmatprep.subr.mxu0 %v5041
      %5453 = vmatpush1.msra.mxu0 %v5040
      %5454 = vmatprep.subr.mxu0 %v5045
      %5455 = vmatpush1.msra.mxu0 %v5044
      %5456 = vmatprep.subr.mxu0 %v5049
      %5457 = vmatpush1.msra.mxu0 %v5048
      %5458 = vmatprep.subr.mxu0 %v5053
      %5459 = vmatpush1.msra.mxu0 %v5052
      %5460 = vmatprep.subr.mxu0 %v5057
      %5461 = vmatpush1.msra.mxu0 %v5056
      %5462 = vmatprep.subr.mxu0 %v5061
      %5463 = vmatpush1.msra.mxu0 %v5060
      %5464 = vmatprep.subr.mxu0 %v5065
      %5465 = vmatpush1.msra.mxu0 %v5064
      %5466 = vmatprep.subr.mxu0 %v5069
      %5467 = vmatpush1.msra.mxu0 %v5068
      %5468 = vmatprep.subr.mxu0 %v5073
      %5469 = vmatpush1.msra.mxu0 %v5072
      %5470 = vmatprep.subr.mxu0 %v5077
      %5471 = vmatpush1.msra.mxu0 %v5076
      %5472 = vmatprep.subr.mxu0 %v5081
      %5473 = vmatpush1.msra.mxu0 %v5080
      %5474 = vmatprep.subr.mxu0 %v5085
      %5475 = vmatpush1.msra.mxu0 %v5084
      %5476 = vmatprep.subr.mxu0 %v5089
      %5477 = vmatpush1.msra.mxu0 %v5088
      %5478 = vmatprep.subr.mxu0 %v5093
      %5479 = vmatpush1.msra.mxu0 %v5092
      %5480 = vmatprep.subr.mxu0 %v5097
      %5481 = vmatpush1.msra.mxu0 %v5096
      %5482 = vmatprep.subr.mxu0 %v5101
      %5483 = vmatpush1.msra.mxu0 %v5100
      %5484 = vmatprep.subr.mxu0 %v5105
      %5485 = vmatpush1.msra.mxu0 %v5104
      %5486 = vmatprep.subr.mxu0 %v5109
      %5487 = vmatpush1.msra.mxu0 %v5108
      %5488 = vmatprep.subr.mxu0 %v5113
      %5489 = vmatpush1.msra.mxu0 %v5112
      %5490 = vmatprep.subr.mxu0 %v5117
      %5491 = vmatpush1.msra.mxu0 %v5116
      %5492 = vmatprep.subr.mxu0 %v5121
      %5493 = vmatpush1.msra.mxu0 %v5120
      %5494 = vmatprep.subr.mxu0 %v5125
      %5495 = vmatpush1.msra.mxu0 %v5124
      %5496 = vmatprep.mubr.f32.mxu0 %v4866
      %5497 = vmatmul.mubr.f32.gmra.mrb[0].mxu0 %v4865
      %v5498 = vpop.f32.mrb[0].mxu0
      %v5499 = vadd.f32 %v5285, %v5498
      %v5500 = vpop.f32.mrb[0].mxu0
      %v5501 = vadd.f32 %v5289, %v5500
      %5502 = vdwg.mxu0
      %5503 = vmatprep.subr.mxu0 %v5129
      %5504 = vmatpush1.msra.mxu0 %v5128
      %5505 = vmatprep.subr.mxu0 %v5133
      %5506 = vmatpush1.msra.mxu0 %v5132
      %5507 = vmatprep.subr.mxu0 %v5137
      %5508 = vmatpush1.msra.mxu0 %v5136
      %5509 = vmatprep.subr.mxu0 %v5141
      %5510 = vmatpush1.msra.mxu0 %v5140
      %5511 = vmatprep.subr.mxu0 %v5145
      %5512 = vmatpush1.msra.mxu0 %v5144
      %5513 = vmatprep.subr.mxu0 %v5149
      %5514 = vmatpush1.msra.mxu0 %v5148
      %5515 = vmatprep.subr.mxu0 %v5153
      %5516 = vmatpush1.msra.mxu0 %v5152
      %5517 = vmatprep.subr.mxu0 %v5157
      %5518 = vmatpush1.msra.mxu0 %v5156
      %5519 = vmatprep.subr.mxu0 %v5161
      %5520 = vmatpush1.msra.mxu0 %v5160
      %5521 = vmatprep.subr.mxu0 %v5165
      %5522 = vmatpush1.msra.mxu0 %v5164
      %5523 = vmatprep.subr.mxu0 %v5169
      %5524 = vmatpush1.msra.mxu0 %v5168
      %5525 = vmatprep.subr.mxu0 %v5173
      %5526 = vmatpush1.msra.mxu0 %v5172
      %5527 = vmatprep.subr.mxu0 %v5177
      %5528 = vmatpush1.msra.mxu0 %v5176
      %5529 = vmatprep.subr.mxu0 %v5181
      %5530 = vmatpush1.msra.mxu0 %v5180
      %5531 = vmatprep.subr.mxu0 %v5185
      %5532 = vmatpush1.msra.mxu0 %v5184
      %5533 = vmatprep.subr.mxu0 %v5189
      %5534 = vmatpush1.msra.mxu0 %v5188
      %5535 = vmatprep.subr.mxu0 %v5193
      %5536 = vmatpush1.msra.mxu0 %v5192
      %5537 = vmatprep.subr.mxu0 %v5197
      %5538 = vmatpush1.msra.mxu0 %v5196
      %5539 = vmatprep.subr.mxu0 %v5201
      %5540 = vmatpush1.msra.mxu0 %v5200
      %5541 = vmatprep.subr.mxu0 %v5205
      %5542 = vmatpush1.msra.mxu0 %v5204
      %5543 = vmatprep.subr.mxu0 %v5209
      %5544 = vmatpush1.msra.mxu0 %v5208
      %5545 = vmatprep.subr.mxu0 %v5213
      %5546 = vmatpush1.msra.mxu0 %v5212
      %5547 = vmatprep.subr.mxu0 %v5217
      %5548 = vmatpush1.msra.mxu0 %v5216
      %5549 = vmatprep.subr.mxu0 %v5221
      %5550 = vmatpush1.msra.mxu0 %v5220
      %5551 = vmatprep.subr.mxu0 %v5225
      %5552 = vmatpush1.msra.mxu0 %v5224
      %5553 = vmatprep.subr.mxu0 %v5229
      %5554 = vmatpush1.msra.mxu0 %v5228
      %5555 = vmatprep.subr.mxu0 %v5233
      %5556 = vmatpush1.msra.mxu0 %v5232
      %5557 = vmatprep.subr.mxu0 %v5237
      %5558 = vmatpush1.msra.mxu0 %v5236
      %5559 = vmatprep.subr.mxu0 %v5241
      %5560 = vmatpush1.msra.mxu0 %v5240
      %5561 = vmatprep.subr.mxu0 %v5245
      %5562 = vmatpush1.msra.mxu0 %v5244
      %5563 = vmatprep.subr.mxu0 %v5249
      %5564 = vmatpush1.msra.mxu0 %v5248
      %5565 = vmatprep.subr.mxu0 %v5253
      %5566 = vmatpush1.msra.mxu0 %v5252
      %5567 = vmatprep.mubr.f32.mxu0 %v4868
      %5568 = vmatmul.mubr.f32.gmra.mrb[0].mxu0 %v4867
      %v5569 = vpop.f32.mrb[0].mxu0
      %v5570 = vadd.f32 %v5499, %v5569
      %v5571 = vpop.f32.mrb[0].mxu0
      %v5572 = vadd.f32 %v5501, %v5571
      %5573 = vdwg.mxu0
      %v5574 = vmax.f32 %v5428, 0.0
      %v5575 = vmax.f32 %v5430, 0.0
      %v5576 = vmax.f32 %v5570, 0.0
      %v5577 = vmax.f32 %v5572, 0.0
      %s5578 = scalar_lea.vmem %s363, 2048
      %v5579 = vld [vmem:[%s5578] sm:$0xff]
      %v5580 = vld [vmem:[%s5578 + $0x8] sm:$0xff]
      %v5581 = vld [vmem:[%s5578 + $0x10] sm:$0xff]
      %v5582 = vld [vmem:[%s5578 + $0x18] sm:$0xff]
      %v5583 = vld [vmem:[%s5578 + $0x20] sm:$0xff]
      %v5584 = vld [vmem:[%s5578 + $0x28] sm:$0xff]
      %v5585 = vld [vmem:[%s5578 + $0x30] sm:$0xff]
      %v5586 = vld [vmem:[%s5578 + $0x38] sm:$0xff]
      %v5587 = vld [vmem:[%s5578 + $0x40] sm:$0xff]
      %v5588 = vld [vmem:[%s5578 + $0x48] sm:$0xff]
      %v5589 = vld [vmem:[%s5578 + $0x50] sm:$0xff]
      %v5590 = vld [vmem:[%s5578 + $0x58] sm:$0xff]
      %v5591 = vld [vmem:[%s5578 + $0x60] sm:$0xff]
      %v5592 = vld [vmem:[%s5578 + $0x68] sm:$0xff]
      %v5593 = vld [vmem:[%s5578 + $0x70] sm:$0xff]
      %v5594 = vld [vmem:[%s5578 + $0x78] sm:$0xff]
      %v5595 = vld [vmem:[%s5578 + $0x80] sm:$0xff]
      %v5596 = vld [vmem:[%s5578 + $0x88] sm:$0xff]
      %v5597 = vld [vmem:[%s5578 + $0x90] sm:$0xff]
      %v5598 = vld [vmem:[%s5578 + $0x98] sm:$0xff]
      %v5599 = vld [vmem:[%s5578 + $0xa0] sm:$0xff]
      %v5600 = vld [vmem:[%s5578 + $0xa8] sm:$0xff]
      %v5601 = vld [vmem:[%s5578 + $0xb0] sm:$0xff]
      %v5602 = vld [vmem:[%s5578 + $0xb8] sm:$0xff]
      %v5603 = vld [vmem:[%s5578 + $0xc0] sm:$0xff]
      %v5604 = vld [vmem:[%s5578 + $0xc8] sm:$0xff]
      %v5605 = vld [vmem:[%s5578 + $0xd0] sm:$0xff]
      %v5606 = vld [vmem:[%s5578 + $0xd8] sm:$0xff]
      %v5607 = vld [vmem:[%s5578 + $0xe0] sm:$0xff]
      %v5608 = vld [vmem:[%s5578 + $0xe8] sm:$0xff]
      %v5609 = vld [vmem:[%s5578 + $0xf0] sm:$0xff]
      %v5610 = vld [vmem:[%s5578 + $0xf8] sm:$0xff]
      %v5611 = vld [vmem:[%s5578 + $0x100] sm:$0xff]
      %v5612 = vld [vmem:[%s5578 + $0x108] sm:$0xff]
      %v5613 = vld [vmem:[%s5578 + $0x110] sm:$0xff]
      %v5614 = vld [vmem:[%s5578 + $0x118] sm:$0xff]
      %v5615 = vld [vmem:[%s5578 + $0x120] sm:$0xff]
      %v5616 = vld [vmem:[%s5578 + $0x128] sm:$0xff]
      %v5617 = vld [vmem:[%s5578 + $0x130] sm:$0xff]
      %v5618 = vld [vmem:[%s5578 + $0x138] sm:$0xff]
      %v5619 = vld [vmem:[%s5578 + $0x140] sm:$0xff]
      %v5620 = vld [vmem:[%s5578 + $0x148] sm:$0xff]
      %v5621 = vld [vmem:[%s5578 + $0x150] sm:$0xff]
      %v5622 = vld [vmem:[%s5578 + $0x158] sm:$0xff]
      %v5623 = vld [vmem:[%s5578 + $0x160] sm:$0xff]
      %v5624 = vld [vmem:[%s5578 + $0x168] sm:$0xff]
      %v5625 = vld [vmem:[%s5578 + $0x170] sm:$0xff]
      %v5626 = vld [vmem:[%s5578 + $0x178] sm:$0xff]
      %v5627 = vld [vmem:[%s5578 + $0x180] sm:$0xff]
      %v5628 = vld [vmem:[%s5578 + $0x188] sm:$0xff]
      %v5629 = vld [vmem:[%s5578 + $0x190] sm:$0xff]
      %v5630 = vld [vmem:[%s5578 + $0x198] sm:$0xff]
      %v5631 = vld [vmem:[%s5578 + $0x1a0] sm:$0xff]
      %v5632 = vld [vmem:[%s5578 + $0x1a8] sm:$0xff]
      %v5633 = vld [vmem:[%s5578 + $0x1b0] sm:$0xff]
      %v5634 = vld [vmem:[%s5578 + $0x1b8] sm:$0xff]
      %v5635 = vld [vmem:[%s5578 + $0x1c0] sm:$0xff]
      %v5636 = vld [vmem:[%s5578 + $0x1c8] sm:$0xff]
      %v5637 = vld [vmem:[%s5578 + $0x1d0] sm:$0xff]
      %v5638 = vld [vmem:[%s5578 + $0x1d8] sm:$0xff]
      %v5639 = vld [vmem:[%s5578 + $0x1e0] sm:$0xff]
      %v5640 = vld [vmem:[%s5578 + $0x1e8] sm:$0xff]
      %v5641 = vld [vmem:[%s5578 + $0x1f0] sm:$0xff]
      %v5642 = vld [vmem:[%s5578 + $0x1f8] sm:$0xff]
      %v5643 = vld [vmem:[%s5578 + $0x200] sm:$0xff]
      %v5644 = vld [vmem:[%s5578 + $0x208] sm:$0xff]
      %v5645 = vld [vmem:[%s5578 + $0x210] sm:$0xff]
      %v5646 = vld [vmem:[%s5578 + $0x218] sm:$0xff]
      %v5647 = vld [vmem:[%s5578 + $0x220] sm:$0xff]
      %v5648 = vld [vmem:[%s5578 + $0x228] sm:$0xff]
      %v5649 = vld [vmem:[%s5578 + $0x230] sm:$0xff]
      %v5650 = vld [vmem:[%s5578 + $0x238] sm:$0xff]
      %v5651 = vld [vmem:[%s5578 + $0x240] sm:$0xff]
      %v5652 = vld [vmem:[%s5578 + $0x248] sm:$0xff]
      %v5653 = vld [vmem:[%s5578 + $0x250] sm:$0xff]
      %v5654 = vld [vmem:[%s5578 + $0x258] sm:$0xff]
      %v5655 = vld [vmem:[%s5578 + $0x260] sm:$0xff]
      %v5656 = vld [vmem:[%s5578 + $0x268] sm:$0xff]
      %v5657 = vld [vmem:[%s5578 + $0x270] sm:$0xff]
      %v5658 = vld [vmem:[%s5578 + $0x278] sm:$0xff]
      %v5659 = vld [vmem:[%s5578 + $0x280] sm:$0xff]
      %v5660 = vld [vmem:[%s5578 + $0x288] sm:$0xff]
      %v5661 = vld [vmem:[%s5578 + $0x290] sm:$0xff]
      %v5662 = vld [vmem:[%s5578 + $0x298] sm:$0xff]
      %v5663 = vld [vmem:[%s5578 + $0x2a0] sm:$0xff]
      %v5664 = vld [vmem:[%s5578 + $0x2a8] sm:$0xff]
      %v5665 = vld [vmem:[%s5578 + $0x2b0] sm:$0xff]
      %v5666 = vld [vmem:[%s5578 + $0x2b8] sm:$0xff]
      %v5667 = vld [vmem:[%s5578 + $0x2c0] sm:$0xff]
      %v5668 = vld [vmem:[%s5578 + $0x2c8] sm:$0xff]
      %v5669 = vld [vmem:[%s5578 + $0x2d0] sm:$0xff]
      %v5670 = vld [vmem:[%s5578 + $0x2d8] sm:$0xff]
      %v5671 = vld [vmem:[%s5578 + $0x2e0] sm:$0xff]
      %v5672 = vld [vmem:[%s5578 + $0x2e8] sm:$0xff]
      %v5673 = vld [vmem:[%s5578 + $0x2f0] sm:$0xff]
      %v5674 = vld [vmem:[%s5578 + $0x2f8] sm:$0xff]
      %v5675 = vld [vmem:[%s5578 + $0x300] sm:$0xff]
      %v5676 = vld [vmem:[%s5578 + $0x308] sm:$0xff]
      %v5677 = vld [vmem:[%s5578 + $0x310] sm:$0xff]
      %v5678 = vld [vmem:[%s5578 + $0x318] sm:$0xff]
      %v5679 = vld [vmem:[%s5578 + $0x320] sm:$0xff]
      %v5680 = vld [vmem:[%s5578 + $0x328] sm:$0xff]
      %v5681 = vld [vmem:[%s5578 + $0x330] sm:$0xff]
      %v5682 = vld [vmem:[%s5578 + $0x338] sm:$0xff]
      %v5683 = vld [vmem:[%s5578 + $0x340] sm:$0xff]
      %v5684 = vld [vmem:[%s5578 + $0x348] sm:$0xff]
      %v5685 = vld [vmem:[%s5578 + $0x350] sm:$0xff]
      %v5686 = vld [vmem:[%s5578 + $0x358] sm:$0xff]
      %v5687 = vld [vmem:[%s5578 + $0x360] sm:$0xff]
      %v5688 = vld [vmem:[%s5578 + $0x368] sm:$0xff]
      %v5689 = vld [vmem:[%s5578 + $0x370] sm:$0xff]
      %v5690 = vld [vmem:[%s5578 + $0x378] sm:$0xff]
      %v5691 = vld [vmem:[%s5578 + $0x380] sm:$0xff]
      %v5692 = vld [vmem:[%s5578 + $0x388] sm:$0xff]
      %v5693 = vld [vmem:[%s5578 + $0x390] sm:$0xff]
      %v5694 = vld [vmem:[%s5578 + $0x398] sm:$0xff]
      %v5695 = vld [vmem:[%s5578 + $0x3a0] sm:$0xff]
      %v5696 = vld [vmem:[%s5578 + $0x3a8] sm:$0xff]
      %v5697 = vld [vmem:[%s5578 + $0x3b0] sm:$0xff]
      %v5698 = vld [vmem:[%s5578 + $0x3b8] sm:$0xff]
      %v5699 = vld [vmem:[%s5578 + $0x3c0] sm:$0xff]
      %v5700 = vld [vmem:[%s5578 + $0x3c8] sm:$0xff]
      %v5701 = vld [vmem:[%s5578 + $0x3d0] sm:$0xff]
      %v5702 = vld [vmem:[%s5578 + $0x3d8] sm:$0xff]
      %v5703 = vld [vmem:[%s5578 + $0x3e0] sm:$0xff]
      %v5704 = vld [vmem:[%s5578 + $0x3e8] sm:$0xff]
      %v5705 = vld [vmem:[%s5578 + $0x3f0] sm:$0xff]
      %v5706 = vld [vmem:[%s5578 + $0x3f8] sm:$0xff]
      %v5707 = vunpack.c.l.bf16 %v5579
      %v5708 = vunpack.c.h.bf16 %v5579
      %v5709 = vunpack.c.l.bf16 %v5580
      %v5710 = vunpack.c.h.bf16 %v5580
      %v5711 = vunpack.c.l.bf16 %v5581
      %v5712 = vunpack.c.h.bf16 %v5581
      %v5713 = vunpack.c.l.bf16 %v5582
      %v5714 = vunpack.c.h.bf16 %v5582
      %v5715 = vunpack.c.l.bf16 %v5583
      %v5716 = vunpack.c.h.bf16 %v5583
      %v5717 = vunpack.c.l.bf16 %v5584
      %v5718 = vunpack.c.h.bf16 %v5584
      %v5719 = vunpack.c.l.bf16 %v5585
      %v5720 = vunpack.c.h.bf16 %v5585
      %v5721 = vunpack.c.l.bf16 %v5586
      %v5722 = vunpack.c.h.bf16 %v5586
      %v5723 = vunpack.c.l.bf16 %v5587
      %v5724 = vunpack.c.h.bf16 %v5587
      %v5725 = vunpack.c.l.bf16 %v5588
      %v5726 = vunpack.c.h.bf16 %v5588
      %v5727 = vunpack.c.l.bf16 %v5589
      %v5728 = vunpack.c.h.bf16 %v5589
      %v5729 = vunpack.c.l.bf16 %v5590
      %v5730 = vunpack.c.h.bf16 %v5590
      %v5731 = vunpack.c.l.bf16 %v5591
      %v5732 = vunpack.c.h.bf16 %v5591
      %v5733 = vunpack.c.l.bf16 %v5592
      %v5734 = vunpack.c.h.bf16 %v5592
      %v5735 = vunpack.c.l.bf16 %v5593
      %v5736 = vunpack.c.h.bf16 %v5593
      %v5737 = vunpack.c.l.bf16 %v5594
      %v5738 = vunpack.c.h.bf16 %v5594
      %v5739 = vunpack.c.l.bf16 %v5595
      %v5740 = vunpack.c.h.bf16 %v5595
      %v5741 = vunpack.c.l.bf16 %v5596
      %v5742 = vunpack.c.h.bf16 %v5596
      %v5743 = vunpack.c.l.bf16 %v5597
      %v5744 = vunpack.c.h.bf16 %v5597
      %v5745 = vunpack.c.l.bf16 %v5598
      %v5746 = vunpack.c.h.bf16 %v5598
      %v5747 = vunpack.c.l.bf16 %v5599
      %v5748 = vunpack.c.h.bf16 %v5599
      %v5749 = vunpack.c.l.bf16 %v5600
      %v5750 = vunpack.c.h.bf16 %v5600
      %v5751 = vunpack.c.l.bf16 %v5601
      %v5752 = vunpack.c.h.bf16 %v5601
      %v5753 = vunpack.c.l.bf16 %v5602
      %v5754 = vunpack.c.h.bf16 %v5602
      %v5755 = vunpack.c.l.bf16 %v5603
      %v5756 = vunpack.c.h.bf16 %v5603
      %v5757 = vunpack.c.l.bf16 %v5604
      %v5758 = vunpack.c.h.bf16 %v5604
      %v5759 = vunpack.c.l.bf16 %v5605
      %v5760 = vunpack.c.h.bf16 %v5605
      %v5761 = vunpack.c.l.bf16 %v5606
      %v5762 = vunpack.c.h.bf16 %v5606
      %v5763 = vunpack.c.l.bf16 %v5607
      %v5764 = vunpack.c.h.bf16 %v5607
      %v5765 = vunpack.c.l.bf16 %v5608
      %v5766 = vunpack.c.h.bf16 %v5608
      %v5767 = vunpack.c.l.bf16 %v5609
      %v5768 = vunpack.c.h.bf16 %v5609
      %v5769 = vunpack.c.l.bf16 %v5610
      %v5770 = vunpack.c.h.bf16 %v5610
      %v5771 = vunpack.c.l.bf16 %v5611
      %v5772 = vunpack.c.h.bf16 %v5611
      %v5773 = vunpack.c.l.bf16 %v5612
      %v5774 = vunpack.c.h.bf16 %v5612
      %v5775 = vunpack.c.l.bf16 %v5613
      %v5776 = vunpack.c.h.bf16 %v5613
      %v5777 = vunpack.c.l.bf16 %v5614
      %v5778 = vunpack.c.h.bf16 %v5614
      %v5779 = vunpack.c.l.bf16 %v5615
      %v5780 = vunpack.c.h.bf16 %v5615
      %v5781 = vunpack.c.l.bf16 %v5616
      %v5782 = vunpack.c.h.bf16 %v5616
      %v5783 = vunpack.c.l.bf16 %v5617
      %v5784 = vunpack.c.h.bf16 %v5617
      %v5785 = vunpack.c.l.bf16 %v5618
      %v5786 = vunpack.c.h.bf16 %v5618
      %v5787 = vunpack.c.l.bf16 %v5619
      %v5788 = vunpack.c.h.bf16 %v5619
      %v5789 = vunpack.c.l.bf16 %v5620
      %v5790 = vunpack.c.h.bf16 %v5620
      %v5791 = vunpack.c.l.bf16 %v5621
      %v5792 = vunpack.c.h.bf16 %v5621
      %v5793 = vunpack.c.l.bf16 %v5622
      %v5794 = vunpack.c.h.bf16 %v5622
      %v5795 = vunpack.c.l.bf16 %v5623
      %v5796 = vunpack.c.h.bf16 %v5623
      %v5797 = vunpack.c.l.bf16 %v5624
      %v5798 = vunpack.c.h.bf16 %v5624
      %v5799 = vunpack.c.l.bf16 %v5625
      %v5800 = vunpack.c.h.bf16 %v5625
      %v5801 = vunpack.c.l.bf16 %v5626
      %v5802 = vunpack.c.h.bf16 %v5626
      %v5803 = vunpack.c.l.bf16 %v5627
      %v5804 = vunpack.c.h.bf16 %v5627
      %v5805 = vunpack.c.l.bf16 %v5628
      %v5806 = vunpack.c.h.bf16 %v5628
      %v5807 = vunpack.c.l.bf16 %v5629
      %v5808 = vunpack.c.h.bf16 %v5629
      %v5809 = vunpack.c.l.bf16 %v5630
      %v5810 = vunpack.c.h.bf16 %v5630
      %v5811 = vunpack.c.l.bf16 %v5631
      %v5812 = vunpack.c.h.bf16 %v5631
      %v5813 = vunpack.c.l.bf16 %v5632
      %v5814 = vunpack.c.h.bf16 %v5632
      %v5815 = vunpack.c.l.bf16 %v5633
      %v5816 = vunpack.c.h.bf16 %v5633
      %v5817 = vunpack.c.l.bf16 %v5634
      %v5818 = vunpack.c.h.bf16 %v5634
      %v5819 = vunpack.c.l.bf16 %v5635
      %v5820 = vunpack.c.h.bf16 %v5635
      %v5821 = vunpack.c.l.bf16 %v5636
      %v5822 = vunpack.c.h.bf16 %v5636
      %v5823 = vunpack.c.l.bf16 %v5637
      %v5824 = vunpack.c.h.bf16 %v5637
      %v5825 = vunpack.c.l.bf16 %v5638
      %v5826 = vunpack.c.h.bf16 %v5638
      %v5827 = vunpack.c.l.bf16 %v5639
      %v5828 = vunpack.c.h.bf16 %v5639
      %v5829 = vunpack.c.l.bf16 %v5640
      %v5830 = vunpack.c.h.bf16 %v5640
      %v5831 = vunpack.c.l.bf16 %v5641
      %v5832 = vunpack.c.h.bf16 %v5641
      %v5833 = vunpack.c.l.bf16 %v5642
      %v5834 = vunpack.c.h.bf16 %v5642
      %v5835 = vunpack.c.l.bf16 %v5643
      %v5836 = vunpack.c.h.bf16 %v5643
      %v5837 = vunpack.c.l.bf16 %v5644
      %v5838 = vunpack.c.h.bf16 %v5644
      %v5839 = vunpack.c.l.bf16 %v5645
      %v5840 = vunpack.c.h.bf16 %v5645
      %v5841 = vunpack.c.l.bf16 %v5646
      %v5842 = vunpack.c.h.bf16 %v5646
      %v5843 = vunpack.c.l.bf16 %v5647
      %v5844 = vunpack.c.h.bf16 %v5647
      %v5845 = vunpack.c.l.bf16 %v5648
      %v5846 = vunpack.c.h.bf16 %v5648
      %v5847 = vunpack.c.l.bf16 %v5649
      %v5848 = vunpack.c.h.bf16 %v5649
      %v5849 = vunpack.c.l.bf16 %v5650
      %v5850 = vunpack.c.h.bf16 %v5650
      %v5851 = vunpack.c.l.bf16 %v5651
      %v5852 = vunpack.c.h.bf16 %v5651
      %v5853 = vunpack.c.l.bf16 %v5652
      %v5854 = vunpack.c.h.bf16 %v5652
      %v5855 = vunpack.c.l.bf16 %v5653
      %v5856 = vunpack.c.h.bf16 %v5653
      %v5857 = vunpack.c.l.bf16 %v5654
      %v5858 = vunpack.c.h.bf16 %v5654
      %v5859 = vunpack.c.l.bf16 %v5655
      %v5860 = vunpack.c.h.bf16 %v5655
      %v5861 = vunpack.c.l.bf16 %v5656
      %v5862 = vunpack.c.h.bf16 %v5656
      %v5863 = vunpack.c.l.bf16 %v5657
      %v5864 = vunpack.c.h.bf16 %v5657
      %v5865 = vunpack.c.l.bf16 %v5658
      %v5866 = vunpack.c.h.bf16 %v5658
      %v5867 = vunpack.c.l.bf16 %v5659
      %v5868 = vunpack.c.h.bf16 %v5659
      %v5869 = vunpack.c.l.bf16 %v5660
      %v5870 = vunpack.c.h.bf16 %v5660
      %v5871 = vunpack.c.l.bf16 %v5661
      %v5872 = vunpack.c.h.bf16 %v5661
      %v5873 = vunpack.c.l.bf16 %v5662
      %v5874 = vunpack.c.h.bf16 %v5662
      %v5875 = vunpack.c.l.bf16 %v5663
      %v5876 = vunpack.c.h.bf16 %v5663
      %v5877 = vunpack.c.l.bf16 %v5664
      %v5878 = vunpack.c.h.bf16 %v5664
      %v5879 = vunpack.c.l.bf16 %v5665
      %v5880 = vunpack.c.h.bf16 %v5665
      %v5881 = vunpack.c.l.bf16 %v5666
      %v5882 = vunpack.c.h.bf16 %v5666
      %v5883 = vunpack.c.l.bf16 %v5667
      %v5884 = vunpack.c.h.bf16 %v5667
      %v5885 = vunpack.c.l.bf16 %v5668
      %v5886 = vunpack.c.h.bf16 %v5668
      %v5887 = vunpack.c.l.bf16 %v5669
      %v5888 = vunpack.c.h.bf16 %v5669
      %v5889 = vunpack.c.l.bf16 %v5670
      %v5890 = vunpack.c.h.bf16 %v5670
      %v5891 = vunpack.c.l.bf16 %v5671
      %v5892 = vunpack.c.h.bf16 %v5671
      %v5893 = vunpack.c.l.bf16 %v5672
      %v5894 = vunpack.c.h.bf16 %v5672
      %v5895 = vunpack.c.l.bf16 %v5673
      %v5896 = vunpack.c.h.bf16 %v5673
      %v5897 = vunpack.c.l.bf16 %v5674
      %v5898 = vunpack.c.h.bf16 %v5674
      %v5899 = vunpack.c.l.bf16 %v5675
      %v5900 = vunpack.c.h.bf16 %v5675
      %v5901 = vunpack.c.l.bf16 %v5676
      %v5902 = vunpack.c.h.bf16 %v5676
      %v5903 = vunpack.c.l.bf16 %v5677
      %v5904 = vunpack.c.h.bf16 %v5677
      %v5905 = vunpack.c.l.bf16 %v5678
      %v5906 = vunpack.c.h.bf16 %v5678
      %v5907 = vunpack.c.l.bf16 %v5679
      %v5908 = vunpack.c.h.bf16 %v5679
      %v5909 = vunpack.c.l.bf16 %v5680
      %v5910 = vunpack.c.h.bf16 %v5680
      %v5911 = vunpack.c.l.bf16 %v5681
      %v5912 = vunpack.c.h.bf16 %v5681
      %v5913 = vunpack.c.l.bf16 %v5682
      %v5914 = vunpack.c.h.bf16 %v5682
      %v5915 = vunpack.c.l.bf16 %v5683
      %v5916 = vunpack.c.h.bf16 %v5683
      %v5917 = vunpack.c.l.bf16 %v5684
      %v5918 = vunpack.c.h.bf16 %v5684
      %v5919 = vunpack.c.l.bf16 %v5685
      %v5920 = vunpack.c.h.bf16 %v5685
      %v5921 = vunpack.c.l.bf16 %v5686
      %v5922 = vunpack.c.h.bf16 %v5686
      %v5923 = vunpack.c.l.bf16 %v5687
      %v5924 = vunpack.c.h.bf16 %v5687
      %v5925 = vunpack.c.l.bf16 %v5688
      %v5926 = vunpack.c.h.bf16 %v5688
      %v5927 = vunpack.c.l.bf16 %v5689
      %v5928 = vunpack.c.h.bf16 %v5689
      %v5929 = vunpack.c.l.bf16 %v5690
      %v5930 = vunpack.c.h.bf16 %v5690
      %v5931 = vunpack.c.l.bf16 %v5691
      %v5932 = vunpack.c.h.bf16 %v5691
      %v5933 = vunpack.c.l.bf16 %v5692
      %v5934 = vunpack.c.h.bf16 %v5692
      %v5935 = vunpack.c.l.bf16 %v5693
      %v5936 = vunpack.c.h.bf16 %v5693
      %v5937 = vunpack.c.l.bf16 %v5694
      %v5938 = vunpack.c.h.bf16 %v5694
      %v5939 = vunpack.c.l.bf16 %v5695
      %v5940 = vunpack.c.h.bf16 %v5695
      %v5941 = vunpack.c.l.bf16 %v5696
      %v5942 = vunpack.c.h.bf16 %v5696
      %v5943 = vunpack.c.l.bf16 %v5697
      %v5944 = vunpack.c.h.bf16 %v5697
      %v5945 = vunpack.c.l.bf16 %v5698
      %v5946 = vunpack.c.h.bf16 %v5698
      %v5947 = vunpack.c.l.bf16 %v5699
      %v5948 = vunpack.c.h.bf16 %v5699
      %v5949 = vunpack.c.l.bf16 %v5700
      %v5950 = vunpack.c.h.bf16 %v5700
      %v5951 = vunpack.c.l.bf16 %v5701
      %v5952 = vunpack.c.h.bf16 %v5701
      %v5953 = vunpack.c.l.bf16 %v5702
      %v5954 = vunpack.c.h.bf16 %v5702
      %v5955 = vunpack.c.l.bf16 %v5703
      %v5956 = vunpack.c.h.bf16 %v5703
      %v5957 = vunpack.c.l.bf16 %v5704
      %v5958 = vunpack.c.h.bf16 %v5704
      %v5959 = vunpack.c.l.bf16 %v5705
      %v5960 = vunpack.c.h.bf16 %v5705
      %v5961 = vunpack.c.l.bf16 %v5706
      %v5962 = vunpack.c.h.bf16 %v5706
      %v5963 = vlaneseq
      %v5964 = vshrl.u32 %v5963, 7
      %v5965 = vsub.s32 2, %v5964
      %v5966 = vrot.slane %v4525, %v5965
      %v5967 = vlaneseq
      %v5968 = vshrl.u32 %v5967, 7
      %v5969 = vsub.s32 6, %v5968
      %v5970 = vrot.slane %v4525, %v5969
      %v5971 = vlaneseq
      %v5972 = vshrl.u32 %v5971, 7
      %v5973 = vsub.s32 2, %v5972
      %v5974 = vrot.slane %v4526, %v5973
      %v5975 = vlaneseq
      %v5976 = vshrl.u32 %v5975, 7
      %v5977 = vsub.s32 6, %v5976
      %v5978 = vrot.slane %v4526, %v5977
      %v5983 = vlaneseq
      %v5984 = vshrl.u32 %v5983, 7
      %v5985 = vsub.s32 2, %v5984
      %v5986 = vrot.slane %v5966, %v5985
      %v5987 = vlaneseq
      %v5988 = vshrl.u32 %v5987, 7
      %v5989 = vsub.s32 2, %v5988
      %v5990 = vrot.slane %v5970, %v5989
      %v5991 = vlaneseq
      %v5992 = vshrl.u32 %v5991, 7
      %v5993 = vsub.s32 2, %v5992
      %v5994 = vrot.slane %v5974, %v5993
      %v5995 = vlaneseq
      %v5996 = vshrl.u32 %v5995, 7
      %v5997 = vsub.s32 2, %v5996
      %v5998 = vrot.slane %v5978, %v5997
      %5999 = vmatprep.subr.mxu0 %v5708
      %6000 = vmatpush1.msra.mxu0 %v5707
      %6001 = vmatprep.subr.mxu0 %v5712
      %6002 = vmatpush1.msra.mxu0 %v5711
      %6003 = vmatprep.subr.mxu0 %v5716
      %6004 = vmatpush1.msra.mxu0 %v5715
      %6005 = vmatprep.subr.mxu0 %v5720
      %6006 = vmatpush1.msra.mxu0 %v5719
      %6007 = vmatprep.subr.mxu0 %v5724
      %6008 = vmatpush1.msra.mxu0 %v5723
      %6009 = vmatprep.subr.mxu0 %v5728
      %6010 = vmatpush1.msra.mxu0 %v5727
      %6011 = vmatprep.subr.mxu0 %v5732
      %6012 = vmatpush1.msra.mxu0 %v5731
      %6013 = vmatprep.subr.mxu0 %v5736
      %6014 = vmatpush1.msra.mxu0 %v5735
      %6015 = vmatprep.subr.mxu0 %v5740
      %6016 = vmatpush1.msra.mxu0 %v5739
      %6017 = vmatprep.subr.mxu0 %v5744
      %6018 = vmatpush1.msra.mxu0 %v5743
      %6019 = vmatprep.subr.mxu0 %v5748
      %6020 = vmatpush1.msra.mxu0 %v5747
      %6021 = vmatprep.subr.mxu0 %v5752
      %6022 = vmatpush1.msra.mxu0 %v5751
      %6023 = vmatprep.subr.mxu0 %v5756
      %6024 = vmatpush1.msra.mxu0 %v5755
      %6025 = vmatprep.subr.mxu0 %v5760
      %6026 = vmatpush1.msra.mxu0 %v5759
      %6027 = vmatprep.subr.mxu0 %v5764
      %6028 = vmatpush1.msra.mxu0 %v5763
      %6029 = vmatprep.subr.mxu0 %v5768
      %6030 = vmatpush1.msra.mxu0 %v5767
      %6031 = vmatprep.subr.mxu0 %v5772
      %6032 = vmatpush1.msra.mxu0 %v5771
      %6033 = vmatprep.subr.mxu0 %v5776
      %6034 = vmatpush1.msra.mxu0 %v5775
      %6035 = vmatprep.subr.mxu0 %v5780
      %6036 = vmatpush1.msra.mxu0 %v5779
      %6037 = vmatprep.subr.mxu0 %v5784
      %6038 = vmatpush1.msra.mxu0 %v5783
      %6039 = vmatprep.subr.mxu0 %v5788
      %6040 = vmatpush1.msra.mxu0 %v5787
      %6041 = vmatprep.subr.mxu0 %v5792
      %6042 = vmatpush1.msra.mxu0 %v5791
      %6043 = vmatprep.subr.mxu0 %v5796
      %6044 = vmatpush1.msra.mxu0 %v5795
      %6045 = vmatprep.subr.mxu0 %v5800
      %6046 = vmatpush1.msra.mxu0 %v5799
      %6047 = vmatprep.subr.mxu0 %v5804
      %6048 = vmatpush1.msra.mxu0 %v5803
      %6049 = vmatprep.subr.mxu0 %v5808
      %6050 = vmatpush1.msra.mxu0 %v5807
      %6051 = vmatprep.subr.mxu0 %v5812
      %6052 = vmatpush1.msra.mxu0 %v5811
      %6053 = vmatprep.subr.mxu0 %v5816
      %6054 = vmatpush1.msra.mxu0 %v5815
      %6055 = vmatprep.subr.mxu0 %v5820
      %6056 = vmatpush1.msra.mxu0 %v5819
      %6057 = vmatprep.subr.mxu0 %v5824
      %6058 = vmatpush1.msra.mxu0 %v5823
      %6059 = vmatprep.subr.mxu0 %v5828
      %6060 = vmatpush1.msra.mxu0 %v5827
      %6061 = vmatprep.subr.mxu0 %v5832
      %6062 = vmatpush1.msra.mxu0 %v5831
      %6063 = vmatprep.mubr.f32.mxu0 %v5575
      %6064 = vmatmul.mubr.f32.gmra.mrb[0].mxu0 %v5574
      %v6065 = vpop.f32.mrb[0].mxu0
      %v6066 = vadd.f32 %v5986, %v6065
      %v6067 = vpop.f32.mrb[0].mxu0
      %v6068 = vadd.f32 %v5990, %v6067
      %6069 = vdwg.mxu0
      %6070 = vmatprep.subr.mxu0 %v5836
      %6071 = vmatpush1.msra.mxu0 %v5835
      %6072 = vmatprep.subr.mxu0 %v5840
      %6073 = vmatpush1.msra.mxu0 %v5839
      %6074 = vmatprep.subr.mxu0 %v5844
      %6075 = vmatpush1.msra.mxu0 %v5843
      %6076 = vmatprep.subr.mxu0 %v5848
      %6077 = vmatpush1.msra.mxu0 %v5847
      %6078 = vmatprep.subr.mxu0 %v5852
      %6079 = vmatpush1.msra.mxu0 %v5851
      %6080 = vmatprep.subr.mxu0 %v5856
      %6081 = vmatpush1.msra.mxu0 %v5855
      %6082 = vmatprep.subr.mxu0 %v5860
      %6083 = vmatpush1.msra.mxu0 %v5859
      %6084 = vmatprep.subr.mxu0 %v5864
      %6085 = vmatpush1.msra.mxu0 %v5863
      %6086 = vmatprep.subr.mxu0 %v5868
      %6087 = vmatpush1.msra.mxu0 %v5867
      %6088 = vmatprep.subr.mxu0 %v5872
      %6089 = vmatpush1.msra.mxu0 %v5871
      %6090 = vmatprep.subr.mxu0 %v5876
      %6091 = vmatpush1.msra.mxu0 %v5875
      %6092 = vmatprep.subr.mxu0 %v5880
      %6093 = vmatpush1.msra.mxu0 %v5879
      %6094 = vmatprep.subr.mxu0 %v5884
      %6095 = vmatpush1.msra.mxu0 %v5883
      %6096 = vmatprep.subr.mxu0 %v5888
      %6097 = vmatpush1.msra.mxu0 %v5887
      %6098 = vmatprep.subr.mxu0 %v5892
      %6099 = vmatpush1.msra.mxu0 %v5891
      %6100 = vmatprep.subr.mxu0 %v5896
      %6101 = vmatpush1.msra.mxu0 %v5895
      %6102 = vmatprep.subr.mxu0 %v5900
      %6103 = vmatpush1.msra.mxu0 %v5899
      %6104 = vmatprep.subr.mxu0 %v5904
      %6105 = vmatpush1.msra.mxu0 %v5903
      %6106 = vmatprep.subr.mxu0 %v5908
      %6107 = vmatpush1.msra.mxu0 %v5907
      %6108 = vmatprep.subr.mxu0 %v5912
      %6109 = vmatpush1.msra.mxu0 %v5911
      %6110 = vmatprep.subr.mxu0 %v5916
      %6111 = vmatpush1.msra.mxu0 %v5915
      %6112 = vmatprep.subr.mxu0 %v5920
      %6113 = vmatpush1.msra.mxu0 %v5919
      %6114 = vmatprep.subr.mxu0 %v5924
      %6115 = vmatpush1.msra.mxu0 %v5923
      %6116 = vmatprep.subr.mxu0 %v5928
      %6117 = vmatpush1.msra.mxu0 %v5927
      %6118 = vmatprep.subr.mxu0 %v5932
      %6119 = vmatpush1.msra.mxu0 %v5931
      %6120 = vmatprep.subr.mxu0 %v5936
      %6121 = vmatpush1.msra.mxu0 %v5935
      %6122 = vmatprep.subr.mxu0 %v5940
      %6123 = vmatpush1.msra.mxu0 %v5939
      %6124 = vmatprep.subr.mxu0 %v5944
      %6125 = vmatpush1.msra.mxu0 %v5943
      %6126 = vmatprep.subr.mxu0 %v5948
      %6127 = vmatpush1.msra.mxu0 %v5947
      %6128 = vmatprep.subr.mxu0 %v5952
      %6129 = vmatpush1.msra.mxu0 %v5951
      %6130 = vmatprep.subr.mxu0 %v5956
      %6131 = vmatpush1.msra.mxu0 %v5955
      %6132 = vmatprep.subr.mxu0 %v5960
      %6133 = vmatpush1.msra.mxu0 %v5959
      %6134 = vmatprep.mubr.f32.mxu0 %v5577
      %6135 = vmatmul.mubr.f32.gmra.mrb[0].mxu0 %v5576
      %v6136 = vpop.f32.mrb[0].mxu0
      %v6137 = vadd.f32 %v6066, %v6136
      %v6138 = vpop.f32.mrb[0].mxu0
      %v6139 = vadd.f32 %v6068, %v6138
      %6140 = vdwg.mxu0
      %6141 = vmatprep.subr.mxu0 %v5710
      %6142 = vmatpush1.msra.mxu0 %v5709
      %6143 = vmatprep.subr.mxu0 %v5714
      %6144 = vmatpush1.msra.mxu0 %v5713
      %6145 = vmatprep.subr.mxu0 %v5718
      %6146 = vmatpush1.msra.mxu0 %v5717
      %6147 = vmatprep.subr.mxu0 %v5722
      %6148 = vmatpush1.msra.mxu0 %v5721
      %6149 = vmatprep.subr.mxu0 %v5726
      %6150 = vmatpush1.msra.mxu0 %v5725
      %6151 = vmatprep.subr.mxu0 %v5730
      %6152 = vmatpush1.msra.mxu0 %v5729
      %6153 = vmatprep.subr.mxu0 %v5734
      %6154 = vmatpush1.msra.mxu0 %v5733
      %6155 = vmatprep.subr.mxu0 %v5738
      %6156 = vmatpush1.msra.mxu0 %v5737
      %6157 = vmatprep.subr.mxu0 %v5742
      %6158 = vmatpush1.msra.mxu0 %v5741
      %6159 = vmatprep.subr.mxu0 %v5746
      %6160 = vmatpush1.msra.mxu0 %v5745
      %6161 = vmatprep.subr.mxu0 %v5750
      %6162 = vmatpush1.msra.mxu0 %v5749
      %6163 = vmatprep.subr.mxu0 %v5754
      %6164 = vmatpush1.msra.mxu0 %v5753
      %6165 = vmatprep.subr.mxu0 %v5758
      %6166 = vmatpush1.msra.mxu0 %v5757
      %6167 = vmatprep.subr.mxu0 %v5762
      %6168 = vmatpush1.msra.mxu0 %v5761
      %6169 = vmatprep.subr.mxu0 %v5766
      %6170 = vmatpush1.msra.mxu0 %v5765
      %6171 = vmatprep.subr.mxu0 %v5770
      %6172 = vmatpush1.msra.mxu0 %v5769
      %6173 = vmatprep.subr.mxu0 %v5774
      %6174 = vmatpush1.msra.mxu0 %v5773
      %6175 = vmatprep.subr.mxu0 %v5778
      %6176 = vmatpush1.msra.mxu0 %v5777
      %6177 = vmatprep.subr.mxu0 %v5782
      %6178 = vmatpush1.msra.mxu0 %v5781
      %6179 = vmatprep.subr.mxu0 %v5786
      %6180 = vmatpush1.msra.mxu0 %v5785
      %6181 = vmatprep.subr.mxu0 %v5790
      %6182 = vmatpush1.msra.mxu0 %v5789
      %6183 = vmatprep.subr.mxu0 %v5794
      %6184 = vmatpush1.msra.mxu0 %v5793
      %6185 = vmatprep.subr.mxu0 %v5798
      %6186 = vmatpush1.msra.mxu0 %v5797
      %6187 = vmatprep.subr.mxu0 %v5802
      %6188 = vmatpush1.msra.mxu0 %v5801
      %6189 = vmatprep.subr.mxu0 %v5806
      %6190 = vmatpush1.msra.mxu0 %v5805
      %6191 = vmatprep.subr.mxu0 %v5810
      %6192 = vmatpush1.msra.mxu0 %v5809
      %6193 = vmatprep.subr.mxu0 %v5814
      %6194 = vmatpush1.msra.mxu0 %v5813
      %6195 = vmatprep.subr.mxu0 %v5818
      %6196 = vmatpush1.msra.mxu0 %v5817
      %6197 = vmatprep.subr.mxu0 %v5822
      %6198 = vmatpush1.msra.mxu0 %v5821
      %6199 = vmatprep.subr.mxu0 %v5826
      %6200 = vmatpush1.msra.mxu0 %v5825
      %6201 = vmatprep.subr.mxu0 %v5830
      %6202 = vmatpush1.msra.mxu0 %v5829
      %6203 = vmatprep.subr.mxu0 %v5834
      %6204 = vmatpush1.msra.mxu0 %v5833
      %6205 = vmatprep.mubr.f32.mxu0 %v5575
      %6206 = vmatmul.mubr.f32.gmra.mrb[0].mxu0 %v5574
      %v6207 = vpop.f32.mrb[0].mxu0
      %v6208 = vadd.f32 %v5994, %v6207
      %v6209 = vpop.f32.mrb[0].mxu0
      %v6210 = vadd.f32 %v5998, %v6209
      %6211 = vdwg.mxu0
      %6212 = vmatprep.subr.mxu0 %v5838
      %6213 = vmatpush1.msra.mxu0 %v5837
      %6214 = vmatprep.subr.mxu0 %v5842
      %6215 = vmatpush1.msra.mxu0 %v5841
      %6216 = vmatprep.subr.mxu0 %v5846
      %6217 = vmatpush1.msra.mxu0 %v5845
      %6218 = vmatprep.subr.mxu0 %v5850
      %6219 = vmatpush1.msra.mxu0 %v5849
      %6220 = vmatprep.subr.mxu0 %v5854
      %6221 = vmatpush1.msra.mxu0 %v5853
      %6222 = vmatprep.subr.mxu0 %v5858
      %6223 = vmatpush1.msra.mxu0 %v5857
      %6224 = vmatprep.subr.mxu0 %v5862
      %6225 = vmatpush1.msra.mxu0 %v5861
      %6226 = vmatprep.subr.mxu0 %v5866
      %6227 = vmatpush1.msra.mxu0 %v5865
      %6228 = vmatprep.subr.mxu0 %v5870
      %6229 = vmatpush1.msra.mxu0 %v5869
      %6230 = vmatprep.subr.mxu0 %v5874
      %6231 = vmatpush1.msra.mxu0 %v5873
      %6232 = vmatprep.subr.mxu0 %v5878
      %6233 = vmatpush1.msra.mxu0 %v5877
      %6234 = vmatprep.subr.mxu0 %v5882
      %6235 = vmatpush1.msra.mxu0 %v5881
      %6236 = vmatprep.subr.mxu0 %v5886
      %6237 = vmatpush1.msra.mxu0 %v5885
      %6238 = vmatprep.subr.mxu0 %v5890
      %6239 = vmatpush1.msra.mxu0 %v5889
      %6240 = vmatprep.subr.mxu0 %v5894
      %6241 = vmatpush1.msra.mxu0 %v5893
      %6242 = vmatprep.subr.mxu0 %v5898
      %6243 = vmatpush1.msra.mxu0 %v5897
      %6244 = vmatprep.subr.mxu0 %v5902
      %6245 = vmatpush1.msra.mxu0 %v5901
      %6246 = vmatprep.subr.mxu0 %v5906
      %6247 = vmatpush1.msra.mxu0 %v5905
      %6248 = vmatprep.subr.mxu0 %v5910
      %6249 = vmatpush1.msra.mxu0 %v5909
      %6250 = vmatprep.subr.mxu0 %v5914
      %6251 = vmatpush1.msra.mxu0 %v5913
      %6252 = vmatprep.subr.mxu0 %v5918
      %6253 = vmatpush1.msra.mxu0 %v5917
      %6254 = vmatprep.subr.mxu0 %v5922
      %6255 = vmatpush1.msra.mxu0 %v5921
      %6256 = vmatprep.subr.mxu0 %v5926
      %6257 = vmatpush1.msra.mxu0 %v5925
      %6258 = vmatprep.subr.mxu0 %v5930
      %6259 = vmatpush1.msra.mxu0 %v5929
      %6260 = vmatprep.subr.mxu0 %v5934
      %6261 = vmatpush1.msra.mxu0 %v5933
      %6262 = vmatprep.subr.mxu0 %v5938
      %6263 = vmatpush1.msra.mxu0 %v5937
      %6264 = vmatprep.subr.mxu0 %v5942
      %6265 = vmatpush1.msra.mxu0 %v5941
      %6266 = vmatprep.subr.mxu0 %v5946
      %6267 = vmatpush1.msra.mxu0 %v5945
      %6268 = vmatprep.subr.mxu0 %v5950
      %6269 = vmatpush1.msra.mxu0 %v5949
      %6270 = vmatprep.subr.mxu0 %v5954
      %6271 = vmatpush1.msra.mxu0 %v5953
      %6272 = vmatprep.subr.mxu0 %v5958
      %6273 = vmatpush1.msra.mxu0 %v5957
      %6274 = vmatprep.subr.mxu0 %v5962
      %6275 = vmatpush1.msra.mxu0 %v5961
      %6276 = vmatprep.mubr.f32.mxu0 %v5577
      %6277 = vmatmul.mubr.f32.gmra.mrb[0].mxu0 %v5576
      %v6278 = vpop.f32.mrb[0].mxu0
      %v6279 = vadd.f32 %v6208, %v6278
      %v6280 = vpop.f32.mrb[0].mxu0
      %v6281 = vadd.f32 %v6210, %v6280
      %6282 = vdwg.mxu0
      %v6283 = vmax.f32 %v6137, 0.0
      %v6284 = vmax.f32 %v6139, 0.0
      %v6285 = vmax.f32 %v6279, 0.0
      %v6286 = vmax.f32 %v6281, 0.0
      %s6287 = scalar_lea.vmem %s370, 512
      %v6288 = vld [vmem:[%s6287] sm:$0xf]
      %v6289 = vld [vmem:[%s6287 + $0x4] sm:$0xf]
      %v6290 = vld [vmem:[%s6287 + $0x8] sm:$0xf]
      %v6291 = vld [vmem:[%s6287 + $0xc] sm:$0xf]
      %v6292 = vld [vmem:[%s6287 + $0x10] sm:$0xf]
      %v6293 = vld [vmem:[%s6287 + $0x14] sm:$0xf]
      %v6294 = vld [vmem:[%s6287 + $0x18] sm:$0xf]
      %v6295 = vld [vmem:[%s6287 + $0x1c] sm:$0xf]
      %v6296 = vld [vmem:[%s6287 + $0x20] sm:$0xf]
      %v6297 = vld [vmem:[%s6287 + $0x24] sm:$0xf]
      %v6298 = vld [vmem:[%s6287 + $0x28] sm:$0xf]
      %v6299 = vld [vmem:[%s6287 + $0x2c] sm:$0xf]
      %v6300 = vld [vmem:[%s6287 + $0x30] sm:$0xf]
      %v6301 = vld [vmem:[%s6287 + $0x34] sm:$0xf]
      %v6302 = vld [vmem:[%s6287 + $0x38] sm:$0xf]
      %v6303 = vld [vmem:[%s6287 + $0x3c] sm:$0xf]
      %v6304 = vld [vmem:[%s6287 + $0x40] sm:$0xf]
      %v6305 = vld [vmem:[%s6287 + $0x44] sm:$0xf]
      %v6306 = vld [vmem:[%s6287 + $0x48] sm:$0xf]
      %v6307 = vld [vmem:[%s6287 + $0x4c] sm:$0xf]
      %v6308 = vld [vmem:[%s6287 + $0x50] sm:$0xf]
      %v6309 = vld [vmem:[%s6287 + $0x54] sm:$0xf]
      %v6310 = vld [vmem:[%s6287 + $0x58] sm:$0xf]
      %v6311 = vld [vmem:[%s6287 + $0x5c] sm:$0xf]
      %v6312 = vld [vmem:[%s6287 + $0x60] sm:$0xf]
      %v6313 = vld [vmem:[%s6287 + $0x64] sm:$0xf]
      %v6314 = vld [vmem:[%s6287 + $0x68] sm:$0xf]
      %v6315 = vld [vmem:[%s6287 + $0x6c] sm:$0xf]
      %v6316 = vld [vmem:[%s6287 + $0x70] sm:$0xf]
      %v6317 = vld [vmem:[%s6287 + $0x74] sm:$0xf]
      %v6318 = vld [vmem:[%s6287 + $0x78] sm:$0xf]
      %v6319 = vld [vmem:[%s6287 + $0x7c] sm:$0xf]
      %v6320 = vld [vmem:[%s6287 + $0x80] sm:$0xf]
      %v6321 = vld [vmem:[%s6287 + $0x84] sm:$0xf]
      %v6322 = vld [vmem:[%s6287 + $0x88] sm:$0xf]
      %v6323 = vld [vmem:[%s6287 + $0x8c] sm:$0xf]
      %v6324 = vld [vmem:[%s6287 + $0x90] sm:$0xf]
      %v6325 = vld [vmem:[%s6287 + $0x94] sm:$0xf]
      %v6326 = vld [vmem:[%s6287 + $0x98] sm:$0xf]
      %v6327 = vld [vmem:[%s6287 + $0x9c] sm:$0xf]
      %v6328 = vld [vmem:[%s6287 + $0xa0] sm:$0xf]
      %v6329 = vld [vmem:[%s6287 + $0xa4] sm:$0xf]
      %v6330 = vld [vmem:[%s6287 + $0xa8] sm:$0xf]
      %v6331 = vld [vmem:[%s6287 + $0xac] sm:$0xf]
      %v6332 = vld [vmem:[%s6287 + $0xb0] sm:$0xf]
      %v6333 = vld [vmem:[%s6287 + $0xb4] sm:$0xf]
      %v6334 = vld [vmem:[%s6287 + $0xb8] sm:$0xf]
      %v6335 = vld [vmem:[%s6287 + $0xbc] sm:$0xf]
      %v6336 = vld [vmem:[%s6287 + $0xc0] sm:$0xf]
      %v6337 = vld [vmem:[%s6287 + $0xc4] sm:$0xf]
      %v6338 = vld [vmem:[%s6287 + $0xc8] sm:$0xf]
      %v6339 = vld [vmem:[%s6287 + $0xcc] sm:$0xf]
      %v6340 = vld [vmem:[%s6287 + $0xd0] sm:$0xf]
      %v6341 = vld [vmem:[%s6287 + $0xd4] sm:$0xf]
      %v6342 = vld [vmem:[%s6287 + $0xd8] sm:$0xf]
      %v6343 = vld [vmem:[%s6287 + $0xdc] sm:$0xf]
      %v6344 = vld [vmem:[%s6287 + $0xe0] sm:$0xf]
      %v6345 = vld [vmem:[%s6287 + $0xe4] sm:$0xf]
      %v6346 = vld [vmem:[%s6287 + $0xe8] sm:$0xf]
      %v6347 = vld [vmem:[%s6287 + $0xec] sm:$0xf]
      %v6348 = vld [vmem:[%s6287 + $0xf0] sm:$0xf]
      %v6349 = vld [vmem:[%s6287 + $0xf4] sm:$0xf]
      %v6350 = vld [vmem:[%s6287 + $0xf8] sm:$0xf]
      %v6351 = vld [vmem:[%s6287 + $0xfc] sm:$0xf]
      %v6352 = vunpack.c.l.bf16 %v6288
      %v6353 = vunpack.c.l.bf16 %v6289
      %v6354 = vunpack.c.l.bf16 %v6290
      %v6355 = vunpack.c.l.bf16 %v6291
      %v6356 = vunpack.c.l.bf16 %v6292
      %v6357 = vunpack.c.l.bf16 %v6293
      %v6358 = vunpack.c.l.bf16 %v6294
      %v6359 = vunpack.c.l.bf16 %v6295
      %v6360 = vunpack.c.l.bf16 %v6296
      %v6361 = vunpack.c.l.bf16 %v6297
      %v6362 = vunpack.c.l.bf16 %v6298
      %v6363 = vunpack.c.l.bf16 %v6299
      %v6364 = vunpack.c.l.bf16 %v6300
      %v6365 = vunpack.c.l.bf16 %v6301
      %v6366 = vunpack.c.l.bf16 %v6302
      %v6367 = vunpack.c.l.bf16 %v6303
      %v6368 = vunpack.c.l.bf16 %v6304
      %v6369 = vunpack.c.l.bf16 %v6305
      %v6370 = vunpack.c.l.bf16 %v6306
      %v6371 = vunpack.c.l.bf16 %v6307
      %v6372 = vunpack.c.l.bf16 %v6308
      %v6373 = vunpack.c.l.bf16 %v6309
      %v6374 = vunpack.c.l.bf16 %v6310
      %v6375 = vunpack.c.l.bf16 %v6311
      %v6376 = vunpack.c.l.bf16 %v6312
      %v6377 = vunpack.c.l.bf16 %v6313
      %v6378 = vunpack.c.l.bf16 %v6314
      %v6379 = vunpack.c.l.bf16 %v6315
      %v6380 = vunpack.c.l.bf16 %v6316
      %v6381 = vunpack.c.l.bf16 %v6317
      %v6382 = vunpack.c.l.bf16 %v6318
      %v6383 = vunpack.c.l.bf16 %v6319
      %v6384 = vunpack.c.l.bf16 %v6320
      %v6385 = vunpack.c.l.bf16 %v6321
      %v6386 = vunpack.c.l.bf16 %v6322
      %v6387 = vunpack.c.l.bf16 %v6323
      %v6388 = vunpack.c.l.bf16 %v6324
      %v6389 = vunpack.c.l.bf16 %v6325
      %v6390 = vunpack.c.l.bf16 %v6326
      %v6391 = vunpack.c.l.bf16 %v6327
      %v6392 = vunpack.c.l.bf16 %v6328
      %v6393 = vunpack.c.l.bf16 %v6329
      %v6394 = vunpack.c.l.bf16 %v6330
      %v6395 = vunpack.c.l.bf16 %v6331
      %v6396 = vunpack.c.l.bf16 %v6332
      %v6397 = vunpack.c.l.bf16 %v6333
      %v6398 = vunpack.c.l.bf16 %v6334
      %v6399 = vunpack.c.l.bf16 %v6335
      %v6400 = vunpack.c.l.bf16 %v6336
      %v6401 = vunpack.c.l.bf16 %v6337
      %v6402 = vunpack.c.l.bf16 %v6338
      %v6403 = vunpack.c.l.bf16 %v6339
      %v6404 = vunpack.c.l.bf16 %v6340
      %v6405 = vunpack.c.l.bf16 %v6341
      %v6406 = vunpack.c.l.bf16 %v6342
      %v6407 = vunpack.c.l.bf16 %v6343
      %v6408 = vunpack.c.l.bf16 %v6344
      %v6409 = vunpack.c.l.bf16 %v6345
      %v6410 = vunpack.c.l.bf16 %v6346
      %v6411 = vunpack.c.l.bf16 %v6347
      %v6412 = vunpack.c.l.bf16 %v6348
      %v6413 = vunpack.c.l.bf16 %v6349
      %v6414 = vunpack.c.l.bf16 %v6350
      %v6415 = vunpack.c.l.bf16 %v6351
      %v6416 = vlaneseq
      %v6417 = vshrl.u32 %v6416, 7
      %v6418 = vsub.s32 3, %v6417
      %v6419 = vrot.slane %v4525, %v6418
      %6420 = vmatprep.subr.mxu0 0.0
      %6421 = vmatpush1.msra.mxu0 %v6352
      %6422 = vmatprep.subr.mxu0 0.0
      %6423 = vmatpush1.msra.mxu0 %v6353
      %6424 = vmatprep.subr.mxu0 0.0
      %6425 = vmatpush1.msra.mxu0 %v6354
      %6426 = vmatprep.subr.mxu0 0.0
      %6427 = vmatpush1.msra.mxu0 %v6355
      %6428 = vmatprep.subr.mxu0 0.0
      %6429 = vmatpush1.msra.mxu0 %v6356
      %6430 = vmatprep.subr.mxu0 0.0
      %6431 = vmatpush1.msra.mxu0 %v6357
      %6432 = vmatprep.subr.mxu0 0.0
      %6433 = vmatpush1.msra.mxu0 %v6358
      %6434 = vmatprep.subr.mxu0 0.0
      %6435 = vmatpush1.msra.mxu0 %v6359
      %6436 = vmatprep.subr.mxu0 0.0
      %6437 = vmatpush1.msra.mxu0 %v6360
      %6438 = vmatprep.subr.mxu0 0.0
      %6439 = vmatpush1.msra.mxu0 %v6361
      %6440 = vmatprep.subr.mxu0 0.0
      %6441 = vmatpush1.msra.mxu0 %v6362
      %6442 = vmatprep.subr.mxu0 0.0
      %6443 = vmatpush1.msra.mxu0 %v6363
      %6444 = vmatprep.subr.mxu0 0.0
      %6445 = vmatpush1.msra.mxu0 %v6364
      %6446 = vmatprep.subr.mxu0 0.0
      %6447 = vmatpush1.msra.mxu0 %v6365
      %6448 = vmatprep.subr.mxu0 0.0
      %6449 = vmatpush1.msra.mxu0 %v6366
      %6450 = vmatprep.subr.mxu0 0.0
      %6451 = vmatpush1.msra.mxu0 %v6367
      %6452 = vmatprep.subr.mxu0 0.0
      %6453 = vmatpush1.msra.mxu0 %v6368
      %6454 = vmatprep.subr.mxu0 0.0
      %6455 = vmatpush1.msra.mxu0 %v6369
      %6456 = vmatprep.subr.mxu0 0.0
      %6457 = vmatpush1.msra.mxu0 %v6370
      %6458 = vmatprep.subr.mxu0 0.0
      %6459 = vmatpush1.msra.mxu0 %v6371
      %6460 = vmatprep.subr.mxu0 0.0
      %6461 = vmatpush1.msra.mxu0 %v6372
      %6462 = vmatprep.subr.mxu0 0.0
      %6463 = vmatpush1.msra.mxu0 %v6373
      %6464 = vmatprep.subr.mxu0 0.0
      %6465 = vmatpush1.msra.mxu0 %v6374
      %6466 = vmatprep.subr.mxu0 0.0
      %6467 = vmatpush1.msra.mxu0 %v6375
      %6468 = vmatprep.subr.mxu0 0.0
      %6469 = vmatpush1.msra.mxu0 %v6376
      %6470 = vmatprep.subr.mxu0 0.0
      %6471 = vmatpush1.msra.mxu0 %v6377
      %6472 = vmatprep.subr.mxu0 0.0
      %6473 = vmatpush1.msra.mxu0 %v6378
      %6474 = vmatprep.subr.mxu0 0.0
      %6475 = vmatpush1.msra.mxu0 %v6379
      %6476 = vmatprep.subr.mxu0 0.0
      %6477 = vmatpush1.msra.mxu0 %v6380
      %6478 = vmatprep.subr.mxu0 0.0
      %6479 = vmatpush1.msra.mxu0 %v6381
      %6480 = vmatprep.subr.mxu0 0.0
      %6481 = vmatpush1.msra.mxu0 %v6382
      %6482 = vmatprep.subr.mxu0 0.0
      %6483 = vmatpush1.msra.mxu0 %v6383
      %6484 = vmatprep.mubr.f32.mxu0 %v6284
      %6485 = vmatmul.mubr.f32.gmra.mrb[0].mxu0 %v6283
      %v6486 = vpop.f32.mrb[0].mxu0
      %v6487 = vadd.f32 %v6419, %v6486
      %v6488 = vpop.f32.mrb[0].mxu0
      %6489 = vdwg.mxu0
      %6490 = vmatprep.subr.mxu0 0.0
      %6491 = vmatpush1.msra.mxu0 %v6384
      %6492 = vmatprep.subr.mxu0 0.0
      %6493 = vmatpush1.msra.mxu0 %v6385
      %6494 = vmatprep.subr.mxu0 0.0
      %6495 = vmatpush1.msra.mxu0 %v6386
      %6496 = vmatprep.subr.mxu0 0.0
      %6497 = vmatpush1.msra.mxu0 %v6387
      %6498 = vmatprep.subr.mxu0 0.0
      %6499 = vmatpush1.msra.mxu0 %v6388
      %6500 = vmatprep.subr.mxu0 0.0
      %6501 = vmatpush1.msra.mxu0 %v6389
      %6502 = vmatprep.subr.mxu0 0.0
      %6503 = vmatpush1.msra.mxu0 %v6390
      %6504 = vmatprep.subr.mxu0 0.0
      %6505 = vmatpush1.msra.mxu0 %v6391
      %6506 = vmatprep.subr.mxu0 0.0
      %6507 = vmatpush1.msra.mxu0 %v6392
      %6508 = vmatprep.subr.mxu0 0.0
      %6509 = vmatpush1.msra.mxu0 %v6393
      %6510 = vmatprep.subr.mxu0 0.0
      %6511 = vmatpush1.msra.mxu0 %v6394
      %6512 = vmatprep.subr.mxu0 0.0
      %6513 = vmatpush1.msra.mxu0 %v6395
      %6514 = vmatprep.subr.mxu0 0.0
      %6515 = vmatpush1.msra.mxu0 %v6396
      %6516 = vmatprep.subr.mxu0 0.0
      %6517 = vmatpush1.msra.mxu0 %v6397
      %6518 = vmatprep.subr.mxu0 0.0
      %6519 = vmatpush1.msra.mxu0 %v6398
      %6520 = vmatprep.subr.mxu0 0.0
      %6521 = vmatpush1.msra.mxu0 %v6399
      %6522 = vmatprep.subr.mxu0 0.0
      %6523 = vmatpush1.msra.mxu0 %v6400
      %6524 = vmatprep.subr.mxu0 0.0
      %6525 = vmatpush1.msra.mxu0 %v6401
      %6526 = vmatprep.subr.mxu0 0.0
      %6527 = vmatpush1.msra.mxu0 %v6402
      %6528 = vmatprep.subr.mxu0 0.0
      %6529 = vmatpush1.msra.mxu0 %v6403
      %6530 = vmatprep.subr.mxu0 0.0
      %6531 = vmatpush1.msra.mxu0 %v6404
      %6532 = vmatprep.subr.mxu0 0.0
      %6533 = vmatpush1.msra.mxu0 %v6405
      %6534 = vmatprep.subr.mxu0 0.0
      %6535 = vmatpush1.msra.mxu0 %v6406
      %6536 = vmatprep.subr.mxu0 0.0
      %6537 = vmatpush1.msra.mxu0 %v6407
      %6538 = vmatprep.subr.mxu0 0.0
      %6539 = vmatpush1.msra.mxu0 %v6408
      %6540 = vmatprep.subr.mxu0 0.0
      %6541 = vmatpush1.msra.mxu0 %v6409
      %6542 = vmatprep.subr.mxu0 0.0
      %6543 = vmatpush1.msra.mxu0 %v6410
      %6544 = vmatprep.subr.mxu0 0.0
      %6545 = vmatpush1.msra.mxu0 %v6411
      %6546 = vmatprep.subr.mxu0 0.0
      %6547 = vmatpush1.msra.mxu0 %v6412
      %6548 = vmatprep.subr.mxu0 0.0
      %6549 = vmatpush1.msra.mxu0 %v6413
      %6550 = vmatprep.subr.mxu0 0.0
      %6551 = vmatpush1.msra.mxu0 %v6414
      %6552 = vmatprep.subr.mxu0 0.0
      %6553 = vmatpush1.msra.mxu0 %v6415
      %6554 = vmatprep.mubr.f32.mxu0 %v6286
      %6555 = vmatmul.mubr.f32.gmra.mrb[0].mxu0 %v6285
      %v6556 = vpop.f32.mrb[0].mxu0
      %v6557 = vadd.f32 %v6487, %v6556
      %v6558 = vpop.f32.mrb[0].mxu0
      %6559 = vdwg.mxu0
      %s6560 = scalar_lea.vmem %s383, 4
      %6561 = vst.msk [vmem:[%s6560] sm:$0x3] %vm2446, %v6557
      %s6562 = smul.u32 3, %s18
      %p6563 = scmp.lt.s32.totalorder %s6562, 5
      %s6564 = scalar_select %p6563, %s6562, 5
      %s6565 = smul.addr %s6564, 2
      %s6566 = scalar_lea.vmem %s7, %s6565
      // Predicated region
      $region49: #{critic_forward.1} parent=47 // pred_check
        %p6567 = pneg %p208
      $region50: #{critic_forward.1} parent=47 // pred_check_branch
        %6569 = sbr.rel (%p6567) target = $region52
      $region51: #{critic_forward.1} parent=47 // pred_region
        %s6570 = smul.u32 3, %s18
      $region52: #{critic_forward.1} parent=47 // pred_fallthru
        _
    $region48: #{critic_forward.1} parent=5 // pred_fallthru
      _
    %p6571 = scmp.le.s32.totalorder 2, %s13
    // Predicated region
    $region53: #{critic_forward.1} parent=5 // pred_check
      %p6572 = pneg %p6571
    $region54: #{critic_forward.1} parent=5 // pred_check_branch
      %6574 = sbr.rel (%p6572) target = $region56
    $region55: #{critic_forward.1} parent=5 // pred_region
      %s6575 = ssub.s32 %s13, 2
      // Predicated region
      $region57: #{critic_forward.1} parent=55 // pred_check
        %p6576 = pneg %p214
      $region58: #{critic_forward.1} parent=55 // pred_check_branch
        %6578 = sbr.rel (%p6576) target = $region60
      $region59: #{critic_forward.1} parent=55 // pred_region
        %s6579 = smul.u32 3, %s19
        %p6580 = scmp.lt.s32.totalorder %s6579, 5
        %s6581 = scalar_select %p6580, %s6579, 5
        %s6582 = smul.addr %s6581, 2
        %s6583 = scalar_lea.vmem %s7, %s6582
      $region60: #{critic_forward.1} parent=55 // pred_fallthru
        _
    $region56: #{critic_forward.1} parent=5 // pred_fallthru
      _
  $region6: #{critic_forward.1} parent=0 // loop_footer
    %s17 = sadd.s32 1, %s13
  $region7: #{critic_forward.1} parent=0 // loop_footer_branch
    %12 = sbr.rel target = $region3
  $region8: #{critic_forward.1} parent=0 // loop_exit
    _

</llo_original>
